<compile_context>
chip_gen: v5e
topology: v5e:2x2
jax: 0.10.0
libtpu: 0.0.40
codegen_flags: <defaults>
</compile_context>

<pallas_src>
import jax
import jax.numpy as jnp
from jax import lax
from jax.experimental import pallas as pl
from jax.experimental.pallas import tpu as pltpu

NUM_CLASSES = 6
F_MAP_SIZE = 196          # 14 x 14 at the target layer
CHANNEL_NUM = 32          # scaled-down stand-in for 512
TARGET_LAYER = 12         # index of the ReLU right before the final maxpool

# stage geometry: spatial size and sublane-aligned canvas pitch
S1, P1 = 28, 32           # stage 1 (conv0, conv1) at 28x28, pitch 32
S2, P2 = 14, 16           # stage 2 (conv2, conv3) at 14x14, pitch 16
CONV_IO = [(3, 16), (16, 16), (16, 32), (32, 32)]


# ----------------------------------------------------------------------------
# Pallas kernels
# ----------------------------------------------------------------------------
def _features_kernel(x_ref,
                     cw0, cb0, cw1, cb1, cw2, cb2, cw3, cb3,
                     fmap_ref, corr_ref, pool_ref,
                     ps1, ps2):
    """Whole feature stack (+ SMG correlation) for ONE image, entirely in VMEM.

    x_ref   : (1, 28, 28, 3) bf16
    cw*     : (9*Cin, Cout)  bf16   BN-scale-folded conv weights (im2col layout)
    cb*     : (1, Cout)      f32    BN shift (conv bias folded in)
    fmap_ref: (1, 14, 14, 32) f32   target-layer activation (NHWC)
    corr_ref: (1, 32, 32)     f32   SMG channel-channel correlation
    pool_ref: (1, 7, 7, 32)   bf16  post-maxpool/avgpool classifier input (NHWC)
    ps1/ps2 : VMEM f32 scratch used for the stride-2 maxpool reads
    """

    def make_canvas(x3, w_valid, pitch):
        # x3: (h, pitch_in, c) bf16 with valid cols [0, w_valid).
        # Returns ((h+3)*pitch, c) bf16 flat replicate-padded canvas:
        #   col 0 = left edge, 1..w = data, w+1 = right edge, rest finite junk;
        #   row 0 = top edge, 1..h = data, h+1 = bottom edge, h+2 = junk.
        # (newPad2d(1) == edge replication.)
        h, c = x3.shape[0], x3.shape[2]
        left = x3[:, 0:1, :]
        body = x3[:, 0:w_valid, :]
        right = x3[:, w_valid - 1:w_valid, :]
        pieces = [left, body, right]
        extra = pitch - (w_valid + 2)
        if extra > 0:
            pieces.append(jnp.broadcast_to(right, (h, extra, c)))
        rows = jnp.concatenate(pieces, axis=1)                       # (h, pitch, c)
        cv = jnp.concatenate([rows[0:1], rows, rows[h - 1:h], rows[h - 1:h]],
                             axis=0)                                 # (h+3, pitch, c)
        return cv.reshape((h + 3) * pitch, c)

    def conv_bn_relu(canvas, w_ref, b_ref, h, pitch):
        # One K = 9*Cin MXU dot: im2col built in VMEM from shifted flat views
        # (kw packed first, then kh), f32 accumulation, folded-BN bias + ReLU.
        m = h * pitch
        nk = m + 2 * pitch
        xkw = jnp.concatenate([canvas[k:k + nk] for k in range(3)], axis=-1)
        xcol = jnp.concatenate([xkw[j * pitch:j * pitch + m] for j in range(3)],
                               axis=-1)                              # (m, 9*Cin) bf16
        acc = jnp.dot(xcol, w_ref[...], preferred_element_type=jnp.float32)
        return jnp.maximum(acc + b_ref[...], 0.0)                    # (m, Cout) f32

    # ------------------ stage 1: conv0 -> conv1 -> maxpool(2x2) --------------
    x = x_ref[0]                                                     # (28, 28, 3) bf16
    y = conv_bn_relu(make_canvas(x, S1, P1), cw0, cb0, S1, P1)       # (896, 16) f32
    y = conv_bn_relu(
        make_canvas(y.astype(jnp.bfloat16).reshape(S1, P1, 16), S1, P1),
        cw1, cb1, S1, P1)                                            # (896, 16) f32
    # maxpool: H via leading-dim reshape + max (free), W via stride-2 reads
    yh = jnp.max(y.reshape(S1 // 2, 2, P1, 16), axis=1)              # (14, 32, 16) f32
    ps1[...] = yh.reshape((S1 // 2) * P1, 16)                        # (448, 16)
    m1 = (S1 // 2) * (P1 // 2)                                       # 224
    p1 = jnp.maximum(ps1[pl.ds(0, m1, stride=2), :],
                     ps1[pl.ds(1, m1, stride=2), :])                 # (224, 16) f32, pitch 16

    # ------------------ stage 2: conv2 -> conv3 (target layer) ---------------
    y = conv_bn_relu(
        make_canvas(p1.astype(jnp.bfloat16).reshape(S2, P2, 16), S2, P2),
        cw2, cb2, S2, P2)                                            # (224, 32) f32
    y = conv_bn_relu(
        make_canvas(y.astype(jnp.bfloat16).reshape(S2, P2, 32), S2, P2),
        cw3, cb3, S2, P2)                                            # (224, 32) f32

    # target-layer feature map (valid 14 columns of the pitch-16 canvas)
    fmap_ref[0] = y.reshape(S2, P2, CHANNEL_NUM)[:, :S2, :]          # (14, 14, 32) f32

    # ------------------ SMG: channel-channel Pearson correlation -------------
    # TODO(synk): SMGBlock / EMA_FM source not provided; approximated as the
    # per-sample Pearson correlation over the 196 spatial positions.
    ridx = lax.broadcasted_iota(jnp.int32, (S2 * P2, 1), 0)
    valid = (ridx % P2) < S2                                         # mask junk cols
    f = jnp.where(valid, y, 0.0)
    mu = jnp.sum(f, axis=0, keepdims=True) * (1.0 / float(F_MAP_SIZE))
    fc = jnp.where(valid, y - mu, 0.0)                               # (224, 32) f32
    cov = jnp.dot(jnp.transpose(fc).astype(jnp.bfloat16), fc.astype(jnp.bfloat16),
                  preferred_element_type=jnp.float32)                # (32, 32)
    var = jnp.sum(fc * fc, axis=0, keepdims=True)                    # (1, 32) f32
    inv = lax.rsqrt(var + 1e-8)
    corr_ref[0] = jnp.transpose(cov * inv) * inv                     # symmetric => 1 transpose

    # ------------------ final maxpool(2x2) + avgpool(7,7) == identity --------
    yh = jnp.max(y.reshape(S2 // 2, 2, P2, CHANNEL_NUM), axis=1)     # (7, 16, 32) f32
    ps2[...] = yh.reshape((S2 // 2) * P2, CHANNEL_NUM)               # (112, 32)
    m2 = (S2 // 2) * (P2 // 2)                                       # 56
    p2 = jnp.maximum(ps2[pl.ds(0, m2, stride=2), :],
                     ps2[pl.ds(1, m2, stride=2), :])                 # (56, 32) f32, pitch 8
    pool_ref[0] = p2.reshape(7, 8, CHANNEL_NUM)[:, :7, :].astype(jnp.bfloat16)


def _classifier_kernel(x_ref, w1_ref, b1_ref, w2_ref, b2_ref, w3_ref, b3_ref, o_ref):
    # Fused Linear -> ReLU -> Linear -> ReLU -> Linear.
    # TODO(synk): nn.Dropout(0.5) (training-mode stochastic masking) treated as identity.
    h = jnp.dot(x_ref[...], w1_ref[...], preferred_element_type=jnp.float32)
    h = jnp.maximum(h + b1_ref[...], 0.0)
    h = jnp.dot(h.astype(jnp.bfloat16), w2_ref[...], preferred_element_type=jnp.float32)
    h = jnp.maximum(h + b2_ref[...], 0.0)
    h = jnp.dot(h.astype(jnp.bfloat16), w3_ref[...], preferred_element_type=jnp.float32)
    o_ref[...] = h + b3_ref[...]


# ----------------------------------------------------------------------------
# Wrappers
# ----------------------------------------------------------------------------
def features_forward(x_nhwc_bf16, conv_params):
    B = x_nhwc_bf16.shape[0]
    (cw0, cb0), (cw1, cb1), (cw2, cb2), (cw3, cb3) = conv_params

    def full2d(a):   # weights/biases: whole array resident across the batch grid
        return pl.BlockSpec(a.shape, lambda b: (0, 0))

    weights = [cw0, cb0, cw1, cb1, cw2, cb2, cw3, cb3]
    in_specs = [pl.BlockSpec((1, S1, S1, 3), lambda b: (b, 0, 0, 0))]
    in_specs += [full2d(a) for a in weights]

    out_shape = (
        jax.ShapeDtypeStruct((B, S2, S2, CHANNEL_NUM), jnp.float32),   # f_map (NHWC)
        jax.ShapeDtypeStruct((B, CHANNEL_NUM, CHANNEL_NUM), jnp.float32),
        jax.ShapeDtypeStruct((B, 7, 7, CHANNEL_NUM), jnp.bfloat16),    # classifier input
    )
    out_specs = (
        pl.BlockSpec((1, S2, S2, CHANNEL_NUM), lambda b: (b, 0, 0, 0)),
        pl.BlockSpec((1, CHANNEL_NUM, CHANNEL_NUM), lambda b: (b, 0, 0)),
        pl.BlockSpec((1, 7, 7, CHANNEL_NUM), lambda b: (b, 0, 0, 0)),
    )
    return pl.pallas_call(
        _features_kernel,
        grid=(B,),
        in_specs=in_specs,
        out_specs=out_specs,
        out_shape=out_shape,
        scratch_shapes=[pltpu.VMEM(((S1 // 2) * P1, 16), jnp.float32),
                        pltpu.VMEM(((S2 // 2) * P2, CHANNEL_NUM), jnp.float32)],
        compiler_params=pltpu.CompilerParams(dimension_semantics=("parallel",)),
    )(x_nhwc_bf16, cw0, cb0, cw1, cb1, cw2, cb2, cw3, cb3)


def classifier_forward(x_bf16, fcs):
    (w1, b1), (w2, b2), (w3, b3) = fcs
    B = x_bf16.shape[0]
    return pl.pallas_call(
        _classifier_kernel,
        out_shape=jax.ShapeDtypeStruct((B, w3.shape[1]), jnp.float32),
    )(x_bf16, w1, b1, w2, b2, w3, b3)


# ----------------------------------------------------------------------------
# Model
# ----------------------------------------------------------------------------
def vgg_forward(x_nchw, params):
    B = x_nchw.shape[0]
    # NCHW (PyTorch) -> NHWC (TPU), bf16 activations
    x = jnp.transpose(x_nchw, (0, 2, 3, 1)).astype(jnp.bfloat16)

    # features[: target_layer + 1], SMG, features[target_layer + 1 :], avgpool
    # -- all inside ONE Pallas kernel (per-image grid step).
    fmap_nhwc, corre_matrix, pooled = features_forward(x, params["convs"])

    # f_map returned in NCHW like torch
    f_map = jnp.transpose(fmap_nhwc, (0, 3, 1, 2))            # (B, 32, 14, 14)

    # classifier: NHWC flatten; FC1 rows were permuted at init to match torch's
    # NCHW x.view(B, -1) ordering, so no activation transpose is needed.
    xc = pooled.reshape(B, 7 * 7 * CHANNEL_NUM)
    logits = classifier_forward(xc, params["fcs"])
    return logits, f_map, corre_matrix


# ----------------------------------------------------------------------------
# Deterministic parameter init (synthetic, mirrors the module's init scheme)
# ----------------------------------------------------------------------------
def init_params(key):
    fc_io = [(CHANNEL_NUM * 7 * 7, 256), (256, 64), (64, NUM_CLASSES)]
    keys = jax.random.split(key, 3 * len(CONV_IO) + len(fc_io))
    k = 0
    convs, fcs = [], []
    eps = 1e-5
    for cin, cout in CONV_IO:
        std = (2.0 / (cout * 9)) ** 0.5                          # kaiming_normal_, fan_out, relu
        w = std * jax.random.normal(keys[k], (cout, cin, 3, 3), jnp.float32); k += 1
        gamma = 1.0 + 0.1 * jax.random.normal(keys[k], (cout,), jnp.float32); k += 1
        beta = 0.1 * jax.random.normal(keys[k], (cout,), jnp.float32); k += 1
        # TODO(synk): BatchNorm2d in inference mode (running_mean=0, running_var=1);
        # scale folded into the conv weights, shift into the bias.  Conv bias = 0.
        scale = gamma / jnp.sqrt(1.0 + eps)
        # (Cout, Cin, 3, 3) -> (kh, kw, Cin, Cout) -> (9*Cin, Cout); matches the
        # in-kernel im2col K order (kh outer, kw middle, cin inner).
        w_mat = jnp.transpose(w, (2, 3, 1, 0)).reshape(9 * cin, cout)
        convs.append(((w_mat * scale[None, :]).astype(jnp.bfloat16),
                      beta.reshape(1, cout).astype(jnp.float32)))
    for li, (fin, fout) in enumerate(fc_io):
        w = 0.01 * jax.random.normal(keys[k], (fout, fin), jnp.float32); k += 1   # normal(0, 0.01)
        wt = jnp.transpose(w)                                    # (fin, fout)
        if li == 0:
            # Classifier input is the NHWC-flattened pooled activation
            # ((h*7 + w)*C + c); permute FC1 rows from torch's NCHW flatten
            # order (c*49 + h*7 + w) so semantics match without a transpose.
            idx = jnp.arange(fin)
            torch_idx = (idx % CHANNEL_NUM) * 49 + idx // CHANNEL_NUM
            wt = wt[torch_idx]
        fcs.append((wt.astype(jnp.bfloat16), jnp.zeros((1, fout), jnp.float32)))
    return {"convs": convs, "fcs": fcs}


if __name__ == "__main__":
    key = jax.random.PRNGKey(0)
    pkey, xkey = jax.random.split(key)
    params = init_params(pkey)
    x = jax.random.normal(xkey, (2, 3, 28, 28), dtype=jnp.float32)   # NCHW like PyTorch

    fwd = jax.jit(vgg_forward)
    logits, f_map, corr = fwd(x, params)
    jax.block_until_ready((logits, f_map, corr))

    assert logits.shape == (2, NUM_CLASSES)
    assert f_map.shape == (2, CHANNEL_NUM, 14, 14)            # 14*14 == F_MAP_SIZE == 196
    assert corr.shape == (2, CHANNEL_NUM, CHANNEL_NUM)
    assert bool(jnp.all(jnp.isfinite(logits)))
    assert bool(jnp.all(jnp.isfinite(f_map)))
    assert bool(jnp.all(jnp.isfinite(corr)))
    print("KERNEL_OK")
</pallas_src>

<mosaic_0001>
module attributes {stable_mosaic.version = 11 : i64} {
  func.func @_features_kernel(%arg0: i32, %arg1: memref<1x28x28x3xbf16, #tpu.memory_space<vmem>>, %arg2: memref<27x16xbf16, #tpu.memory_space<vmem>>, %arg3: memref<1x16xf32, #tpu.memory_space<vmem>>, %arg4: memref<144x16xbf16, #tpu.memory_space<vmem>>, %arg5: memref<1x16xf32, #tpu.memory_space<vmem>>, %arg6: memref<144x32xbf16, #tpu.memory_space<vmem>>, %arg7: memref<1x32xf32, #tpu.memory_space<vmem>>, %arg8: memref<288x32xbf16, #tpu.memory_space<vmem>>, %arg9: memref<1x32xf32, #tpu.memory_space<vmem>>, %arg10: memref<1x14x14x32xf32, #tpu.memory_space<vmem>>, %arg11: memref<1x32x32xf32, #tpu.memory_space<vmem>>, %arg12: memref<1x7x7x32xbf16, #tpu.memory_space<vmem>>, %arg13: memref<448x16xf32, #tpu.memory_space<vmem>>, %arg14: memref<112x32xf32, #tpu.memory_space<vmem>>) attributes {dimension_semantics = [#tpu.dimension_semantics<parallel>], iteration_bounds = array<i64: 2>, scalar_prefetch = 0 : i64, scratch_operands = 2 : i64, tpu.core_type = #tpu.core_type<tc>, window_params = [{transform_indices = @transform_0, window_bounds = array<i64: 1, 28, 28, 3>}, {pipeline_mode = #tpu.pipeline_mode<synchronous>, transform_indices = @transform_1, window_bounds = array<i64: 27, 16>}, {pipeline_mode = #tpu.pipeline_mode<synchronous>, transform_indices = @transform_2, window_bounds = array<i64: 1, 16>}, {pipeline_mode = #tpu.pipeline_mode<synchronous>, transform_indices = @transform_3, window_bounds = array<i64: 144, 16>}, {pipeline_mode = #tpu.pipeline_mode<synchronous>, transform_indices = @transform_4, window_bounds = array<i64: 1, 16>}, {pipeline_mode = #tpu.pipeline_mode<synchronous>, transform_indices = @transform_5, window_bounds = array<i64: 144, 32>}, {pipeline_mode = #tpu.pipeline_mode<synchronous>, transform_indices = @transform_6, window_bounds = array<i64: 1, 32>}, {pipeline_mode = #tpu.pipeline_mode<synchronous>, transform_indices = @transform_7, window_bounds = array<i64: 288, 32>}, {pipeline_mode = #tpu.pipeline_mode<synchronous>, transform_indices = @transform_8, window_bounds = array<i64: 1, 32>}, {transform_indices = @transform_9, window_bounds = array<i64: 1, 14, 14, 32>}, {transform_indices = @transform_10, window_bounds = array<i64: 1, 32, 32>}, {transform_indices = @transform_11, window_bounds = array<i64: 1, 7, 7, 32>}]} {
    %c0 = arith.constant 0 : index
    %c0_0 = arith.constant 0 : index
    %c0_1 = arith.constant 0 : index
    %c0_2 = arith.constant 0 : index
    %0 = vector.load %arg1[%c0, %c0_0, %c0_1, %c0_2] : memref<1x28x28x3xbf16, #tpu.memory_space<vmem>>, vector<1x28x28x3xbf16>
    %1 = vector.shape_cast %0 : vector<1x28x28x3xbf16> to vector<28x28x3xbf16>
    %2 = vector.extract_strided_slice %1 {offsets = [0, 0, 0], sizes = [28, 1, 3], strides = [1, 1, 1]} : vector<28x28x3xbf16> to vector<28x1x3xbf16>
    %3 = vector.extract_strided_slice %1 {offsets = [0, 27, 0], sizes = [28, 1, 3], strides = [1, 1, 1]} : vector<28x28x3xbf16> to vector<28x1x3xbf16>
    %4 = vector.shape_cast %3 : vector<28x1x3xbf16> to vector<28x1x3xbf16>
    %5 = vector.broadcast %4 : vector<28x1x3xbf16> to vector<28x2x3xbf16>
    %6 = tpu.concatenate %2, %1, %3, %5 in 1 : vector<28x1x3xbf16>, vector<28x28x3xbf16>, vector<28x1x3xbf16>, vector<28x2x3xbf16> -> vector<28x32x3xbf16>
    %7 = vector.extract_strided_slice %6 {offsets = [0, 0, 0], sizes = [1, 32, 3], strides = [1, 1, 1]} : vector<28x32x3xbf16> to vector<1x32x3xbf16>
    %8 = vector.extract_strided_slice %6 {offsets = [27, 0, 0], sizes = [1, 32, 3], strides = [1, 1, 1]} : vector<28x32x3xbf16> to vector<1x32x3xbf16>
    %9 = vector.extract_strided_slice %6 {offsets = [27, 0, 0], sizes = [1, 32, 3], strides = [1, 1, 1]} : vector<28x32x3xbf16> to vector<1x32x3xbf16>
    %10 = tpu.concatenate %7, %6, %8, %9 in 0 : vector<1x32x3xbf16>, vector<28x32x3xbf16>, vector<1x32x3xbf16>, vector<1x32x3xbf16> -> vector<31x32x3xbf16>
    %11 = vector.shape_cast %10 : vector<31x32x3xbf16> to vector<992x3xbf16>
    %12 = vector.extract_strided_slice %11 {offsets = [0, 0], sizes = [960, 3], strides = [1, 1]} : vector<992x3xbf16> to vector<960x3xbf16>
    %13 = vector.extract_strided_slice %11 {offsets = [1, 0], sizes = [960, 3], strides = [1, 1]} : vector<992x3xbf16> to vector<960x3xbf16>
    %14 = vector.extract_strided_slice %11 {offsets = [2, 0], sizes = [960, 3], strides = [1, 1]} : vector<992x3xbf16> to vector<960x3xbf16>
    %15 = tpu.concatenate %12, %13, %14 in 1 : vector<960x3xbf16>, vector<960x3xbf16>, vector<960x3xbf16> -> vector<960x9xbf16>
    %16 = vector.extract_strided_slice %15 {offsets = [0, 0], sizes = [896, 9], strides = [1, 1]} : vector<960x9xbf16> to vector<896x9xbf16>
    %17 = vector.extract_strided_slice %15 {offsets = [32, 0], sizes = [896, 9], strides = [1, 1]} : vector<960x9xbf16> to vector<896x9xbf16>
    %18 = vector.extract_strided_slice %15 {offsets = [64, 0], sizes = [896, 9], strides = [1, 1]} : vector<960x9xbf16> to vector<896x9xbf16>
    %19 = tpu.concatenate %16, %17, %18 in 1 : vector<896x9xbf16>, vector<896x9xbf16>, vector<896x9xbf16> -> vector<896x27xbf16>
    %c0_3 = arith.constant 0 : index
    %c0_4 = arith.constant 0 : index
    %20 = vector.load %arg2[%c0_3, %c0_4] : memref<27x16xbf16, #tpu.memory_space<vmem>>, vector<27x16xbf16>
    %cst = arith.constant dense<0.000000e+00> : vector<896x16xf32>
    %21 = tpu.matmul %19, %20, %cst {dimension_numbers = #tpu.dot_dimension_numbers<[1], [0], [0], [1], [0, 0, 1, 1], [], []>} : vector<896x27xbf16>, vector<27x16xbf16>, vector<896x16xf32> -> vector<896x16xf32>
    %c0_5 = arith.constant 0 : index
    %c0_6 = arith.constant 0 : index
    %22 = vector.load %arg3[%c0_5, %c0_6] : memref<1x16xf32, #tpu.memory_space<vmem>>, vector<1x16xf32>
    %23 = vector.broadcast %22 : vector<1x16xf32> to vector<896x16xf32>
    %24 = arith.addf %21, %23 : vector<896x16xf32>
    %cst_7 = arith.constant 0.000000e+00 : f32
    %25 = vector.broadcast %cst_7 : f32 to vector<896x16xf32>
    %26 = arith.maximumf %24, %25 : vector<896x16xf32>
    %27 = arith.truncf %26 : vector<896x16xf32> to vector<896x16xbf16>
    %28 = vector.shape_cast %27 : vector<896x16xbf16> to vector<28x32x16xbf16>
    %29 = vector.extract_strided_slice %28 {offsets = [0, 0, 0], sizes = [28, 1, 16], strides = [1, 1, 1]} : vector<28x32x16xbf16> to vector<28x1x16xbf16>
    %30 = vector.extract_strided_slice %28 {offsets = [0, 0, 0], sizes = [28, 28, 16], strides = [1, 1, 1]} : vector<28x32x16xbf16> to vector<28x28x16xbf16>
    %31 = vector.extract_strided_slice %28 {offsets = [0, 27, 0], sizes = [28, 1, 16], strides = [1, 1, 1]} : vector<28x32x16xbf16> to vector<28x1x16xbf16>
    %32 = vector.shape_cast %31 : vector<28x1x16xbf16> to vector<28x1x16xbf16>
    %33 = vector.broadcast %32 : vector<28x1x16xbf16> to vector<28x2x16xbf16>
    %34 = tpu.concatenate %29, %30, %31, %33 in 1 : vector<28x1x16xbf16>, vector<28x28x16xbf16>, vector<28x1x16xbf16>, vector<28x2x16xbf16> -> vector<28x32x16xbf16>
    %35 = vector.extract_strided_slice %34 {offsets = [0, 0, 0], sizes = [1, 32, 16], strides = [1, 1, 1]} : vector<28x32x16xbf16> to vector<1x32x16xbf16>
    %36 = vector.extract_strided_slice %34 {offsets = [27, 0, 0], sizes = [1, 32, 16], strides = [1, 1, 1]} : vector<28x32x16xbf16> to vector<1x32x16xbf16>
    %37 = vector.extract_strided_slice %34 {offsets = [27, 0, 0], sizes = [1, 32, 16], strides = [1, 1, 1]} : vector<28x32x16xbf16> to vector<1x32x16xbf16>
    %38 = tpu.concatenate %35, %34, %36, %37 in 0 : vector<1x32x16xbf16>, vector<28x32x16xbf16>, vector<1x32x16xbf16>, vector<1x32x16xbf16> -> vector<31x32x16xbf16>
    %39 = vector.shape_cast %38 : vector<31x32x16xbf16> to vector<992x16xbf16>
    %40 = vector.extract_strided_slice %39 {offsets = [0, 0], sizes = [960, 16], strides = [1, 1]} : vector<992x16xbf16> to vector<960x16xbf16>
    %41 = vector.extract_strided_slice %39 {offsets = [1, 0], sizes = [960, 16], strides = [1, 1]} : vector<992x16xbf16> to vector<960x16xbf16>
    %42 = vector.extract_strided_slice %39 {offsets = [2, 0], sizes = [960, 16], strides = [1, 1]} : vector<992x16xbf16> to vector<960x16xbf16>
    %43 = tpu.concatenate %40, %41, %42 in 1 : vector<960x16xbf16>, vector<960x16xbf16>, vector<960x16xbf16> -> vector<960x48xbf16>
    %44 = vector.extract_strided_slice %43 {offsets = [0, 0], sizes = [896, 48], strides = [1, 1]} : vector<960x48xbf16> to vector<896x48xbf16>
    %45 = vector.extract_strided_slice %43 {offsets = [32, 0], sizes = [896, 48], strides = [1, 1]} : vector<960x48xbf16> to vector<896x48xbf16>
    %46 = vector.extract_strided_slice %43 {offsets = [64, 0], sizes = [896, 48], strides = [1, 1]} : vector<960x48xbf16> to vector<896x48xbf16>
    %47 = tpu.concatenate %44, %45, %46 in 1 : vector<896x48xbf16>, vector<896x48xbf16>, vector<896x48xbf16> -> vector<896x144xbf16>
    %c0_8 = arith.constant 0 : index
    %c0_9 = arith.constant 0 : index
    %48 = vector.load %arg4[%c0_8, %c0_9] : memref<144x16xbf16, #tpu.memory_space<vmem>>, vector<144x16xbf16>
    %cst_10 = arith.constant dense<0.000000e+00> : vector<896x16xf32>
    %49 = tpu.matmul %47, %48, %cst_10 {dimension_numbers = #tpu.dot_dimension_numbers<[1], [0], [0], [1], [0, 0, 1, 1], [], []>} : vector<896x144xbf16>, vector<144x16xbf16>, vector<896x16xf32> -> vector<896x16xf32>
    %c0_11 = arith.constant 0 : index
    %c0_12 = arith.constant 0 : index
    %50 = vector.load %arg5[%c0_11, %c0_12] : memref<1x16xf32, #tpu.memory_space<vmem>>, vector<1x16xf32>
    %51 = vector.broadcast %50 : vector<1x16xf32> to vector<896x16xf32>
    %52 = arith.addf %49, %51 : vector<896x16xf32>
    %cst_13 = arith.constant 0.000000e+00 : f32
    %53 = vector.broadcast %cst_13 : f32 to vector<896x16xf32>
    %54 = arith.maximumf %52, %53 : vector<896x16xf32>
    %55 = vector.shape_cast %54 : vector<896x16xf32> to vector<14x2x32x16xf32>
    %cst_14 = arith.constant dense<0xFF800000> : vector<14x32x16xf32>
    %56 = vector.multi_reduction <maximumf>, %55, %cst_14 [1] : vector<14x2x32x16xf32> to vector<14x32x16xf32>
    %57 = vector.shape_cast %56 : vector<14x32x16xf32> to vector<448x16xf32>
    %c0_15 = arith.constant 0 : index
    %c0_16 = arith.constant 0 : index
    %58 = vector.load %arg13[%c0_15, %c0_16] : memref<448x16xf32, #tpu.memory_space<vmem>>, vector<448x16xf32>
    tpu.vector_store %arg13[%c0_15, %c0_16], %57 {strides = array<i32>} : memref<448x16xf32, #tpu.memory_space<vmem>>, vector<448x16xf32>,
    %c0_17 = arith.constant 0 : index
    %c0_18 = arith.constant 0 : index
    %59 = tpu.strided_load %arg13[%c0_17, %c0_18] {strides = array<i32: 2, 1>} : memref<448x16xf32, #tpu.memory_space<vmem>>, vector<224x16xf32>
    %c1 = arith.constant 1 : index
    %c0_19 = arith.constant 0 : index
    %60 = tpu.strided_load %arg13[%c1, %c0_19] {strides = array<i32: 2, 1>} : memref<448x16xf32, #tpu.memory_space<vmem>>, vector<224x16xf32>
    %61 = arith.maximumf %59, %60 : vector<224x16xf32>
    %62 = arith.truncf %61 : vector<224x16xf32> to vector<224x16xbf16>
    %63 = vector.shape_cast %62 : vector<224x16xbf16> to vector<14x16x16xbf16>
    %64 = vector.extract_strided_slice %63 {offsets = [0, 0, 0], sizes = [14, 1, 16], strides = [1, 1, 1]} : vector<14x16x16xbf16> to vector<14x1x16xbf16>
    %65 = vector.extract_strided_slice %63 {offsets = [0, 0, 0], sizes = [14, 14, 16], strides = [1, 1, 1]} : vector<14x16x16xbf16> to vector<14x14x16xbf16>
    %66 = vector.extract_strided_slice %63 {offsets = [0, 13, 0], sizes = [14, 1, 16], strides = [1, 1, 1]} : vector<14x16x16xbf16> to vector<14x1x16xbf16>
    %67 = tpu.concatenate %64, %65, %66 in 1 : vector<14x1x16xbf16>, vector<14x14x16xbf16>, vector<14x1x16xbf16> -> vector<14x16x16xbf16>
    %68 = vector.extract_strided_slice %67 {offsets = [0, 0, 0], sizes = [1, 16, 16], strides = [1, 1, 1]} : vector<14x16x16xbf16> to vector<1x16x16xbf16>
    %69 = vector.extract_strided_slice %67 {offsets = [13, 0, 0], sizes = [1, 16, 16], strides = [1, 1, 1]} : vector<14x16x16xbf16> to vector<1x16x16xbf16>
    %70 = vector.extract_strided_slice %67 {offsets = [13, 0, 0], sizes = [1, 16, 16], strides = [1, 1, 1]} : vector<14x16x16xbf16> to vector<1x16x16xbf16>
    %71 = tpu.concatenate %68, %67, %69, %70 in 0 : vector<1x16x16xbf16>, vector<14x16x16xbf16>, vector<1x16x16xbf16>, vector<1x16x16xbf16> -> vector<17x16x16xbf16>
    %72 = vector.shape_cast %71 : vector<17x16x16xbf16> to vector<272x16xbf16>
    %73 = vector.extract_strided_slice %72 {offsets = [0, 0], sizes = [256, 16], strides = [1, 1]} : vector<272x16xbf16> to vector<256x16xbf16>
    %74 = vector.extract_strided_slice %72 {offsets = [1, 0], sizes = [256, 16], strides = [1, 1]} : vector<272x16xbf16> to vector<256x16xbf16>
    %75 = vector.extract_strided_slice %72 {offsets = [2, 0], sizes = [256, 16], strides = [1, 1]} : vector<272x16xbf16> to vector<256x16xbf16>
    %76 = tpu.concatenate %73, %74, %75 in 1 : vector<256x16xbf16>, vector<256x16xbf16>, vector<256x16xbf16> -> vector<256x48xbf16>
    %77 = vector.extract_strided_slice %76 {offsets = [0, 0], sizes = [224, 48], strides = [1, 1]} : vector<256x48xbf16> to vector<224x48xbf16>
    %78 = vector.extract_strided_slice %76 {offsets = [16, 0], sizes = [224, 48], strides = [1, 1]} : vector<256x48xbf16> to vector<224x48xbf16>
    %79 = vector.extract_strided_slice %76 {offsets = [32, 0], sizes = [224, 48], strides = [1, 1]} : vector<256x48xbf16> to vector<224x48xbf16>
    %80 = tpu.concatenate %77, %78, %79 in 1 : vector<224x48xbf16>, vector<224x48xbf16>, vector<224x48xbf16> -> vector<224x144xbf16>
    %c0_20 = arith.constant 0 : index
    %c0_21 = arith.constant 0 : index
    %81 = vector.load %arg6[%c0_20, %c0_21] : memref<144x32xbf16, #tpu.memory_space<vmem>>, vector<144x32xbf16>
    %cst_22 = arith.constant dense<0.000000e+00> : vector<224x32xf32>
    %82 = tpu.matmul %80, %81, %cst_22 {dimension_numbers = #tpu.dot_dimension_numbers<[1], [0], [0], [1], [0, 0, 1, 1], [], []>} : vector<224x144xbf16>, vector<144x32xbf16>, vector<224x32xf32> -> vector<224x32xf32>
    %c0_23 = arith.constant 0 : index
    %c0_24 = arith.constant 0 : index
    %83 = vector.load %arg7[%c0_23, %c0_24] : memref<1x32xf32, #tpu.memory_space<vmem>>, vector<1x32xf32>
    %84 = vector.broadcast %83 : vector<1x32xf32> to vector<224x32xf32>
    %85 = arith.addf %82, %84 : vector<224x32xf32>
    %cst_25 = arith.constant 0.000000e+00 : f32
    %86 = vector.broadcast %cst_25 : f32 to vector<224x32xf32>
    %87 = arith.maximumf %85, %86 : vector<224x32xf32>
    %88 = arith.truncf %87 : vector<224x32xf32> to vector<224x32xbf16>
    %89 = vector.shape_cast %88 : vector<224x32xbf16> to vector<14x16x32xbf16>
    %90 = vector.extract_strided_slice %89 {offsets = [0, 0, 0], sizes = [14, 1, 32], strides = [1, 1, 1]} : vector<14x16x32xbf16> to vector<14x1x32xbf16>
    %91 = vector.extract_strided_slice %89 {offsets = [0, 0, 0], sizes = [14, 14, 32], strides = [1, 1, 1]} : vector<14x16x32xbf16> to vector<14x14x32xbf16>
    %92 = vector.extract_strided_slice %89 {offsets = [0, 13, 0], sizes = [14, 1, 32], strides = [1, 1, 1]} : vector<14x16x32xbf16> to vector<14x1x32xbf16>
    %93 = tpu.concatenate %90, %91, %92 in 1 : vector<14x1x32xbf16>, vector<14x14x32xbf16>, vector<14x1x32xbf16> -> vector<14x16x32xbf16>
    %94 = vector.extract_strided_slice %93 {offsets = [0, 0, 0], sizes = [1, 16, 32], strides = [1, 1, 1]} : vector<14x16x32xbf16> to vector<1x16x32xbf16>
    %95 = vector.extract_strided_slice %93 {offsets = [13, 0, 0], sizes = [1, 16, 32], strides = [1, 1, 1]} : vector<14x16x32xbf16> to vector<1x16x32xbf16>
    %96 = vector.extract_strided_slice %93 {offsets = [13, 0, 0], sizes = [1, 16, 32], strides = [1, 1, 1]} : vector<14x16x32xbf16> to vector<1x16x32xbf16>
    %97 = tpu.concatenate %94, %93, %95, %96 in 0 : vector<1x16x32xbf16>, vector<14x16x32xbf16>, vector<1x16x32xbf16>, vector<1x16x32xbf16> -> vector<17x16x32xbf16>
    %98 = vector.shape_cast %97 : vector<17x16x32xbf16> to vector<272x32xbf16>
    %99 = vector.extract_strided_slice %98 {offsets = [0, 0], sizes = [256, 32], strides = [1, 1]} : vector<272x32xbf16> to vector<256x32xbf16>
    %100 = vector.extract_strided_slice %98 {offsets = [1, 0], sizes = [256, 32], strides = [1, 1]} : vector<272x32xbf16> to vector<256x32xbf16>
    %101 = vector.extract_strided_slice %98 {offsets = [2, 0], sizes = [256, 32], strides = [1, 1]} : vector<272x32xbf16> to vector<256x32xbf16>
    %102 = tpu.concatenate %99, %100, %101 in 1 : vector<256x32xbf16>, vector<256x32xbf16>, vector<256x32xbf16> -> vector<256x96xbf16>
    %103 = vector.extract_strided_slice %102 {offsets = [0, 0], sizes = [224, 96], strides = [1, 1]} : vector<256x96xbf16> to vector<224x96xbf16>
    %104 = vector.extract_strided_slice %102 {offsets = [16, 0], sizes = [224, 96], strides = [1, 1]} : vector<256x96xbf16> to vector<224x96xbf16>
    %105 = vector.extract_strided_slice %102 {offsets = [32, 0], sizes = [224, 96], strides = [1, 1]} : vector<256x96xbf16> to vector<224x96xbf16>
    %106 = tpu.concatenate %103, %104, %105 in 1 : vector<224x96xbf16>, vector<224x96xbf16>, vector<224x96xbf16> -> vector<224x288xbf16>
    %c0_26 = arith.constant 0 : index
    %c0_27 = arith.constant 0 : index
    %107 = vector.load %arg8[%c0_26, %c0_27] : memref<288x32xbf16, #tpu.memory_space<vmem>>, vector<288x32xbf16>
    %cst_28 = arith.constant dense<0.000000e+00> : vector<224x32xf32>
    %108 = tpu.matmul %106, %107, %cst_28 {dimension_numbers = #tpu.dot_dimension_numbers<[1], [0], [0], [1], [0, 0, 1, 1], [], []>} : vector<224x288xbf16>, vector<288x32xbf16>, vector<224x32xf32> -> vector<224x32xf32>
    %c0_29 = arith.constant 0 : index
    %c0_30 = arith.constant 0 : index
    %109 = vector.load %arg9[%c0_29, %c0_30] : memref<1x32xf32, #tpu.memory_space<vmem>>, vector<1x32xf32>
    %110 = vector.broadcast %109 : vector<1x32xf32> to vector<224x32xf32>
    %111 = arith.addf %108, %110 : vector<224x32xf32>
    %cst_31 = arith.constant 0.000000e+00 : f32
    %112 = vector.broadcast %cst_31 : f32 to vector<224x32xf32>
    %113 = arith.maximumf %111, %112 : vector<224x32xf32>
    %114 = vector.shape_cast %113 : vector<224x32xf32> to vector<14x16x32xf32>
    %115 = vector.extract_strided_slice %114 {offsets = [0, 0, 0], sizes = [14, 14, 32], strides = [1, 1, 1]} : vector<14x16x32xf32> to vector<14x14x32xf32>
    %c0_32 = arith.constant 0 : index
    %c0_33 = arith.constant 0 : index
    %c0_34 = arith.constant 0 : index
    %c0_35 = arith.constant 0 : index
    %116 = vector.load %arg10[%c0_32, %c0_33, %c0_34, %c0_35] : memref<1x14x14x32xf32, #tpu.memory_space<vmem>>, vector<1x14x14x32xf32>
    %117 = vector.shape_cast %116 : vector<1x14x14x32xf32> to vector<14x14x32xf32>
    %118 = vector.shape_cast %115 : vector<14x14x32xf32> to vector<1x14x14x32xf32>
    tpu.vector_store %arg10[%c0_32, %c0_33, %c0_34, %c0_35], %118 {strides = array<i32>} : memref<1x14x14x32xf32, #tpu.memory_space<vmem>>, vector<1x14x14x32xf32>,
    %119 = tpu.iota {dimensions = array<i32: 0>} : vector<224x1xi32>
    %c16_i32 = arith.constant 16 : i32
    %c0_i32 = arith.constant 0 : i32
    %120 = arith.cmpi eq, %c16_i32, %c0_i32 : i32
    %c1_i32 = arith.constant 1 : i32
    %121 = arith.select %120, %c1_i32, %c16_i32 : i32
    %122 = vector.broadcast %121 : i32 to vector<224x1xi32>
    %123 = arith.remsi %119, %122 : vector<224x1xi32>
    %c0_i32_36 = arith.constant 0 : i32
    %124 = vector.broadcast %c0_i32_36 : i32 to vector<224x1xi32>
    %125 = arith.cmpi ne, %123, %124 : vector<224x1xi32>
    %c0_i32_37 = arith.constant 0 : i32
    %126 = vector.broadcast %c0_i32_37 : i32 to vector<224x1xi32>
    %127 = arith.cmpi slt, %123, %126 : vector<224x1xi32>
    %c0_i32_38 = arith.constant 0 : i32
    %128 = arith.cmpi slt, %121, %c0_i32_38 : i32
    %129 = vector.broadcast %128 : i1 to vector<224x1xi1>
    %130 = vector.broadcast %129 : vector<224x1xi1> to vector<224x1xi1>
    %131 = arith.xori %127, %130 : vector<224x1xi1>
    %132 = arith.andi %131, %125 : vector<224x1xi1>
    %133 = vector.broadcast %121 : i32 to vector<224x1xi32>
    %134 = arith.addi %123, %133 : vector<224x1xi32>
    %135 = arith.select %132, %134, %123 : vector<224x1xi1>, vector<224x1xi32>
    %c14_i32 = arith.constant 14 : i32
    %136 = vector.broadcast %c14_i32 : i32 to vector<224x1xi32>
    %137 = arith.cmpi slt, %135, %136 : vector<224x1xi32>
    %cst_39 = arith.constant 0.000000e+00 : f32
    %138 = vector.shape_cast %137 : vector<224x1xi1> to vector<224x1xi1>
    %139 = vector.broadcast %138 : vector<224x1xi1> to vector<224x32xi1>
    %140 = vector.broadcast %cst_39 : f32 to vector<224x32xf32>
    %141 = arith.select %139, %113, %140 : vector<224x32xi1>, vector<224x32xf32>
    %cst_40 = arith.constant dense<0.000000e+00> : vector<32xf32>
    %142 = vector.multi_reduction <add>, %141, %cst_40 [0] : vector<224x32xf32> to vector<32xf32>
    %143 = vector.shape_cast %142 : vector<32xf32> to vector<1x32xf32>
    %cst_41 = arith.constant 0.00510204071 : f32
    %144 = vector.broadcast %cst_41 : f32 to vector<1x32xf32>
    %145 = arith.mulf %143, %144 : vector<1x32xf32>
    %146 = vector.broadcast %145 : vector<1x32xf32> to vector<224x32xf32>
    %147 = arith.subf %113, %146 : vector<224x32xf32>
    %cst_42 = arith.constant 0.000000e+00 : f32
    %148 = vector.shape_cast %137 : vector<224x1xi1> to vector<224x1xi1>
    %149 = vector.broadcast %148 : vector<224x1xi1> to vector<224x32xi1>
    %150 = vector.broadcast %cst_42 : f32 to vector<224x32xf32>
    %151 = arith.select %149, %147, %150 : vector<224x32xi1>, vector<224x32xf32>
    %152 = tpu.transpose %151, [1, 0] : vector<224x32xf32> -> vector<32x224xf32>
    %153 = arith.truncf %152 : vector<32x224xf32> to vector<32x224xbf16>
    %154 = arith.truncf %151 : vector<224x32xf32> to vector<224x32xbf16>
    %cst_43 = arith.constant dense<0.000000e+00> : vector<32x32xf32>
    %155 = tpu.matmul %153, %154, %cst_43 {dimension_numbers = #tpu.dot_dimension_numbers<[1], [0], [0], [1], [0, 0, 1, 1], [], []>} : vector<32x224xbf16>, vector<224x32xbf16>, vector<32x32xf32> -> vector<32x32xf32>
    %156 = arith.mulf %151, %151 : vector<224x32xf32>
    %cst_44 = arith.constant dense<0.000000e+00> : vector<32xf32>
    %157 = vector.multi_reduction <add>, %156, %cst_44 [0] : vector<224x32xf32> to vector<32xf32>
    %158 = vector.shape_cast %157 : vector<32xf32> to vector<1x32xf32>
    %cst_45 = arith.constant 9.99999993E-9 : f32
    %159 = vector.broadcast %cst_45 : f32 to vector<1x32xf32>
    %160 = arith.addf %158, %159 : vector<1x32xf32>
    %161 = math.rsqrt %160 : vector<1x32xf32>
    %162 = vector.broadcast %161 : vector<1x32xf32> to vector<32x32xf32>
    %163 = arith.mulf %155, %162 : vector<32x32xf32>
    %164 = tpu.transpose %163, [1, 0] : vector<32x32xf32> -> vector<32x32xf32>
    %165 = vector.broadcast %161 : vector<1x32xf32> to vector<32x32xf32>
    %166 = arith.mulf %164, %165 : vector<32x32xf32>
    %c0_46 = arith.constant 0 : index
    %c0_47 = arith.constant 0 : index
    %c0_48 = arith.constant 0 : index
    %167 = vector.load %arg11[%c0_46, %c0_47, %c0_48] : memref<1x32x32xf32, #tpu.memory_space<vmem>>, vector<1x32x32xf32>
    %168 = vector.shape_cast %167 : vector<1x32x32xf32> to vector<32x32xf32>
    %169 = vector.shape_cast %166 : vector<32x32xf32> to vector<1x32x32xf32>
    tpu.vector_store %arg11[%c0_46, %c0_47, %c0_48], %169 {strides = array<i32>} : memref<1x32x32xf32, #tpu.memory_space<vmem>>, vector<1x32x32xf32>,
    %170 = vector.shape_cast %113 : vector<224x32xf32> to vector<7x2x16x32xf32>
    %cst_49 = arith.constant dense<0xFF800000> : vector<7x16x32xf32>
    %171 = vector.multi_reduction <maximumf>, %170, %cst_49 [1] : vector<7x2x16x32xf32> to vector<7x16x32xf32>
    %172 = vector.shape_cast %171 : vector<7x16x32xf32> to vector<112x32xf32>
    %c0_50 = arith.constant 0 : index
    %c0_51 = arith.constant 0 : index
    %173 = vector.load %arg14[%c0_50, %c0_51] : memref<112x32xf32, #tpu.memory_space<vmem>>, vector<112x32xf32>
    tpu.vector_store %arg14[%c0_50, %c0_51], %172 {strides = array<i32>} : memref<112x32xf32, #tpu.memory_space<vmem>>, vector<112x32xf32>,
    %c0_52 = arith.constant 0 : index
    %c0_53 = arith.constant 0 : index
    %174 = tpu.strided_load %arg14[%c0_52, %c0_53] {strides = array<i32: 2, 1>} : memref<112x32xf32, #tpu.memory_space<vmem>>, vector<56x32xf32>
    %c1_54 = arith.constant 1 : index
    %c0_55 = arith.constant 0 : index
    %175 = tpu.strided_load %arg14[%c1_54, %c0_55] {strides = array<i32: 2, 1>} : memref<112x32xf32, #tpu.memory_space<vmem>>, vector<56x32xf32>
    %176 = arith.maximumf %174, %175 : vector<56x32xf32>
    %177 = vector.shape_cast %176 : vector<56x32xf32> to vector<7x8x32xf32>
    %178 = vector.extract_strided_slice %177 {offsets = [0, 0, 0], sizes = [7, 7, 32], strides = [1, 1, 1]} : vector<7x8x32xf32> to vector<7x7x32xf32>
    %179 = arith.truncf %178 : vector<7x7x32xf32> to vector<7x7x32xbf16>
    %c0_56 = arith.constant 0 : index
    %c0_57 = arith.constant 0 : index
    %c0_58 = arith.constant 0 : index
    %c0_59 = arith.constant 0 : index
    %180 = vector.load %arg12[%c0_56, %c0_57, %c0_58, %c0_59] : memref<1x7x7x32xbf16, #tpu.memory_space<vmem>>, vector<1x7x7x32xbf16>
    %181 = vector.shape_cast %180 : vector<1x7x7x32xbf16> to vector<7x7x32xbf16>
    %182 = vector.shape_cast %179 : vector<7x7x32xbf16> to vector<1x7x7x32xbf16>
    tpu.vector_store %arg12[%c0_56, %c0_57, %c0_58, %c0_59], %182 {strides = array<i32>} : memref<1x7x7x32xbf16, #tpu.memory_space<vmem>>, vector<1x7x7x32xbf16>,
    return
  }
  func.func @transform_0(%arg0: i32) -> (i32, i32, i32, i32) {
    %c0_i32 = arith.constant 0 : i32
    %c0_i32_0 = arith.constant 0 : i32
    %c0_i32_1 = arith.constant 0 : i32
    %c0_i32_2 = arith.constant 0 : i32
    return %arg0, %c0_i32, %c0_i32_0, %c0_i32_1 : i32, i32, i32, i32
  }
  func.func @transform_1(%arg0: i32) -> (i32, i32) {
    %c0_i32 = arith.constant 0 : i32
    %c0_i32_0 = arith.constant 0 : i32
    %c0_i32_1 = arith.constant 0 : i32
    return %c0_i32, %c0_i32_0 : i32, i32
  }
  func.func @transform_2(%arg0: i32) -> (i32, i32) {
    %c0_i32 = arith.constant 0 : i32
    %c0_i32_0 = arith.constant 0 : i32
    %c0_i32_1 = arith.constant 0 : i32
    return %c0_i32, %c0_i32_0 : i32, i32
  }
  func.func @transform_3(%arg0: i32) -> (i32, i32) {
    %c0_i32 = arith.constant 0 : i32
    %c0_i32_0 = arith.constant 0 : i32
    %c0_i32_1 = arith.constant 0 : i32
    return %c0_i32, %c0_i32_0 : i32, i32
  }
  func.func @transform_4(%arg0: i32) -> (i32, i32) {
    %c0_i32 = arith.constant 0 : i32
    %c0_i32_0 = arith.constant 0 : i32
    %c0_i32_1 = arith.constant 0 : i32
    return %c0_i32, %c0_i32_0 : i32, i32
  }
  func.func @transform_5(%arg0: i32) -> (i32, i32) {
    %c0_i32 = arith.constant 0 : i32
    %c0_i32_0 = arith.constant 0 : i32
    %c0_i32_1 = arith.constant 0 : i32
    return %c0_i32, %c0_i32_0 : i32, i32
  }
  func.func @transform_6(%arg0: i32) -> (i32, i32) {
    %c0_i32 = arith.constant 0 : i32
    %c0_i32_0 = arith.constant 0 : i32
    %c0_i32_1 = arith.constant 0 : i32
    return %c0_i32, %c0_i32_0 : i32, i32
  }
  func.func @transform_7(%arg0: i32) -> (i32, i32) {
    %c0_i32 = arith.constant 0 : i32
    %c0_i32_0 = arith.constant 0 : i32
    %c0_i32_1 = arith.constant 0 : i32
    return %c0_i32, %c0_i32_0 : i32, i32
  }
  func.func @transform_8(%arg0: i32) -> (i32, i32) {
    %c0_i32 = arith.constant 0 : i32
    %c0_i32_0 = arith.constant 0 : i32
    %c0_i32_1 = arith.constant 0 : i32
    return %c0_i32, %c0_i32_0 : i32, i32
  }
  func.func @transform_9(%arg0: i32) -> (i32, i32, i32, i32) {
    %c0_i32 = arith.constant 0 : i32
    %c0_i32_0 = arith.constant 0 : i32
    %c0_i32_1 = arith.constant 0 : i32
    %c0_i32_2 = arith.constant 0 : i32
    return %arg0, %c0_i32, %c0_i32_0, %c0_i32_1 : i32, i32, i32, i32
  }
  func.func @transform_10(%arg0: i32) -> (i32, i32, i32) {
    %c0_i32 = arith.constant 0 : i32
    %c0_i32_0 = arith.constant 0 : i32
    %c0_i32_1 = arith.constant 0 : i32
    return %arg0, %c0_i32, %c0_i32_0 : i32, i32, i32
  }
  func.func @transform_11(%arg0: i32) -> (i32, i32, i32, i32) {
    %c0_i32 = arith.constant 0 : i32
    %c0_i32_0 = arith.constant 0 : i32
    %c0_i32_1 = arith.constant 0 : i32
    %c0_i32_2 = arith.constant 0 : i32
    return %arg0, %c0_i32, %c0_i32_0, %c0_i32_1 : i32, i32, i32, i32
  }
}

module attributes {stable_mosaic.version = 11 : i64} {
  func.func @_classifier_kernel(%arg0: memref<2x1568xbf16, #tpu.memory_space<vmem>>, %arg1: memref<1568x256xbf16, #tpu.memory_space<vmem>>, %arg2: memref<1x256xf32, #tpu.memory_space<vmem>>, %arg3: memref<256x64xbf16, #tpu.memory_space<vmem>>, %arg4: memref<1x64xf32, #tpu.memory_space<vmem>>, %arg5: memref<64x6xbf16, #tpu.memory_space<vmem>>, %arg6: memref<1x6xf32, #tpu.memory_space<vmem>>, %arg7: memref<2x6xf32, #tpu.memory_space<vmem>>) attributes {dimension_semantics = [], scalar_prefetch = 0 : i64, scratch_operands = 0 : i64, tpu.core_type = #tpu.core_type<tc>} {
    %c0 = arith.constant 0 : index
    %c0_0 = arith.constant 0 : index
    %0 = vector.load %arg0[%c0, %c0_0] : memref<2x1568xbf16, #tpu.memory_space<vmem>>, vector<2x1568xbf16>
    %c0_1 = arith.constant 0 : index
    %c0_2 = arith.constant 0 : index
    %1 = vector.load %arg1[%c0_1, %c0_2] : memref<1568x256xbf16, #tpu.memory_space<vmem>>, vector<1568x256xbf16>
    %cst = arith.constant dense<0.000000e+00> : vector<2x256xf32>
    %2 = tpu.matmul %0, %1, %cst {dimension_numbers = #tpu.dot_dimension_numbers<[1], [0], [0], [1], [0, 0, 1, 1], [], []>} : vector<2x1568xbf16>, vector<1568x256xbf16>, vector<2x256xf32> -> vector<2x256xf32>
    %c0_3 = arith.constant 0 : index
    %c0_4 = arith.constant 0 : index
    %3 = vector.load %arg2[%c0_3, %c0_4] : memref<1x256xf32, #tpu.memory_space<vmem>>, vector<1x256xf32>
    %4 = vector.broadcast %3 : vector<1x256xf32> to vector<2x256xf32>
    %5 = arith.addf %2, %4 : vector<2x256xf32>
    %cst_5 = arith.constant 0.000000e+00 : f32
    %6 = vector.broadcast %cst_5 : f32 to vector<2x256xf32>
    %7 = arith.maximumf %5, %6 : vector<2x256xf32>
    %8 = arith.truncf %7 : vector<2x256xf32> to vector<2x256xbf16>
    %c0_6 = arith.constant 0 : index
    %c0_7 = arith.constant 0 : index
    %9 = vector.load %arg3[%c0_6, %c0_7] : memref<256x64xbf16, #tpu.memory_space<vmem>>, vector<256x64xbf16>
    %cst_8 = arith.constant dense<0.000000e+00> : vector<2x64xf32>
    %10 = tpu.matmul %8, %9, %cst_8 {dimension_numbers = #tpu.dot_dimension_numbers<[1], [0], [0], [1], [0, 0, 1, 1], [], []>} : vector<2x256xbf16>, vector<256x64xbf16>, vector<2x64xf32> -> vector<2x64xf32>
    %c0_9 = arith.constant 0 : index
    %c0_10 = arith.constant 0 : index
    %11 = vector.load %arg4[%c0_9, %c0_10] : memref<1x64xf32, #tpu.memory_space<vmem>>, vector<1x64xf32>
    %12 = vector.broadcast %11 : vector<1x64xf32> to vector<2x64xf32>
    %13 = arith.addf %10, %12 : vector<2x64xf32>
    %cst_11 = arith.constant 0.000000e+00 : f32
    %14 = vector.broadcast %cst_11 : f32 to vector<2x64xf32>
    %15 = arith.maximumf %13, %14 : vector<2x64xf32>
    %16 = arith.truncf %15 : vector<2x64xf32> to vector<2x64xbf16>
    %c0_12 = arith.constant 0 : index
    %c0_13 = arith.constant 0 : index
    %17 = vector.load %arg5[%c0_12, %c0_13] : memref<64x6xbf16, #tpu.memory_space<vmem>>, vector<64x6xbf16>
    %cst_14 = arith.constant dense<0.000000e+00> : vector<2x6xf32>
    %18 = tpu.matmul %16, %17, %cst_14 {dimension_numbers = #tpu.dot_dimension_numbers<[1], [0], [0], [1], [0, 0, 1, 1], [], []>} : vector<2x64xbf16>, vector<64x6xbf16>, vector<2x6xf32> -> vector<2x6xf32>
    %c0_15 = arith.constant 0 : index
    %c0_16 = arith.constant 0 : index
    %19 = vector.load %arg6[%c0_15, %c0_16] : memref<1x6xf32, #tpu.memory_space<vmem>>, vector<1x6xf32>
    %20 = vector.broadcast %19 : vector<1x6xf32> to vector<2x6xf32>
    %21 = arith.addf %18, %20 : vector<2x6xf32>
    %c0_17 = arith.constant 0 : index
    %c0_18 = arith.constant 0 : index
    %22 = vector.load %arg7[%c0_17, %c0_18] : memref<2x6xf32, #tpu.memory_space<vmem>>, vector<2x6xf32>
    tpu.vector_store %arg7[%c0_17, %c0_18], %21 {strides = array<i32>} : memref<2x6xf32, #tpu.memory_space<vmem>>, vector<2x6xf32>,
    return
  }
}

</mosaic_0001>

<llo_original>
// kernel: vgg_forward.3
$region0: #{vgg_forward.3}
  #allocation0 [shape = 'u32[]', space=smem, size = 0x4, offset = 0x4, fixed_abs, tag = 'smem constant byte address 0x4 - core index']
  #allocation1 [shape = 'u32[72,128]{1,0:T(1,128)}', space=vmem, size = 0x9000, scoped, tag = 'internal scratch']
  %s0 = inlined_call_operand.vmem [shape: bf16[2,1568], index: 0, kind: input, shape index: {}]
  %s1 = inlined_call_operand.hbm [shape: bf16[1568,256], index: 1, kind: input, shape index: {}]
  %s2 = inlined_call_operand.vmem [shape: f32[1,256], index: 2, kind: input, shape index: {}]
  %s3 = inlined_call_operand.vmem [shape: bf16[256,64], index: 3, kind: input, shape index: {}]
  %s4 = inlined_call_operand.vmem [shape: f32[1,64], index: 4, kind: input, shape index: {}]
  %s5 = inlined_call_operand.vmem [shape: bf16[64,6], index: 5, kind: input, shape index: {}]
  %s6 = inlined_call_operand.vmem [shape: f32[1,6], index: 6, kind: input, shape index: {}]
  %s7 = inlined_call_operand.hbm [shape: f32[2,6], index: 7, kind: output, shape index: {}]
  %s8 = sld [smem:[#allocation0]]
  $region42: #{vgg_forward.3} parent=0
    _
  %s10 = ssub.s32 1, %s8
  %s11 = scalar_select 0, %s10, %s8
  $region1: #{vgg_forward.3} parent=0
    #allocation2 [shape = 'u8[802816]{0}', space=vmem, size = 0xc4000, scoped, tag = 'input window, operand 1, single buffered']
    #allocation3 [shape = 's32[1]{0}', space=sflag, size = 0x4, scoped, tag = 'scoped memory for vgg_forward.3']
    #allocation4 [shape = 's32[1]{0}', space=sflag, size = 0x4, scoped, tag = 'scoped memory for vgg_forward.3']
    #allocation5 [shape = 'u8[1024]{0}', space=vmem, size = 0x400, scoped, tag = 'output window, operand 0, single buffered']
    %12 = vsyncpa [#allocation3], 0
    %13 = vsyncpa [#allocation4], 0
    // Predicated region
    $region2: #{vgg_forward.3} parent=1 // pred_check
      _
    $region3: #{vgg_forward.3} parent=1 // pred_check_branch
      %15 = sbr.rel (0) target = $region5
    $region4: #{vgg_forward.3} parent=1 // pred_region
      _
    $region5: #{vgg_forward.3} parent=1 // pred_fallthru
      _
    // Predicated region
    $region6: #{vgg_forward.3} parent=1 // pred_check
      _
    $region7: #{vgg_forward.3} parent=1 // pred_check_branch
      %17 = sbr.rel (0) target = $region9
    $region8: #{vgg_forward.3} parent=1 // pred_region
      %19 = vsyncadd [#allocation3], 0
      %s20 = sshll.u32 %s1, 4
      %s21 = int_to_ptr.hbm [resolvable:$true] %s20
      %s22 = sshll.u32 [#allocation2], 4
      %s23 = int_to_ptr.vmem [resolvable:$true] %s22
      %28 = dma.hbm_to_vmem [thread:$0]  %s21, 25088, %s23, [#allocation3], 128, 128, 8
    $region9: #{vgg_forward.3} parent=1 // pred_fallthru
      _
    // Predicated region
    $region10: #{vgg_forward.3} parent=1 // pred_check
      _
    $region11: #{vgg_forward.3} parent=1 // pred_check_branch
      %30 = sbr.rel (0) target = $region13
    $region12: #{vgg_forward.3} parent=1 // pred_region
      _
    $region13: #{vgg_forward.3} parent=1 // pred_fallthru
      _
    // Predicated region
    $region14: #{vgg_forward.3} parent=1 // pred_check
      _
    $region15: #{vgg_forward.3} parent=1 // pred_check_branch
      %32 = sbr.rel (0) target = $region17
    $region16: #{vgg_forward.3} parent=1 // pred_region
      _
    $region17: #{vgg_forward.3} parent=1 // pred_fallthru
      _
    // Predicated region
    $region18: #{vgg_forward.3} parent=1 // pred_check
      _
    $region19: #{vgg_forward.3} parent=1 // pred_check_branch
      %34 = sbr.rel (0) target = $region21
    $region20: #{vgg_forward.3} parent=1 // pred_region
      _
    $region21: #{vgg_forward.3} parent=1 // pred_fallthru
      _
    // Predicated region
    $region22: #{vgg_forward.3} parent=1 // pred_check
      _
    $region23: #{vgg_forward.3} parent=1 // pred_check_branch
      %36 = sbr.rel (0) target = $region25
    $region24: #{vgg_forward.3} parent=1 // pred_region
      _
    $region25: #{vgg_forward.3} parent=1 // pred_fallthru
      _
    // Predicated region
    $region26: #{vgg_forward.3} parent=1 // pred_check
      _
    $region27: #{vgg_forward.3} parent=1 // pred_check_branch
      %38 = sbr.rel (0) target = $region29
    $region28: #{vgg_forward.3} parent=1 // pred_region
      _
    $region29: #{vgg_forward.3} parent=1 // pred_fallthru
      _
    // Predicated region
    $region30: #{vgg_forward.3} parent=1 // pred_check
      _
    $region31: #{vgg_forward.3} parent=1 // pred_check_branch
      %40 = sbr.rel (0) target = $region33
    $region32: #{vgg_forward.3} parent=1 // pred_region
      %42 = dma.done [#allocation3], 25088
    $region33: #{vgg_forward.3} parent=1 // pred_fallthru
      _
    %v44 = vld [vmem:[%s0] sm:$0xff]
    %v45 = vld [vmem:[%s0 + $0x8] sm:$0x1f]
    %v46 = vld [vmem:[#allocation2] sm:$0xff]
    %v47 = vld [vmem:[#allocation2 + $0x8] sm:$0xff]
    %v48 = vld [vmem:[#allocation2 + $0x10] sm:$0xff]
    %v49 = vld [vmem:[#allocation2 + $0x18] sm:$0xff]
    %v50 = vld [vmem:[#allocation2 + $0x20] sm:$0xff]
    %v51 = vld [vmem:[#allocation2 + $0x28] sm:$0xff]
    %v52 = vld [vmem:[#allocation2 + $0x30] sm:$0xff]
    %v53 = vld [vmem:[#allocation2 + $0x38] sm:$0xff]
    %v54 = vld [vmem:[#allocation2 + $0x40] sm:$0xff]
    %v55 = vld [vmem:[#allocation2 + $0x48] sm:$0xff]
    %v56 = vld [vmem:[#allocation2 + $0x50] sm:$0xff]
    %v57 = vld [vmem:[#allocation2 + $0x58] sm:$0xff]
    %v58 = vld [vmem:[#allocation2 + $0x60] sm:$0xff]
    %v59 = vld [vmem:[#allocation2 + $0x68] sm:$0xff]
    %v60 = vld [vmem:[#allocation2 + $0x70] sm:$0xff]
    %v61 = vld [vmem:[#allocation2 + $0x78] sm:$0xff]
    %v62 = vld [vmem:[#allocation2 + $0x80] sm:$0xff]
    %v63 = vld [vmem:[#allocation2 + $0x88] sm:$0xff]
    %v64 = vld [vmem:[#allocation2 + $0x90] sm:$0xff]
    %v65 = vld [vmem:[#allocation2 + $0x98] sm:$0xff]
    %v66 = vld [vmem:[#allocation2 + $0xa0] sm:$0xff]
    %v67 = vld [vmem:[#allocation2 + $0xa8] sm:$0xff]
    %v68 = vld [vmem:[#allocation2 + $0xb0] sm:$0xff]
    %v69 = vld [vmem:[#allocation2 + $0xb8] sm:$0xff]
    %v70 = vld [vmem:[#allocation2 + $0xc0] sm:$0xff]
    %v71 = vld [vmem:[#allocation2 + $0xc8] sm:$0xff]
    %v72 = vld [vmem:[#allocation2 + $0xd0] sm:$0xff]
    %v73 = vld [vmem:[#allocation2 + $0xd8] sm:$0xff]
    %v74 = vld [vmem:[#allocation2 + $0xe0] sm:$0xff]
    %v75 = vld [vmem:[#allocation2 + $0xe8] sm:$0xff]
    %v76 = vld [vmem:[#allocation2 + $0xf0] sm:$0xff]
    %v77 = vld [vmem:[#allocation2 + $0xf8] sm:$0xff]
    %v78 = vld [vmem:[#allocation2 + $0x100] sm:$0xff]
    %v79 = vld [vmem:[#allocation2 + $0x108] sm:$0xff]
    %v80 = vld [vmem:[#allocation2 + $0x110] sm:$0xff]
    %v81 = vld [vmem:[#allocation2 + $0x118] sm:$0xff]
    %v82 = vld [vmem:[#allocation2 + $0x120] sm:$0xff]
    %v83 = vld [vmem:[#allocation2 + $0x128] sm:$0xff]
    %v84 = vld [vmem:[#allocation2 + $0x130] sm:$0xff]
    %v85 = vld [vmem:[#allocation2 + $0x138] sm:$0xff]
    %v86 = vld [vmem:[#allocation2 + $0x140] sm:$0xff]
    %v87 = vld [vmem:[#allocation2 + $0x148] sm:$0xff]
    %v88 = vld [vmem:[#allocation2 + $0x150] sm:$0xff]
    %v89 = vld [vmem:[#allocation2 + $0x158] sm:$0xff]
    %v90 = vld [vmem:[#allocation2 + $0x160] sm:$0xff]
    %v91 = vld [vmem:[#allocation2 + $0x168] sm:$0xff]
    %v92 = vld [vmem:[#allocation2 + $0x170] sm:$0xff]
    %v93 = vld [vmem:[#allocation2 + $0x178] sm:$0xff]
    %v94 = vld [vmem:[#allocation2 + $0x180] sm:$0xff]
    %v95 = vld [vmem:[#allocation2 + $0x188] sm:$0xff]
    %v96 = vld [vmem:[#allocation2 + $0x190] sm:$0xff]
    %v97 = vld [vmem:[#allocation2 + $0x198] sm:$0xff]
    %v98 = vld [vmem:[#allocation2 + $0x1a0] sm:$0xff]
    %v99 = vld [vmem:[#allocation2 + $0x1a8] sm:$0xff]
    %v100 = vld [vmem:[#allocation2 + $0x1b0] sm:$0xff]
    %v101 = vld [vmem:[#allocation2 + $0x1b8] sm:$0xff]
    %v102 = vld [vmem:[#allocation2 + $0x1c0] sm:$0xff]
    %v103 = vld [vmem:[#allocation2 + $0x1c8] sm:$0xff]
    %v104 = vld [vmem:[#allocation2 + $0x1d0] sm:$0xff]
    %v105 = vld [vmem:[#allocation2 + $0x1d8] sm:$0xff]
    %v106 = vld [vmem:[#allocation2 + $0x1e0] sm:$0xff]
    %v107 = vld [vmem:[#allocation2 + $0x1e8] sm:$0xff]
    %v108 = vld [vmem:[#allocation2 + $0x1f0] sm:$0xff]
    %v109 = vld [vmem:[#allocation2 + $0x1f8] sm:$0xff]
    %v110 = vld [vmem:[#allocation2 + $0x200] sm:$0xff]
    %v111 = vld [vmem:[#allocation2 + $0x208] sm:$0xff]
    %v112 = vld [vmem:[#allocation2 + $0x210] sm:$0xff]
    %v113 = vld [vmem:[#allocation2 + $0x218] sm:$0xff]
    %v114 = vld [vmem:[#allocation2 + $0x220] sm:$0xff]
    %v115 = vld [vmem:[#allocation2 + $0x228] sm:$0xff]
    %v116 = vld [vmem:[#allocation2 + $0x230] sm:$0xff]
    %v117 = vld [vmem:[#allocation2 + $0x238] sm:$0xff]
    %v118 = vld [vmem:[#allocation2 + $0x240] sm:$0xff]
    %v119 = vld [vmem:[#allocation2 + $0x248] sm:$0xff]
    %v120 = vld [vmem:[#allocation2 + $0x250] sm:$0xff]
    %v121 = vld [vmem:[#allocation2 + $0x258] sm:$0xff]
    %v122 = vld [vmem:[#allocation2 + $0x260] sm:$0xff]
    %v123 = vld [vmem:[#allocation2 + $0x268] sm:$0xff]
    %v124 = vld [vmem:[#allocation2 + $0x270] sm:$0xff]
    %v125 = vld [vmem:[#allocation2 + $0x278] sm:$0xff]
    %v126 = vld [vmem:[#allocation2 + $0x280] sm:$0xff]
    %v127 = vld [vmem:[#allocation2 + $0x288] sm:$0xff]
    %v128 = vld [vmem:[#allocation2 + $0x290] sm:$0xff]
    %v129 = vld [vmem:[#allocation2 + $0x298] sm:$0xff]
    %v130 = vld [vmem:[#allocation2 + $0x2a0] sm:$0xff]
    %v131 = vld [vmem:[#allocation2 + $0x2a8] sm:$0xff]
    %v132 = vld [vmem:[#allocation2 + $0x2b0] sm:$0xff]
    %v133 = vld [vmem:[#allocation2 + $0x2b8] sm:$0xff]
    %v134 = vld [vmem:[#allocation2 + $0x2c0] sm:$0xff]
    %v135 = vld [vmem:[#allocation2 + $0x2c8] sm:$0xff]
    %v136 = vld [vmem:[#allocation2 + $0x2d0] sm:$0xff]
    %v137 = vld [vmem:[#allocation2 + $0x2d8] sm:$0xff]
    %v138 = vld [vmem:[#allocation2 + $0x2e0] sm:$0xff]
    %v139 = vld [vmem:[#allocation2 + $0x2e8] sm:$0xff]
    %v140 = vld [vmem:[#allocation2 + $0x2f0] sm:$0xff]
    %v141 = vld [vmem:[#allocation2 + $0x2f8] sm:$0xff]
    %v142 = vld [vmem:[#allocation2 + $0x300] sm:$0xff]
    %v143 = vld [vmem:[#allocation2 + $0x308] sm:$0xff]
    %v144 = vld [vmem:[#allocation2 + $0x310] sm:$0xff]
    %v145 = vld [vmem:[#allocation2 + $0x318] sm:$0xff]
    %v146 = vld [vmem:[#allocation2 + $0x320] sm:$0xff]
    %v147 = vld [vmem:[#allocation2 + $0x328] sm:$0xff]
    %v148 = vld [vmem:[#allocation2 + $0x330] sm:$0xff]
    %v149 = vld [vmem:[#allocation2 + $0x338] sm:$0xff]
    %v150 = vld [vmem:[#allocation2 + $0x340] sm:$0xff]
    %v151 = vld [vmem:[#allocation2 + $0x348] sm:$0xff]
    %v152 = vld [vmem:[#allocation2 + $0x350] sm:$0xff]
    %v153 = vld [vmem:[#allocation2 + $0x358] sm:$0xff]
    %v154 = vld [vmem:[#allocation2 + $0x360] sm:$0xff]
    %v155 = vld [vmem:[#allocation2 + $0x368] sm:$0xff]
    %v156 = vld [vmem:[#allocation2 + $0x370] sm:$0xff]
    %v157 = vld [vmem:[#allocation2 + $0x378] sm:$0xff]
    %v158 = vld [vmem:[#allocation2 + $0x380] sm:$0xff]
    %v159 = vld [vmem:[#allocation2 + $0x388] sm:$0xff]
    %v160 = vld [vmem:[#allocation2 + $0x390] sm:$0xff]
    %v161 = vld [vmem:[#allocation2 + $0x398] sm:$0xff]
    %v162 = vld [vmem:[#allocation2 + $0x3a0] sm:$0xff]
    %v163 = vld [vmem:[#allocation2 + $0x3a8] sm:$0xff]
    %v164 = vld [vmem:[#allocation2 + $0x3b0] sm:$0xff]
    %v165 = vld [vmem:[#allocation2 + $0x3b8] sm:$0xff]
    %v166 = vld [vmem:[#allocation2 + $0x3c0] sm:$0xff]
    %v167 = vld [vmem:[#allocation2 + $0x3c8] sm:$0xff]
    %v168 = vld [vmem:[#allocation2 + $0x3d0] sm:$0xff]
    %v169 = vld [vmem:[#allocation2 + $0x3d8] sm:$0xff]
    %v170 = vld [vmem:[#allocation2 + $0x3e0] sm:$0xff]
    %v171 = vld [vmem:[#allocation2 + $0x3e8] sm:$0xff]
    %v172 = vld [vmem:[#allocation2 + $0x3f0] sm:$0xff]
    %v173 = vld [vmem:[#allocation2 + $0x3f8] sm:$0xff]
    %v174 = vld [vmem:[#allocation2 + $0x400] sm:$0xff]
    %v175 = vld [vmem:[#allocation2 + $0x408] sm:$0xff]
    %v176 = vld [vmem:[#allocation2 + $0x410] sm:$0xff]
    %v177 = vld [vmem:[#allocation2 + $0x418] sm:$0xff]
    %v178 = vld [vmem:[#allocation2 + $0x420] sm:$0xff]
    %v179 = vld [vmem:[#allocation2 + $0x428] sm:$0xff]
    %v180 = vld [vmem:[#allocation2 + $0x430] sm:$0xff]
    %v181 = vld [vmem:[#allocation2 + $0x438] sm:$0xff]
    %v182 = vld [vmem:[#allocation2 + $0x440] sm:$0xff]
    %v183 = vld [vmem:[#allocation2 + $0x448] sm:$0xff]
    %v184 = vld [vmem:[#allocation2 + $0x450] sm:$0xff]
    %v185 = vld [vmem:[#allocation2 + $0x458] sm:$0xff]
    %v186 = vld [vmem:[#allocation2 + $0x460] sm:$0xff]
    %v187 = vld [vmem:[#allocation2 + $0x468] sm:$0xff]
    %v188 = vld [vmem:[#allocation2 + $0x470] sm:$0xff]
    %v189 = vld [vmem:[#allocation2 + $0x478] sm:$0xff]
    %v190 = vld [vmem:[#allocation2 + $0x480] sm:$0xff]
    %v191 = vld [vmem:[#allocation2 + $0x488] sm:$0xff]
    %v192 = vld [vmem:[#allocation2 + $0x490] sm:$0xff]
    %v193 = vld [vmem:[#allocation2 + $0x498] sm:$0xff]
    %v194 = vld [vmem:[#allocation2 + $0x4a0] sm:$0xff]
    %v195 = vld [vmem:[#allocation2 + $0x4a8] sm:$0xff]
    %v196 = vld [vmem:[#allocation2 + $0x4b0] sm:$0xff]
    %v197 = vld [vmem:[#allocation2 + $0x4b8] sm:$0xff]
    %v198 = vld [vmem:[#allocation2 + $0x4c0] sm:$0xff]
    %v199 = vld [vmem:[#allocation2 + $0x4c8] sm:$0xff]
    %v200 = vld [vmem:[#allocation2 + $0x4d0] sm:$0xff]
    %v201 = vld [vmem:[#allocation2 + $0x4d8] sm:$0xff]
    %v202 = vld [vmem:[#allocation2 + $0x4e0] sm:$0xff]
    %v203 = vld [vmem:[#allocation2 + $0x4e8] sm:$0xff]
    %v204 = vld [vmem:[#allocation2 + $0x4f0] sm:$0xff]
    %v205 = vld [vmem:[#allocation2 + $0x4f8] sm:$0xff]
    %v206 = vld [vmem:[#allocation2 + $0x500] sm:$0xff]
    %v207 = vld [vmem:[#allocation2 + $0x508] sm:$0xff]
    %v208 = vld [vmem:[#allocation2 + $0x510] sm:$0xff]
    %v209 = vld [vmem:[#allocation2 + $0x518] sm:$0xff]
    %v210 = vld [vmem:[#allocation2 + $0x520] sm:$0xff]
    %v211 = vld [vmem:[#allocation2 + $0x528] sm:$0xff]
    %v212 = vld [vmem:[#allocation2 + $0x530] sm:$0xff]
    %v213 = vld [vmem:[#allocation2 + $0x538] sm:$0xff]
    %v214 = vld [vmem:[#allocation2 + $0x540] sm:$0xff]
    %v215 = vld [vmem:[#allocation2 + $0x548] sm:$0xff]
    %v216 = vld [vmem:[#allocation2 + $0x550] sm:$0xff]
    %v217 = vld [vmem:[#allocation2 + $0x558] sm:$0xff]
    %v218 = vld [vmem:[#allocation2 + $0x560] sm:$0xff]
    %v219 = vld [vmem:[#allocation2 + $0x568] sm:$0xff]
    %v220 = vld [vmem:[#allocation2 + $0x570] sm:$0xff]
    %v221 = vld [vmem:[#allocation2 + $0x578] sm:$0xff]
    %v222 = vld [vmem:[#allocation2 + $0x580] sm:$0xff]
    %v223 = vld [vmem:[#allocation2 + $0x588] sm:$0xff]
    %v224 = vld [vmem:[#allocation2 + $0x590] sm:$0xff]
    %v225 = vld [vmem:[#allocation2 + $0x598] sm:$0xff]
    %v226 = vld [vmem:[#allocation2 + $0x5a0] sm:$0xff]
    %v227 = vld [vmem:[#allocation2 + $0x5a8] sm:$0xff]
    %v228 = vld [vmem:[#allocation2 + $0x5b0] sm:$0xff]
    %v229 = vld [vmem:[#allocation2 + $0x5b8] sm:$0xff]
    %v230 = vld [vmem:[#allocation2 + $0x5c0] sm:$0xff]
    %v231 = vld [vmem:[#allocation2 + $0x5c8] sm:$0xff]
    %v232 = vld [vmem:[#allocation2 + $0x5d0] sm:$0xff]
    %v233 = vld [vmem:[#allocation2 + $0x5d8] sm:$0xff]
    %v234 = vld [vmem:[#allocation2 + $0x5e0] sm:$0xff]
    %v235 = vld [vmem:[#allocation2 + $0x5e8] sm:$0xff]
    %v236 = vld [vmem:[#allocation2 + $0x5f0] sm:$0xff]
    %v237 = vld [vmem:[#allocation2 + $0x5f8] sm:$0xff]
    %v238 = vld [vmem:[#allocation2 + $0x600] sm:$0xff]
    %v239 = vld [vmem:[#allocation2 + $0x608] sm:$0xff]
    %v240 = vld [vmem:[#allocation2 + $0x610] sm:$0xff]
    %v241 = vld [vmem:[#allocation2 + $0x618] sm:$0xff]
    %v242 = vld [vmem:[%s2] sm:$0x3]
    %v244 = vperm.slane %v242, 0
    %v245 = vperm.slane %v242, 1
    %249 = vst [vmem:[#allocation1] ss:$9 sm:$0xff] %v44
    %v250 = vld [vmem:[#allocation1] sm:$0xff]
    %v251 = vld [vmem:[#allocation1 + $0x9] sm:$0xff]
    %v252 = vld [vmem:[#allocation1 + $0x12] sm:$0xff]
    %v253 = vld [vmem:[#allocation1 + $0x1b] sm:$0xff]
    %v254 = vld [vmem:[#allocation1 + $0x24] sm:$0xff]
    %v255 = vld [vmem:[#allocation1 + $0x2d] sm:$0xff]
    %v256 = vld [vmem:[#allocation1 + $0x36] sm:$0xff]
    %v257 = vld [vmem:[#allocation1 + $0x3f] sm:$0xff]
    %259 = vst [vmem:[#allocation1] ss:$9 sm:$0xff] %v45
    %v260 = vld [vmem:[#allocation1] sm:$0xff]
    %v261 = vld [vmem:[#allocation1 + $0x9] sm:$0xff]
    %v262 = vld [vmem:[#allocation1 + $0x12] sm:$0xff]
    %v263 = vld [vmem:[#allocation1 + $0x1b] sm:$0xff]
    %v264 = vld [vmem:[#allocation1 + $0x24] sm:$0xff]
    %v473 = vunpack.c.l.b16 %v46
    %v474 = vunpack.c.h.b16 %v46
    %v475 = vunpack.c.l.b16 %v47
    %v476 = vunpack.c.h.b16 %v47
    %v477 = vunpack.c.l.b16 %v48
    %v478 = vunpack.c.h.b16 %v48
    %v479 = vunpack.c.l.b16 %v49
    %v480 = vunpack.c.h.b16 %v49
    %v481 = vunpack.c.l.b16 %v50
    %v482 = vunpack.c.h.b16 %v50
    %v483 = vunpack.c.l.b16 %v51
    %v484 = vunpack.c.h.b16 %v51
    %v485 = vunpack.c.l.b16 %v52
    %v486 = vunpack.c.h.b16 %v52
    %v487 = vunpack.c.l.b16 %v53
    %v488 = vunpack.c.h.b16 %v53
    %v489 = vunpack.c.l.b16 %v54
    %v490 = vunpack.c.h.b16 %v54
    %v491 = vunpack.c.l.b16 %v55
    %v492 = vunpack.c.h.b16 %v55
    %v493 = vunpack.c.l.b16 %v56
    %v494 = vunpack.c.h.b16 %v56
    %v495 = vunpack.c.l.b16 %v57
    %v496 = vunpack.c.h.b16 %v57
    %v497 = vunpack.c.l.b16 %v58
    %v498 = vunpack.c.h.b16 %v58
    %v499 = vunpack.c.l.b16 %v59
    %v500 = vunpack.c.h.b16 %v59
    %v501 = vunpack.c.l.b16 %v60
    %v502 = vunpack.c.h.b16 %v60
    %v503 = vunpack.c.l.b16 %v61
    %v504 = vunpack.c.h.b16 %v61
    %v505 = vunpack.c.l.b16 %v62
    %v506 = vunpack.c.h.b16 %v62
    %v507 = vunpack.c.l.b16 %v63
    %v508 = vunpack.c.h.b16 %v63
    %v509 = vunpack.c.l.b16 %v64
    %v510 = vunpack.c.h.b16 %v64
    %v511 = vunpack.c.l.b16 %v65
    %v512 = vunpack.c.h.b16 %v65
    %v513 = vunpack.c.l.b16 %v66
    %v514 = vunpack.c.h.b16 %v66
    %v515 = vunpack.c.l.b16 %v67
    %v516 = vunpack.c.h.b16 %v67
    %v517 = vunpack.c.l.b16 %v68
    %v518 = vunpack.c.h.b16 %v68
    %v519 = vunpack.c.l.b16 %v69
    %v520 = vunpack.c.h.b16 %v69
    %v521 = vunpack.c.l.b16 %v70
    %v522 = vunpack.c.h.b16 %v70
    %v523 = vunpack.c.l.b16 %v71
    %v524 = vunpack.c.h.b16 %v71
    %v525 = vunpack.c.l.b16 %v72
    %v526 = vunpack.c.h.b16 %v72
    %v527 = vunpack.c.l.b16 %v73
    %v528 = vunpack.c.h.b16 %v73
    %v529 = vunpack.c.l.b16 %v74
    %v530 = vunpack.c.h.b16 %v74
    %v531 = vunpack.c.l.b16 %v75
    %v532 = vunpack.c.h.b16 %v75
    %v533 = vunpack.c.l.b16 %v76
    %v534 = vunpack.c.h.b16 %v76
    %v535 = vunpack.c.l.b16 %v77
    %v536 = vunpack.c.h.b16 %v77
    %v537 = vunpack.c.l.b16 %v78
    %v538 = vunpack.c.h.b16 %v78
    %v539 = vunpack.c.l.b16 %v79
    %v540 = vunpack.c.h.b16 %v79
    %v541 = vunpack.c.l.b16 %v80
    %v542 = vunpack.c.h.b16 %v80
    %v543 = vunpack.c.l.b16 %v81
    %v544 = vunpack.c.h.b16 %v81
    %v545 = vunpack.c.l.b16 %v82
    %v546 = vunpack.c.h.b16 %v82
    %v547 = vunpack.c.l.b16 %v83
    %v548 = vunpack.c.h.b16 %v83
    %v549 = vunpack.c.l.b16 %v84
    %v550 = vunpack.c.h.b16 %v84
    %v551 = vunpack.c.l.b16 %v85
    %v552 = vunpack.c.h.b16 %v85
    %v553 = vunpack.c.l.b16 %v86
    %v554 = vunpack.c.h.b16 %v86
    %v555 = vunpack.c.l.b16 %v87
    %v556 = vunpack.c.h.b16 %v87
    %v557 = vunpack.c.l.b16 %v88
    %v558 = vunpack.c.h.b16 %v88
    %v559 = vunpack.c.l.b16 %v89
    %v560 = vunpack.c.h.b16 %v89
    %v561 = vunpack.c.l.b16 %v90
    %v562 = vunpack.c.h.b16 %v90
    %v563 = vunpack.c.l.b16 %v91
    %v564 = vunpack.c.h.b16 %v91
    %v565 = vunpack.c.l.b16 %v92
    %v566 = vunpack.c.h.b16 %v92
    %v567 = vunpack.c.l.b16 %v93
    %v568 = vunpack.c.h.b16 %v93
    %v569 = vunpack.c.l.b16 %v94
    %v570 = vunpack.c.h.b16 %v94
    %v571 = vunpack.c.l.b16 %v95
    %v572 = vunpack.c.h.b16 %v95
    %v573 = vunpack.c.l.b16 %v96
    %v574 = vunpack.c.h.b16 %v96
    %v575 = vunpack.c.l.b16 %v97
    %v576 = vunpack.c.h.b16 %v97
    %v577 = vunpack.c.l.b16 %v98
    %v578 = vunpack.c.h.b16 %v98
    %v579 = vunpack.c.l.b16 %v99
    %v580 = vunpack.c.h.b16 %v99
    %v581 = vunpack.c.l.b16 %v100
    %v582 = vunpack.c.h.b16 %v100
    %v583 = vunpack.c.l.b16 %v101
    %v584 = vunpack.c.h.b16 %v101
    %v585 = vunpack.c.l.b16 %v102
    %v586 = vunpack.c.h.b16 %v102
    %v587 = vunpack.c.l.b16 %v103
    %v588 = vunpack.c.h.b16 %v103
    %v589 = vunpack.c.l.b16 %v104
    %v590 = vunpack.c.h.b16 %v104
    %v591 = vunpack.c.l.b16 %v105
    %v592 = vunpack.c.h.b16 %v105
    %v593 = vunpack.c.l.b16 %v106
    %v594 = vunpack.c.h.b16 %v106
    %v595 = vunpack.c.l.b16 %v107
    %v596 = vunpack.c.h.b16 %v107
    %v597 = vunpack.c.l.b16 %v108
    %v598 = vunpack.c.h.b16 %v108
    %v599 = vunpack.c.l.b16 %v109
    %v600 = vunpack.c.h.b16 %v109
    %v601 = vunpack.c.l.b16 %v110
    %v602 = vunpack.c.h.b16 %v110
    %v603 = vunpack.c.l.b16 %v111
    %v604 = vunpack.c.h.b16 %v111
    %v605 = vunpack.c.l.b16 %v112
    %v606 = vunpack.c.h.b16 %v112
    %v607 = vunpack.c.l.b16 %v113
    %v608 = vunpack.c.h.b16 %v113
    %v609 = vunpack.c.l.b16 %v114
    %v610 = vunpack.c.h.b16 %v114
    %v611 = vunpack.c.l.b16 %v115
    %v612 = vunpack.c.h.b16 %v115
    %v613 = vunpack.c.l.b16 %v116
    %v614 = vunpack.c.h.b16 %v116
    %v615 = vunpack.c.l.b16 %v117
    %v616 = vunpack.c.h.b16 %v117
    %v617 = vunpack.c.l.b16 %v118
    %v618 = vunpack.c.h.b16 %v118
    %v619 = vunpack.c.l.b16 %v119
    %v620 = vunpack.c.h.b16 %v119
    %v621 = vunpack.c.l.b16 %v120
    %v622 = vunpack.c.h.b16 %v120
    %v623 = vunpack.c.l.b16 %v121
    %v624 = vunpack.c.h.b16 %v121
    %v625 = vunpack.c.l.b16 %v122
    %v626 = vunpack.c.h.b16 %v122
    %v627 = vunpack.c.l.b16 %v123
    %v628 = vunpack.c.h.b16 %v123
    %v629 = vunpack.c.l.b16 %v124
    %v630 = vunpack.c.h.b16 %v124
    %v631 = vunpack.c.l.b16 %v125
    %v632 = vunpack.c.h.b16 %v125
    %v633 = vunpack.c.l.b16 %v126
    %v634 = vunpack.c.h.b16 %v126
    %v635 = vunpack.c.l.b16 %v127
    %v636 = vunpack.c.h.b16 %v127
    %v637 = vunpack.c.l.b16 %v128
    %v638 = vunpack.c.h.b16 %v128
    %v639 = vunpack.c.l.b16 %v129
    %v640 = vunpack.c.h.b16 %v129
    %v641 = vunpack.c.l.b16 %v130
    %v642 = vunpack.c.h.b16 %v130
    %v643 = vunpack.c.l.b16 %v131
    %v644 = vunpack.c.h.b16 %v131
    %v645 = vunpack.c.l.b16 %v132
    %v646 = vunpack.c.h.b16 %v132
    %v647 = vunpack.c.l.b16 %v133
    %v648 = vunpack.c.h.b16 %v133
    %v649 = vunpack.c.l.b16 %v134
    %v650 = vunpack.c.h.b16 %v134
    %v651 = vunpack.c.l.b16 %v135
    %v652 = vunpack.c.h.b16 %v135
    %v653 = vunpack.c.l.b16 %v136
    %v654 = vunpack.c.h.b16 %v136
    %v655 = vunpack.c.l.b16 %v137
    %v656 = vunpack.c.h.b16 %v137
    %v657 = vunpack.c.l.b16 %v138
    %v658 = vunpack.c.h.b16 %v138
    %v659 = vunpack.c.l.b16 %v139
    %v660 = vunpack.c.h.b16 %v139
    %v661 = vunpack.c.l.b16 %v140
    %v662 = vunpack.c.h.b16 %v140
    %v663 = vunpack.c.l.b16 %v141
    %v664 = vunpack.c.h.b16 %v141
    %v665 = vunpack.c.l.b16 %v142
    %v666 = vunpack.c.h.b16 %v142
    %v667 = vunpack.c.l.b16 %v143
    %v668 = vunpack.c.h.b16 %v143
    %v669 = vunpack.c.l.b16 %v144
    %v670 = vunpack.c.h.b16 %v144
    %v671 = vunpack.c.l.b16 %v145
    %v672 = vunpack.c.h.b16 %v145
    %v673 = vunpack.c.l.b16 %v146
    %v674 = vunpack.c.h.b16 %v146
    %v675 = vunpack.c.l.b16 %v147
    %v676 = vunpack.c.h.b16 %v147
    %v677 = vunpack.c.l.b16 %v148
    %v678 = vunpack.c.h.b16 %v148
    %v679 = vunpack.c.l.b16 %v149
    %v680 = vunpack.c.h.b16 %v149
    %v681 = vunpack.c.l.b16 %v150
    %v682 = vunpack.c.h.b16 %v150
    %v683 = vunpack.c.l.b16 %v151
    %v684 = vunpack.c.h.b16 %v151
    %v685 = vunpack.c.l.b16 %v152
    %v686 = vunpack.c.h.b16 %v152
    %v687 = vunpack.c.l.b16 %v153
    %v688 = vunpack.c.h.b16 %v153
    %v689 = vunpack.c.l.b16 %v154
    %v690 = vunpack.c.h.b16 %v154
    %v691 = vunpack.c.l.b16 %v155
    %v692 = vunpack.c.h.b16 %v155
    %v693 = vunpack.c.l.b16 %v156
    %v694 = vunpack.c.h.b16 %v156
    %v695 = vunpack.c.l.b16 %v157
    %v696 = vunpack.c.h.b16 %v157
    %v697 = vunpack.c.l.b16 %v158
    %v698 = vunpack.c.h.b16 %v158
    %v699 = vunpack.c.l.b16 %v159
    %v700 = vunpack.c.h.b16 %v159
    %v701 = vunpack.c.l.b16 %v160
    %v702 = vunpack.c.h.b16 %v160
    %v703 = vunpack.c.l.b16 %v161
    %v704 = vunpack.c.h.b16 %v161
    %v705 = vunpack.c.l.b16 %v162
    %v706 = vunpack.c.h.b16 %v162
    %v707 = vunpack.c.l.b16 %v163
    %v708 = vunpack.c.h.b16 %v163
    %v709 = vunpack.c.l.b16 %v164
    %v710 = vunpack.c.h.b16 %v164
    %v711 = vunpack.c.l.b16 %v165
    %v712 = vunpack.c.h.b16 %v165
    %v713 = vunpack.c.l.b16 %v166
    %v714 = vunpack.c.h.b16 %v166
    %v715 = vunpack.c.l.b16 %v167
    %v716 = vunpack.c.h.b16 %v167
    %v717 = vunpack.c.l.b16 %v168
    %v718 = vunpack.c.h.b16 %v168
    %v719 = vunpack.c.l.b16 %v169
    %v720 = vunpack.c.h.b16 %v169
    %v721 = vunpack.c.l.b16 %v170
    %v722 = vunpack.c.h.b16 %v170
    %v723 = vunpack.c.l.b16 %v171
    %v724 = vunpack.c.h.b16 %v171
    %v725 = vunpack.c.l.b16 %v172
    %v726 = vunpack.c.h.b16 %v172
    %v727 = vunpack.c.l.b16 %v173
    %v728 = vunpack.c.h.b16 %v173
    %v729 = vunpack.c.l.b16 %v174
    %v730 = vunpack.c.h.b16 %v174
    %v731 = vunpack.c.l.b16 %v175
    %v732 = vunpack.c.h.b16 %v175
    %v733 = vunpack.c.l.b16 %v176
    %v734 = vunpack.c.h.b16 %v176
    %v735 = vunpack.c.l.b16 %v177
    %v736 = vunpack.c.h.b16 %v177
    %v737 = vunpack.c.l.b16 %v178
    %v738 = vunpack.c.h.b16 %v178
    %v739 = vunpack.c.l.b16 %v179
    %v740 = vunpack.c.h.b16 %v179
    %v741 = vunpack.c.l.b16 %v180
    %v742 = vunpack.c.h.b16 %v180
    %v743 = vunpack.c.l.b16 %v181
    %v744 = vunpack.c.h.b16 %v181
    %v745 = vunpack.c.l.b16 %v182
    %v746 = vunpack.c.h.b16 %v182
    %v747 = vunpack.c.l.b16 %v183
    %v748 = vunpack.c.h.b16 %v183
    %v749 = vunpack.c.l.b16 %v184
    %v750 = vunpack.c.h.b16 %v184
    %v751 = vunpack.c.l.b16 %v185
    %v752 = vunpack.c.h.b16 %v185
    %v753 = vunpack.c.l.b16 %v186
    %v754 = vunpack.c.h.b16 %v186
    %v755 = vunpack.c.l.b16 %v187
    %v756 = vunpack.c.h.b16 %v187
    %v757 = vunpack.c.l.b16 %v188
    %v758 = vunpack.c.h.b16 %v188
    %v759 = vunpack.c.l.b16 %v189
    %v760 = vunpack.c.h.b16 %v189
    %v761 = vunpack.c.l.b16 %v190
    %v762 = vunpack.c.h.b16 %v190
    %v763 = vunpack.c.l.b16 %v191
    %v764 = vunpack.c.h.b16 %v191
    %v765 = vunpack.c.l.b16 %v192
    %v766 = vunpack.c.h.b16 %v192
    %v767 = vunpack.c.l.b16 %v193
    %v768 = vunpack.c.h.b16 %v193
    %v769 = vunpack.c.l.b16 %v194
    %v770 = vunpack.c.h.b16 %v194
    %v771 = vunpack.c.l.b16 %v195
    %v772 = vunpack.c.h.b16 %v195
    %v773 = vunpack.c.l.b16 %v196
    %v774 = vunpack.c.h.b16 %v196
    %v775 = vunpack.c.l.b16 %v197
    %v776 = vunpack.c.h.b16 %v197
    %v777 = vunpack.c.l.b16 %v198
    %v778 = vunpack.c.h.b16 %v198
    %v779 = vunpack.c.l.b16 %v199
    %v780 = vunpack.c.h.b16 %v199
    %v781 = vunpack.c.l.b16 %v200
    %v782 = vunpack.c.h.b16 %v200
    %v783 = vunpack.c.l.b16 %v201
    %v784 = vunpack.c.h.b16 %v201
    %v785 = vunpack.c.l.b16 %v202
    %v786 = vunpack.c.h.b16 %v202
    %v787 = vunpack.c.l.b16 %v203
    %v788 = vunpack.c.h.b16 %v203
    %v789 = vunpack.c.l.b16 %v204
    %v790 = vunpack.c.h.b16 %v204
    %v791 = vunpack.c.l.b16 %v205
    %v792 = vunpack.c.h.b16 %v205
    %v793 = vunpack.c.l.b16 %v206
    %v794 = vunpack.c.h.b16 %v206
    %v795 = vunpack.c.l.b16 %v207
    %v796 = vunpack.c.h.b16 %v207
    %v797 = vunpack.c.l.b16 %v208
    %v798 = vunpack.c.h.b16 %v208
    %v799 = vunpack.c.l.b16 %v209
    %v800 = vunpack.c.h.b16 %v209
    %v801 = vunpack.c.l.b16 %v210
    %v802 = vunpack.c.h.b16 %v210
    %v803 = vunpack.c.l.b16 %v211
    %v804 = vunpack.c.h.b16 %v211
    %v805 = vunpack.c.l.b16 %v212
    %v806 = vunpack.c.h.b16 %v212
    %v807 = vunpack.c.l.b16 %v213
    %v808 = vunpack.c.h.b16 %v213
    %v809 = vunpack.c.l.b16 %v214
    %v810 = vunpack.c.h.b16 %v214
    %v811 = vunpack.c.l.b16 %v215
    %v812 = vunpack.c.h.b16 %v215
    %v813 = vunpack.c.l.b16 %v216
    %v814 = vunpack.c.h.b16 %v216
    %v815 = vunpack.c.l.b16 %v217
    %v816 = vunpack.c.h.b16 %v217
    %v817 = vunpack.c.l.b16 %v218
    %v818 = vunpack.c.h.b16 %v218
    %v819 = vunpack.c.l.b16 %v219
    %v820 = vunpack.c.h.b16 %v219
    %v821 = vunpack.c.l.b16 %v220
    %v822 = vunpack.c.h.b16 %v220
    %v823 = vunpack.c.l.b16 %v221
    %v824 = vunpack.c.h.b16 %v221
    %v825 = vunpack.c.l.b16 %v222
    %v826 = vunpack.c.h.b16 %v222
    %v827 = vunpack.c.l.b16 %v223
    %v828 = vunpack.c.h.b16 %v223
    %v829 = vunpack.c.l.b16 %v224
    %v830 = vunpack.c.h.b16 %v224
    %v831 = vunpack.c.l.b16 %v225
    %v832 = vunpack.c.h.b16 %v225
    %v833 = vunpack.c.l.b16 %v226
    %v834 = vunpack.c.h.b16 %v226
    %v835 = vunpack.c.l.b16 %v227
    %v836 = vunpack.c.h.b16 %v227
    %v837 = vunpack.c.l.b16 %v228
    %v838 = vunpack.c.h.b16 %v228
    %v839 = vunpack.c.l.b16 %v229
    %v840 = vunpack.c.h.b16 %v229
    %v841 = vunpack.c.l.b16 %v230
    %v842 = vunpack.c.h.b16 %v230
    %v843 = vunpack.c.l.b16 %v231
    %v844 = vunpack.c.h.b16 %v231
    %v845 = vunpack.c.l.b16 %v232
    %v846 = vunpack.c.h.b16 %v232
    %v847 = vunpack.c.l.b16 %v233
    %v848 = vunpack.c.h.b16 %v233
    %v849 = vunpack.c.l.b16 %v234
    %v850 = vunpack.c.h.b16 %v234
    %v851 = vunpack.c.l.b16 %v235
    %v852 = vunpack.c.h.b16 %v235
    %v853 = vunpack.c.l.b16 %v236
    %v854 = vunpack.c.h.b16 %v236
    %v855 = vunpack.c.l.b16 %v237
    %v856 = vunpack.c.h.b16 %v237
    %v857 = vunpack.c.l.b16 %v238
    %v858 = vunpack.c.h.b16 %v238
    %v859 = vunpack.c.l.b16 %v239
    %v860 = vunpack.c.h.b16 %v239
    %v861 = vunpack.c.l.b16 %v240
    %v862 = vunpack.c.h.b16 %v240
    %v863 = vunpack.c.l.b16 %v241
    %v864 = vunpack.c.h.b16 %v241
    %v865 = vpack.c.b16 %v475, %v473
    %v866 = vpack.c.b16 %v476, %v474
    %v867 = vpack.c.b16 %v479, %v477
    %v868 = vpack.c.b16 %v480, %v478
    %v869 = vpack.c.b16 %v483, %v481
    %v870 = vpack.c.b16 %v484, %v482
    %v871 = vpack.c.b16 %v487, %v485
    %v872 = vpack.c.b16 %v488, %v486
    %v873 = vpack.c.b16 %v491, %v489
    %v874 = vpack.c.b16 %v492, %v490
    %v875 = vpack.c.b16 %v495, %v493
    %v876 = vpack.c.b16 %v496, %v494
    %v877 = vpack.c.b16 %v499, %v497
    %v878 = vpack.c.b16 %v500, %v498
    %v879 = vpack.c.b16 %v503, %v501
    %v880 = vpack.c.b16 %v504, %v502
    %v881 = vpack.c.b16 %v507, %v505
    %v882 = vpack.c.b16 %v508, %v506
    %v883 = vpack.c.b16 %v511, %v509
    %v884 = vpack.c.b16 %v512, %v510
    %v885 = vpack.c.b16 %v515, %v513
    %v886 = vpack.c.b16 %v516, %v514
    %v887 = vpack.c.b16 %v519, %v517
    %v888 = vpack.c.b16 %v520, %v518
    %v889 = vpack.c.b16 %v523, %v521
    %v890 = vpack.c.b16 %v524, %v522
    %v891 = vpack.c.b16 %v527, %v525
    %v892 = vpack.c.b16 %v528, %v526
    %v893 = vpack.c.b16 %v531, %v529
    %v894 = vpack.c.b16 %v532, %v530
    %v895 = vpack.c.b16 %v535, %v533
    %v896 = vpack.c.b16 %v536, %v534
    %v897 = vpack.c.b16 %v539, %v537
    %v898 = vpack.c.b16 %v540, %v538
    %v899 = vpack.c.b16 %v543, %v541
    %v900 = vpack.c.b16 %v544, %v542
    %v901 = vpack.c.b16 %v547, %v545
    %v902 = vpack.c.b16 %v548, %v546
    %v903 = vpack.c.b16 %v551, %v549
    %v904 = vpack.c.b16 %v552, %v550
    %v905 = vpack.c.b16 %v555, %v553
    %v906 = vpack.c.b16 %v556, %v554
    %v907 = vpack.c.b16 %v559, %v557
    %v908 = vpack.c.b16 %v560, %v558
    %v909 = vpack.c.b16 %v563, %v561
    %v910 = vpack.c.b16 %v564, %v562
    %v911 = vpack.c.b16 %v567, %v565
    %v912 = vpack.c.b16 %v568, %v566
    %v913 = vpack.c.b16 %v571, %v569
    %v914 = vpack.c.b16 %v572, %v570
    %v915 = vpack.c.b16 %v575, %v573
    %v916 = vpack.c.b16 %v576, %v574
    %v917 = vpack.c.b16 %v579, %v577
    %v918 = vpack.c.b16 %v580, %v578
    %v919 = vpack.c.b16 %v583, %v581
    %v920 = vpack.c.b16 %v584, %v582
    %v921 = vpack.c.b16 %v587, %v585
    %v922 = vpack.c.b16 %v588, %v586
    %v923 = vpack.c.b16 %v591, %v589
    %v924 = vpack.c.b16 %v592, %v590
    %v925 = vpack.c.b16 %v595, %v593
    %v926 = vpack.c.b16 %v596, %v594
    %v927 = vpack.c.b16 %v599, %v597
    %v928 = vpack.c.b16 %v600, %v598
    %v929 = vpack.c.b16 %v603, %v601
    %v930 = vpack.c.b16 %v604, %v602
    %v931 = vpack.c.b16 %v607, %v605
    %v932 = vpack.c.b16 %v608, %v606
    %v933 = vpack.c.b16 %v611, %v609
    %v934 = vpack.c.b16 %v612, %v610
    %v935 = vpack.c.b16 %v615, %v613
    %v936 = vpack.c.b16 %v616, %v614
    %v937 = vpack.c.b16 %v619, %v617
    %v938 = vpack.c.b16 %v620, %v618
    %v939 = vpack.c.b16 %v623, %v621
    %v940 = vpack.c.b16 %v624, %v622
    %v941 = vpack.c.b16 %v627, %v625
    %v942 = vpack.c.b16 %v628, %v626
    %v943 = vpack.c.b16 %v631, %v629
    %v944 = vpack.c.b16 %v632, %v630
    %v945 = vpack.c.b16 %v635, %v633
    %v946 = vpack.c.b16 %v636, %v634
    %v947 = vpack.c.b16 %v639, %v637
    %v948 = vpack.c.b16 %v640, %v638
    %v949 = vpack.c.b16 %v643, %v641
    %v950 = vpack.c.b16 %v644, %v642
    %v951 = vpack.c.b16 %v647, %v645
    %v952 = vpack.c.b16 %v648, %v646
    %v953 = vpack.c.b16 %v651, %v649
    %v954 = vpack.c.b16 %v652, %v650
    %v955 = vpack.c.b16 %v655, %v653
    %v956 = vpack.c.b16 %v656, %v654
    %v957 = vpack.c.b16 %v659, %v657
    %v958 = vpack.c.b16 %v660, %v658
    %v959 = vpack.c.b16 %v663, %v661
    %v960 = vpack.c.b16 %v664, %v662
    %v961 = vpack.c.b16 %v667, %v665
    %v962 = vpack.c.b16 %v668, %v666
    %v963 = vpack.c.b16 %v671, %v669
    %v964 = vpack.c.b16 %v672, %v670
    %v965 = vpack.c.b16 %v675, %v673
    %v966 = vpack.c.b16 %v676, %v674
    %v967 = vpack.c.b16 %v679, %v677
    %v968 = vpack.c.b16 %v680, %v678
    %v969 = vpack.c.b16 %v683, %v681
    %v970 = vpack.c.b16 %v684, %v682
    %v971 = vpack.c.b16 %v687, %v685
    %v972 = vpack.c.b16 %v688, %v686
    %v973 = vpack.c.b16 %v691, %v689
    %v974 = vpack.c.b16 %v692, %v690
    %v975 = vpack.c.b16 %v695, %v693
    %v976 = vpack.c.b16 %v696, %v694
    %v977 = vpack.c.b16 %v699, %v697
    %v978 = vpack.c.b16 %v700, %v698
    %v979 = vpack.c.b16 %v703, %v701
    %v980 = vpack.c.b16 %v704, %v702
    %v981 = vpack.c.b16 %v707, %v705
    %v982 = vpack.c.b16 %v708, %v706
    %v983 = vpack.c.b16 %v711, %v709
    %v984 = vpack.c.b16 %v712, %v710
    %v985 = vpack.c.b16 %v715, %v713
    %v986 = vpack.c.b16 %v716, %v714
    %v987 = vpack.c.b16 %v719, %v717
    %v988 = vpack.c.b16 %v720, %v718
    %v989 = vpack.c.b16 %v723, %v721
    %v990 = vpack.c.b16 %v724, %v722
    %v991 = vpack.c.b16 %v727, %v725
    %v992 = vpack.c.b16 %v728, %v726
    %v993 = vpack.c.b16 %v731, %v729
    %v994 = vpack.c.b16 %v732, %v730
    %v995 = vpack.c.b16 %v735, %v733
    %v996 = vpack.c.b16 %v736, %v734
    %v997 = vpack.c.b16 %v739, %v737
    %v998 = vpack.c.b16 %v740, %v738
    %v999 = vpack.c.b16 %v743, %v741
    %v1000 = vpack.c.b16 %v744, %v742
    %v1001 = vpack.c.b16 %v747, %v745
    %v1002 = vpack.c.b16 %v748, %v746
    %v1003 = vpack.c.b16 %v751, %v749
    %v1004 = vpack.c.b16 %v752, %v750
    %v1005 = vpack.c.b16 %v755, %v753
    %v1006 = vpack.c.b16 %v756, %v754
    %v1007 = vpack.c.b16 %v759, %v757
    %v1008 = vpack.c.b16 %v760, %v758
    %v1009 = vpack.c.b16 %v763, %v761
    %v1010 = vpack.c.b16 %v764, %v762
    %v1011 = vpack.c.b16 %v767, %v765
    %v1012 = vpack.c.b16 %v768, %v766
    %v1013 = vpack.c.b16 %v771, %v769
    %v1014 = vpack.c.b16 %v772, %v770
    %v1015 = vpack.c.b16 %v775, %v773
    %v1016 = vpack.c.b16 %v776, %v774
    %v1017 = vpack.c.b16 %v779, %v777
    %v1018 = vpack.c.b16 %v780, %v778
    %v1019 = vpack.c.b16 %v783, %v781
    %v1020 = vpack.c.b16 %v784, %v782
    %v1021 = vpack.c.b16 %v787, %v785
    %v1022 = vpack.c.b16 %v788, %v786
    %v1023 = vpack.c.b16 %v791, %v789
    %v1024 = vpack.c.b16 %v792, %v790
    %v1025 = vpack.c.b16 %v795, %v793
    %v1026 = vpack.c.b16 %v796, %v794
    %v1027 = vpack.c.b16 %v799, %v797
    %v1028 = vpack.c.b16 %v800, %v798
    %v1029 = vpack.c.b16 %v803, %v801
    %v1030 = vpack.c.b16 %v804, %v802
    %v1031 = vpack.c.b16 %v807, %v805
    %v1032 = vpack.c.b16 %v808, %v806
    %v1033 = vpack.c.b16 %v811, %v809
    %v1034 = vpack.c.b16 %v812, %v810
    %v1035 = vpack.c.b16 %v815, %v813
    %v1036 = vpack.c.b16 %v816, %v814
    %v1037 = vpack.c.b16 %v819, %v817
    %v1038 = vpack.c.b16 %v820, %v818
    %v1039 = vpack.c.b16 %v823, %v821
    %v1040 = vpack.c.b16 %v824, %v822
    %v1041 = vpack.c.b16 %v827, %v825
    %v1042 = vpack.c.b16 %v828, %v826
    %v1043 = vpack.c.b16 %v831, %v829
    %v1044 = vpack.c.b16 %v832, %v830
    %v1045 = vpack.c.b16 %v835, %v833
    %v1046 = vpack.c.b16 %v836, %v834
    %v1047 = vpack.c.b16 %v839, %v837
    %v1048 = vpack.c.b16 %v840, %v838
    %v1049 = vpack.c.b16 %v843, %v841
    %v1050 = vpack.c.b16 %v844, %v842
    %v1051 = vpack.c.b16 %v847, %v845
    %v1052 = vpack.c.b16 %v848, %v846
    %v1053 = vpack.c.b16 %v851, %v849
    %v1054 = vpack.c.b16 %v852, %v850
    %v1055 = vpack.c.b16 %v855, %v853
    %v1056 = vpack.c.b16 %v856, %v854
    %v1057 = vpack.c.b16 %v859, %v857
    %v1058 = vpack.c.b16 %v860, %v858
    %v1059 = vpack.c.b16 %v863, %v861
    %v1060 = vpack.c.b16 %v864, %v862
    %vm1257 = vcmask 261120
    %v1258 = vsel %vm1257, %v264, 0
    %1260 = vmatpush.bf16.msra.mxu0 %v879
    %1261 = vmatpush.bf16.msra.mxu0 %v877
    %1262 = vmatpush.bf16.msra.mxu0 %v875
    %1263 = vmatpush.bf16.msra.mxu0 %v873
    %1264 = vmatpush.bf16.msra.mxu0 %v871
    %1265 = vmatpush.bf16.msra.mxu0 %v869
    %1266 = vmatpush.bf16.msra.mxu0 %v867
    %1267 = vmatpush.bf16.msra.mxu0 %v865
    %1268 = vmatmul.bf16.gmra.mxu0 %v250
    %v1269 = vpop.f32.mrf.mxu0
    %v1270 = vadd.f32 %v244, %v1269
    %v1271 = vpop.f32.mrf.mxu0
    %1272 = vdwg.mxu0
    %1273 = vmatpush.bf16.msra.mxu0 %v895
    %1274 = vmatpush.bf16.msra.mxu0 %v893
    %1275 = vmatpush.bf16.msra.mxu0 %v891
    %1276 = vmatpush.bf16.msra.mxu0 %v889
    %1277 = vmatpush.bf16.msra.mxu0 %v887
    %1278 = vmatpush.bf16.msra.mxu0 %v885
    %1279 = vmatpush.bf16.msra.mxu0 %v883
    %1280 = vmatpush.bf16.msra.mxu0 %v881
    %1281 = vmatmul.bf16.gmra.mxu0 %v251
    %v1282 = vpop.f32.mrf.mxu0
    %v1283 = vadd.f32 %v1270, %v1282
    %v1284 = vpop.f32.mrf.mxu0
    %1285 = vdwg.mxu0
    %1286 = vmatpush.bf16.msra.mxu0 %v911
    %1287 = vmatpush.bf16.msra.mxu0 %v909
    %1288 = vmatpush.bf16.msra.mxu0 %v907
    %1289 = vmatpush.bf16.msra.mxu0 %v905
    %1290 = vmatpush.bf16.msra.mxu0 %v903
    %1291 = vmatpush.bf16.msra.mxu0 %v901
    %1292 = vmatpush.bf16.msra.mxu0 %v899
    %1293 = vmatpush.bf16.msra.mxu0 %v897
    %1294 = vmatmul.bf16.gmra.mxu0 %v252
    %v1295 = vpop.f32.mrf.mxu0
    %v1296 = vadd.f32 %v1283, %v1295
    %v1297 = vpop.f32.mrf.mxu0
    %1298 = vdwg.mxu0
    %1299 = vmatpush.bf16.msra.mxu0 %v927
    %1300 = vmatpush.bf16.msra.mxu0 %v925
    %1301 = vmatpush.bf16.msra.mxu0 %v923
    %1302 = vmatpush.bf16.msra.mxu0 %v921
    %1303 = vmatpush.bf16.msra.mxu0 %v919
    %1304 = vmatpush.bf16.msra.mxu0 %v917
    %1305 = vmatpush.bf16.msra.mxu0 %v915
    %1306 = vmatpush.bf16.msra.mxu0 %v913
    %1307 = vmatmul.bf16.gmra.mxu0 %v253
    %v1308 = vpop.f32.mrf.mxu0
    %v1309 = vadd.f32 %v1296, %v1308
    %v1310 = vpop.f32.mrf.mxu0
    %1311 = vdwg.mxu0
    %1312 = vmatpush.bf16.msra.mxu0 %v943
    %1313 = vmatpush.bf16.msra.mxu0 %v941
    %1314 = vmatpush.bf16.msra.mxu0 %v939
    %1315 = vmatpush.bf16.msra.mxu0 %v937
    %1316 = vmatpush.bf16.msra.mxu0 %v935
    %1317 = vmatpush.bf16.msra.mxu0 %v933
    %1318 = vmatpush.bf16.msra.mxu0 %v931
    %1319 = vmatpush.bf16.msra.mxu0 %v929
    %1320 = vmatmul.bf16.gmra.mxu0 %v254
    %v1321 = vpop.f32.mrf.mxu0
    %v1322 = vadd.f32 %v1309, %v1321
    %v1323 = vpop.f32.mrf.mxu0
    %1324 = vdwg.mxu0
    %1325 = vmatpush.bf16.msra.mxu0 %v959
    %1326 = vmatpush.bf16.msra.mxu0 %v957
    %1327 = vmatpush.bf16.msra.mxu0 %v955
    %1328 = vmatpush.bf16.msra.mxu0 %v953
    %1329 = vmatpush.bf16.msra.mxu0 %v951
    %1330 = vmatpush.bf16.msra.mxu0 %v949
    %1331 = vmatpush.bf16.msra.mxu0 %v947
    %1332 = vmatpush.bf16.msra.mxu0 %v945
    %1333 = vmatmul.bf16.gmra.mxu0 %v255
    %v1334 = vpop.f32.mrf.mxu0
    %v1335 = vadd.f32 %v1322, %v1334
    %v1336 = vpop.f32.mrf.mxu0
    %1337 = vdwg.mxu0
    %1338 = vmatpush.bf16.msra.mxu0 %v975
    %1339 = vmatpush.bf16.msra.mxu0 %v973
    %1340 = vmatpush.bf16.msra.mxu0 %v971
    %1341 = vmatpush.bf16.msra.mxu0 %v969
    %1342 = vmatpush.bf16.msra.mxu0 %v967
    %1343 = vmatpush.bf16.msra.mxu0 %v965
    %1344 = vmatpush.bf16.msra.mxu0 %v963
    %1345 = vmatpush.bf16.msra.mxu0 %v961
    %1346 = vmatmul.bf16.gmra.mxu0 %v256
    %v1347 = vpop.f32.mrf.mxu0
    %v1348 = vadd.f32 %v1335, %v1347
    %v1349 = vpop.f32.mrf.mxu0
    %1350 = vdwg.mxu0
    %1351 = vmatpush.bf16.msra.mxu0 %v991
    %1352 = vmatpush.bf16.msra.mxu0 %v989
    %1353 = vmatpush.bf16.msra.mxu0 %v987
    %1354 = vmatpush.bf16.msra.mxu0 %v985
    %1355 = vmatpush.bf16.msra.mxu0 %v983
    %1356 = vmatpush.bf16.msra.mxu0 %v981
    %1357 = vmatpush.bf16.msra.mxu0 %v979
    %1358 = vmatpush.bf16.msra.mxu0 %v977
    %1359 = vmatmul.bf16.gmra.mxu0 %v257
    %v1360 = vpop.f32.mrf.mxu0
    %v1361 = vadd.f32 %v1348, %v1360
    %v1362 = vpop.f32.mrf.mxu0
    %1363 = vdwg.mxu0
    %1364 = vmatpush.bf16.msra.mxu0 %v1007
    %1365 = vmatpush.bf16.msra.mxu0 %v1005
    %1366 = vmatpush.bf16.msra.mxu0 %v1003
    %1367 = vmatpush.bf16.msra.mxu0 %v1001
    %1368 = vmatpush.bf16.msra.mxu0 %v999
    %1369 = vmatpush.bf16.msra.mxu0 %v997
    %1370 = vmatpush.bf16.msra.mxu0 %v995
    %1371 = vmatpush.bf16.msra.mxu0 %v993
    %1372 = vmatmul.bf16.gmra.mxu0 %v260
    %v1373 = vpop.f32.mrf.mxu0
    %v1374 = vadd.f32 %v1361, %v1373
    %v1375 = vpop.f32.mrf.mxu0
    %1376 = vdwg.mxu0
    %1377 = vmatpush.bf16.msra.mxu0 %v1023
    %1378 = vmatpush.bf16.msra.mxu0 %v1021
    %1379 = vmatpush.bf16.msra.mxu0 %v1019
    %1380 = vmatpush.bf16.msra.mxu0 %v1017
    %1381 = vmatpush.bf16.msra.mxu0 %v1015
    %1382 = vmatpush.bf16.msra.mxu0 %v1013
    %1383 = vmatpush.bf16.msra.mxu0 %v1011
    %1384 = vmatpush.bf16.msra.mxu0 %v1009
    %1385 = vmatmul.bf16.gmra.mxu0 %v261
    %v1386 = vpop.f32.mrf.mxu0
    %v1387 = vadd.f32 %v1374, %v1386
    %v1388 = vpop.f32.mrf.mxu0
    %1389 = vdwg.mxu0
    %1390 = vmatpush.bf16.msra.mxu0 %v1039
    %1391 = vmatpush.bf16.msra.mxu0 %v1037
    %1392 = vmatpush.bf16.msra.mxu0 %v1035
    %1393 = vmatpush.bf16.msra.mxu0 %v1033
    %1394 = vmatpush.bf16.msra.mxu0 %v1031
    %1395 = vmatpush.bf16.msra.mxu0 %v1029
    %1396 = vmatpush.bf16.msra.mxu0 %v1027
    %1397 = vmatpush.bf16.msra.mxu0 %v1025
    %1398 = vmatmul.bf16.gmra.mxu0 %v262
    %v1399 = vpop.f32.mrf.mxu0
    %v1400 = vadd.f32 %v1387, %v1399
    %v1401 = vpop.f32.mrf.mxu0
    %1402 = vdwg.mxu0
    %1403 = vmatpush.bf16.msra.mxu0 %v1055
    %1404 = vmatpush.bf16.msra.mxu0 %v1053
    %1405 = vmatpush.bf16.msra.mxu0 %v1051
    %1406 = vmatpush.bf16.msra.mxu0 %v1049
    %1407 = vmatpush.bf16.msra.mxu0 %v1047
    %1408 = vmatpush.bf16.msra.mxu0 %v1045
    %1409 = vmatpush.bf16.msra.mxu0 %v1043
    %1410 = vmatpush.bf16.msra.mxu0 %v1041
    %1411 = vmatmul.bf16.gmra.mxu0 %v263
    %v1412 = vpop.f32.mrf.mxu0
    %v1413 = vadd.f32 %v1400, %v1412
    %v1414 = vpop.f32.mrf.mxu0
    %1415 = vdwg.mxu0
    %1416 = vmatpush.bf16.msra.mxu0 0
    %1417 = vmatpush.bf16.msra.mxu0 0
    %1418 = vmatpush.bf16.msra.mxu0 0
    %1419 = vmatpush.bf16.msra.mxu0 0
    %1420 = vmatpush.bf16.msra.mxu0 0
    %1421 = vmatpush.bf16.msra.mxu0 0
    %1422 = vmatpush.bf16.msra.mxu0 %v1059
    %1423 = vmatpush.bf16.msra.mxu0 %v1057
    %1424 = vmatmul.bf16.gmra.mxu0 %v1258
    %v1425 = vpop.f32.mrf.mxu0
    %v1426 = vadd.f32 %v1413, %v1425
    %v1427 = vpop.f32.mrf.mxu0
    %1428 = vdwg.mxu0
    %1429 = vmatpush.bf16.msra.mxu0 %v880
    %1430 = vmatpush.bf16.msra.mxu0 %v878
    %1431 = vmatpush.bf16.msra.mxu0 %v876
    %1432 = vmatpush.bf16.msra.mxu0 %v874
    %1433 = vmatpush.bf16.msra.mxu0 %v872
    %1434 = vmatpush.bf16.msra.mxu0 %v870
    %1435 = vmatpush.bf16.msra.mxu0 %v868
    %1436 = vmatpush.bf16.msra.mxu0 %v866
    %1437 = vmatmul.bf16.gmra.mxu0 %v250
    %v1438 = vpop.f32.mrf.mxu0
    %v1439 = vadd.f32 %v245, %v1438
    %v1440 = vpop.f32.mrf.mxu0
    %1441 = vdwg.mxu0
    %1442 = vmatpush.bf16.msra.mxu0 %v896
    %1443 = vmatpush.bf16.msra.mxu0 %v894
    %1444 = vmatpush.bf16.msra.mxu0 %v892
    %1445 = vmatpush.bf16.msra.mxu0 %v890
    %1446 = vmatpush.bf16.msra.mxu0 %v888
    %1447 = vmatpush.bf16.msra.mxu0 %v886
    %1448 = vmatpush.bf16.msra.mxu0 %v884
    %1449 = vmatpush.bf16.msra.mxu0 %v882
    %1450 = vmatmul.bf16.gmra.mxu0 %v251
    %v1451 = vpop.f32.mrf.mxu0
    %v1452 = vadd.f32 %v1439, %v1451
    %v1453 = vpop.f32.mrf.mxu0
    %1454 = vdwg.mxu0
    %1455 = vmatpush.bf16.msra.mxu0 %v912
    %1456 = vmatpush.bf16.msra.mxu0 %v910
    %1457 = vmatpush.bf16.msra.mxu0 %v908
    %1458 = vmatpush.bf16.msra.mxu0 %v906
    %1459 = vmatpush.bf16.msra.mxu0 %v904
    %1460 = vmatpush.bf16.msra.mxu0 %v902
    %1461 = vmatpush.bf16.msra.mxu0 %v900
    %1462 = vmatpush.bf16.msra.mxu0 %v898
    %1463 = vmatmul.bf16.gmra.mxu0 %v252
    %v1464 = vpop.f32.mrf.mxu0
    %v1465 = vadd.f32 %v1452, %v1464
    %v1466 = vpop.f32.mrf.mxu0
    %1467 = vdwg.mxu0
    %1468 = vmatpush.bf16.msra.mxu0 %v928
    %1469 = vmatpush.bf16.msra.mxu0 %v926
    %1470 = vmatpush.bf16.msra.mxu0 %v924
    %1471 = vmatpush.bf16.msra.mxu0 %v922
    %1472 = vmatpush.bf16.msra.mxu0 %v920
    %1473 = vmatpush.bf16.msra.mxu0 %v918
    %1474 = vmatpush.bf16.msra.mxu0 %v916
    %1475 = vmatpush.bf16.msra.mxu0 %v914
    %1476 = vmatmul.bf16.gmra.mxu0 %v253
    %v1477 = vpop.f32.mrf.mxu0
    %v1478 = vadd.f32 %v1465, %v1477
    %v1479 = vpop.f32.mrf.mxu0
    %1480 = vdwg.mxu0
    %1481 = vmatpush.bf16.msra.mxu0 %v944
    %1482 = vmatpush.bf16.msra.mxu0 %v942
    %1483 = vmatpush.bf16.msra.mxu0 %v940
    %1484 = vmatpush.bf16.msra.mxu0 %v938
    %1485 = vmatpush.bf16.msra.mxu0 %v936
    %1486 = vmatpush.bf16.msra.mxu0 %v934
    %1487 = vmatpush.bf16.msra.mxu0 %v932
    %1488 = vmatpush.bf16.msra.mxu0 %v930
    %1489 = vmatmul.bf16.gmra.mxu0 %v254
    %v1490 = vpop.f32.mrf.mxu0
    %v1491 = vadd.f32 %v1478, %v1490
    %v1492 = vpop.f32.mrf.mxu0
    %1493 = vdwg.mxu0
    %1494 = vmatpush.bf16.msra.mxu0 %v960
    %1495 = vmatpush.bf16.msra.mxu0 %v958
    %1496 = vmatpush.bf16.msra.mxu0 %v956
    %1497 = vmatpush.bf16.msra.mxu0 %v954
    %1498 = vmatpush.bf16.msra.mxu0 %v952
    %1499 = vmatpush.bf16.msra.mxu0 %v950
    %1500 = vmatpush.bf16.msra.mxu0 %v948
    %1501 = vmatpush.bf16.msra.mxu0 %v946
    %1502 = vmatmul.bf16.gmra.mxu0 %v255
    %v1503 = vpop.f32.mrf.mxu0
    %v1504 = vadd.f32 %v1491, %v1503
    %v1505 = vpop.f32.mrf.mxu0
    %1506 = vdwg.mxu0
    %1507 = vmatpush.bf16.msra.mxu0 %v976
    %1508 = vmatpush.bf16.msra.mxu0 %v974
    %1509 = vmatpush.bf16.msra.mxu0 %v972
    %1510 = vmatpush.bf16.msra.mxu0 %v970
    %1511 = vmatpush.bf16.msra.mxu0 %v968
    %1512 = vmatpush.bf16.msra.mxu0 %v966
    %1513 = vmatpush.bf16.msra.mxu0 %v964
    %1514 = vmatpush.bf16.msra.mxu0 %v962
    %1515 = vmatmul.bf16.gmra.mxu0 %v256
    %v1516 = vpop.f32.mrf.mxu0
    %v1517 = vadd.f32 %v1504, %v1516
    %v1518 = vpop.f32.mrf.mxu0
    %1519 = vdwg.mxu0
    %1520 = vmatpush.bf16.msra.mxu0 %v992
    %1521 = vmatpush.bf16.msra.mxu0 %v990
    %1522 = vmatpush.bf16.msra.mxu0 %v988
    %1523 = vmatpush.bf16.msra.mxu0 %v986
    %1524 = vmatpush.bf16.msra.mxu0 %v984
    %1525 = vmatpush.bf16.msra.mxu0 %v982
    %1526 = vmatpush.bf16.msra.mxu0 %v980
    %1527 = vmatpush.bf16.msra.mxu0 %v978
    %1528 = vmatmul.bf16.gmra.mxu0 %v257
    %v1529 = vpop.f32.mrf.mxu0
    %v1530 = vadd.f32 %v1517, %v1529
    %v1531 = vpop.f32.mrf.mxu0
    %1532 = vdwg.mxu0
    %1533 = vmatpush.bf16.msra.mxu0 %v1008
    %1534 = vmatpush.bf16.msra.mxu0 %v1006
    %1535 = vmatpush.bf16.msra.mxu0 %v1004
    %1536 = vmatpush.bf16.msra.mxu0 %v1002
    %1537 = vmatpush.bf16.msra.mxu0 %v1000
    %1538 = vmatpush.bf16.msra.mxu0 %v998
    %1539 = vmatpush.bf16.msra.mxu0 %v996
    %1540 = vmatpush.bf16.msra.mxu0 %v994
    %1541 = vmatmul.bf16.gmra.mxu0 %v260
    %v1542 = vpop.f32.mrf.mxu0
    %v1543 = vadd.f32 %v1530, %v1542
    %v1544 = vpop.f32.mrf.mxu0
    %1545 = vdwg.mxu0
    %1546 = vmatpush.bf16.msra.mxu0 %v1024
    %1547 = vmatpush.bf16.msra.mxu0 %v1022
    %1548 = vmatpush.bf16.msra.mxu0 %v1020
    %1549 = vmatpush.bf16.msra.mxu0 %v1018
    %1550 = vmatpush.bf16.msra.mxu0 %v1016
    %1551 = vmatpush.bf16.msra.mxu0 %v1014
    %1552 = vmatpush.bf16.msra.mxu0 %v1012
    %1553 = vmatpush.bf16.msra.mxu0 %v1010
    %1554 = vmatmul.bf16.gmra.mxu0 %v261
    %v1555 = vpop.f32.mrf.mxu0
    %v1556 = vadd.f32 %v1543, %v1555
    %v1557 = vpop.f32.mrf.mxu0
    %1558 = vdwg.mxu0
    %1559 = vmatpush.bf16.msra.mxu0 %v1040
    %1560 = vmatpush.bf16.msra.mxu0 %v1038
    %1561 = vmatpush.bf16.msra.mxu0 %v1036
    %1562 = vmatpush.bf16.msra.mxu0 %v1034
    %1563 = vmatpush.bf16.msra.mxu0 %v1032
    %1564 = vmatpush.bf16.msra.mxu0 %v1030
    %1565 = vmatpush.bf16.msra.mxu0 %v1028
    %1566 = vmatpush.bf16.msra.mxu0 %v1026
    %1567 = vmatmul.bf16.gmra.mxu0 %v262
    %v1568 = vpop.f32.mrf.mxu0
    %v1569 = vadd.f32 %v1556, %v1568
    %v1570 = vpop.f32.mrf.mxu0
    %1571 = vdwg.mxu0
    %1572 = vmatpush.bf16.msra.mxu0 %v1056
    %1573 = vmatpush.bf16.msra.mxu0 %v1054
    %1574 = vmatpush.bf16.msra.mxu0 %v1052
    %1575 = vmatpush.bf16.msra.mxu0 %v1050
    %1576 = vmatpush.bf16.msra.mxu0 %v1048
    %1577 = vmatpush.bf16.msra.mxu0 %v1046
    %1578 = vmatpush.bf16.msra.mxu0 %v1044
    %1579 = vmatpush.bf16.msra.mxu0 %v1042
    %1580 = vmatmul.bf16.gmra.mxu0 %v263
    %v1581 = vpop.f32.mrf.mxu0
    %v1582 = vadd.f32 %v1569, %v1581
    %v1583 = vpop.f32.mrf.mxu0
    %1584 = vdwg.mxu0
    %1585 = vmatpush.bf16.msra.mxu0 0
    %1586 = vmatpush.bf16.msra.mxu0 0
    %1587 = vmatpush.bf16.msra.mxu0 0
    %1588 = vmatpush.bf16.msra.mxu0 0
    %1589 = vmatpush.bf16.msra.mxu0 0
    %1590 = vmatpush.bf16.msra.mxu0 0
    %1591 = vmatpush.bf16.msra.mxu0 %v1060
    %1592 = vmatpush.bf16.msra.mxu0 %v1058
    %1593 = vmatmul.bf16.gmra.mxu0 %v1258
    %v1594 = vpop.f32.mrf.mxu0
    %v1595 = vadd.f32 %v1582, %v1594
    %v1596 = vpop.f32.mrf.mxu0
    %1597 = vdwg.mxu0
    %v1598 = vmax.f32 %v1426, 0.0
    %v1599 = vmax.f32 %v1595, 0.0
    %v1600 = vpack.c.bf16 %v1598, %v1598
    %v1601 = vpack.c.bf16 %v1599, %v1599
    %v1602 = vld [vmem:[%s3] sm:$0xf]
    %v1603 = vld [vmem:[%s3 + $0x4] sm:$0xf]
    %v1604 = vld [vmem:[%s3 + $0x8] sm:$0xf]
    %v1605 = vld [vmem:[%s3 + $0xc] sm:$0xf]
    %v1606 = vld [vmem:[%s3 + $0x10] sm:$0xf]
    %v1607 = vld [vmem:[%s3 + $0x14] sm:$0xf]
    %v1608 = vld [vmem:[%s3 + $0x18] sm:$0xf]
    %v1609 = vld [vmem:[%s3 + $0x1c] sm:$0xf]
    %v1610 = vld [vmem:[%s3 + $0x20] sm:$0xf]
    %v1611 = vld [vmem:[%s3 + $0x24] sm:$0xf]
    %v1612 = vld [vmem:[%s3 + $0x28] sm:$0xf]
    %v1613 = vld [vmem:[%s3 + $0x2c] sm:$0xf]
    %v1614 = vld [vmem:[%s3 + $0x30] sm:$0xf]
    %v1615 = vld [vmem:[%s3 + $0x34] sm:$0xf]
    %v1616 = vld [vmem:[%s3 + $0x38] sm:$0xf]
    %v1617 = vld [vmem:[%s3 + $0x3c] sm:$0xf]
    %v1618 = vld [vmem:[%s3 + $0x40] sm:$0xf]
    %v1619 = vld [vmem:[%s3 + $0x44] sm:$0xf]
    %v1620 = vld [vmem:[%s3 + $0x48] sm:$0xf]
    %v1621 = vld [vmem:[%s3 + $0x4c] sm:$0xf]
    %v1622 = vld [vmem:[%s3 + $0x50] sm:$0xf]
    %v1623 = vld [vmem:[%s3 + $0x54] sm:$0xf]
    %v1624 = vld [vmem:[%s3 + $0x58] sm:$0xf]
    %v1625 = vld [vmem:[%s3 + $0x5c] sm:$0xf]
    %v1626 = vld [vmem:[%s3 + $0x60] sm:$0xf]
    %v1627 = vld [vmem:[%s3 + $0x64] sm:$0xf]
    %v1628 = vld [vmem:[%s3 + $0x68] sm:$0xf]
    %v1629 = vld [vmem:[%s3 + $0x6c] sm:$0xf]
    %v1630 = vld [vmem:[%s3 + $0x70] sm:$0xf]
    %v1631 = vld [vmem:[%s3 + $0x74] sm:$0xf]
    %v1632 = vld [vmem:[%s3 + $0x78] sm:$0xf]
    %v1633 = vld [vmem:[%s3 + $0x7c] sm:$0xf]
    %v1634 = vld [vmem:[%s4] sm:$0x1]
    %v1636 = vperm.slane %v1634, 0
    %v1670 = vunpack.c.l.b16 %v1602
    %v1671 = vunpack.c.l.b16 %v1603
    %v1672 = vunpack.c.l.b16 %v1604
    %v1673 = vunpack.c.l.b16 %v1605
    %v1674 = vunpack.c.l.b16 %v1606
    %v1675 = vunpack.c.l.b16 %v1607
    %v1676 = vunpack.c.l.b16 %v1608
    %v1677 = vunpack.c.l.b16 %v1609
    %v1678 = vunpack.c.l.b16 %v1610
    %v1679 = vunpack.c.l.b16 %v1611
    %v1680 = vunpack.c.l.b16 %v1612
    %v1681 = vunpack.c.l.b16 %v1613
    %v1682 = vunpack.c.l.b16 %v1614
    %v1683 = vunpack.c.l.b16 %v1615
    %v1684 = vunpack.c.l.b16 %v1616
    %v1685 = vunpack.c.l.b16 %v1617
    %v1686 = vunpack.c.l.b16 %v1618
    %v1687 = vunpack.c.l.b16 %v1619
    %v1688 = vunpack.c.l.b16 %v1620
    %v1689 = vunpack.c.l.b16 %v1621
    %v1690 = vunpack.c.l.b16 %v1622
    %v1691 = vunpack.c.l.b16 %v1623
    %v1692 = vunpack.c.l.b16 %v1624
    %v1693 = vunpack.c.l.b16 %v1625
    %v1694 = vunpack.c.l.b16 %v1626
    %v1695 = vunpack.c.l.b16 %v1627
    %v1696 = vunpack.c.l.b16 %v1628
    %v1697 = vunpack.c.l.b16 %v1629
    %v1698 = vunpack.c.l.b16 %v1630
    %v1699 = vunpack.c.l.b16 %v1631
    %v1700 = vunpack.c.l.b16 %v1632
    %v1701 = vunpack.c.l.b16 %v1633
    %v1702 = vpack.c.b16 %v1671, %v1670
    %v1703 = vpack.c.b16 %v1673, %v1672
    %v1704 = vpack.c.b16 %v1675, %v1674
    %v1705 = vpack.c.b16 %v1677, %v1676
    %v1706 = vpack.c.b16 %v1679, %v1678
    %v1707 = vpack.c.b16 %v1681, %v1680
    %v1708 = vpack.c.b16 %v1683, %v1682
    %v1709 = vpack.c.b16 %v1685, %v1684
    %v1710 = vpack.c.b16 %v1687, %v1686
    %v1711 = vpack.c.b16 %v1689, %v1688
    %v1712 = vpack.c.b16 %v1691, %v1690
    %v1713 = vpack.c.b16 %v1693, %v1692
    %v1714 = vpack.c.b16 %v1695, %v1694
    %v1715 = vpack.c.b16 %v1697, %v1696
    %v1716 = vpack.c.b16 %v1699, %v1698
    %v1717 = vpack.c.b16 %v1701, %v1700
    %1734 = vmatpush.bf16.msra.mxu0 %v1709
    %1735 = vmatpush.bf16.msra.mxu0 %v1708
    %1736 = vmatpush.bf16.msra.mxu0 %v1707
    %1737 = vmatpush.bf16.msra.mxu0 %v1706
    %1738 = vmatpush.bf16.msra.mxu0 %v1705
    %1739 = vmatpush.bf16.msra.mxu0 %v1704
    %1740 = vmatpush.bf16.msra.mxu0 %v1703
    %1741 = vmatpush.bf16.msra.mxu0 %v1702
    %1742 = vmatmul.bf16.gmra.mxu0 %v1600
    %v1743 = vpop.f32.mrf.mxu0
    %v1744 = vadd.f32 %v1636, %v1743
    %v1745 = vpop.f32.mrf.mxu0
    %1746 = vdwg.mxu0
    %1747 = vmatpush.bf16.msra.mxu0 %v1717
    %1748 = vmatpush.bf16.msra.mxu0 %v1716
    %1749 = vmatpush.bf16.msra.mxu0 %v1715
    %1750 = vmatpush.bf16.msra.mxu0 %v1714
    %1751 = vmatpush.bf16.msra.mxu0 %v1713
    %1752 = vmatpush.bf16.msra.mxu0 %v1712
    %1753 = vmatpush.bf16.msra.mxu0 %v1711
    %1754 = vmatpush.bf16.msra.mxu0 %v1710
    %1755 = vmatmul.bf16.gmra.mxu0 %v1601
    %v1756 = vpop.f32.mrf.mxu0
    %v1757 = vadd.f32 %v1744, %v1756
    %v1758 = vpop.f32.mrf.mxu0
    %1759 = vdwg.mxu0
    %v1760 = vmax.f32 %v1757, 0.0
    %v1761 = vpack.c.bf16 %v1760, %v1760
    %v1762 = vld [vmem:[%s5] sm:$0xf]
    %v1763 = vld [vmem:[%s5 + $0x4] sm:$0xf]
    %v1764 = vld [vmem:[%s5 + $0x8] sm:$0xf]
    %v1765 = vld [vmem:[%s5 + $0xc] sm:$0xf]
    %v1766 = vld [vmem:[%s5 + $0x10] sm:$0xf]
    %v1767 = vld [vmem:[%s5 + $0x14] sm:$0xf]
    %v1768 = vld [vmem:[%s5 + $0x18] sm:$0xf]
    %v1769 = vld [vmem:[%s5 + $0x1c] sm:$0xf]
    %v1770 = vld [vmem:[%s6] sm:$0x1]
    %v1772 = vperm.slane %v1770, 0
    %v1782 = vunpack.c.l.b16 %v1762
    %v1783 = vunpack.c.l.b16 %v1763
    %v1784 = vunpack.c.l.b16 %v1764
    %v1785 = vunpack.c.l.b16 %v1765
    %v1786 = vunpack.c.l.b16 %v1766
    %v1787 = vunpack.c.l.b16 %v1767
    %v1788 = vunpack.c.l.b16 %v1768
    %v1789 = vunpack.c.l.b16 %v1769
    %v1790 = vpack.c.b16 %v1783, %v1782
    %v1791 = vpack.c.b16 %v1785, %v1784
    %v1792 = vpack.c.b16 %v1787, %v1786
    %v1793 = vpack.c.b16 %v1789, %v1788
    %vm1798 = vcmask 523264
    %v1800 = vsel %vm1798, %v1761, 0
    %1802 = vmatpush.bf16.msra.mxu0 0
    %1803 = vmatpush.bf16.msra.mxu0 0
    %1804 = vmatpush.bf16.msra.mxu0 0
    %1805 = vmatpush.bf16.msra.mxu0 0
    %1806 = vmatpush.bf16.msra.mxu0 %v1793
    %1807 = vmatpush.bf16.msra.mxu0 %v1792
    %1808 = vmatpush.bf16.msra.mxu0 %v1791
    %1809 = vmatpush.bf16.msra.mxu0 %v1790
    %1810 = vmatmul.bf16.gmra.mxu0 %v1800
    %v1811 = vpop.f32.mrf.mxu0
    %v1812 = vadd.f32 %v1772, %v1811
    %v1813 = vpop.f32.mrf.mxu0
    %1814 = vdwg.mxu0
    %vm1815 = vcmask 41984
    %1816 = vst.msk [vmem:[#allocation5] sm:$0x3] %vm1815, %v1812
    // Predicated region
    $region34: #{vgg_forward.3} parent=1 // pred_check
      _
    $region35: #{vgg_forward.3} parent=1 // pred_check_branch
      %1818 = sbr.rel (0) target = $region37
    $region36: #{vgg_forward.3} parent=1 // pred_region
      %1820 = vsyncadd [#allocation4], 0
      %s1822 = sshll.u32 [#allocation5], 4
      %s1823 = int_to_ptr.vmem [resolvable:$true] %s1822
      %s1824 = sshll.u32 %s7, 4
      %s1825 = int_to_ptr.hbm [resolvable:$true] %s1824
      %1827 = dma.vmem_to_hbm [thread:$0]  %s1823, 32, %s1825, [#allocation4]
    $region37: #{vgg_forward.3} parent=1 // pred_fallthru
      _
    // Predicated region
    $region38: #{vgg_forward.3} parent=1 // pred_check
      _
    $region39: #{vgg_forward.3} parent=1 // pred_check_branch
      %1829 = sbr.rel (0) target = $region41
    $region40: #{vgg_forward.3} parent=1 // pred_region
      %1831 = dma.done [#allocation4], 32
    $region41: #{vgg_forward.3} parent=1 // pred_fallthru
      _
    %1832 = vsyncpa [#allocation3], 1
    %1833 = vsyncpa [#allocation4], 1

// kernel: vgg_forward.2
$region0: #{vgg_forward.2}
  #allocation0 [shape = 'u32[]', space=smem, size = 0x4, offset = 0x4, fixed_abs, tag = 'smem constant byte address 0x4 - core index']
  #allocation1 [shape = 'u32[72,128]{1,0:T(1,128)}', space=vmem, size = 0x9000, scoped, tag = 'internal scratch']
  #allocation2 [shape = 'f32[448,16]{1,0:T(8,128)}', space=vmem, size = 0x38000, scoped, tag = 'scratch operand']
  #allocation3 [shape = 'f32[112,32]{1,0:T(8,128)}', space=vmem, size = 0xe000, scoped, tag = 'scratch operand']
  %s0 = inlined_call_operand.vmem [shape: bf16[2,28,28,3], index: 0, kind: input, shape index: {}]
  %s1 = inlined_call_operand.vmem [shape: bf16[27,16], index: 1, kind: input, shape index: {}]
  %s2 = inlined_call_operand.vmem [shape: f32[1,16], index: 2, kind: input, shape index: {}]
  %s3 = inlined_call_operand.vmem [shape: bf16[144,16], index: 3, kind: input, shape index: {}]
  %s4 = inlined_call_operand.vmem [shape: f32[1,16], index: 4, kind: input, shape index: {}]
  %s5 = inlined_call_operand.vmem [shape: bf16[144,32], index: 5, kind: input, shape index: {}]
  %s6 = inlined_call_operand.vmem [shape: f32[1,32], index: 6, kind: input, shape index: {}]
  %s7 = inlined_call_operand.vmem [shape: bf16[288,32], index: 7, kind: input, shape index: {}]
  %s8 = inlined_call_operand.vmem [shape: f32[1,32], index: 8, kind: input, shape index: {}]
  %s9 = inlined_call_operand.vmem [shape: f32[2,14,14,32], index: 9, kind: output, shape index: {0}]
  %s10 = inlined_call_operand.hbm [shape: f32[2,32,32], index: 10, kind: output, shape index: {1}]
  %s11 = inlined_call_operand.vmem [shape: bf16[2,7,7,32], index: 11, kind: output, shape index: {2}]
  %12 = xla_tuple %s9, %s10, %s11
  %s13 = sld [smem:[#allocation0]]
  $region85: #{vgg_forward.2} parent=0
    _
  %s15 = ssub.s32 1, %s13
  %s16 = scalar_select 0, %s15, %s13
  $region1: #{vgg_forward.2} parent=0
    #allocation4 [shape = 'u8[32768]{0}', space=vmem, size = 0x8000, scoped, tag = 'output window, operand 1']
    #allocation5 [shape = 's32[2]{0}', space=sflag, size = 0x8, scoped, tag = 'scoped memory for vgg_forward.2']
    %17 = vsyncpa [#allocation5], 0
    %s18 = scalar_lea.sflag [#allocation5], 1
    %19 = vsyncpa %s18, 0
    loop: start=0, step=1, limit=4
    $region2: #{vgg_forward.2} parent=1 // loop_pre_header
      _
    $region3: #{vgg_forward.2} parent=1 // loop_header
      %s21 = sphi 0, %s25
      %p22 = scmp.ge.s32.totalorder %s21, 4
      %s31 = sphi 0, %s33
      %s34 = sphi 0, %s31
      %s35 = sphi 0, %s34
      %s51 = sphi 0, %s35
      %s55 = sphi 0, %s55
      %s57 = sphi 0, %s55
      %s58 = sphi 0, %s57
      %s72 = sphi 0, %s58
      %s76 = sphi 0, %s76
      %s78 = sphi 0, %s76
      %s79 = sphi 0, %s78
      %s93 = sphi 0, %s79
      %s97 = sphi 0, %s97
      %s99 = sphi 0, %s97
      %s100 = sphi 0, %s99
      %s114 = sphi 0, %s100
      %s118 = sphi 0, %s118
      %s120 = sphi 0, %s118
      %s121 = sphi 0, %s120
      %s135 = sphi 0, %s121
      %s139 = sphi 0, %s139
      %s141 = sphi 0, %s139
      %s142 = sphi 0, %s141
      %s156 = sphi 0, %s142
      %s160 = sphi 0, %s160
      %s162 = sphi 0, %s160
      %s163 = sphi 0, %s162
      %s177 = sphi 0, %s163
      %s181 = sphi 0, %s181
      %s183 = sphi 0, %s181
      %s184 = sphi 0, %s183
      %s198 = sphi 0, %s184
      %s202 = sphi 0, %s202
      %s204 = sphi 0, %s202
      %s205 = sphi 0, %s204
      %s219 = sphi 0, %s205
      %s225 = sphi 0, %s227
      %s228 = sphi 0, %s225
      %s229 = sphi 0, %s228
      %s245 = sphi 0, %s229
      %s251 = sphi 0, %s253
      %s254 = sphi 0, %s251
      %s255 = sphi 0, %s254
      %s271 = sphi 0, %s255
      %s277 = sphi 0, %s279
      %s280 = sphi 0, %s277
      %s281 = sphi 0, %s280
      %s297 = sphi 0, %s281
    $region4: #{vgg_forward.2} parent=1 // loop_header_branch
      %24 = sbr.rel (%p22) target = $region8
    $region5: #{vgg_forward.2} parent=1 // loop_body
      %s26 = ssub.s32 %s21, 1
      %s27 = ssub.s32 %s21, 2
      %s28 = sadd.s32 %s21, 1
      %s29 = ssub.s32 %s21, %s28
      %p30 = scmp.eq.s32.totalorder %s29, 0
      %s32 = sadd.s32 %s31, 1
      %s33 = scalar_select %p30, %s31, %s32
      %p36 = pneg %p30
      %p37 = scmp.eq.s32.totalorder %s21, 1
      %p38 = por %p36, %p37
      %p39 = scmp.ne.s32.totalorder %s31, %s34
      %p40 = scmp.eq.s32.totalorder %s21, 0
      %p41 = por %p39, %p40
      %p42 = scmp.ne.s32.totalorder %s31, %s34
      %p43 = scmp.eq.s32.totalorder %s26, 1
      %p44 = por %p42, %p43
      %p45 = scmp.ne.s32.totalorder %s34, %s35
      %p46 = scmp.eq.s32.totalorder %s26, 0
      %p47 = por %p45, %p46
      %p48 = scmp.ne.s32.totalorder %s34, %s35
      %p49 = scmp.eq.s32.totalorder %s27, 1
      %p50 = por %p48, %p49
      %p52 = scmp.ne.s32.totalorder %s35, %s51
      %p53 = scmp.eq.s32.totalorder %s27, 0
      %p54 = por %p52, %p53
      %s56 = sadd.s32 %s55, 1
      %p59 = scmp.eq.s32.totalorder %s21, 1
      %p60 = scmp.ne.s32.totalorder %s55, %s57
      %p61 = scmp.eq.s32.totalorder %s21, 0
      %p62 = por %p60, %p61
      %p63 = scmp.ne.s32.totalorder %s55, %s57
      %p64 = scmp.eq.s32.totalorder %s26, 1
      %p65 = por %p63, %p64
      %p66 = scmp.ne.s32.totalorder %s57, %s58
      %p67 = scmp.eq.s32.totalorder %s26, 0
      %p68 = por %p66, %p67
      %p69 = scmp.ne.s32.totalorder %s57, %s58
      %p70 = scmp.eq.s32.totalorder %s27, 1
      %p71 = por %p69, %p70
      %p73 = scmp.ne.s32.totalorder %s58, %s72
      %p74 = scmp.eq.s32.totalorder %s27, 0
      %p75 = por %p73, %p74
      %s77 = sadd.s32 %s76, 1
      %p80 = scmp.eq.s32.totalorder %s21, 1
      %p81 = scmp.ne.s32.totalorder %s76, %s78
      %p82 = scmp.eq.s32.totalorder %s21, 0
      %p83 = por %p81, %p82
      %p84 = scmp.ne.s32.totalorder %s76, %s78
      %p85 = scmp.eq.s32.totalorder %s26, 1
      %p86 = por %p84, %p85
      %p87 = scmp.ne.s32.totalorder %s78, %s79
      %p88 = scmp.eq.s32.totalorder %s26, 0
      %p89 = por %p87, %p88
      %p90 = scmp.ne.s32.totalorder %s78, %s79
      %p91 = scmp.eq.s32.totalorder %s27, 1
      %p92 = por %p90, %p91
      %p94 = scmp.ne.s32.totalorder %s79, %s93
      %p95 = scmp.eq.s32.totalorder %s27, 0
      %p96 = por %p94, %p95
      %s98 = sadd.s32 %s97, 1
      %p101 = scmp.eq.s32.totalorder %s21, 1
      %p102 = scmp.ne.s32.totalorder %s97, %s99
      %p103 = scmp.eq.s32.totalorder %s21, 0
      %p104 = por %p102, %p103
      %p105 = scmp.ne.s32.totalorder %s97, %s99
      %p106 = scmp.eq.s32.totalorder %s26, 1
      %p107 = por %p105, %p106
      %p108 = scmp.ne.s32.totalorder %s99, %s100
      %p109 = scmp.eq.s32.totalorder %s26, 0
      %p110 = por %p108, %p109
      %p111 = scmp.ne.s32.totalorder %s99, %s100
      %p112 = scmp.eq.s32.totalorder %s27, 1
      %p113 = por %p111, %p112
      %p115 = scmp.ne.s32.totalorder %s100, %s114
      %p116 = scmp.eq.s32.totalorder %s27, 0
      %p117 = por %p115, %p116
      %s119 = sadd.s32 %s118, 1
      %p122 = scmp.eq.s32.totalorder %s21, 1
      %p123 = scmp.ne.s32.totalorder %s118, %s120
      %p124 = scmp.eq.s32.totalorder %s21, 0
      %p125 = por %p123, %p124
      %p126 = scmp.ne.s32.totalorder %s118, %s120
      %p127 = scmp.eq.s32.totalorder %s26, 1
      %p128 = por %p126, %p127
      %p129 = scmp.ne.s32.totalorder %s120, %s121
      %p130 = scmp.eq.s32.totalorder %s26, 0
      %p131 = por %p129, %p130
      %p132 = scmp.ne.s32.totalorder %s120, %s121
      %p133 = scmp.eq.s32.totalorder %s27, 1
      %p134 = por %p132, %p133
      %p136 = scmp.ne.s32.totalorder %s121, %s135
      %p137 = scmp.eq.s32.totalorder %s27, 0
      %p138 = por %p136, %p137
      %s140 = sadd.s32 %s139, 1
      %p143 = scmp.eq.s32.totalorder %s21, 1
      %p144 = scmp.ne.s32.totalorder %s139, %s141
      %p145 = scmp.eq.s32.totalorder %s21, 0
      %p146 = por %p144, %p145
      %p147 = scmp.ne.s32.totalorder %s139, %s141
      %p148 = scmp.eq.s32.totalorder %s26, 1
      %p149 = por %p147, %p148
      %p150 = scmp.ne.s32.totalorder %s141, %s142
      %p151 = scmp.eq.s32.totalorder %s26, 0
      %p152 = por %p150, %p151
      %p153 = scmp.ne.s32.totalorder %s141, %s142
      %p154 = scmp.eq.s32.totalorder %s27, 1
      %p155 = por %p153, %p154
      %p157 = scmp.ne.s32.totalorder %s142, %s156
      %p158 = scmp.eq.s32.totalorder %s27, 0
      %p159 = por %p157, %p158
      %s161 = sadd.s32 %s160, 1
      %p164 = scmp.eq.s32.totalorder %s21, 1
      %p165 = scmp.ne.s32.totalorder %s160, %s162
      %p166 = scmp.eq.s32.totalorder %s21, 0
      %p167 = por %p165, %p166
      %p168 = scmp.ne.s32.totalorder %s160, %s162
      %p169 = scmp.eq.s32.totalorder %s26, 1
      %p170 = por %p168, %p169
      %p171 = scmp.ne.s32.totalorder %s162, %s163
      %p172 = scmp.eq.s32.totalorder %s26, 0
      %p173 = por %p171, %p172
      %p174 = scmp.ne.s32.totalorder %s162, %s163
      %p175 = scmp.eq.s32.totalorder %s27, 1
      %p176 = por %p174, %p175
      %p178 = scmp.ne.s32.totalorder %s163, %s177
      %p179 = scmp.eq.s32.totalorder %s27, 0
      %p180 = por %p178, %p179
      %s182 = sadd.s32 %s181, 1
      %p185 = scmp.eq.s32.totalorder %s21, 1
      %p186 = scmp.ne.s32.totalorder %s181, %s183
      %p187 = scmp.eq.s32.totalorder %s21, 0
      %p188 = por %p186, %p187
      %p189 = scmp.ne.s32.totalorder %s181, %s183
      %p190 = scmp.eq.s32.totalorder %s26, 1
      %p191 = por %p189, %p190
      %p192 = scmp.ne.s32.totalorder %s183, %s184
      %p193 = scmp.eq.s32.totalorder %s26, 0
      %p194 = por %p192, %p193
      %p195 = scmp.ne.s32.totalorder %s183, %s184
      %p196 = scmp.eq.s32.totalorder %s27, 1
      %p197 = por %p195, %p196
      %p199 = scmp.ne.s32.totalorder %s184, %s198
      %p200 = scmp.eq.s32.totalorder %s27, 0
      %p201 = por %p199, %p200
      %s203 = sadd.s32 %s202, 1
      %p206 = scmp.eq.s32.totalorder %s21, 1
      %p207 = scmp.ne.s32.totalorder %s202, %s204
      %p208 = scmp.eq.s32.totalorder %s21, 0
      %p209 = por %p207, %p208
      %p210 = scmp.ne.s32.totalorder %s202, %s204
      %p211 = scmp.eq.s32.totalorder %s26, 1
      %p212 = por %p210, %p211
      %p213 = scmp.ne.s32.totalorder %s204, %s205
      %p214 = scmp.eq.s32.totalorder %s26, 0
      %p215 = por %p213, %p214
      %p216 = scmp.ne.s32.totalorder %s204, %s205
      %p217 = scmp.eq.s32.totalorder %s27, 1
      %p218 = por %p216, %p217
      %p220 = scmp.ne.s32.totalorder %s205, %s219
      %p221 = scmp.eq.s32.totalorder %s27, 0
      %p222 = por %p220, %p221
      %s223 = ssub.s32 %s21, %s28
      %p224 = scmp.eq.s32.totalorder %s223, 0
      %s226 = sadd.s32 %s225, 1
      %s227 = scalar_select %p224, %s225, %s226
      %p230 = pneg %p224
      %p231 = scmp.eq.s32.totalorder %s21, 1
      %p232 = por %p230, %p231
      %p233 = scmp.ne.s32.totalorder %s225, %s228
      %p234 = scmp.eq.s32.totalorder %s21, 0
      %p235 = por %p233, %p234
      %p236 = scmp.ne.s32.totalorder %s225, %s228
      %p237 = scmp.eq.s32.totalorder %s26, 1
      %p238 = por %p236, %p237
      %p239 = scmp.ne.s32.totalorder %s228, %s229
      %p240 = scmp.eq.s32.totalorder %s26, 0
      %p241 = por %p239, %p240
      %p242 = scmp.ne.s32.totalorder %s228, %s229
      %p243 = scmp.eq.s32.totalorder %s27, 1
      %p244 = por %p242, %p243
      %p246 = scmp.ne.s32.totalorder %s229, %s245
      %p247 = scmp.eq.s32.totalorder %s27, 0
      %p248 = por %p246, %p247
      %s249 = ssub.s32 %s21, %s28
      %p250 = scmp.eq.s32.totalorder %s249, 0
      %s252 = sadd.s32 %s251, 1
      %s253 = scalar_select %p250, %s251, %s252
      %p256 = pneg %p250
      %p257 = scmp.eq.s32.totalorder %s21, 1
      %p258 = por %p256, %p257
      %p259 = scmp.ne.s32.totalorder %s251, %s254
      %p260 = scmp.eq.s32.totalorder %s21, 0
      %p261 = por %p259, %p260
      %p262 = scmp.ne.s32.totalorder %s251, %s254
      %p263 = scmp.eq.s32.totalorder %s26, 1
      %p264 = por %p262, %p263
      %p265 = scmp.ne.s32.totalorder %s254, %s255
      %p266 = scmp.eq.s32.totalorder %s26, 0
      %p267 = por %p265, %p266
      %p268 = scmp.ne.s32.totalorder %s254, %s255
      %p269 = scmp.eq.s32.totalorder %s27, 1
      %p270 = por %p268, %p269
      %p272 = scmp.ne.s32.totalorder %s255, %s271
      %p273 = scmp.eq.s32.totalorder %s27, 0
      %p274 = por %p272, %p273
      %s275 = ssub.s32 %s21, %s28
      %p276 = scmp.eq.s32.totalorder %s275, 0
      %s278 = sadd.s32 %s277, 1
      %s279 = scalar_select %p276, %s277, %s278
      %p282 = pneg %p276
      %p283 = scmp.eq.s32.totalorder %s21, 1
      %p284 = por %p282, %p283
      %p285 = scmp.ne.s32.totalorder %s277, %s280
      %p286 = scmp.eq.s32.totalorder %s21, 0
      %p287 = por %p285, %p286
      %p288 = scmp.ne.s32.totalorder %s277, %s280
      %p289 = scmp.eq.s32.totalorder %s26, 1
      %p290 = por %p288, %p289
      %p291 = scmp.ne.s32.totalorder %s280, %s281
      %p292 = scmp.eq.s32.totalorder %s26, 0
      %p293 = por %p291, %p292
      %p294 = scmp.ne.s32.totalorder %s280, %s281
      %p295 = scmp.eq.s32.totalorder %s27, 1
      %p296 = por %p294, %p295
      %p298 = scmp.ne.s32.totalorder %s281, %s297
      %p299 = scmp.eq.s32.totalorder %s27, 0
      %p300 = por %p298, %p299
      %p301 = scmp.le.s32.totalorder 1, %s21
      %p302 = scmp.lt.s32.totalorder %s21, 3
      %p303 = pnand %p301, %p302
      %p304 = pneg %p303
      // Predicated region
      $region9: #{vgg_forward.2} parent=5 // pred_check
        _
      $region10: #{vgg_forward.2} parent=5 // pred_check_branch
        %306 = sbr.rel (%p303) target = $region12
      $region11: #{vgg_forward.2} parent=5 // pred_region
        %s307 = ssub.s32 %s21, 1
        // Predicated region
        $region13: #{vgg_forward.2} parent=11 // pred_check
          %p308 = pneg %p68
        $region14: #{vgg_forward.2} parent=11 // pred_check_branch
          %310 = sbr.rel (%p308) target = $region16
        $region15: #{vgg_forward.2} parent=11 // pred_region
          _
        $region16: #{vgg_forward.2} parent=11 // pred_fallthru
          _
        // Predicated region
        $region17: #{vgg_forward.2} parent=11 // pred_check
          %p311 = pneg %p89
        $region18: #{vgg_forward.2} parent=11 // pred_check_branch
          %313 = sbr.rel (%p311) target = $region20
        $region19: #{vgg_forward.2} parent=11 // pred_region
          _
        $region20: #{vgg_forward.2} parent=11 // pred_fallthru
          _
        // Predicated region
        $region21: #{vgg_forward.2} parent=11 // pred_check
          %p314 = pneg %p110
        $region22: #{vgg_forward.2} parent=11 // pred_check_branch
          %316 = sbr.rel (%p314) target = $region24
        $region23: #{vgg_forward.2} parent=11 // pred_region
          _
        $region24: #{vgg_forward.2} parent=11 // pred_fallthru
          _
        // Predicated region
        $region25: #{vgg_forward.2} parent=11 // pred_check
          %p317 = pneg %p131
        $region26: #{vgg_forward.2} parent=11 // pred_check_branch
          %319 = sbr.rel (%p317) target = $region28
        $region27: #{vgg_forward.2} parent=11 // pred_region
          _
        $region28: #{vgg_forward.2} parent=11 // pred_fallthru
          _
        // Predicated region
        $region29: #{vgg_forward.2} parent=11 // pred_check
          %p320 = pneg %p152
        $region30: #{vgg_forward.2} parent=11 // pred_check_branch
          %322 = sbr.rel (%p320) target = $region32
        $region31: #{vgg_forward.2} parent=11 // pred_region
          _
        $region32: #{vgg_forward.2} parent=11 // pred_fallthru
          _
        // Predicated region
        $region33: #{vgg_forward.2} parent=11 // pred_check
          %p323 = pneg %p173
        $region34: #{vgg_forward.2} parent=11 // pred_check_branch
          %325 = sbr.rel (%p323) target = $region36
        $region35: #{vgg_forward.2} parent=11 // pred_region
          _
        $region36: #{vgg_forward.2} parent=11 // pred_fallthru
          _
        // Predicated region
        $region37: #{vgg_forward.2} parent=11 // pred_check
          %p326 = pneg %p194
        $region38: #{vgg_forward.2} parent=11 // pred_check_branch
          %328 = sbr.rel (%p326) target = $region40
        $region39: #{vgg_forward.2} parent=11 // pred_region
          _
        $region40: #{vgg_forward.2} parent=11 // pred_fallthru
          _
        // Predicated region
        $region41: #{vgg_forward.2} parent=11 // pred_check
          %p329 = pneg %p215
        $region42: #{vgg_forward.2} parent=11 // pred_check_branch
          %331 = sbr.rel (%p329) target = $region44
        $region43: #{vgg_forward.2} parent=11 // pred_region
          _
        $region44: #{vgg_forward.2} parent=11 // pred_fallthru
          _
      $region12: #{vgg_forward.2} parent=5 // pred_fallthru
        _
      %p332 = scmp.lt.s32.totalorder %s21, 2
      // Predicated region
      $region45: #{vgg_forward.2} parent=5 // pred_check
        %p333 = pneg %p332
      $region46: #{vgg_forward.2} parent=5 // pred_check_branch
        %335 = sbr.rel (%p333) target = $region48
      $region47: #{vgg_forward.2} parent=5 // pred_region
        // Predicated region
        $region49: #{vgg_forward.2} parent=47 // pred_check
          %p336 = pneg %p41
        $region50: #{vgg_forward.2} parent=47 // pred_check_branch
          %338 = sbr.rel (%p336) target = $region52
        $region51: #{vgg_forward.2} parent=47 // pred_region
          %p339 = scmp.lt.s32.totalorder %s21, 1
          %s340 = scalar_select %p339, %s21, 1
          %s341 = smul.addr %s340, 112
          %s342 = smul.addr %s341, 4
          %s343 = scalar_lea.vmem %s0, %s342
        $region52: #{vgg_forward.2} parent=47 // pred_fallthru
          _
      $region48: #{vgg_forward.2} parent=5 // pred_fallthru
        _
      %p344 = scmp.le.s32.totalorder 1, %s21
      %p345 = scmp.lt.s32.totalorder %s21, 3
      %p346 = pnand %p344, %p345
      %p347 = pneg %p346
      // Predicated region
      $region53: #{vgg_forward.2} parent=5 // pred_check
        _
      $region54: #{vgg_forward.2} parent=5 // pred_check_branch
        %349 = sbr.rel (%p346) target = $region56
      $region55: #{vgg_forward.2} parent=5 // pred_region
        %s350 = ssub.s32 %s21, 1
        %p351 = scmp.lt.s32.totalorder %s26, 1
        %s352 = scalar_select %p351, %s26, 1
        %s353 = smul.addr %s352, 112
        %s354 = smul.addr %s353, 4
        %s355 = scalar_lea.vmem %s0, %s354
        %p356 = pneg %p47
        %p357 = pneg %p44
        %p358 = pneg %p68
        %p359 = pneg %p65
        %p360 = pneg %p89
        %p361 = pneg %p86
        %p362 = pneg %p110
        %p363 = pneg %p107
        %p364 = pneg %p131
        %p365 = pneg %p128
        %p366 = pneg %p152
        %p367 = pneg %p149
        %p368 = pneg %p173
        %p369 = pneg %p170
        %p370 = pneg %p194
        %p371 = pneg %p191
        %p372 = pneg %p215
        %p373 = pneg %p212
        %p374 = pneg %p241
        %p375 = pneg %p238
        %p376 = scmp.lt.s32.totalorder %s26, 1
        %s377 = scalar_select %p376, %s26, 1
        %s378 = smul.addr %s377, 28
        %s379 = smul.addr %s378, 8
        %s380 = scalar_lea.vmem %s9, %s379
        %p381 = pneg %p267
        %p382 = pneg %p264
        %s383 = sand.u32 %s254, 1
        %s384 = scalar_lea.sflag [#allocation5], %s383
        %s385 = sand.u32 %s254, 1
        %s386 = smul.addr %s385, 32
        %s387 = scalar_lea.vmem [#allocation4], %s386
        %p388 = pneg %p293
        %p389 = pneg %p290
        %p390 = scmp.lt.s32.totalorder %s26, 1
        %s391 = scalar_select %p390, %s26, 1
        %s392 = smul.addr %s391, 7
        %s393 = smul.addr %s392, 4
        %s394 = scalar_lea.vmem %s11, %s393
        %p395 = scmp.lt.s32.totalorder %s26, 1
        %s396 = scalar_select %p395, %s26, 1
        %s397 = smul.addr %s396, 112
        %s398 = smul.addr %s397, 4
        %s399 = scalar_lea.vmem %s0, %s398
        %p400 = scmp.lt.s32.totalorder %s26, 1
        %s401 = scalar_select %p400, %s26, 1
        %s402 = smul.addr %s401, 28
        %s403 = smul.addr %s402, 8
        %s404 = scalar_lea.vmem %s9, %s403
        %p405 = scmp.lt.s32.totalorder %s26, 1
        %s406 = scalar_select %p405, %s26, 1
        %s407 = smul.addr %s406, 7
        %s408 = smul.addr %s407, 4
        %s409 = scalar_lea.vmem %s11, %s408
        %v411 = vld [vmem:[%s399] sm:$0xf]
        %v412 = vld [vmem:[%s399 + $0x4] sm:$0xf]
        %v413 = vld [vmem:[%s399 + $0x8] sm:$0xf]
        %v414 = vld [vmem:[%s399 + $0xc] sm:$0x3]
        %v415 = vld [vmem:[%s399 + $0x10] sm:$0xf]
        %v416 = vld [vmem:[%s399 + $0x14] sm:$0xf]
        %v417 = vld [vmem:[%s399 + $0x18] sm:$0xf]
        %v418 = vld [vmem:[%s399 + $0x1c] sm:$0x3]
        %v419 = vld [vmem:[%s399 + $0x20] sm:$0xf]
        %v420 = vld [vmem:[%s399 + $0x24] sm:$0xf]
        %v421 = vld [vmem:[%s399 + $0x28] sm:$0xf]
        %v422 = vld [vmem:[%s399 + $0x2c] sm:$0x3]
        %v423 = vld [vmem:[%s399 + $0x30] sm:$0xf]
        %v424 = vld [vmem:[%s399 + $0x34] sm:$0xf]
        %v425 = vld [vmem:[%s399 + $0x38] sm:$0xf]
        %v426 = vld [vmem:[%s399 + $0x3c] sm:$0x3]
        %v427 = vld [vmem:[%s399 + $0x40] sm:$0xf]
        %v428 = vld [vmem:[%s399 + $0x44] sm:$0xf]
        %v429 = vld [vmem:[%s399 + $0x48] sm:$0xf]
        %v430 = vld [vmem:[%s399 + $0x4c] sm:$0x3]
        %v431 = vld [vmem:[%s399 + $0x50] sm:$0xf]
        %v432 = vld [vmem:[%s399 + $0x54] sm:$0xf]
        %v433 = vld [vmem:[%s399 + $0x58] sm:$0xf]
        %v434 = vld [vmem:[%s399 + $0x5c] sm:$0x3]
        %v435 = vld [vmem:[%s399 + $0x60] sm:$0xf]
        %v436 = vld [vmem:[%s399 + $0x64] sm:$0xf]
        %v437 = vld [vmem:[%s399 + $0x68] sm:$0xf]
        %v438 = vld [vmem:[%s399 + $0x6c] sm:$0x3]
        %v439 = vld [vmem:[%s399 + $0x70] sm:$0xf]
        %v440 = vld [vmem:[%s399 + $0x74] sm:$0xf]
        %v441 = vld [vmem:[%s399 + $0x78] sm:$0xf]
        %v442 = vld [vmem:[%s399 + $0x7c] sm:$0x3]
        %v443 = vld [vmem:[%s399 + $0x80] sm:$0xf]
        %v444 = vld [vmem:[%s399 + $0x84] sm:$0xf]
        %v445 = vld [vmem:[%s399 + $0x88] sm:$0xf]
        %v446 = vld [vmem:[%s399 + $0x8c] sm:$0x3]
        %v447 = vld [vmem:[%s399 + $0x90] sm:$0xf]
        %v448 = vld [vmem:[%s399 + $0x94] sm:$0xf]
        %v449 = vld [vmem:[%s399 + $0x98] sm:$0xf]
        %v450 = vld [vmem:[%s399 + $0x9c] sm:$0x3]
        %v451 = vld [vmem:[%s399 + $0xa0] sm:$0xf]
        %v452 = vld [vmem:[%s399 + $0xa4] sm:$0xf]
        %v453 = vld [vmem:[%s399 + $0xa8] sm:$0xf]
        %v454 = vld [vmem:[%s399 + $0xac] sm:$0x3]
        %v455 = vld [vmem:[%s399 + $0xb0] sm:$0xf]
        %v456 = vld [vmem:[%s399 + $0xb4] sm:$0xf]
        %v457 = vld [vmem:[%s399 + $0xb8] sm:$0xf]
        %v458 = vld [vmem:[%s399 + $0xbc] sm:$0x3]
        %v459 = vld [vmem:[%s399 + $0xc0] sm:$0xf]
        %v460 = vld [vmem:[%s399 + $0xc4] sm:$0xf]
        %v461 = vld [vmem:[%s399 + $0xc8] sm:$0xf]
        %v462 = vld [vmem:[%s399 + $0xcc] sm:$0x3]
        %v463 = vld [vmem:[%s399 + $0xd0] sm:$0xf]
        %v464 = vld [vmem:[%s399 + $0xd4] sm:$0xf]
        %v465 = vld [vmem:[%s399 + $0xd8] sm:$0xf]
        %v466 = vld [vmem:[%s399 + $0xdc] sm:$0x3]
        %v467 = vld [vmem:[%s399 + $0xe0] sm:$0xf]
        %v468 = vld [vmem:[%s399 + $0xe4] sm:$0xf]
        %v469 = vld [vmem:[%s399 + $0xe8] sm:$0xf]
        %v470 = vld [vmem:[%s399 + $0xec] sm:$0x3]
        %v471 = vld [vmem:[%s399 + $0xf0] sm:$0xf]
        %v472 = vld [vmem:[%s399 + $0xf4] sm:$0xf]
        %v473 = vld [vmem:[%s399 + $0xf8] sm:$0xf]
        %v474 = vld [vmem:[%s399 + $0xfc] sm:$0x3]
        %v475 = vld [vmem:[%s399 + $0x100] sm:$0xf]
        %v476 = vld [vmem:[%s399 + $0x104] sm:$0xf]
        %v477 = vld [vmem:[%s399 + $0x108] sm:$0xf]
        %v478 = vld [vmem:[%s399 + $0x10c] sm:$0x3]
        %v479 = vld [vmem:[%s399 + $0x110] sm:$0xf]
        %v480 = vld [vmem:[%s399 + $0x114] sm:$0xf]
        %v481 = vld [vmem:[%s399 + $0x118] sm:$0xf]
        %v482 = vld [vmem:[%s399 + $0x11c] sm:$0x3]
        %v483 = vld [vmem:[%s399 + $0x120] sm:$0xf]
        %v484 = vld [vmem:[%s399 + $0x124] sm:$0xf]
        %v485 = vld [vmem:[%s399 + $0x128] sm:$0xf]
        %v486 = vld [vmem:[%s399 + $0x12c] sm:$0x3]
        %v487 = vld [vmem:[%s399 + $0x130] sm:$0xf]
        %v488 = vld [vmem:[%s399 + $0x134] sm:$0xf]
        %v489 = vld [vmem:[%s399 + $0x138] sm:$0xf]
        %v490 = vld [vmem:[%s399 + $0x13c] sm:$0x3]
        %v491 = vld [vmem:[%s399 + $0x140] sm:$0xf]
        %v492 = vld [vmem:[%s399 + $0x144] sm:$0xf]
        %v493 = vld [vmem:[%s399 + $0x148] sm:$0xf]
        %v494 = vld [vmem:[%s399 + $0x14c] sm:$0x3]
        %v495 = vld [vmem:[%s399 + $0x150] sm:$0xf]
        %v496 = vld [vmem:[%s399 + $0x154] sm:$0xf]
        %v497 = vld [vmem:[%s399 + $0x158] sm:$0xf]
        %v498 = vld [vmem:[%s399 + $0x15c] sm:$0x3]
        %v499 = vld [vmem:[%s399 + $0x160] sm:$0xf]
        %v500 = vld [vmem:[%s399 + $0x164] sm:$0xf]
        %v501 = vld [vmem:[%s399 + $0x168] sm:$0xf]
        %v502 = vld [vmem:[%s399 + $0x16c] sm:$0x3]
        %v503 = vld [vmem:[%s399 + $0x170] sm:$0xf]
        %v504 = vld [vmem:[%s399 + $0x174] sm:$0xf]
        %v505 = vld [vmem:[%s399 + $0x178] sm:$0xf]
        %v506 = vld [vmem:[%s399 + $0x17c] sm:$0x3]
        %v507 = vld [vmem:[%s399 + $0x180] sm:$0xf]
        %v508 = vld [vmem:[%s399 + $0x184] sm:$0xf]
        %v509 = vld [vmem:[%s399 + $0x188] sm:$0xf]
        %v510 = vld [vmem:[%s399 + $0x18c] sm:$0x3]
        %v511 = vld [vmem:[%s399 + $0x190] sm:$0xf]
        %v512 = vld [vmem:[%s399 + $0x194] sm:$0xf]
        %v513 = vld [vmem:[%s399 + $0x198] sm:$0xf]
        %v514 = vld [vmem:[%s399 + $0x19c] sm:$0x3]
        %v515 = vld [vmem:[%s399 + $0x1a0] sm:$0xf]
        %v516 = vld [vmem:[%s399 + $0x1a4] sm:$0xf]
        %v517 = vld [vmem:[%s399 + $0x1a8] sm:$0xf]
        %v518 = vld [vmem:[%s399 + $0x1ac] sm:$0x3]
        %v519 = vld [vmem:[%s399 + $0x1b0] sm:$0xf]
        %v520 = vld [vmem:[%s399 + $0x1b4] sm:$0xf]
        %v521 = vld [vmem:[%s399 + $0x1b8] sm:$0xf]
        %v522 = vld [vmem:[%s399 + $0x1bc] sm:$0x3]
        %v524 = vshrl.u32 %v414, 16
        %v525 = vpack.i.b16 %v524, %v524
        %v527 = vperm.slane %v525, 1
        %v529 = vshrl.u32 %v418, 16
        %v530 = vpack.i.b16 %v529, %v529
        %v532 = vperm.slane %v530, 1
        %v534 = vshrl.u32 %v422, 16
        %v535 = vpack.i.b16 %v534, %v534
        %v537 = vperm.slane %v535, 1
        %v539 = vshrl.u32 %v426, 16
        %v540 = vpack.i.b16 %v539, %v539
        %v542 = vperm.slane %v540, 1
        %v544 = vshrl.u32 %v430, 16
        %v545 = vpack.i.b16 %v544, %v544
        %v547 = vperm.slane %v545, 1
        %v549 = vshrl.u32 %v434, 16
        %v550 = vpack.i.b16 %v549, %v549
        %v552 = vperm.slane %v550, 1
        %v554 = vshrl.u32 %v438, 16
        %v555 = vpack.i.b16 %v554, %v554
        %v557 = vperm.slane %v555, 1
        %v559 = vshrl.u32 %v442, 16
        %v560 = vpack.i.b16 %v559, %v559
        %v562 = vperm.slane %v560, 1
        %v564 = vshrl.u32 %v446, 16
        %v565 = vpack.i.b16 %v564, %v564
        %v567 = vperm.slane %v565, 1
        %v569 = vshrl.u32 %v450, 16
        %v570 = vpack.i.b16 %v569, %v569
        %v572 = vperm.slane %v570, 1
        %v574 = vshrl.u32 %v454, 16
        %v575 = vpack.i.b16 %v574, %v574
        %v577 = vperm.slane %v575, 1
        %v579 = vshrl.u32 %v458, 16
        %v580 = vpack.i.b16 %v579, %v579
        %v582 = vperm.slane %v580, 1
        %v584 = vshrl.u32 %v462, 16
        %v585 = vpack.i.b16 %v584, %v584
        %v587 = vperm.slane %v585, 1
        %v589 = vshrl.u32 %v466, 16
        %v590 = vpack.i.b16 %v589, %v589
        %v592 = vperm.slane %v590, 1
        %v594 = vshrl.u32 %v470, 16
        %v595 = vpack.i.b16 %v594, %v594
        %v597 = vperm.slane %v595, 1
        %v599 = vshrl.u32 %v474, 16
        %v600 = vpack.i.b16 %v599, %v599
        %v602 = vperm.slane %v600, 1
        %v604 = vshrl.u32 %v478, 16
        %v605 = vpack.i.b16 %v604, %v604
        %v607 = vperm.slane %v605, 1
        %v609 = vshrl.u32 %v482, 16
        %v610 = vpack.i.b16 %v609, %v609
        %v612 = vperm.slane %v610, 1
        %v614 = vshrl.u32 %v486, 16
        %v615 = vpack.i.b16 %v614, %v614
        %v617 = vperm.slane %v615, 1
        %v619 = vshrl.u32 %v490, 16
        %v620 = vpack.i.b16 %v619, %v619
        %v622 = vperm.slane %v620, 1
        %v624 = vshrl.u32 %v494, 16
        %v625 = vpack.i.b16 %v624, %v624
        %v627 = vperm.slane %v625, 1
        %v629 = vshrl.u32 %v498, 16
        %v630 = vpack.i.b16 %v629, %v629
        %v632 = vperm.slane %v630, 1
        %v634 = vshrl.u32 %v502, 16
        %v635 = vpack.i.b16 %v634, %v634
        %v637 = vperm.slane %v635, 1
        %v639 = vshrl.u32 %v506, 16
        %v640 = vpack.i.b16 %v639, %v639
        %v642 = vperm.slane %v640, 1
        %v644 = vshrl.u32 %v510, 16
        %v645 = vpack.i.b16 %v644, %v644
        %v647 = vperm.slane %v645, 1
        %v649 = vshrl.u32 %v514, 16
        %v650 = vpack.i.b16 %v649, %v649
        %v652 = vperm.slane %v650, 1
        %v654 = vshrl.u32 %v518, 16
        %v655 = vpack.i.b16 %v654, %v654
        %v657 = vperm.slane %v655, 1
        %v659 = vshrl.u32 %v522, 16
        %v660 = vpack.i.b16 %v659, %v659
        %v662 = vperm.slane %v660, 1
        %v775 = vunpack.c.l.b16 %v411
        %v776 = vunpack.c.l.b16 %v412
        %v777 = vunpack.c.l.b16 %v413
        %v778 = vunpack.c.l.b16 %v414
        %v779 = vunpack.c.l.b16 %v415
        %v780 = vunpack.c.l.b16 %v416
        %v781 = vunpack.c.l.b16 %v417
        %v782 = vunpack.c.l.b16 %v418
        %v783 = vunpack.c.l.b16 %v419
        %v784 = vunpack.c.l.b16 %v420
        %v785 = vunpack.c.l.b16 %v421
        %v786 = vunpack.c.l.b16 %v422
        %v787 = vunpack.c.l.b16 %v423
        %v788 = vunpack.c.l.b16 %v424
        %v789 = vunpack.c.l.b16 %v425
        %v790 = vunpack.c.l.b16 %v426
        %v791 = vunpack.c.l.b16 %v427
        %v792 = vunpack.c.l.b16 %v428
        %v793 = vunpack.c.l.b16 %v429
        %v794 = vunpack.c.l.b16 %v430
        %v795 = vunpack.c.l.b16 %v431
        %v796 = vunpack.c.l.b16 %v432
        %v797 = vunpack.c.l.b16 %v433
        %v798 = vunpack.c.l.b16 %v434
        %v799 = vunpack.c.l.b16 %v435
        %v800 = vunpack.c.l.b16 %v436
        %v801 = vunpack.c.l.b16 %v437
        %v802 = vunpack.c.l.b16 %v438
        %v803 = vunpack.c.l.b16 %v439
        %v804 = vunpack.c.l.b16 %v440
        %v805 = vunpack.c.l.b16 %v441
        %v806 = vunpack.c.l.b16 %v442
        %v807 = vunpack.c.l.b16 %v443
        %v808 = vunpack.c.l.b16 %v444
        %v809 = vunpack.c.l.b16 %v445
        %v810 = vunpack.c.l.b16 %v446
        %v811 = vunpack.c.l.b16 %v447
        %v812 = vunpack.c.l.b16 %v448
        %v813 = vunpack.c.l.b16 %v449
        %v814 = vunpack.c.l.b16 %v450
        %v815 = vunpack.c.l.b16 %v451
        %v816 = vunpack.c.l.b16 %v452
        %v817 = vunpack.c.l.b16 %v453
        %v818 = vunpack.c.l.b16 %v454
        %v819 = vunpack.c.l.b16 %v455
        %v820 = vunpack.c.l.b16 %v456
        %v821 = vunpack.c.l.b16 %v457
        %v822 = vunpack.c.l.b16 %v458
        %v823 = vunpack.c.l.b16 %v459
        %v824 = vunpack.c.l.b16 %v460
        %v825 = vunpack.c.l.b16 %v461
        %v826 = vunpack.c.l.b16 %v462
        %v827 = vunpack.c.l.b16 %v463
        %v828 = vunpack.c.l.b16 %v464
        %v829 = vunpack.c.l.b16 %v465
        %v830 = vunpack.c.l.b16 %v466
        %v831 = vunpack.c.l.b16 %v467
        %v832 = vunpack.c.l.b16 %v468
        %v833 = vunpack.c.l.b16 %v469
        %v834 = vunpack.c.l.b16 %v470
        %v835 = vunpack.c.l.b16 %v471
        %v836 = vunpack.c.l.b16 %v472
        %v837 = vunpack.c.l.b16 %v473
        %v838 = vunpack.c.l.b16 %v474
        %v839 = vunpack.c.l.b16 %v475
        %v840 = vunpack.c.l.b16 %v476
        %v841 = vunpack.c.l.b16 %v477
        %v842 = vunpack.c.l.b16 %v478
        %v843 = vunpack.c.l.b16 %v479
        %v844 = vunpack.c.l.b16 %v480
        %v845 = vunpack.c.l.b16 %v481
        %v846 = vunpack.c.l.b16 %v482
        %v847 = vunpack.c.l.b16 %v483
        %v848 = vunpack.c.l.b16 %v484
        %v849 = vunpack.c.l.b16 %v485
        %v850 = vunpack.c.l.b16 %v486
        %v851 = vunpack.c.l.b16 %v487
        %v852 = vunpack.c.l.b16 %v488
        %v853 = vunpack.c.l.b16 %v489
        %v854 = vunpack.c.l.b16 %v490
        %v855 = vunpack.c.l.b16 %v491
        %v856 = vunpack.c.l.b16 %v492
        %v857 = vunpack.c.l.b16 %v493
        %v858 = vunpack.c.l.b16 %v494
        %v859 = vunpack.c.l.b16 %v495
        %v860 = vunpack.c.l.b16 %v496
        %v861 = vunpack.c.l.b16 %v497
        %v862 = vunpack.c.l.b16 %v498
        %v863 = vunpack.c.l.b16 %v499
        %v864 = vunpack.c.l.b16 %v500
        %v865 = vunpack.c.l.b16 %v501
        %v866 = vunpack.c.l.b16 %v502
        %v867 = vunpack.c.l.b16 %v503
        %v868 = vunpack.c.l.b16 %v504
        %v869 = vunpack.c.l.b16 %v505
        %v870 = vunpack.c.l.b16 %v506
        %v871 = vunpack.c.l.b16 %v507
        %v872 = vunpack.c.l.b16 %v508
        %v873 = vunpack.c.l.b16 %v509
        %v874 = vunpack.c.l.b16 %v510
        %v875 = vunpack.c.l.b16 %v511
        %v876 = vunpack.c.l.b16 %v512
        %v877 = vunpack.c.l.b16 %v513
        %v878 = vunpack.c.l.b16 %v514
        %v879 = vunpack.c.l.b16 %v515
        %v880 = vunpack.c.l.b16 %v516
        %v881 = vunpack.c.l.b16 %v517
        %v882 = vunpack.c.l.b16 %v518
        %v883 = vunpack.c.l.b16 %v519
        %v884 = vunpack.c.l.b16 %v520
        %v885 = vunpack.c.l.b16 %v521
        %v886 = vunpack.c.l.b16 %v522
        %v887 = vpack.c.b16 %v776, %v775
        %v888 = vpack.c.b16 %v778, %v777
        %v889 = vpack.c.b16 %v780, %v779
        %v890 = vpack.c.b16 %v782, %v781
        %v891 = vpack.c.b16 %v784, %v783
        %v892 = vpack.c.b16 %v786, %v785
        %v893 = vpack.c.b16 %v788, %v787
        %v894 = vpack.c.b16 %v790, %v789
        %v895 = vpack.c.b16 %v792, %v791
        %v896 = vpack.c.b16 %v794, %v793
        %v897 = vpack.c.b16 %v796, %v795
        %v898 = vpack.c.b16 %v798, %v797
        %v899 = vpack.c.b16 %v800, %v799
        %v900 = vpack.c.b16 %v802, %v801
        %v901 = vpack.c.b16 %v804, %v803
        %v902 = vpack.c.b16 %v806, %v805
        %v903 = vpack.c.b16 %v808, %v807
        %v904 = vpack.c.b16 %v810, %v809
        %v905 = vpack.c.b16 %v812, %v811
        %v906 = vpack.c.b16 %v814, %v813
        %v907 = vpack.c.b16 %v816, %v815
        %v908 = vpack.c.b16 %v818, %v817
        %v909 = vpack.c.b16 %v820, %v819
        %v910 = vpack.c.b16 %v822, %v821
        %v911 = vpack.c.b16 %v824, %v823
        %v912 = vpack.c.b16 %v826, %v825
        %v913 = vpack.c.b16 %v828, %v827
        %v914 = vpack.c.b16 %v830, %v829
        %v915 = vpack.c.b16 %v832, %v831
        %v916 = vpack.c.b16 %v834, %v833
        %v917 = vpack.c.b16 %v836, %v835
        %v918 = vpack.c.b16 %v838, %v837
        %v919 = vpack.c.b16 %v840, %v839
        %v920 = vpack.c.b16 %v842, %v841
        %v921 = vpack.c.b16 %v844, %v843
        %v922 = vpack.c.b16 %v846, %v845
        %v923 = vpack.c.b16 %v848, %v847
        %v924 = vpack.c.b16 %v850, %v849
        %v925 = vpack.c.b16 %v852, %v851
        %v926 = vpack.c.b16 %v854, %v853
        %v927 = vpack.c.b16 %v856, %v855
        %v928 = vpack.c.b16 %v858, %v857
        %v929 = vpack.c.b16 %v860, %v859
        %v930 = vpack.c.b16 %v862, %v861
        %v931 = vpack.c.b16 %v864, %v863
        %v932 = vpack.c.b16 %v866, %v865
        %v933 = vpack.c.b16 %v868, %v867
        %v934 = vpack.c.b16 %v870, %v869
        %v935 = vpack.c.b16 %v872, %v871
        %v936 = vpack.c.b16 %v874, %v873
        %v937 = vpack.c.b16 %v876, %v875
        %v938 = vpack.c.b16 %v878, %v877
        %v939 = vpack.c.b16 %v880, %v879
        %v940 = vpack.c.b16 %v882, %v881
        %v941 = vpack.c.b16 %v884, %v883
        %v942 = vpack.c.b16 %v886, %v885
        %vm943 = vsmask.f32 256
        %v945 = vshrl.u32 %v887, 16
        %v947 = vrot.slane %v945, 7
        %v948 = vshll.u32 %v887, 16
        %v950 = vor.u32 %v947, %v948
        %v952 = vshrl.u32 %v888, 16
        %v954 = vrot.slane %v952, 7
        %v955 = vshll.u32 %v888, 16
        %v957 = vor.u32 %v954, %v955
        %v958 = vsel %vm943, %v947, %v957
        %v960 = vshrl.u32 %v889, 16
        %v962 = vrot.slane %v960, 7
        %v963 = vshll.u32 %v889, 16
        %v965 = vor.u32 %v962, %v963
        %v967 = vshrl.u32 %v890, 16
        %v969 = vrot.slane %v967, 7
        %v970 = vshll.u32 %v890, 16
        %v972 = vor.u32 %v969, %v970
        %v973 = vsel %vm943, %v962, %v972
        %v975 = vshrl.u32 %v891, 16
        %v977 = vrot.slane %v975, 7
        %v978 = vshll.u32 %v891, 16
        %v980 = vor.u32 %v977, %v978
        %v982 = vshrl.u32 %v892, 16
        %v984 = vrot.slane %v982, 7
        %v985 = vshll.u32 %v892, 16
        %v987 = vor.u32 %v984, %v985
        %v988 = vsel %vm943, %v977, %v987
        %v990 = vshrl.u32 %v893, 16
        %v992 = vrot.slane %v990, 7
        %v993 = vshll.u32 %v893, 16
        %v995 = vor.u32 %v992, %v993
        %v997 = vshrl.u32 %v894, 16
        %v999 = vrot.slane %v997, 7
        %v1000 = vshll.u32 %v894, 16
        %v1002 = vor.u32 %v999, %v1000
        %v1003 = vsel %vm943, %v992, %v1002
        %v1005 = vshrl.u32 %v895, 16
        %v1007 = vrot.slane %v1005, 7
        %v1008 = vshll.u32 %v895, 16
        %v1010 = vor.u32 %v1007, %v1008
        %v1012 = vshrl.u32 %v896, 16
        %v1014 = vrot.slane %v1012, 7
        %v1015 = vshll.u32 %v896, 16
        %v1017 = vor.u32 %v1014, %v1015
        %v1018 = vsel %vm943, %v1007, %v1017
        %v1020 = vshrl.u32 %v897, 16
        %v1022 = vrot.slane %v1020, 7
        %v1023 = vshll.u32 %v897, 16
        %v1025 = vor.u32 %v1022, %v1023
        %v1027 = vshrl.u32 %v898, 16
        %v1029 = vrot.slane %v1027, 7
        %v1030 = vshll.u32 %v898, 16
        %v1032 = vor.u32 %v1029, %v1030
        %v1033 = vsel %vm943, %v1022, %v1032
        %v1035 = vshrl.u32 %v899, 16
        %v1037 = vrot.slane %v1035, 7
        %v1038 = vshll.u32 %v899, 16
        %v1040 = vor.u32 %v1037, %v1038
        %v1042 = vshrl.u32 %v900, 16
        %v1044 = vrot.slane %v1042, 7
        %v1045 = vshll.u32 %v900, 16
        %v1047 = vor.u32 %v1044, %v1045
        %v1048 = vsel %vm943, %v1037, %v1047
        %v1050 = vshrl.u32 %v901, 16
        %v1052 = vrot.slane %v1050, 7
        %v1053 = vshll.u32 %v901, 16
        %v1055 = vor.u32 %v1052, %v1053
        %v1057 = vshrl.u32 %v902, 16
        %v1059 = vrot.slane %v1057, 7
        %v1060 = vshll.u32 %v902, 16
        %v1062 = vor.u32 %v1059, %v1060
        %v1063 = vsel %vm943, %v1052, %v1062
        %v1065 = vshrl.u32 %v903, 16
        %v1067 = vrot.slane %v1065, 7
        %v1068 = vshll.u32 %v903, 16
        %v1070 = vor.u32 %v1067, %v1068
        %v1072 = vshrl.u32 %v904, 16
        %v1074 = vrot.slane %v1072, 7
        %v1075 = vshll.u32 %v904, 16
        %v1077 = vor.u32 %v1074, %v1075
        %v1078 = vsel %vm943, %v1067, %v1077
        %v1080 = vshrl.u32 %v905, 16
        %v1082 = vrot.slane %v1080, 7
        %v1083 = vshll.u32 %v905, 16
        %v1085 = vor.u32 %v1082, %v1083
        %v1087 = vshrl.u32 %v906, 16
        %v1089 = vrot.slane %v1087, 7
        %v1090 = vshll.u32 %v906, 16
        %v1092 = vor.u32 %v1089, %v1090
        %v1093 = vsel %vm943, %v1082, %v1092
        %v1095 = vshrl.u32 %v907, 16
        %v1097 = vrot.slane %v1095, 7
        %v1098 = vshll.u32 %v907, 16
        %v1100 = vor.u32 %v1097, %v1098
        %v1102 = vshrl.u32 %v908, 16
        %v1104 = vrot.slane %v1102, 7
        %v1105 = vshll.u32 %v908, 16
        %v1107 = vor.u32 %v1104, %v1105
        %v1108 = vsel %vm943, %v1097, %v1107
        %v1110 = vshrl.u32 %v909, 16
        %v1112 = vrot.slane %v1110, 7
        %v1113 = vshll.u32 %v909, 16
        %v1115 = vor.u32 %v1112, %v1113
        %v1117 = vshrl.u32 %v910, 16
        %v1119 = vrot.slane %v1117, 7
        %v1120 = vshll.u32 %v910, 16
        %v1122 = vor.u32 %v1119, %v1120
        %v1123 = vsel %vm943, %v1112, %v1122
        %v1125 = vshrl.u32 %v911, 16
        %v1127 = vrot.slane %v1125, 7
        %v1128 = vshll.u32 %v911, 16
        %v1130 = vor.u32 %v1127, %v1128
        %v1132 = vshrl.u32 %v912, 16
        %v1134 = vrot.slane %v1132, 7
        %v1135 = vshll.u32 %v912, 16
        %v1137 = vor.u32 %v1134, %v1135
        %v1138 = vsel %vm943, %v1127, %v1137
        %v1140 = vshrl.u32 %v913, 16
        %v1142 = vrot.slane %v1140, 7
        %v1143 = vshll.u32 %v913, 16
        %v1145 = vor.u32 %v1142, %v1143
        %v1147 = vshrl.u32 %v914, 16
        %v1149 = vrot.slane %v1147, 7
        %v1150 = vshll.u32 %v914, 16
        %v1152 = vor.u32 %v1149, %v1150
        %v1153 = vsel %vm943, %v1142, %v1152
        %v1155 = vshrl.u32 %v915, 16
        %v1157 = vrot.slane %v1155, 7
        %v1158 = vshll.u32 %v915, 16
        %v1160 = vor.u32 %v1157, %v1158
        %v1162 = vshrl.u32 %v916, 16
        %v1164 = vrot.slane %v1162, 7
        %v1165 = vshll.u32 %v916, 16
        %v1167 = vor.u32 %v1164, %v1165
        %v1168 = vsel %vm943, %v1157, %v1167
        %v1170 = vshrl.u32 %v917, 16
        %v1172 = vrot.slane %v1170, 7
        %v1173 = vshll.u32 %v917, 16
        %v1175 = vor.u32 %v1172, %v1173
        %v1177 = vshrl.u32 %v918, 16
        %v1179 = vrot.slane %v1177, 7
        %v1180 = vshll.u32 %v918, 16
        %v1182 = vor.u32 %v1179, %v1180
        %v1183 = vsel %vm943, %v1172, %v1182
        %v1185 = vshrl.u32 %v919, 16
        %v1187 = vrot.slane %v1185, 7
        %v1188 = vshll.u32 %v919, 16
        %v1190 = vor.u32 %v1187, %v1188
        %v1192 = vshrl.u32 %v920, 16
        %v1194 = vrot.slane %v1192, 7
        %v1195 = vshll.u32 %v920, 16
        %v1197 = vor.u32 %v1194, %v1195
        %v1198 = vsel %vm943, %v1187, %v1197
        %v1200 = vshrl.u32 %v921, 16
        %v1202 = vrot.slane %v1200, 7
        %v1203 = vshll.u32 %v921, 16
        %v1205 = vor.u32 %v1202, %v1203
        %v1207 = vshrl.u32 %v922, 16
        %v1209 = vrot.slane %v1207, 7
        %v1210 = vshll.u32 %v922, 16
        %v1212 = vor.u32 %v1209, %v1210
        %v1213 = vsel %vm943, %v1202, %v1212
        %v1215 = vshrl.u32 %v923, 16
        %v1217 = vrot.slane %v1215, 7
        %v1218 = vshll.u32 %v923, 16
        %v1220 = vor.u32 %v1217, %v1218
        %v1222 = vshrl.u32 %v924, 16
        %v1224 = vrot.slane %v1222, 7
        %v1225 = vshll.u32 %v924, 16
        %v1227 = vor.u32 %v1224, %v1225
        %v1228 = vsel %vm943, %v1217, %v1227
        %v1230 = vshrl.u32 %v925, 16
        %v1232 = vrot.slane %v1230, 7
        %v1233 = vshll.u32 %v925, 16
        %v1235 = vor.u32 %v1232, %v1233
        %v1237 = vshrl.u32 %v926, 16
        %v1239 = vrot.slane %v1237, 7
        %v1240 = vshll.u32 %v926, 16
        %v1242 = vor.u32 %v1239, %v1240
        %v1243 = vsel %vm943, %v1232, %v1242
        %v1245 = vshrl.u32 %v927, 16
        %v1247 = vrot.slane %v1245, 7
        %v1248 = vshll.u32 %v927, 16
        %v1250 = vor.u32 %v1247, %v1248
        %v1252 = vshrl.u32 %v928, 16
        %v1254 = vrot.slane %v1252, 7
        %v1255 = vshll.u32 %v928, 16
        %v1257 = vor.u32 %v1254, %v1255
        %v1258 = vsel %vm943, %v1247, %v1257
        %v1260 = vshrl.u32 %v929, 16
        %v1262 = vrot.slane %v1260, 7
        %v1263 = vshll.u32 %v929, 16
        %v1265 = vor.u32 %v1262, %v1263
        %v1267 = vshrl.u32 %v930, 16
        %v1269 = vrot.slane %v1267, 7
        %v1270 = vshll.u32 %v930, 16
        %v1272 = vor.u32 %v1269, %v1270
        %v1273 = vsel %vm943, %v1262, %v1272
        %v1275 = vshrl.u32 %v931, 16
        %v1277 = vrot.slane %v1275, 7
        %v1278 = vshll.u32 %v931, 16
        %v1280 = vor.u32 %v1277, %v1278
        %v1282 = vshrl.u32 %v932, 16
        %v1284 = vrot.slane %v1282, 7
        %v1285 = vshll.u32 %v932, 16
        %v1287 = vor.u32 %v1284, %v1285
        %v1288 = vsel %vm943, %v1277, %v1287
        %v1290 = vshrl.u32 %v933, 16
        %v1292 = vrot.slane %v1290, 7
        %v1293 = vshll.u32 %v933, 16
        %v1295 = vor.u32 %v1292, %v1293
        %v1297 = vshrl.u32 %v934, 16
        %v1299 = vrot.slane %v1297, 7
        %v1300 = vshll.u32 %v934, 16
        %v1302 = vor.u32 %v1299, %v1300
        %v1303 = vsel %vm943, %v1292, %v1302
        %v1305 = vshrl.u32 %v935, 16
        %v1307 = vrot.slane %v1305, 7
        %v1308 = vshll.u32 %v935, 16
        %v1310 = vor.u32 %v1307, %v1308
        %v1312 = vshrl.u32 %v936, 16
        %v1314 = vrot.slane %v1312, 7
        %v1315 = vshll.u32 %v936, 16
        %v1317 = vor.u32 %v1314, %v1315
        %v1318 = vsel %vm943, %v1307, %v1317
        %v1320 = vshrl.u32 %v937, 16
        %v1322 = vrot.slane %v1320, 7
        %v1323 = vshll.u32 %v937, 16
        %v1325 = vor.u32 %v1322, %v1323
        %v1327 = vshrl.u32 %v938, 16
        %v1329 = vrot.slane %v1327, 7
        %v1330 = vshll.u32 %v938, 16
        %v1332 = vor.u32 %v1329, %v1330
        %v1333 = vsel %vm943, %v1322, %v1332
        %v1335 = vshrl.u32 %v939, 16
        %v1337 = vrot.slane %v1335, 7
        %v1338 = vshll.u32 %v939, 16
        %v1340 = vor.u32 %v1337, %v1338
        %v1342 = vshrl.u32 %v940, 16
        %v1344 = vrot.slane %v1342, 7
        %v1345 = vshll.u32 %v940, 16
        %v1347 = vor.u32 %v1344, %v1345
        %v1348 = vsel %vm943, %v1337, %v1347
        %v1350 = vshrl.u32 %v941, 16
        %v1352 = vrot.slane %v1350, 7
        %v1353 = vshll.u32 %v941, 16
        %v1355 = vor.u32 %v1352, %v1353
        %v1357 = vshrl.u32 %v942, 16
        %v1359 = vrot.slane %v1357, 7
        %v1360 = vshll.u32 %v942, 16
        %v1362 = vor.u32 %v1359, %v1360
        %v1363 = vsel %vm943, %v1352, %v1362
        %v1420 = vpack.c.b16 %v778, %v778
        %v1421 = vpack.c.b16 %v782, %v782
        %v1422 = vpack.c.b16 %v786, %v786
        %v1423 = vpack.c.b16 %v790, %v790
        %v1424 = vpack.c.b16 %v794, %v794
        %v1425 = vpack.c.b16 %v798, %v798
        %v1426 = vpack.c.b16 %v802, %v802
        %v1427 = vpack.c.b16 %v806, %v806
        %v1428 = vpack.c.b16 %v810, %v810
        %v1429 = vpack.c.b16 %v814, %v814
        %v1430 = vpack.c.b16 %v818, %v818
        %v1431 = vpack.c.b16 %v822, %v822
        %v1432 = vpack.c.b16 %v826, %v826
        %v1433 = vpack.c.b16 %v830, %v830
        %v1434 = vpack.c.b16 %v834, %v834
        %v1435 = vpack.c.b16 %v838, %v838
        %v1436 = vpack.c.b16 %v842, %v842
        %v1437 = vpack.c.b16 %v846, %v846
        %v1438 = vpack.c.b16 %v850, %v850
        %v1439 = vpack.c.b16 %v854, %v854
        %v1440 = vpack.c.b16 %v858, %v858
        %v1441 = vpack.c.b16 %v862, %v862
        %v1442 = vpack.c.b16 %v866, %v866
        %v1443 = vpack.c.b16 %v870, %v870
        %v1444 = vpack.c.b16 %v874, %v874
        %v1445 = vpack.c.b16 %v878, %v878
        %v1446 = vpack.c.b16 %v882, %v882
        %v1447 = vpack.c.b16 %v886, %v886
        %v1448 = vrot.slane %v1420, 3
        %v1449 = vrot.slane %v1421, 3
        %v1450 = vrot.slane %v1422, 3
        %v1451 = vrot.slane %v1423, 3
        %v1452 = vrot.slane %v1424, 3
        %v1453 = vrot.slane %v1425, 3
        %v1454 = vrot.slane %v1426, 3
        %v1455 = vrot.slane %v1427, 3
        %v1456 = vrot.slane %v1428, 3
        %v1457 = vrot.slane %v1429, 3
        %v1458 = vrot.slane %v1430, 3
        %v1459 = vrot.slane %v1431, 3
        %v1460 = vrot.slane %v1432, 3
        %v1461 = vrot.slane %v1433, 3
        %v1462 = vrot.slane %v1434, 3
        %v1463 = vrot.slane %v1435, 3
        %v1464 = vrot.slane %v1436, 3
        %v1465 = vrot.slane %v1437, 3
        %v1466 = vrot.slane %v1438, 3
        %v1467 = vrot.slane %v1439, 3
        %v1468 = vrot.slane %v1440, 3
        %v1469 = vrot.slane %v1441, 3
        %v1470 = vrot.slane %v1442, 3
        %v1471 = vrot.slane %v1443, 3
        %v1472 = vrot.slane %v1444, 3
        %v1473 = vrot.slane %v1445, 3
        %v1474 = vrot.slane %v1446, 3
        %v1475 = vrot.slane %v1447, 3
        %vm1504 = vcmask 1040384
        %vm1505 = vmand %vm1504, %vm943
        %v1506 = vsel %vm1505, %v411, %v950
        %v1507 = vsel %vm1505, %v415, %v965
        %v1508 = vsel %vm1505, %v419, %v980
        %v1509 = vsel %vm1505, %v423, %v995
        %v1510 = vsel %vm1505, %v427, %v1010
        %v1511 = vsel %vm1505, %v431, %v1025
        %v1512 = vsel %vm1505, %v435, %v1040
        %v1513 = vsel %vm1505, %v439, %v1055
        %v1514 = vsel %vm1505, %v443, %v1070
        %v1515 = vsel %vm1505, %v447, %v1085
        %v1516 = vsel %vm1505, %v451, %v1100
        %v1517 = vsel %vm1505, %v455, %v1115
        %v1518 = vsel %vm1505, %v459, %v1130
        %v1519 = vsel %vm1505, %v463, %v1145
        %v1520 = vsel %vm1505, %v467, %v1160
        %v1521 = vsel %vm1505, %v471, %v1175
        %v1522 = vsel %vm1505, %v475, %v1190
        %v1523 = vsel %vm1505, %v479, %v1205
        %v1524 = vsel %vm1505, %v483, %v1220
        %v1525 = vsel %vm1505, %v487, %v1235
        %v1526 = vsel %vm1505, %v491, %v1250
        %v1527 = vsel %vm1505, %v495, %v1265
        %v1528 = vsel %vm1505, %v499, %v1280
        %v1529 = vsel %vm1505, %v503, %v1295
        %v1530 = vsel %vm1505, %v507, %v1310
        %v1531 = vsel %vm1505, %v511, %v1325
        %v1532 = vsel %vm1505, %v515, %v1340
        %v1533 = vsel %vm1505, %v519, %v1355
        %vm1534 = vcmask 1046528
        %vm1535 = vsmask.f32 6400
        %vm1536 = vmand %vm1534, %vm1535
        %v1537 = vsel %vm1536, %v958, %v1448
        %v1538 = vsel %vm1536, %v973, %v1449
        %v1539 = vsel %vm1536, %v988, %v1450
        %v1540 = vsel %vm1536, %v1003, %v1451
        %v1541 = vsel %vm1536, %v1018, %v1452
        %v1542 = vsel %vm1536, %v1033, %v1453
        %v1543 = vsel %vm1536, %v1048, %v1454
        %v1544 = vsel %vm1536, %v1063, %v1455
        %v1545 = vsel %vm1536, %v1078, %v1456
        %v1546 = vsel %vm1536, %v1093, %v1457
        %v1547 = vsel %vm1536, %v1108, %v1458
        %v1548 = vsel %vm1536, %v1123, %v1459
        %v1549 = vsel %vm1536, %v1138, %v1460
        %v1550 = vsel %vm1536, %v1153, %v1461
        %v1551 = vsel %vm1536, %v1168, %v1462
        %v1552 = vsel %vm1536, %v1183, %v1463
        %v1553 = vsel %vm1536, %v1198, %v1464
        %v1554 = vsel %vm1536, %v1213, %v1465
        %v1555 = vsel %vm1536, %v1228, %v1466
        %v1556 = vsel %vm1536, %v1243, %v1467
        %v1557 = vsel %vm1536, %v1258, %v1468
        %v1558 = vsel %vm1536, %v1273, %v1469
        %v1559 = vsel %vm1536, %v1288, %v1470
        %v1560 = vsel %vm1536, %v1303, %v1471
        %v1561 = vsel %vm1536, %v1318, %v1472
        %v1562 = vsel %vm1536, %v1333, %v1473
        %v1563 = vsel %vm1536, %v1348, %v1474
        %v1564 = vsel %vm1536, %v1363, %v1475
        %vm1565 = vcmask 1046528
        %v1568 = vsel %vm1565, %v1537, %v527
        %v1571 = vsel %vm1565, %v1538, %v532
        %v1574 = vsel %vm1565, %v1539, %v537
        %v1577 = vsel %vm1565, %v1540, %v542
        %v1580 = vsel %vm1565, %v1541, %v547
        %v1583 = vsel %vm1565, %v1542, %v552
        %v1586 = vsel %vm1565, %v1543, %v557
        %v1589 = vsel %vm1565, %v1544, %v562
        %v1592 = vsel %vm1565, %v1545, %v567
        %v1595 = vsel %vm1565, %v1546, %v572
        %v1598 = vsel %vm1565, %v1547, %v577
        %v1601 = vsel %vm1565, %v1548, %v582
        %v1604 = vsel %vm1565, %v1549, %v587
        %v1607 = vsel %vm1565, %v1550, %v592
        %v1610 = vsel %vm1565, %v1551, %v597
        %v1613 = vsel %vm1565, %v1552, %v602
        %v1616 = vsel %vm1565, %v1553, %v607
        %v1619 = vsel %vm1565, %v1554, %v612
        %v1622 = vsel %vm1565, %v1555, %v617
        %v1625 = vsel %vm1565, %v1556, %v622
        %v1628 = vsel %vm1565, %v1557, %v627
        %v1631 = vsel %vm1565, %v1558, %v632
        %v1634 = vsel %vm1565, %v1559, %v637
        %v1637 = vsel %vm1565, %v1560, %v642
        %v1640 = vsel %vm1565, %v1561, %v647
        %v1643 = vsel %vm1565, %v1562, %v652
        %v1646 = vsel %vm1565, %v1563, %v657
        %v1649 = vsel %vm1565, %v1564, %v662
        %vm1650 = vsmask.f32 7424
        %v1652 = vshrl.u32 %v1506, 16
        %v1654 = vshll.u32 %v1506, 16
        %v1656 = vrot.slane %v1654, 1
        %v1657 = vor.u32 %v1652, %v1656
        %v1658 = vshll.u32 %v1568, 16
        %v1660 = vrot.slane %v1658, 1
        %v1661 = vsel %vm1650, %v1657, %v1660
        %v1662 = vshrl.u32 %v1568, 16
        %v1664 = vor.u32 %v1662, %v1660
        %v1665 = vsel %vm1650, %v1664, %v1656
        %v1667 = vshll.u32 %v1507, 16
        %v1669 = vrot.slane %v1667, 1
        %v1670 = vsel %vm1650, %v1664, %v1669
        %v1671 = vshrl.u32 %v1507, 16
        %v1673 = vor.u32 %v1671, %v1669
        %v1674 = vshll.u32 %v1571, 16
        %v1676 = vrot.slane %v1674, 1
        %v1677 = vsel %vm1650, %v1673, %v1676
        %v1678 = vshrl.u32 %v1571, 16
        %v1680 = vor.u32 %v1678, %v1676
        %v1682 = vshll.u32 %v1508, 16
        %v1684 = vrot.slane %v1682, 1
        %v1685 = vsel %vm1650, %v1680, %v1684
        %v1686 = vshrl.u32 %v1508, 16
        %v1688 = vor.u32 %v1686, %v1684
        %v1689 = vshll.u32 %v1574, 16
        %v1691 = vrot.slane %v1689, 1
        %v1692 = vsel %vm1650, %v1688, %v1691
        %v1693 = vshrl.u32 %v1574, 16
        %v1695 = vor.u32 %v1693, %v1691
        %v1697 = vshll.u32 %v1509, 16
        %v1699 = vrot.slane %v1697, 1
        %v1700 = vsel %vm1650, %v1695, %v1699
        %v1701 = vshrl.u32 %v1509, 16
        %v1703 = vor.u32 %v1701, %v1699
        %v1704 = vshll.u32 %v1577, 16
        %v1706 = vrot.slane %v1704, 1
        %v1707 = vsel %vm1650, %v1703, %v1706
        %v1708 = vshrl.u32 %v1577, 16
        %v1710 = vor.u32 %v1708, %v1706
        %v1712 = vshll.u32 %v1510, 16
        %v1714 = vrot.slane %v1712, 1
        %v1715 = vsel %vm1650, %v1710, %v1714
        %v1716 = vshrl.u32 %v1510, 16
        %v1718 = vor.u32 %v1716, %v1714
        %v1719 = vshll.u32 %v1580, 16
        %v1721 = vrot.slane %v1719, 1
        %v1722 = vsel %vm1650, %v1718, %v1721
        %v1723 = vshrl.u32 %v1580, 16
        %v1725 = vor.u32 %v1723, %v1721
        %v1727 = vshll.u32 %v1511, 16
        %v1729 = vrot.slane %v1727, 1
        %v1730 = vsel %vm1650, %v1725, %v1729
        %v1731 = vshrl.u32 %v1511, 16
        %v1733 = vor.u32 %v1731, %v1729
        %v1734 = vshll.u32 %v1583, 16
        %v1736 = vrot.slane %v1734, 1
        %v1737 = vsel %vm1650, %v1733, %v1736
        %v1738 = vshrl.u32 %v1583, 16
        %v1740 = vor.u32 %v1738, %v1736
        %v1742 = vshll.u32 %v1512, 16
        %v1744 = vrot.slane %v1742, 1
        %v1745 = vsel %vm1650, %v1740, %v1744
        %v1746 = vshrl.u32 %v1512, 16
        %v1748 = vor.u32 %v1746, %v1744
        %v1749 = vshll.u32 %v1586, 16
        %v1751 = vrot.slane %v1749, 1
        %v1752 = vsel %vm1650, %v1748, %v1751
        %v1753 = vshrl.u32 %v1586, 16
        %v1755 = vor.u32 %v1753, %v1751
        %v1757 = vshll.u32 %v1513, 16
        %v1759 = vrot.slane %v1757, 1
        %v1760 = vsel %vm1650, %v1755, %v1759
        %v1761 = vshrl.u32 %v1513, 16
        %v1763 = vor.u32 %v1761, %v1759
        %v1764 = vshll.u32 %v1589, 16
        %v1766 = vrot.slane %v1764, 1
        %v1767 = vsel %vm1650, %v1763, %v1766
        %v1768 = vshrl.u32 %v1589, 16
        %v1770 = vor.u32 %v1768, %v1766
        %v1772 = vshll.u32 %v1514, 16
        %v1774 = vrot.slane %v1772, 1
        %v1775 = vsel %vm1650, %v1770, %v1774
        %v1776 = vshrl.u32 %v1514, 16
        %v1778 = vor.u32 %v1776, %v1774
        %v1779 = vshll.u32 %v1592, 16
        %v1781 = vrot.slane %v1779, 1
        %v1782 = vsel %vm1650, %v1778, %v1781
        %v1783 = vshrl.u32 %v1592, 16
        %v1785 = vor.u32 %v1783, %v1781
        %v1787 = vshll.u32 %v1515, 16
        %v1789 = vrot.slane %v1787, 1
        %v1790 = vsel %vm1650, %v1785, %v1789
        %v1791 = vshrl.u32 %v1515, 16
        %v1793 = vor.u32 %v1791, %v1789
        %v1794 = vshll.u32 %v1595, 16
        %v1796 = vrot.slane %v1794, 1
        %v1797 = vsel %vm1650, %v1793, %v1796
        %v1798 = vshrl.u32 %v1595, 16
        %v1800 = vor.u32 %v1798, %v1796
        %v1802 = vshll.u32 %v1516, 16
        %v1804 = vrot.slane %v1802, 1
        %v1805 = vsel %vm1650, %v1800, %v1804
        %v1806 = vshrl.u32 %v1516, 16
        %v1808 = vor.u32 %v1806, %v1804
        %v1809 = vshll.u32 %v1598, 16
        %v1811 = vrot.slane %v1809, 1
        %v1812 = vsel %vm1650, %v1808, %v1811
        %v1813 = vshrl.u32 %v1598, 16
        %v1815 = vor.u32 %v1813, %v1811
        %v1817 = vshll.u32 %v1517, 16
        %v1819 = vrot.slane %v1817, 1
        %v1820 = vsel %vm1650, %v1815, %v1819
        %v1821 = vshrl.u32 %v1517, 16
        %v1823 = vor.u32 %v1821, %v1819
        %v1824 = vshll.u32 %v1601, 16
        %v1826 = vrot.slane %v1824, 1
        %v1827 = vsel %vm1650, %v1823, %v1826
        %v1828 = vshrl.u32 %v1601, 16
        %v1830 = vor.u32 %v1828, %v1826
        %v1832 = vshll.u32 %v1518, 16
        %v1834 = vrot.slane %v1832, 1
        %v1835 = vsel %vm1650, %v1830, %v1834
        %v1836 = vshrl.u32 %v1518, 16
        %v1838 = vor.u32 %v1836, %v1834
        %v1839 = vshll.u32 %v1604, 16
        %v1841 = vrot.slane %v1839, 1
        %v1842 = vsel %vm1650, %v1838, %v1841
        %v1843 = vshrl.u32 %v1604, 16
        %v1845 = vor.u32 %v1843, %v1841
        %v1847 = vshll.u32 %v1519, 16
        %v1849 = vrot.slane %v1847, 1
        %v1850 = vsel %vm1650, %v1845, %v1849
        %v1851 = vshrl.u32 %v1519, 16
        %v1853 = vor.u32 %v1851, %v1849
        %v1854 = vshll.u32 %v1607, 16
        %v1856 = vrot.slane %v1854, 1
        %v1857 = vsel %vm1650, %v1853, %v1856
        %v1858 = vshrl.u32 %v1607, 16
        %v1860 = vor.u32 %v1858, %v1856
        %v1862 = vshll.u32 %v1520, 16
        %v1864 = vrot.slane %v1862, 1
        %v1865 = vsel %vm1650, %v1860, %v1864
        %v1866 = vshrl.u32 %v1520, 16
        %v1868 = vor.u32 %v1866, %v1864
        %v1869 = vshll.u32 %v1610, 16
        %v1871 = vrot.slane %v1869, 1
        %v1872 = vsel %vm1650, %v1868, %v1871
        %v1873 = vshrl.u32 %v1610, 16
        %v1875 = vor.u32 %v1873, %v1871
        %v1877 = vshll.u32 %v1521, 16
        %v1879 = vrot.slane %v1877, 1
        %v1880 = vsel %vm1650, %v1875, %v1879
        %v1881 = vshrl.u32 %v1521, 16
        %v1883 = vor.u32 %v1881, %v1879
        %v1884 = vshll.u32 %v1613, 16
        %v1886 = vrot.slane %v1884, 1
        %v1887 = vsel %vm1650, %v1883, %v1886
        %v1888 = vshrl.u32 %v1613, 16
        %v1890 = vor.u32 %v1888, %v1886
        %v1892 = vshll.u32 %v1522, 16
        %v1894 = vrot.slane %v1892, 1
        %v1895 = vsel %vm1650, %v1890, %v1894
        %v1896 = vshrl.u32 %v1522, 16
        %v1898 = vor.u32 %v1896, %v1894
        %v1899 = vshll.u32 %v1616, 16
        %v1901 = vrot.slane %v1899, 1
        %v1902 = vsel %vm1650, %v1898, %v1901
        %v1903 = vshrl.u32 %v1616, 16
        %v1905 = vor.u32 %v1903, %v1901
        %v1907 = vshll.u32 %v1523, 16
        %v1909 = vrot.slane %v1907, 1
        %v1910 = vsel %vm1650, %v1905, %v1909
        %v1911 = vshrl.u32 %v1523, 16
        %v1913 = vor.u32 %v1911, %v1909
        %v1914 = vshll.u32 %v1619, 16
        %v1916 = vrot.slane %v1914, 1
        %v1917 = vsel %vm1650, %v1913, %v1916
        %v1918 = vshrl.u32 %v1619, 16
        %v1920 = vor.u32 %v1918, %v1916
        %v1922 = vshll.u32 %v1524, 16
        %v1924 = vrot.slane %v1922, 1
        %v1925 = vsel %vm1650, %v1920, %v1924
        %v1926 = vshrl.u32 %v1524, 16
        %v1928 = vor.u32 %v1926, %v1924
        %v1929 = vshll.u32 %v1622, 16
        %v1931 = vrot.slane %v1929, 1
        %v1932 = vsel %vm1650, %v1928, %v1931
        %v1933 = vshrl.u32 %v1622, 16
        %v1935 = vor.u32 %v1933, %v1931
        %v1937 = vshll.u32 %v1525, 16
        %v1939 = vrot.slane %v1937, 1
        %v1940 = vsel %vm1650, %v1935, %v1939
        %v1941 = vshrl.u32 %v1525, 16
        %v1943 = vor.u32 %v1941, %v1939
        %v1944 = vshll.u32 %v1625, 16
        %v1946 = vrot.slane %v1944, 1
        %v1947 = vsel %vm1650, %v1943, %v1946
        %v1948 = vshrl.u32 %v1625, 16
        %v1950 = vor.u32 %v1948, %v1946
        %v1952 = vshll.u32 %v1526, 16
        %v1954 = vrot.slane %v1952, 1
        %v1955 = vsel %vm1650, %v1950, %v1954
        %v1956 = vshrl.u32 %v1526, 16
        %v1958 = vor.u32 %v1956, %v1954
        %v1959 = vshll.u32 %v1628, 16
        %v1961 = vrot.slane %v1959, 1
        %v1962 = vsel %vm1650, %v1958, %v1961
        %v1963 = vshrl.u32 %v1628, 16
        %v1965 = vor.u32 %v1963, %v1961
        %v1967 = vshll.u32 %v1527, 16
        %v1969 = vrot.slane %v1967, 1
        %v1970 = vsel %vm1650, %v1965, %v1969
        %v1971 = vshrl.u32 %v1527, 16
        %v1973 = vor.u32 %v1971, %v1969
        %v1974 = vshll.u32 %v1631, 16
        %v1976 = vrot.slane %v1974, 1
        %v1977 = vsel %vm1650, %v1973, %v1976
        %v1978 = vshrl.u32 %v1631, 16
        %v1980 = vor.u32 %v1978, %v1976
        %v1982 = vshll.u32 %v1528, 16
        %v1984 = vrot.slane %v1982, 1
        %v1985 = vsel %vm1650, %v1980, %v1984
        %v1986 = vshrl.u32 %v1528, 16
        %v1988 = vor.u32 %v1986, %v1984
        %v1989 = vshll.u32 %v1634, 16
        %v1991 = vrot.slane %v1989, 1
        %v1992 = vsel %vm1650, %v1988, %v1991
        %v1993 = vshrl.u32 %v1634, 16
        %v1995 = vor.u32 %v1993, %v1991
        %v1997 = vshll.u32 %v1529, 16
        %v1999 = vrot.slane %v1997, 1
        %v2000 = vsel %vm1650, %v1995, %v1999
        %v2001 = vshrl.u32 %v1529, 16
        %v2003 = vor.u32 %v2001, %v1999
        %v2004 = vshll.u32 %v1637, 16
        %v2006 = vrot.slane %v2004, 1
        %v2007 = vsel %vm1650, %v2003, %v2006
        %v2008 = vshrl.u32 %v1637, 16
        %v2010 = vor.u32 %v2008, %v2006
        %v2012 = vshll.u32 %v1530, 16
        %v2014 = vrot.slane %v2012, 1
        %v2015 = vsel %vm1650, %v2010, %v2014
        %v2016 = vshrl.u32 %v1530, 16
        %v2018 = vor.u32 %v2016, %v2014
        %v2019 = vshll.u32 %v1640, 16
        %v2021 = vrot.slane %v2019, 1
        %v2022 = vsel %vm1650, %v2018, %v2021
        %v2023 = vshrl.u32 %v1640, 16
        %v2025 = vor.u32 %v2023, %v2021
        %v2027 = vshll.u32 %v1531, 16
        %v2029 = vrot.slane %v2027, 1
        %v2030 = vsel %vm1650, %v2025, %v2029
        %v2031 = vshrl.u32 %v1531, 16
        %v2033 = vor.u32 %v2031, %v2029
        %v2034 = vshll.u32 %v1643, 16
        %v2036 = vrot.slane %v2034, 1
        %v2037 = vsel %vm1650, %v2033, %v2036
        %v2038 = vshrl.u32 %v1643, 16
        %v2040 = vor.u32 %v2038, %v2036
        %v2042 = vshll.u32 %v1532, 16
        %v2044 = vrot.slane %v2042, 1
        %v2045 = vsel %vm1650, %v2040, %v2044
        %v2046 = vshrl.u32 %v1532, 16
        %v2048 = vor.u32 %v2046, %v2044
        %v2049 = vshll.u32 %v1646, 16
        %v2051 = vrot.slane %v2049, 1
        %v2052 = vsel %vm1650, %v2048, %v2051
        %v2053 = vshrl.u32 %v1646, 16
        %v2055 = vor.u32 %v2053, %v2051
        %v2057 = vshll.u32 %v1533, 16
        %v2059 = vrot.slane %v2057, 1
        %v2060 = vsel %vm1650, %v2055, %v2059
        %v2061 = vshrl.u32 %v1533, 16
        %v2063 = vor.u32 %v2061, %v2059
        %v2064 = vshll.u32 %v1649, 16
        %v2066 = vrot.slane %v2064, 1
        %v2067 = vsel %vm1650, %v2063, %v2066
        %v2068 = vshrl.u32 %v1649, 16
        %v2070 = vor.u32 %v2068, %v2066
        %v2071 = vsel %vm1650, %v2070, %v2059
        %2072 = vrot.lane.b32.xlu0 %v1661, 3
        %v2073 = vpop.permute.xlu0 %2072
        %2074 = vrot.lane.b32.xlu0 %v1665, 3
        %v2075 = vpop.permute.xlu0 %2074
        %2076 = vrot.lane.b32.xlu0 %v1670, 3
        %v2077 = vpop.permute.xlu0 %2076
        %2078 = vrot.lane.b32.xlu0 %v1677, 3
        %v2079 = vpop.permute.xlu0 %2078
        %2080 = vrot.lane.b32.xlu0 %v1685, 3
        %v2081 = vpop.permute.xlu0 %2080
        %2082 = vrot.lane.b32.xlu0 %v1692, 3
        %v2083 = vpop.permute.xlu0 %2082
        %2084 = vrot.lane.b32.xlu0 %v1700, 3
        %v2085 = vpop.permute.xlu0 %2084
        %2086 = vrot.lane.b32.xlu0 %v1707, 3
        %v2087 = vpop.permute.xlu0 %2086
        %2088 = vrot.lane.b32.xlu0 %v1715, 3
        %v2089 = vpop.permute.xlu0 %2088
        %2090 = vrot.lane.b32.xlu0 %v1722, 3
        %v2091 = vpop.permute.xlu0 %2090
        %2092 = vrot.lane.b32.xlu0 %v1730, 3
        %v2093 = vpop.permute.xlu0 %2092
        %2094 = vrot.lane.b32.xlu0 %v1737, 3
        %v2095 = vpop.permute.xlu0 %2094
        %2096 = vrot.lane.b32.xlu0 %v1745, 3
        %v2097 = vpop.permute.xlu0 %2096
        %2098 = vrot.lane.b32.xlu0 %v1752, 3
        %v2099 = vpop.permute.xlu0 %2098
        %2100 = vrot.lane.b32.xlu0 %v1760, 3
        %v2101 = vpop.permute.xlu0 %2100
        %2102 = vrot.lane.b32.xlu0 %v1767, 3
        %v2103 = vpop.permute.xlu0 %2102
        %2104 = vrot.lane.b32.xlu0 %v1775, 3
        %v2105 = vpop.permute.xlu0 %2104
        %2106 = vrot.lane.b32.xlu0 %v1782, 3
        %v2107 = vpop.permute.xlu0 %2106
        %2108 = vrot.lane.b32.xlu0 %v1790, 3
        %v2109 = vpop.permute.xlu0 %2108
        %2110 = vrot.lane.b32.xlu0 %v1797, 3
        %v2111 = vpop.permute.xlu0 %2110
        %2112 = vrot.lane.b32.xlu0 %v1805, 3
        %v2113 = vpop.permute.xlu0 %2112
        %2114 = vrot.lane.b32.xlu0 %v1812, 3
        %v2115 = vpop.permute.xlu0 %2114
        %2116 = vrot.lane.b32.xlu0 %v1820, 3
        %v2117 = vpop.permute.xlu0 %2116
        %2118 = vrot.lane.b32.xlu0 %v1827, 3
        %v2119 = vpop.permute.xlu0 %2118
        %2120 = vrot.lane.b32.xlu0 %v1835, 3
        %v2121 = vpop.permute.xlu0 %2120
        %2122 = vrot.lane.b32.xlu0 %v1842, 3
        %v2123 = vpop.permute.xlu0 %2122
        %2124 = vrot.lane.b32.xlu0 %v1850, 3
        %v2125 = vpop.permute.xlu0 %2124
        %2126 = vrot.lane.b32.xlu0 %v1857, 3
        %v2127 = vpop.permute.xlu0 %2126
        %2128 = vrot.lane.b32.xlu0 %v1865, 3
        %v2129 = vpop.permute.xlu0 %2128
        %2130 = vrot.lane.b32.xlu0 %v1872, 3
        %v2131 = vpop.permute.xlu0 %2130
        %2132 = vrot.lane.b32.xlu0 %v1880, 3
        %v2133 = vpop.permute.xlu0 %2132
        %2134 = vrot.lane.b32.xlu0 %v1887, 3
        %v2135 = vpop.permute.xlu0 %2134
        %2136 = vrot.lane.b32.xlu0 %v1895, 3
        %v2137 = vpop.permute.xlu0 %2136
        %2138 = vrot.lane.b32.xlu0 %v1902, 3
        %v2139 = vpop.permute.xlu0 %2138
        %2140 = vrot.lane.b32.xlu0 %v1910, 3
        %v2141 = vpop.permute.xlu0 %2140
        %2142 = vrot.lane.b32.xlu0 %v1917, 3
        %v2143 = vpop.permute.xlu0 %2142
        %2144 = vrot.lane.b32.xlu0 %v1925, 3
        %v2145 = vpop.permute.xlu0 %2144
        %2146 = vrot.lane.b32.xlu0 %v1932, 3
        %v2147 = vpop.permute.xlu0 %2146
        %2148 = vrot.lane.b32.xlu0 %v1940, 3
        %v2149 = vpop.permute.xlu0 %2148
        %2150 = vrot.lane.b32.xlu0 %v1947, 3
        %v2151 = vpop.permute.xlu0 %2150
        %2152 = vrot.lane.b32.xlu0 %v1955, 3
        %v2153 = vpop.permute.xlu0 %2152
        %2154 = vrot.lane.b32.xlu0 %v1962, 3
        %v2155 = vpop.permute.xlu0 %2154
        %2156 = vrot.lane.b32.xlu0 %v1970, 3
        %v2157 = vpop.permute.xlu0 %2156
        %2158 = vrot.lane.b32.xlu0 %v1977, 3
        %v2159 = vpop.permute.xlu0 %2158
        %2160 = vrot.lane.b32.xlu0 %v1985, 3
        %v2161 = vpop.permute.xlu0 %2160
        %2162 = vrot.lane.b32.xlu0 %v1992, 3
        %v2163 = vpop.permute.xlu0 %2162
        %2164 = vrot.lane.b32.xlu0 %v2000, 3
        %v2165 = vpop.permute.xlu0 %2164
        %2166 = vrot.lane.b32.xlu0 %v2007, 3
        %v2167 = vpop.permute.xlu0 %2166
        %2168 = vrot.lane.b32.xlu0 %v2015, 3
        %v2169 = vpop.permute.xlu0 %2168
        %2170 = vrot.lane.b32.xlu0 %v2022, 3
        %v2171 = vpop.permute.xlu0 %2170
        %2172 = vrot.lane.b32.xlu0 %v2030, 3
        %v2173 = vpop.permute.xlu0 %2172
        %2174 = vrot.lane.b32.xlu0 %v2037, 3
        %v2175 = vpop.permute.xlu0 %2174
        %2176 = vrot.lane.b32.xlu0 %v2045, 3
        %v2177 = vpop.permute.xlu0 %2176
        %2178 = vrot.lane.b32.xlu0 %v2052, 3
        %v2179 = vpop.permute.xlu0 %2178
        %2180 = vrot.lane.b32.xlu0 %v2060, 3
        %v2181 = vpop.permute.xlu0 %2180
        %2182 = vrot.lane.b32.xlu0 %v2067, 3
        %v2183 = vpop.permute.xlu0 %2182
        %2184 = vrot.lane.b32.xlu0 %v2071, 3
        %v2185 = vpop.permute.xlu0 %2184
        %v2242 = vrot.slane %v1506, 1
        %v2243 = vrot.slane %v1568, 1
        %v2244 = vsel %vm1534, %v2242, %v2243
        %v2245 = vsel %vm1534, %v2243, %v2242
        %v2246 = vrot.slane %v1507, 1
        %v2247 = vsel %vm1534, %v2243, %v2246
        %v2248 = vrot.slane %v1571, 1
        %v2249 = vsel %vm1534, %v2246, %v2248
        %v2250 = vrot.slane %v1508, 1
        %v2251 = vsel %vm1534, %v2248, %v2250
        %v2252 = vrot.slane %v1574, 1
        %v2253 = vsel %vm1534, %v2250, %v2252
        %v2254 = vrot.slane %v1509, 1
        %v2255 = vsel %vm1534, %v2252, %v2254
        %v2256 = vrot.slane %v1577, 1
        %v2257 = vsel %vm1534, %v2254, %v2256
        %v2258 = vrot.slane %v1510, 1
        %v2259 = vsel %vm1534, %v2256, %v2258
        %v2260 = vrot.slane %v1580, 1
        %v2261 = vsel %vm1534, %v2258, %v2260
        %v2262 = vrot.slane %v1511, 1
        %v2263 = vsel %vm1534, %v2260, %v2262
        %v2264 = vrot.slane %v1583, 1
        %v2265 = vsel %vm1534, %v2262, %v2264
        %v2266 = vrot.slane %v1512, 1
        %v2267 = vsel %vm1534, %v2264, %v2266
        %v2268 = vrot.slane %v1586, 1
        %v2269 = vsel %vm1534, %v2266, %v2268
        %v2270 = vrot.slane %v1513, 1
        %v2271 = vsel %vm1534, %v2268, %v2270
        %v2272 = vrot.slane %v1589, 1
        %v2273 = vsel %vm1534, %v2270, %v2272
        %v2274 = vrot.slane %v1514, 1
        %v2275 = vsel %vm1534, %v2272, %v2274
        %v2276 = vrot.slane %v1592, 1
        %v2277 = vsel %vm1534, %v2274, %v2276
        %v2278 = vrot.slane %v1515, 1
        %v2279 = vsel %vm1534, %v2276, %v2278
        %v2280 = vrot.slane %v1595, 1
        %v2281 = vsel %vm1534, %v2278, %v2280
        %v2282 = vrot.slane %v1516, 1
        %v2283 = vsel %vm1534, %v2280, %v2282
        %v2284 = vrot.slane %v1598, 1
        %v2285 = vsel %vm1534, %v2282, %v2284
        %v2286 = vrot.slane %v1517, 1
        %v2287 = vsel %vm1534, %v2284, %v2286
        %v2288 = vrot.slane %v1601, 1
        %v2289 = vsel %vm1534, %v2286, %v2288
        %v2290 = vrot.slane %v1518, 1
        %v2291 = vsel %vm1534, %v2288, %v2290
        %v2292 = vrot.slane %v1604, 1
        %v2293 = vsel %vm1534, %v2290, %v2292
        %v2294 = vrot.slane %v1519, 1
        %v2295 = vsel %vm1534, %v2292, %v2294
        %v2296 = vrot.slane %v1607, 1
        %v2297 = vsel %vm1534, %v2294, %v2296
        %v2298 = vrot.slane %v1520, 1
        %v2299 = vsel %vm1534, %v2296, %v2298
        %v2300 = vrot.slane %v1610, 1
        %v2301 = vsel %vm1534, %v2298, %v2300
        %v2302 = vrot.slane %v1521, 1
        %v2303 = vsel %vm1534, %v2300, %v2302
        %v2304 = vrot.slane %v1613, 1
        %v2305 = vsel %vm1534, %v2302, %v2304
        %v2306 = vrot.slane %v1522, 1
        %v2307 = vsel %vm1534, %v2304, %v2306
        %v2308 = vrot.slane %v1616, 1
        %v2309 = vsel %vm1534, %v2306, %v2308
        %v2310 = vrot.slane %v1523, 1
        %v2311 = vsel %vm1534, %v2308, %v2310
        %v2312 = vrot.slane %v1619, 1
        %v2313 = vsel %vm1534, %v2310, %v2312
        %v2314 = vrot.slane %v1524, 1
        %v2315 = vsel %vm1534, %v2312, %v2314
        %v2316 = vrot.slane %v1622, 1
        %v2317 = vsel %vm1534, %v2314, %v2316
        %v2318 = vrot.slane %v1525, 1
        %v2319 = vsel %vm1534, %v2316, %v2318
        %v2320 = vrot.slane %v1625, 1
        %v2321 = vsel %vm1534, %v2318, %v2320
        %v2322 = vrot.slane %v1526, 1
        %v2323 = vsel %vm1534, %v2320, %v2322
        %v2324 = vrot.slane %v1628, 1
        %v2325 = vsel %vm1534, %v2322, %v2324
        %v2326 = vrot.slane %v1527, 1
        %v2327 = vsel %vm1534, %v2324, %v2326
        %v2328 = vrot.slane %v1631, 1
        %v2329 = vsel %vm1534, %v2326, %v2328
        %v2330 = vrot.slane %v1528, 1
        %v2331 = vsel %vm1534, %v2328, %v2330
        %v2332 = vrot.slane %v1634, 1
        %v2333 = vsel %vm1534, %v2330, %v2332
        %v2334 = vrot.slane %v1529, 1
        %v2335 = vsel %vm1534, %v2332, %v2334
        %v2336 = vrot.slane %v1637, 1
        %v2337 = vsel %vm1534, %v2334, %v2336
        %v2338 = vrot.slane %v1530, 1
        %v2339 = vsel %vm1534, %v2336, %v2338
        %v2340 = vrot.slane %v1640, 1
        %v2341 = vsel %vm1534, %v2338, %v2340
        %v2342 = vrot.slane %v1531, 1
        %v2343 = vsel %vm1534, %v2340, %v2342
        %v2344 = vrot.slane %v1643, 1
        %v2345 = vsel %vm1534, %v2342, %v2344
        %v2346 = vrot.slane %v1532, 1
        %v2347 = vsel %vm1534, %v2344, %v2346
        %v2348 = vrot.slane %v1646, 1
        %v2349 = vsel %vm1534, %v2346, %v2348
        %v2350 = vrot.slane %v1533, 1
        %v2351 = vsel %vm1534, %v2348, %v2350
        %v2352 = vrot.slane %v1649, 1
        %v2353 = vsel %vm1534, %v2350, %v2352
        %v2354 = vsel %vm1534, %v2352, %v2350
        %2355 = vrot.lane.b32.xlu0 %v2244, 6
        %v2356 = vpop.permute.xlu0 %2355
        %2357 = vrot.lane.b32.xlu0 %v2245, 6
        %v2358 = vpop.permute.xlu0 %2357
        %2359 = vrot.lane.b32.xlu0 %v2247, 6
        %v2360 = vpop.permute.xlu0 %2359
        %2361 = vrot.lane.b32.xlu0 %v2249, 6
        %v2362 = vpop.permute.xlu0 %2361
        %2363 = vrot.lane.b32.xlu0 %v2251, 6
        %v2364 = vpop.permute.xlu0 %2363
        %2365 = vrot.lane.b32.xlu0 %v2253, 6
        %v2366 = vpop.permute.xlu0 %2365
        %2367 = vrot.lane.b32.xlu0 %v2255, 6
        %v2368 = vpop.permute.xlu0 %2367
        %2369 = vrot.lane.b32.xlu0 %v2257, 6
        %v2370 = vpop.permute.xlu0 %2369
        %2371 = vrot.lane.b32.xlu0 %v2259, 6
        %v2372 = vpop.permute.xlu0 %2371
        %2373 = vrot.lane.b32.xlu0 %v2261, 6
        %v2374 = vpop.permute.xlu0 %2373
        %2375 = vrot.lane.b32.xlu0 %v2263, 6
        %v2376 = vpop.permute.xlu0 %2375
        %2377 = vrot.lane.b32.xlu0 %v2265, 6
        %v2378 = vpop.permute.xlu0 %2377
        %2379 = vrot.lane.b32.xlu0 %v2267, 6
        %v2380 = vpop.permute.xlu0 %2379
        %2381 = vrot.lane.b32.xlu0 %v2269, 6
        %v2382 = vpop.permute.xlu0 %2381
        %2383 = vrot.lane.b32.xlu0 %v2271, 6
        %v2384 = vpop.permute.xlu0 %2383
        %2385 = vrot.lane.b32.xlu0 %v2273, 6
        %v2386 = vpop.permute.xlu0 %2385
        %2387 = vrot.lane.b32.xlu0 %v2275, 6
        %v2388 = vpop.permute.xlu0 %2387
        %2389 = vrot.lane.b32.xlu0 %v2277, 6
        %v2390 = vpop.permute.xlu0 %2389
        %2391 = vrot.lane.b32.xlu0 %v2279, 6
        %v2392 = vpop.permute.xlu0 %2391
        %2393 = vrot.lane.b32.xlu0 %v2281, 6
        %v2394 = vpop.permute.xlu0 %2393
        %2395 = vrot.lane.b32.xlu0 %v2283, 6
        %v2396 = vpop.permute.xlu0 %2395
        %2397 = vrot.lane.b32.xlu0 %v2285, 6
        %v2398 = vpop.permute.xlu0 %2397
        %2399 = vrot.lane.b32.xlu0 %v2287, 6
        %v2400 = vpop.permute.xlu0 %2399
        %2401 = vrot.lane.b32.xlu0 %v2289, 6
        %v2402 = vpop.permute.xlu0 %2401
        %2403 = vrot.lane.b32.xlu0 %v2291, 6
        %v2404 = vpop.permute.xlu0 %2403
        %2405 = vrot.lane.b32.xlu0 %v2293, 6
        %v2406 = vpop.permute.xlu0 %2405
        %2407 = vrot.lane.b32.xlu0 %v2295, 6
        %v2408 = vpop.permute.xlu0 %2407
        %2409 = vrot.lane.b32.xlu0 %v2297, 6
        %v2410 = vpop.permute.xlu0 %2409
        %2411 = vrot.lane.b32.xlu0 %v2299, 6
        %v2412 = vpop.permute.xlu0 %2411
        %2413 = vrot.lane.b32.xlu0 %v2301, 6
        %v2414 = vpop.permute.xlu0 %2413
        %2415 = vrot.lane.b32.xlu0 %v2303, 6
        %v2416 = vpop.permute.xlu0 %2415
        %2417 = vrot.lane.b32.xlu0 %v2305, 6
        %v2418 = vpop.permute.xlu0 %2417
        %2419 = vrot.lane.b32.xlu0 %v2307, 6
        %v2420 = vpop.permute.xlu0 %2419
        %2421 = vrot.lane.b32.xlu0 %v2309, 6
        %v2422 = vpop.permute.xlu0 %2421
        %2423 = vrot.lane.b32.xlu0 %v2311, 6
        %v2424 = vpop.permute.xlu0 %2423
        %2425 = vrot.lane.b32.xlu0 %v2313, 6
        %v2426 = vpop.permute.xlu0 %2425
        %2427 = vrot.lane.b32.xlu0 %v2315, 6
        %v2428 = vpop.permute.xlu0 %2427
        %2429 = vrot.lane.b32.xlu0 %v2317, 6
        %v2430 = vpop.permute.xlu0 %2429
        %2431 = vrot.lane.b32.xlu0 %v2319, 6
        %v2432 = vpop.permute.xlu0 %2431
        %2433 = vrot.lane.b32.xlu0 %v2321, 6
        %v2434 = vpop.permute.xlu0 %2433
        %2435 = vrot.lane.b32.xlu0 %v2323, 6
        %v2436 = vpop.permute.xlu0 %2435
        %2437 = vrot.lane.b32.xlu0 %v2325, 6
        %v2438 = vpop.permute.xlu0 %2437
        %2439 = vrot.lane.b32.xlu0 %v2327, 6
        %v2440 = vpop.permute.xlu0 %2439
        %2441 = vrot.lane.b32.xlu0 %v2329, 6
        %v2442 = vpop.permute.xlu0 %2441
        %2443 = vrot.lane.b32.xlu0 %v2331, 6
        %v2444 = vpop.permute.xlu0 %2443
        %2445 = vrot.lane.b32.xlu0 %v2333, 6
        %v2446 = vpop.permute.xlu0 %2445
        %2447 = vrot.lane.b32.xlu0 %v2335, 6
        %v2448 = vpop.permute.xlu0 %2447
        %2449 = vrot.lane.b32.xlu0 %v2337, 6
        %v2450 = vpop.permute.xlu0 %2449
        %2451 = vrot.lane.b32.xlu0 %v2339, 6
        %v2452 = vpop.permute.xlu0 %2451
        %2453 = vrot.lane.b32.xlu0 %v2341, 6
        %v2454 = vpop.permute.xlu0 %2453
        %2455 = vrot.lane.b32.xlu0 %v2343, 6
        %v2456 = vpop.permute.xlu0 %2455
        %2457 = vrot.lane.b32.xlu0 %v2345, 6
        %v2458 = vpop.permute.xlu0 %2457
        %2459 = vrot.lane.b32.xlu0 %v2347, 6
        %v2460 = vpop.permute.xlu0 %2459
        %2461 = vrot.lane.b32.xlu0 %v2349, 6
        %v2462 = vpop.permute.xlu0 %2461
        %2463 = vrot.lane.b32.xlu0 %v2351, 6
        %v2464 = vpop.permute.xlu0 %2463
        %2465 = vrot.lane.b32.xlu0 %v2353, 6
        %v2466 = vpop.permute.xlu0 %2465
        %2467 = vrot.lane.b32.xlu0 %v2354, 6
        %v2468 = vpop.permute.xlu0 %2467
        %vm2469 = vcmask 23552
        %v2471 = vsel %vm2469, %v1506, %v2073
        %v2473 = vsel %vm2469, %v1568, %v2075
        %v2475 = vsel %vm2469, %v1568, %v2077
        %v2477 = vsel %vm2469, %v1507, %v2079
        %v2479 = vsel %vm2469, %v1571, %v2081
        %v2481 = vsel %vm2469, %v1508, %v2083
        %v2483 = vsel %vm2469, %v1574, %v2085
        %v2485 = vsel %vm2469, %v1509, %v2087
        %v2487 = vsel %vm2469, %v1577, %v2089
        %v2489 = vsel %vm2469, %v1510, %v2091
        %v2491 = vsel %vm2469, %v1580, %v2093
        %v2493 = vsel %vm2469, %v1511, %v2095
        %v2495 = vsel %vm2469, %v1583, %v2097
        %v2497 = vsel %vm2469, %v1512, %v2099
        %v2499 = vsel %vm2469, %v1586, %v2101
        %v2501 = vsel %vm2469, %v1513, %v2103
        %v2503 = vsel %vm2469, %v1589, %v2105
        %v2505 = vsel %vm2469, %v1514, %v2107
        %v2507 = vsel %vm2469, %v1592, %v2109
        %v2509 = vsel %vm2469, %v1515, %v2111
        %v2511 = vsel %vm2469, %v1595, %v2113
        %v2513 = vsel %vm2469, %v1516, %v2115
        %v2515 = vsel %vm2469, %v1598, %v2117
        %v2517 = vsel %vm2469, %v1517, %v2119
        %v2519 = vsel %vm2469, %v1601, %v2121
        %v2521 = vsel %vm2469, %v1518, %v2123
        %v2523 = vsel %vm2469, %v1604, %v2125
        %v2525 = vsel %vm2469, %v1519, %v2127
        %v2527 = vsel %vm2469, %v1607, %v2129
        %v2529 = vsel %vm2469, %v1520, %v2131
        %v2531 = vsel %vm2469, %v1610, %v2133
        %v2533 = vsel %vm2469, %v1521, %v2135
        %v2535 = vsel %vm2469, %v1613, %v2137
        %v2537 = vsel %vm2469, %v1522, %v2139
        %v2539 = vsel %vm2469, %v1616, %v2141
        %v2541 = vsel %vm2469, %v1523, %v2143
        %v2543 = vsel %vm2469, %v1619, %v2145
        %v2545 = vsel %vm2469, %v1524, %v2147
        %v2547 = vsel %vm2469, %v1622, %v2149
        %v2549 = vsel %vm2469, %v1525, %v2151
        %v2551 = vsel %vm2469, %v1625, %v2153
        %v2553 = vsel %vm2469, %v1526, %v2155
        %v2555 = vsel %vm2469, %v1628, %v2157
        %v2557 = vsel %vm2469, %v1527, %v2159
        %v2559 = vsel %vm2469, %v1631, %v2161
        %v2561 = vsel %vm2469, %v1528, %v2163
        %v2563 = vsel %vm2469, %v1634, %v2165
        %v2565 = vsel %vm2469, %v1529, %v2167
        %v2567 = vsel %vm2469, %v1637, %v2169
        %v2569 = vsel %vm2469, %v1530, %v2171
        %v2571 = vsel %vm2469, %v1640, %v2173
        %v2573 = vsel %vm2469, %v1531, %v2175
        %v2575 = vsel %vm2469, %v1643, %v2177
        %v2577 = vsel %vm2469, %v1532, %v2179
        %v2579 = vsel %vm2469, %v1646, %v2181
        %v2581 = vsel %vm2469, %v1533, %v2183
        %v2583 = vsel %vm2469, %v1649, %v2185
        %vm2584 = vcmask 48128
        %v2586 = vsel %vm2584, %v2471, %v2356
        %v2588 = vsel %vm2584, %v2473, %v2358
        %v2590 = vsel %vm2584, %v2475, %v2360
        %v2592 = vsel %vm2584, %v2477, %v2362
        %v2594 = vsel %vm2584, %v2479, %v2364
        %v2596 = vsel %vm2584, %v2481, %v2366
        %v2598 = vsel %vm2584, %v2483, %v2368
        %v2600 = vsel %vm2584, %v2485, %v2370
        %v2602 = vsel %vm2584, %v2487, %v2372
        %v2604 = vsel %vm2584, %v2489, %v2374
        %v2606 = vsel %vm2584, %v2491, %v2376
        %v2608 = vsel %vm2584, %v2493, %v2378
        %v2610 = vsel %vm2584, %v2495, %v2380
        %v2612 = vsel %vm2584, %v2497, %v2382
        %v2614 = vsel %vm2584, %v2499, %v2384
        %v2616 = vsel %vm2584, %v2501, %v2386
        %v2618 = vsel %vm2584, %v2503, %v2388
        %v2620 = vsel %vm2584, %v2505, %v2390
        %v2622 = vsel %vm2584, %v2507, %v2392
        %v2624 = vsel %vm2584, %v2509, %v2394
        %v2626 = vsel %vm2584, %v2511, %v2396
        %v2628 = vsel %vm2584, %v2513, %v2398
        %v2630 = vsel %vm2584, %v2515, %v2400
        %v2632 = vsel %vm2584, %v2517, %v2402
        %v2634 = vsel %vm2584, %v2519, %v2404
        %v2636 = vsel %vm2584, %v2521, %v2406
        %v2638 = vsel %vm2584, %v2523, %v2408
        %v2640 = vsel %vm2584, %v2525, %v2410
        %v2642 = vsel %vm2584, %v2527, %v2412
        %v2644 = vsel %vm2584, %v2529, %v2414
        %v2646 = vsel %vm2584, %v2531, %v2416
        %v2648 = vsel %vm2584, %v2533, %v2418
        %v2650 = vsel %vm2584, %v2535, %v2420
        %v2652 = vsel %vm2584, %v2537, %v2422
        %v2654 = vsel %vm2584, %v2539, %v2424
        %v2656 = vsel %vm2584, %v2541, %v2426
        %v2658 = vsel %vm2584, %v2543, %v2428
        %v2660 = vsel %vm2584, %v2545, %v2430
        %v2662 = vsel %vm2584, %v2547, %v2432
        %v2664 = vsel %vm2584, %v2549, %v2434
        %v2666 = vsel %vm2584, %v2551, %v2436
        %v2668 = vsel %vm2584, %v2553, %v2438
        %v2670 = vsel %vm2584, %v2555, %v2440
        %v2672 = vsel %vm2584, %v2557, %v2442
        %v2674 = vsel %vm2584, %v2559, %v2444
        %v2676 = vsel %vm2584, %v2561, %v2446
        %v2678 = vsel %vm2584, %v2563, %v2448
        %v2680 = vsel %vm2584, %v2565, %v2450
        %v2682 = vsel %vm2584, %v2567, %v2452
        %v2684 = vsel %vm2584, %v2569, %v2454
        %v2686 = vsel %vm2584, %v2571, %v2456
        %v2688 = vsel %vm2584, %v2573, %v2458
        %v2690 = vsel %vm2584, %v2575, %v2460
        %v2692 = vsel %vm2584, %v2577, %v2462
        %v2694 = vsel %vm2584, %v2579, %v2464
        %v2696 = vsel %vm2584, %v2581, %v2466
        %v2698 = vsel %vm2584, %v2583, %v2468
        %2755 = vrot.lane.b32.xlu0 %v2586, 9
        %v2756 = vpop.permute.xlu0 %2755
        %2757 = vrot.lane.b32.xlu0 %v2590, 9
        %v2758 = vpop.permute.xlu0 %2757
        %2759 = vrot.lane.b32.xlu0 %v2592, 9
        %v2760 = vpop.permute.xlu0 %2759
        %2761 = vrot.lane.b32.xlu0 %v2594, 9
        %v2762 = vpop.permute.xlu0 %2761
        %2763 = vrot.lane.b32.xlu0 %v2596, 9
        %v2764 = vpop.permute.xlu0 %2763
        %2765 = vrot.lane.b32.xlu0 %v2598, 9
        %v2766 = vpop.permute.xlu0 %2765
        %2767 = vrot.lane.b32.xlu0 %v2600, 9
        %v2768 = vpop.permute.xlu0 %2767
        %2769 = vrot.lane.b32.xlu0 %v2602, 9
        %v2770 = vpop.permute.xlu0 %2769
        %2771 = vrot.lane.b32.xlu0 %v2604, 9
        %v2772 = vpop.permute.xlu0 %2771
        %2773 = vrot.lane.b32.xlu0 %v2606, 9
        %v2774 = vpop.permute.xlu0 %2773
        %2775 = vrot.lane.b32.xlu0 %v2608, 9
        %v2776 = vpop.permute.xlu0 %2775
        %2777 = vrot.lane.b32.xlu0 %v2610, 9
        %v2778 = vpop.permute.xlu0 %2777
        %2779 = vrot.lane.b32.xlu0 %v2612, 9
        %v2780 = vpop.permute.xlu0 %2779
        %2781 = vrot.lane.b32.xlu0 %v2614, 9
        %v2782 = vpop.permute.xlu0 %2781
        %2783 = vrot.lane.b32.xlu0 %v2616, 9
        %v2784 = vpop.permute.xlu0 %2783
        %2785 = vrot.lane.b32.xlu0 %v2618, 9
        %v2786 = vpop.permute.xlu0 %2785
        %2787 = vrot.lane.b32.xlu0 %v2620, 9
        %v2788 = vpop.permute.xlu0 %2787
        %2789 = vrot.lane.b32.xlu0 %v2622, 9
        %v2790 = vpop.permute.xlu0 %2789
        %2791 = vrot.lane.b32.xlu0 %v2624, 9
        %v2792 = vpop.permute.xlu0 %2791
        %2793 = vrot.lane.b32.xlu0 %v2626, 9
        %v2794 = vpop.permute.xlu0 %2793
        %2795 = vrot.lane.b32.xlu0 %v2628, 9
        %v2796 = vpop.permute.xlu0 %2795
        %2797 = vrot.lane.b32.xlu0 %v2630, 9
        %v2798 = vpop.permute.xlu0 %2797
        %2799 = vrot.lane.b32.xlu0 %v2632, 9
        %v2800 = vpop.permute.xlu0 %2799
        %2801 = vrot.lane.b32.xlu0 %v2634, 9
        %v2802 = vpop.permute.xlu0 %2801
        %2803 = vrot.lane.b32.xlu0 %v2636, 9
        %v2804 = vpop.permute.xlu0 %2803
        %2805 = vrot.lane.b32.xlu0 %v2638, 9
        %v2806 = vpop.permute.xlu0 %2805
        %2807 = vrot.lane.b32.xlu0 %v2640, 9
        %v2808 = vpop.permute.xlu0 %2807
        %2809 = vrot.lane.b32.xlu0 %v2642, 9
        %v2810 = vpop.permute.xlu0 %2809
        %2811 = vrot.lane.b32.xlu0 %v2644, 9
        %v2812 = vpop.permute.xlu0 %2811
        %2813 = vrot.lane.b32.xlu0 %v2646, 9
        %v2814 = vpop.permute.xlu0 %2813
        %2815 = vrot.lane.b32.xlu0 %v2648, 9
        %v2816 = vpop.permute.xlu0 %2815
        %2817 = vrot.lane.b32.xlu0 %v2650, 9
        %v2818 = vpop.permute.xlu0 %2817
        %2819 = vrot.lane.b32.xlu0 %v2652, 9
        %v2820 = vpop.permute.xlu0 %2819
        %2821 = vrot.lane.b32.xlu0 %v2654, 9
        %v2822 = vpop.permute.xlu0 %2821
        %2823 = vrot.lane.b32.xlu0 %v2656, 9
        %v2824 = vpop.permute.xlu0 %2823
        %2825 = vrot.lane.b32.xlu0 %v2658, 9
        %v2826 = vpop.permute.xlu0 %2825
        %2827 = vrot.lane.b32.xlu0 %v2660, 9
        %v2828 = vpop.permute.xlu0 %2827
        %2829 = vrot.lane.b32.xlu0 %v2662, 9
        %v2830 = vpop.permute.xlu0 %2829
        %2831 = vrot.lane.b32.xlu0 %v2664, 9
        %v2832 = vpop.permute.xlu0 %2831
        %2833 = vrot.lane.b32.xlu0 %v2666, 9
        %v2834 = vpop.permute.xlu0 %2833
        %2835 = vrot.lane.b32.xlu0 %v2668, 9
        %v2836 = vpop.permute.xlu0 %2835
        %2837 = vrot.lane.b32.xlu0 %v2670, 9
        %v2838 = vpop.permute.xlu0 %2837
        %2839 = vrot.lane.b32.xlu0 %v2672, 9
        %v2840 = vpop.permute.xlu0 %2839
        %2841 = vrot.lane.b32.xlu0 %v2674, 9
        %v2842 = vpop.permute.xlu0 %2841
        %2843 = vrot.lane.b32.xlu0 %v2676, 9
        %v2844 = vpop.permute.xlu0 %2843
        %2845 = vrot.lane.b32.xlu0 %v2678, 9
        %v2846 = vpop.permute.xlu0 %2845
        %2847 = vrot.lane.b32.xlu0 %v2680, 9
        %v2848 = vpop.permute.xlu0 %2847
        %2849 = vrot.lane.b32.xlu0 %v2682, 9
        %v2850 = vpop.permute.xlu0 %2849
        %2851 = vrot.lane.b32.xlu0 %v2684, 9
        %v2852 = vpop.permute.xlu0 %2851
        %2853 = vrot.lane.b32.xlu0 %v2686, 9
        %v2854 = vpop.permute.xlu0 %2853
        %2855 = vrot.lane.b32.xlu0 %v2688, 9
        %v2856 = vpop.permute.xlu0 %2855
        %2857 = vrot.lane.b32.xlu0 %v2690, 9
        %v2858 = vpop.permute.xlu0 %2857
        %2859 = vrot.lane.b32.xlu0 %v2692, 9
        %v2860 = vpop.permute.xlu0 %2859
        %2861 = vrot.lane.b32.xlu0 %v2694, 9
        %v2862 = vpop.permute.xlu0 %2861
        %2863 = vrot.lane.b32.xlu0 %v2696, 9
        %v2864 = vpop.permute.xlu0 %2863
        %2865 = vrot.lane.b32.xlu0 %v2698, 9
        %v2866 = vpop.permute.xlu0 %2865
        %2867 = vrot.lane.b32.xlu0 %v2592, 18
        %v2868 = vpop.permute.xlu0 %2867
        %2869 = vrot.lane.b32.xlu0 %v2594, 18
        %v2870 = vpop.permute.xlu0 %2869
        %2871 = vrot.lane.b32.xlu0 %v2596, 18
        %v2872 = vpop.permute.xlu0 %2871
        %2873 = vrot.lane.b32.xlu0 %v2598, 18
        %v2874 = vpop.permute.xlu0 %2873
        %2875 = vrot.lane.b32.xlu0 %v2600, 18
        %v2876 = vpop.permute.xlu0 %2875
        %2877 = vrot.lane.b32.xlu0 %v2602, 18
        %v2878 = vpop.permute.xlu0 %2877
        %2879 = vrot.lane.b32.xlu0 %v2604, 18
        %v2880 = vpop.permute.xlu0 %2879
        %2881 = vrot.lane.b32.xlu0 %v2606, 18
        %v2882 = vpop.permute.xlu0 %2881
        %2883 = vrot.lane.b32.xlu0 %v2608, 18
        %v2884 = vpop.permute.xlu0 %2883
        %2885 = vrot.lane.b32.xlu0 %v2610, 18
        %v2886 = vpop.permute.xlu0 %2885
        %2887 = vrot.lane.b32.xlu0 %v2612, 18
        %v2888 = vpop.permute.xlu0 %2887
        %2889 = vrot.lane.b32.xlu0 %v2614, 18
        %v2890 = vpop.permute.xlu0 %2889
        %2891 = vrot.lane.b32.xlu0 %v2616, 18
        %v2892 = vpop.permute.xlu0 %2891
        %2893 = vrot.lane.b32.xlu0 %v2618, 18
        %v2894 = vpop.permute.xlu0 %2893
        %2895 = vrot.lane.b32.xlu0 %v2620, 18
        %v2896 = vpop.permute.xlu0 %2895
        %2897 = vrot.lane.b32.xlu0 %v2622, 18
        %v2898 = vpop.permute.xlu0 %2897
        %2899 = vrot.lane.b32.xlu0 %v2624, 18
        %v2900 = vpop.permute.xlu0 %2899
        %2901 = vrot.lane.b32.xlu0 %v2626, 18
        %v2902 = vpop.permute.xlu0 %2901
        %2903 = vrot.lane.b32.xlu0 %v2628, 18
        %v2904 = vpop.permute.xlu0 %2903
        %2905 = vrot.lane.b32.xlu0 %v2630, 18
        %v2906 = vpop.permute.xlu0 %2905
        %2907 = vrot.lane.b32.xlu0 %v2632, 18
        %v2908 = vpop.permute.xlu0 %2907
        %2909 = vrot.lane.b32.xlu0 %v2634, 18
        %v2910 = vpop.permute.xlu0 %2909
        %2911 = vrot.lane.b32.xlu0 %v2636, 18
        %v2912 = vpop.permute.xlu0 %2911
        %2913 = vrot.lane.b32.xlu0 %v2638, 18
        %v2914 = vpop.permute.xlu0 %2913
        %2915 = vrot.lane.b32.xlu0 %v2640, 18
        %v2916 = vpop.permute.xlu0 %2915
        %2917 = vrot.lane.b32.xlu0 %v2642, 18
        %v2918 = vpop.permute.xlu0 %2917
        %2919 = vrot.lane.b32.xlu0 %v2644, 18
        %v2920 = vpop.permute.xlu0 %2919
        %2921 = vrot.lane.b32.xlu0 %v2646, 18
        %v2922 = vpop.permute.xlu0 %2921
        %2923 = vrot.lane.b32.xlu0 %v2648, 18
        %v2924 = vpop.permute.xlu0 %2923
        %2925 = vrot.lane.b32.xlu0 %v2650, 18
        %v2926 = vpop.permute.xlu0 %2925
        %2927 = vrot.lane.b32.xlu0 %v2652, 18
        %v2928 = vpop.permute.xlu0 %2927
        %2929 = vrot.lane.b32.xlu0 %v2654, 18
        %v2930 = vpop.permute.xlu0 %2929
        %2931 = vrot.lane.b32.xlu0 %v2656, 18
        %v2932 = vpop.permute.xlu0 %2931
        %2933 = vrot.lane.b32.xlu0 %v2658, 18
        %v2934 = vpop.permute.xlu0 %2933
        %2935 = vrot.lane.b32.xlu0 %v2660, 18
        %v2936 = vpop.permute.xlu0 %2935
        %2937 = vrot.lane.b32.xlu0 %v2662, 18
        %v2938 = vpop.permute.xlu0 %2937
        %2939 = vrot.lane.b32.xlu0 %v2664, 18
        %v2940 = vpop.permute.xlu0 %2939
        %2941 = vrot.lane.b32.xlu0 %v2666, 18
        %v2942 = vpop.permute.xlu0 %2941
        %2943 = vrot.lane.b32.xlu0 %v2668, 18
        %v2944 = vpop.permute.xlu0 %2943
        %2945 = vrot.lane.b32.xlu0 %v2670, 18
        %v2946 = vpop.permute.xlu0 %2945
        %2947 = vrot.lane.b32.xlu0 %v2672, 18
        %v2948 = vpop.permute.xlu0 %2947
        %2949 = vrot.lane.b32.xlu0 %v2674, 18
        %v2950 = vpop.permute.xlu0 %2949
        %2951 = vrot.lane.b32.xlu0 %v2676, 18
        %v2952 = vpop.permute.xlu0 %2951
        %2953 = vrot.lane.b32.xlu0 %v2678, 18
        %v2954 = vpop.permute.xlu0 %2953
        %2955 = vrot.lane.b32.xlu0 %v2680, 18
        %v2956 = vpop.permute.xlu0 %2955
        %2957 = vrot.lane.b32.xlu0 %v2682, 18
        %v2958 = vpop.permute.xlu0 %2957
        %2959 = vrot.lane.b32.xlu0 %v2684, 18
        %v2960 = vpop.permute.xlu0 %2959
        %2961 = vrot.lane.b32.xlu0 %v2686, 18
        %v2962 = vpop.permute.xlu0 %2961
        %2963 = vrot.lane.b32.xlu0 %v2688, 18
        %v2964 = vpop.permute.xlu0 %2963
        %2965 = vrot.lane.b32.xlu0 %v2690, 18
        %v2966 = vpop.permute.xlu0 %2965
        %2967 = vrot.lane.b32.xlu0 %v2692, 18
        %v2968 = vpop.permute.xlu0 %2967
        %2969 = vrot.lane.b32.xlu0 %v2694, 18
        %v2970 = vpop.permute.xlu0 %2969
        %2971 = vrot.lane.b32.xlu0 %v2696, 18
        %v2972 = vpop.permute.xlu0 %2971
        %2973 = vrot.lane.b32.xlu0 %v2698, 18
        %v2974 = vpop.permute.xlu0 %2973
        %vm2975 = vcmask 72704
        %v2977 = vsel %vm2975, %v2586, %v2756
        %v2979 = vsel %vm2975, %v2588, %v2758
        %v2981 = vsel %vm2975, %v2586, %v2760
        %v2983 = vsel %vm2975, %v2590, %v2762
        %v2985 = vsel %vm2975, %v2592, %v2764
        %v2987 = vsel %vm2975, %v2594, %v2766
        %v2989 = vsel %vm2975, %v2596, %v2768
        %v2991 = vsel %vm2975, %v2598, %v2770
        %v2993 = vsel %vm2975, %v2600, %v2772
        %v2995 = vsel %vm2975, %v2602, %v2774
        %v2997 = vsel %vm2975, %v2604, %v2776
        %v2999 = vsel %vm2975, %v2606, %v2778
        %v3001 = vsel %vm2975, %v2608, %v2780
        %v3003 = vsel %vm2975, %v2610, %v2782
        %v3005 = vsel %vm2975, %v2612, %v2784
        %v3007 = vsel %vm2975, %v2614, %v2786
        %v3009 = vsel %vm2975, %v2616, %v2788
        %v3011 = vsel %vm2975, %v2618, %v2790
        %v3013 = vsel %vm2975, %v2620, %v2792
        %v3015 = vsel %vm2975, %v2622, %v2794
        %v3017 = vsel %vm2975, %v2624, %v2796
        %v3019 = vsel %vm2975, %v2626, %v2798
        %v3021 = vsel %vm2975, %v2628, %v2800
        %v3023 = vsel %vm2975, %v2630, %v2802
        %v3025 = vsel %vm2975, %v2632, %v2804
        %v3027 = vsel %vm2975, %v2634, %v2806
        %v3029 = vsel %vm2975, %v2636, %v2808
        %v3031 = vsel %vm2975, %v2638, %v2810
        %v3033 = vsel %vm2975, %v2640, %v2812
        %v3035 = vsel %vm2975, %v2642, %v2814
        %v3037 = vsel %vm2975, %v2644, %v2816
        %v3039 = vsel %vm2975, %v2646, %v2818
        %v3041 = vsel %vm2975, %v2648, %v2820
        %v3043 = vsel %vm2975, %v2650, %v2822
        %v3045 = vsel %vm2975, %v2652, %v2824
        %v3047 = vsel %vm2975, %v2654, %v2826
        %v3049 = vsel %vm2975, %v2656, %v2828
        %v3051 = vsel %vm2975, %v2658, %v2830
        %v3053 = vsel %vm2975, %v2660, %v2832
        %v3055 = vsel %vm2975, %v2662, %v2834
        %v3057 = vsel %vm2975, %v2664, %v2836
        %v3059 = vsel %vm2975, %v2666, %v2838
        %v3061 = vsel %vm2975, %v2668, %v2840
        %v3063 = vsel %vm2975, %v2670, %v2842
        %v3065 = vsel %vm2975, %v2672, %v2844
        %v3067 = vsel %vm2975, %v2674, %v2846
        %v3069 = vsel %vm2975, %v2676, %v2848
        %v3071 = vsel %vm2975, %v2678, %v2850
        %v3073 = vsel %vm2975, %v2680, %v2852
        %v3075 = vsel %vm2975, %v2682, %v2854
        %v3077 = vsel %vm2975, %v2684, %v2856
        %v3079 = vsel %vm2975, %v2686, %v2858
        %v3081 = vsel %vm2975, %v2688, %v2860
        %v3083 = vsel %vm2975, %v2690, %v2862
        %v3085 = vsel %vm2975, %v2692, %v2864
        %v3087 = vsel %vm2975, %v2694, %v2866
        %vm3088 = vcmask 146432
        %v3090 = vsel %vm3088, %v2977, %v2868
        %v3092 = vsel %vm3088, %v2979, %v2870
        %v3094 = vsel %vm3088, %v2981, %v2872
        %v3096 = vsel %vm3088, %v2983, %v2874
        %v3098 = vsel %vm3088, %v2985, %v2876
        %v3100 = vsel %vm3088, %v2987, %v2878
        %v3102 = vsel %vm3088, %v2989, %v2880
        %v3104 = vsel %vm3088, %v2991, %v2882
        %v3106 = vsel %vm3088, %v2993, %v2884
        %v3108 = vsel %vm3088, %v2995, %v2886
        %v3110 = vsel %vm3088, %v2997, %v2888
        %v3112 = vsel %vm3088, %v2999, %v2890
        %v3114 = vsel %vm3088, %v3001, %v2892
        %v3116 = vsel %vm3088, %v3003, %v2894
        %v3118 = vsel %vm3088, %v3005, %v2896
        %v3120 = vsel %vm3088, %v3007, %v2898
        %v3122 = vsel %vm3088, %v3009, %v2900
        %v3124 = vsel %vm3088, %v3011, %v2902
        %v3126 = vsel %vm3088, %v3013, %v2904
        %v3128 = vsel %vm3088, %v3015, %v2906
        %v3130 = vsel %vm3088, %v3017, %v2908
        %v3132 = vsel %vm3088, %v3019, %v2910
        %v3134 = vsel %vm3088, %v3021, %v2912
        %v3136 = vsel %vm3088, %v3023, %v2914
        %v3138 = vsel %vm3088, %v3025, %v2916
        %v3140 = vsel %vm3088, %v3027, %v2918
        %v3142 = vsel %vm3088, %v3029, %v2920
        %v3144 = vsel %vm3088, %v3031, %v2922
        %v3146 = vsel %vm3088, %v3033, %v2924
        %v3148 = vsel %vm3088, %v3035, %v2926
        %v3150 = vsel %vm3088, %v3037, %v2928
        %v3152 = vsel %vm3088, %v3039, %v2930
        %v3154 = vsel %vm3088, %v3041, %v2932
        %v3156 = vsel %vm3088, %v3043, %v2934
        %v3158 = vsel %vm3088, %v3045, %v2936
        %v3160 = vsel %vm3088, %v3047, %v2938
        %v3162 = vsel %vm3088, %v3049, %v2940
        %v3164 = vsel %vm3088, %v3051, %v2942
        %v3166 = vsel %vm3088, %v3053, %v2944
        %v3168 = vsel %vm3088, %v3055, %v2946
        %v3170 = vsel %vm3088, %v3057, %v2948
        %v3172 = vsel %vm3088, %v3059, %v2950
        %v3174 = vsel %vm3088, %v3061, %v2952
        %v3176 = vsel %vm3088, %v3063, %v2954
        %v3178 = vsel %vm3088, %v3065, %v2956
        %v3180 = vsel %vm3088, %v3067, %v2958
        %v3182 = vsel %vm3088, %v3069, %v2960
        %v3184 = vsel %vm3088, %v3071, %v2962
        %v3186 = vsel %vm3088, %v3073, %v2964
        %v3188 = vsel %vm3088, %v3075, %v2966
        %v3190 = vsel %vm3088, %v3077, %v2968
        %v3192 = vsel %vm3088, %v3079, %v2970
        %v3194 = vsel %vm3088, %v3081, %v2972
        %v3196 = vsel %vm3088, %v3083, %v2974
        %v3197 = vsel %vm3088, %v3085, %v2972
        %v3198 = vsel %vm3088, %v3087, %v2974
        %v3199 = vld [vmem:[%s1] sm:$0xf]
        %v3200 = vld [vmem:[%s1 + $0x4] sm:$0xf]
        %v3201 = vld [vmem:[%s1 + $0x8] sm:$0xf]
        %v3202 = vld [vmem:[%s1 + $0xc] sm:$0x3]
        %v3203 = vld [vmem:[%s2] sm:$0x1]
        %v3205 = vperm.slane %v3203, 0
        %v3211 = vunpack.c.l.b16 %v3199
        %v3212 = vunpack.c.l.b16 %v3200
        %v3213 = vunpack.c.l.b16 %v3201
        %v3214 = vunpack.c.l.b16 %v3202
        %v3215 = vpack.c.b16 %v3212, %v3211
        %v3216 = vpack.c.b16 %v3214, %v3213
        %vm3218 = vcmask 220160
        %v3219 = vsel %vm3218, %v3090, 0
        %v3221 = vsel %vm3218, %v3092, 0
        %v3223 = vsel %vm3218, %v3094, 0
        %v3225 = vsel %vm3218, %v3096, 0
        %v3227 = vsel %vm3218, %v3098, 0
        %v3229 = vsel %vm3218, %v3100, 0
        %v3231 = vsel %vm3218, %v3102, 0
        %v3233 = vsel %vm3218, %v3104, 0
        %v3235 = vsel %vm3218, %v3106, 0
        %v3237 = vsel %vm3218, %v3108, 0
        %v3239 = vsel %vm3218, %v3110, 0
        %v3241 = vsel %vm3218, %v3112, 0
        %v3243 = vsel %vm3218, %v3114, 0
        %v3245 = vsel %vm3218, %v3116, 0
        %v3247 = vsel %vm3218, %v3118, 0
        %v3249 = vsel %vm3218, %v3120, 0
        %v3251 = vsel %vm3218, %v3122, 0
        %v3253 = vsel %vm3218, %v3124, 0
        %v3255 = vsel %vm3218, %v3126, 0
        %v3257 = vsel %vm3218, %v3128, 0
        %v3259 = vsel %vm3218, %v3130, 0
        %v3261 = vsel %vm3218, %v3132, 0
        %v3263 = vsel %vm3218, %v3134, 0
        %v3265 = vsel %vm3218, %v3136, 0
        %v3267 = vsel %vm3218, %v3138, 0
        %v3269 = vsel %vm3218, %v3140, 0
        %v3271 = vsel %vm3218, %v3142, 0
        %v3273 = vsel %vm3218, %v3144, 0
        %v3275 = vsel %vm3218, %v3146, 0
        %v3277 = vsel %vm3218, %v3148, 0
        %v3279 = vsel %vm3218, %v3150, 0
        %v3281 = vsel %vm3218, %v3152, 0
        %v3283 = vsel %vm3218, %v3154, 0
        %v3285 = vsel %vm3218, %v3156, 0
        %v3287 = vsel %vm3218, %v3158, 0
        %v3289 = vsel %vm3218, %v3160, 0
        %v3291 = vsel %vm3218, %v3162, 0
        %v3293 = vsel %vm3218, %v3164, 0
        %v3295 = vsel %vm3218, %v3166, 0
        %v3297 = vsel %vm3218, %v3168, 0
        %v3299 = vsel %vm3218, %v3170, 0
        %v3301 = vsel %vm3218, %v3172, 0
        %v3303 = vsel %vm3218, %v3174, 0
        %v3305 = vsel %vm3218, %v3176, 0
        %v3307 = vsel %vm3218, %v3178, 0
        %v3309 = vsel %vm3218, %v3180, 0
        %v3311 = vsel %vm3218, %v3182, 0
        %v3313 = vsel %vm3218, %v3184, 0
        %v3315 = vsel %vm3218, %v3186, 0
        %v3317 = vsel %vm3218, %v3188, 0
        %v3319 = vsel %vm3218, %v3190, 0
        %v3321 = vsel %vm3218, %v3192, 0
        %v3323 = vsel %vm3218, %v3194, 0
        %v3325 = vsel %vm3218, %v3196, 0
        %v3327 = vsel %vm3218, %v3197, 0
        %v3329 = vsel %vm3218, %v3198, 0
        %vm3331 = vcmask 1044480
        %vm3332 = vcmask 1045504
        %v3333 = vsel %vm3331, 4294967295, 65535
        %v3334 = vsel %vm3332, %v3333, 0
        %v3336 = vand.u32 %v3216, %v3334
        %3338 = vmatpush.bf16.msra.mxu0 0
        %3339 = vmatpush.bf16.msra.mxu0 0
        %3340 = vmatpush.bf16.msra.mxu0 0
        %3341 = vmatpush.bf16.msra.mxu0 0
        %3342 = vmatpush.bf16.msra.mxu0 0
        %3343 = vmatpush.bf16.msra.mxu0 0
        %3344 = vmatpush.bf16.msra.mxu0 %v3336
        %3345 = vmatpush.bf16.msra.mxu0 %v3215
        %3346 = vmatmul.bf16.gmra.mxu0 %v3219
        %v3347 = vpop.f32.mrf.mxu0
        %v3348 = vadd.f32 %v3205, %v3347
        %v3349 = vpop.f32.mrf.mxu0
        %v3350 = vadd.f32 %v3205, %v3349
        %3351 = vmatmul.bf16.gmra.mxu0 %v3221
        %v3352 = vpop.f32.mrf.mxu0
        %v3353 = vadd.f32 %v3205, %v3352
        %v3354 = vpop.f32.mrf.mxu0
        %v3355 = vadd.f32 %v3205, %v3354
        %3356 = vmatmul.bf16.gmra.mxu0 %v3223
        %v3357 = vpop.f32.mrf.mxu0
        %v3358 = vadd.f32 %v3205, %v3357
        %v3359 = vpop.f32.mrf.mxu0
        %v3360 = vadd.f32 %v3205, %v3359
        %3361 = vmatmul.bf16.gmra.mxu0 %v3225
        %v3362 = vpop.f32.mrf.mxu0
        %v3363 = vadd.f32 %v3205, %v3362
        %v3364 = vpop.f32.mrf.mxu0
        %v3365 = vadd.f32 %v3205, %v3364
        %3366 = vmatmul.bf16.gmra.mxu0 %v3227
        %v3367 = vpop.f32.mrf.mxu0
        %v3368 = vadd.f32 %v3205, %v3367
        %v3369 = vpop.f32.mrf.mxu0
        %v3370 = vadd.f32 %v3205, %v3369
        %3371 = vmatmul.bf16.gmra.mxu0 %v3229
        %v3372 = vpop.f32.mrf.mxu0
        %v3373 = vadd.f32 %v3205, %v3372
        %v3374 = vpop.f32.mrf.mxu0
        %v3375 = vadd.f32 %v3205, %v3374
        %3376 = vmatmul.bf16.gmra.mxu0 %v3231
        %v3377 = vpop.f32.mrf.mxu0
        %v3378 = vadd.f32 %v3205, %v3377
        %v3379 = vpop.f32.mrf.mxu0
        %v3380 = vadd.f32 %v3205, %v3379
        %3381 = vmatmul.bf16.gmra.mxu0 %v3233
        %v3382 = vpop.f32.mrf.mxu0
        %v3383 = vadd.f32 %v3205, %v3382
        %v3384 = vpop.f32.mrf.mxu0
        %v3385 = vadd.f32 %v3205, %v3384
        %3386 = vmatmul.bf16.gmra.mxu0 %v3235
        %v3387 = vpop.f32.mrf.mxu0
        %v3388 = vadd.f32 %v3205, %v3387
        %v3389 = vpop.f32.mrf.mxu0
        %v3390 = vadd.f32 %v3205, %v3389
        %3391 = vmatmul.bf16.gmra.mxu0 %v3237
        %v3392 = vpop.f32.mrf.mxu0
        %v3393 = vadd.f32 %v3205, %v3392
        %v3394 = vpop.f32.mrf.mxu0
        %v3395 = vadd.f32 %v3205, %v3394
        %3396 = vmatmul.bf16.gmra.mxu0 %v3239
        %v3397 = vpop.f32.mrf.mxu0
        %v3398 = vadd.f32 %v3205, %v3397
        %v3399 = vpop.f32.mrf.mxu0
        %v3400 = vadd.f32 %v3205, %v3399
        %3401 = vmatmul.bf16.gmra.mxu0 %v3241
        %v3402 = vpop.f32.mrf.mxu0
        %v3403 = vadd.f32 %v3205, %v3402
        %v3404 = vpop.f32.mrf.mxu0
        %v3405 = vadd.f32 %v3205, %v3404
        %3406 = vmatmul.bf16.gmra.mxu0 %v3243
        %v3407 = vpop.f32.mrf.mxu0
        %v3408 = vadd.f32 %v3205, %v3407
        %v3409 = vpop.f32.mrf.mxu0
        %v3410 = vadd.f32 %v3205, %v3409
        %3411 = vmatmul.bf16.gmra.mxu0 %v3245
        %v3412 = vpop.f32.mrf.mxu0
        %v3413 = vadd.f32 %v3205, %v3412
        %v3414 = vpop.f32.mrf.mxu0
        %v3415 = vadd.f32 %v3205, %v3414
        %3416 = vmatmul.bf16.gmra.mxu0 %v3247
        %v3417 = vpop.f32.mrf.mxu0
        %v3418 = vadd.f32 %v3205, %v3417
        %v3419 = vpop.f32.mrf.mxu0
        %v3420 = vadd.f32 %v3205, %v3419
        %3421 = vmatmul.bf16.gmra.mxu0 %v3249
        %v3422 = vpop.f32.mrf.mxu0
        %v3423 = vadd.f32 %v3205, %v3422
        %v3424 = vpop.f32.mrf.mxu0
        %v3425 = vadd.f32 %v3205, %v3424
        %3426 = vmatmul.bf16.gmra.mxu0 %v3251
        %v3427 = vpop.f32.mrf.mxu0
        %v3428 = vadd.f32 %v3205, %v3427
        %v3429 = vpop.f32.mrf.mxu0
        %v3430 = vadd.f32 %v3205, %v3429
        %3431 = vmatmul.bf16.gmra.mxu0 %v3253
        %v3432 = vpop.f32.mrf.mxu0
        %v3433 = vadd.f32 %v3205, %v3432
        %v3434 = vpop.f32.mrf.mxu0
        %v3435 = vadd.f32 %v3205, %v3434
        %3436 = vmatmul.bf16.gmra.mxu0 %v3255
        %v3437 = vpop.f32.mrf.mxu0
        %v3438 = vadd.f32 %v3205, %v3437
        %v3439 = vpop.f32.mrf.mxu0
        %v3440 = vadd.f32 %v3205, %v3439
        %3441 = vmatmul.bf16.gmra.mxu0 %v3257
        %v3442 = vpop.f32.mrf.mxu0
        %v3443 = vadd.f32 %v3205, %v3442
        %v3444 = vpop.f32.mrf.mxu0
        %v3445 = vadd.f32 %v3205, %v3444
        %3446 = vmatmul.bf16.gmra.mxu0 %v3259
        %v3447 = vpop.f32.mrf.mxu0
        %v3448 = vadd.f32 %v3205, %v3447
        %v3449 = vpop.f32.mrf.mxu0
        %v3450 = vadd.f32 %v3205, %v3449
        %3451 = vmatmul.bf16.gmra.mxu0 %v3261
        %v3452 = vpop.f32.mrf.mxu0
        %v3453 = vadd.f32 %v3205, %v3452
        %v3454 = vpop.f32.mrf.mxu0
        %v3455 = vadd.f32 %v3205, %v3454
        %3456 = vmatmul.bf16.gmra.mxu0 %v3263
        %v3457 = vpop.f32.mrf.mxu0
        %v3458 = vadd.f32 %v3205, %v3457
        %v3459 = vpop.f32.mrf.mxu0
        %v3460 = vadd.f32 %v3205, %v3459
        %3461 = vmatmul.bf16.gmra.mxu0 %v3265
        %v3462 = vpop.f32.mrf.mxu0
        %v3463 = vadd.f32 %v3205, %v3462
        %v3464 = vpop.f32.mrf.mxu0
        %v3465 = vadd.f32 %v3205, %v3464
        %3466 = vmatmul.bf16.gmra.mxu0 %v3267
        %v3467 = vpop.f32.mrf.mxu0
        %v3468 = vadd.f32 %v3205, %v3467
        %v3469 = vpop.f32.mrf.mxu0
        %v3470 = vadd.f32 %v3205, %v3469
        %3471 = vmatmul.bf16.gmra.mxu0 %v3269
        %v3472 = vpop.f32.mrf.mxu0
        %v3473 = vadd.f32 %v3205, %v3472
        %v3474 = vpop.f32.mrf.mxu0
        %v3475 = vadd.f32 %v3205, %v3474
        %3476 = vmatmul.bf16.gmra.mxu0 %v3271
        %v3477 = vpop.f32.mrf.mxu0
        %v3478 = vadd.f32 %v3205, %v3477
        %v3479 = vpop.f32.mrf.mxu0
        %v3480 = vadd.f32 %v3205, %v3479
        %3481 = vmatmul.bf16.gmra.mxu0 %v3273
        %v3482 = vpop.f32.mrf.mxu0
        %v3483 = vadd.f32 %v3205, %v3482
        %v3484 = vpop.f32.mrf.mxu0
        %v3485 = vadd.f32 %v3205, %v3484
        %3486 = vmatmul.bf16.gmra.mxu0 %v3275
        %v3487 = vpop.f32.mrf.mxu0
        %v3488 = vadd.f32 %v3205, %v3487
        %v3489 = vpop.f32.mrf.mxu0
        %v3490 = vadd.f32 %v3205, %v3489
        %3491 = vmatmul.bf16.gmra.mxu0 %v3277
        %v3492 = vpop.f32.mrf.mxu0
        %v3493 = vadd.f32 %v3205, %v3492
        %v3494 = vpop.f32.mrf.mxu0
        %v3495 = vadd.f32 %v3205, %v3494
        %3496 = vmatmul.bf16.gmra.mxu0 %v3279
        %v3497 = vpop.f32.mrf.mxu0
        %v3498 = vadd.f32 %v3205, %v3497
        %v3499 = vpop.f32.mrf.mxu0
        %v3500 = vadd.f32 %v3205, %v3499
        %3501 = vmatmul.bf16.gmra.mxu0 %v3281
        %v3502 = vpop.f32.mrf.mxu0
        %v3503 = vadd.f32 %v3205, %v3502
        %v3504 = vpop.f32.mrf.mxu0
        %v3505 = vadd.f32 %v3205, %v3504
        %3506 = vmatmul.bf16.gmra.mxu0 %v3283
        %v3507 = vpop.f32.mrf.mxu0
        %v3508 = vadd.f32 %v3205, %v3507
        %v3509 = vpop.f32.mrf.mxu0
        %v3510 = vadd.f32 %v3205, %v3509
        %3511 = vmatmul.bf16.gmra.mxu0 %v3285
        %v3512 = vpop.f32.mrf.mxu0
        %v3513 = vadd.f32 %v3205, %v3512
        %v3514 = vpop.f32.mrf.mxu0
        %v3515 = vadd.f32 %v3205, %v3514
        %3516 = vmatmul.bf16.gmra.mxu0 %v3287
        %v3517 = vpop.f32.mrf.mxu0
        %v3518 = vadd.f32 %v3205, %v3517
        %v3519 = vpop.f32.mrf.mxu0
        %v3520 = vadd.f32 %v3205, %v3519
        %3521 = vmatmul.bf16.gmra.mxu0 %v3289
        %v3522 = vpop.f32.mrf.mxu0
        %v3523 = vadd.f32 %v3205, %v3522
        %v3524 = vpop.f32.mrf.mxu0
        %v3525 = vadd.f32 %v3205, %v3524
        %3526 = vmatmul.bf16.gmra.mxu0 %v3291
        %v3527 = vpop.f32.mrf.mxu0
        %v3528 = vadd.f32 %v3205, %v3527
        %v3529 = vpop.f32.mrf.mxu0
        %v3530 = vadd.f32 %v3205, %v3529
        %3531 = vmatmul.bf16.gmra.mxu0 %v3293
        %v3532 = vpop.f32.mrf.mxu0
        %v3533 = vadd.f32 %v3205, %v3532
        %v3534 = vpop.f32.mrf.mxu0
        %v3535 = vadd.f32 %v3205, %v3534
        %3536 = vmatmul.bf16.gmra.mxu0 %v3295
        %v3537 = vpop.f32.mrf.mxu0
        %v3538 = vadd.f32 %v3205, %v3537
        %v3539 = vpop.f32.mrf.mxu0
        %v3540 = vadd.f32 %v3205, %v3539
        %3541 = vmatmul.bf16.gmra.mxu0 %v3297
        %v3542 = vpop.f32.mrf.mxu0
        %v3543 = vadd.f32 %v3205, %v3542
        %v3544 = vpop.f32.mrf.mxu0
        %v3545 = vadd.f32 %v3205, %v3544
        %3546 = vmatmul.bf16.gmra.mxu0 %v3299
        %v3547 = vpop.f32.mrf.mxu0
        %v3548 = vadd.f32 %v3205, %v3547
        %v3549 = vpop.f32.mrf.mxu0
        %v3550 = vadd.f32 %v3205, %v3549
        %3551 = vmatmul.bf16.gmra.mxu0 %v3301
        %v3552 = vpop.f32.mrf.mxu0
        %v3553 = vadd.f32 %v3205, %v3552
        %v3554 = vpop.f32.mrf.mxu0
        %v3555 = vadd.f32 %v3205, %v3554
        %3556 = vmatmul.bf16.gmra.mxu0 %v3303
        %v3557 = vpop.f32.mrf.mxu0
        %v3558 = vadd.f32 %v3205, %v3557
        %v3559 = vpop.f32.mrf.mxu0
        %v3560 = vadd.f32 %v3205, %v3559
        %3561 = vmatmul.bf16.gmra.mxu0 %v3305
        %v3562 = vpop.f32.mrf.mxu0
        %v3563 = vadd.f32 %v3205, %v3562
        %v3564 = vpop.f32.mrf.mxu0
        %v3565 = vadd.f32 %v3205, %v3564
        %3566 = vmatmul.bf16.gmra.mxu0 %v3307
        %v3567 = vpop.f32.mrf.mxu0
        %v3568 = vadd.f32 %v3205, %v3567
        %v3569 = vpop.f32.mrf.mxu0
        %v3570 = vadd.f32 %v3205, %v3569
        %3571 = vmatmul.bf16.gmra.mxu0 %v3309
        %v3572 = vpop.f32.mrf.mxu0
        %v3573 = vadd.f32 %v3205, %v3572
        %v3574 = vpop.f32.mrf.mxu0
        %v3575 = vadd.f32 %v3205, %v3574
        %3576 = vmatmul.bf16.gmra.mxu0 %v3311
        %v3577 = vpop.f32.mrf.mxu0
        %v3578 = vadd.f32 %v3205, %v3577
        %v3579 = vpop.f32.mrf.mxu0
        %v3580 = vadd.f32 %v3205, %v3579
        %3581 = vmatmul.bf16.gmra.mxu0 %v3313
        %v3582 = vpop.f32.mrf.mxu0
        %v3583 = vadd.f32 %v3205, %v3582
        %v3584 = vpop.f32.mrf.mxu0
        %v3585 = vadd.f32 %v3205, %v3584
        %3586 = vmatmul.bf16.gmra.mxu0 %v3315
        %v3587 = vpop.f32.mrf.mxu0
        %v3588 = vadd.f32 %v3205, %v3587
        %v3589 = vpop.f32.mrf.mxu0
        %v3590 = vadd.f32 %v3205, %v3589
        %3591 = vmatmul.bf16.gmra.mxu0 %v3317
        %v3592 = vpop.f32.mrf.mxu0
        %v3593 = vadd.f32 %v3205, %v3592
        %v3594 = vpop.f32.mrf.mxu0
        %v3595 = vadd.f32 %v3205, %v3594
        %3596 = vmatmul.bf16.gmra.mxu0 %v3319
        %v3597 = vpop.f32.mrf.mxu0
        %v3598 = vadd.f32 %v3205, %v3597
        %v3599 = vpop.f32.mrf.mxu0
        %v3600 = vadd.f32 %v3205, %v3599
        %3601 = vmatmul.bf16.gmra.mxu0 %v3321
        %v3602 = vpop.f32.mrf.mxu0
        %v3603 = vadd.f32 %v3205, %v3602
        %v3604 = vpop.f32.mrf.mxu0
        %v3605 = vadd.f32 %v3205, %v3604
        %3606 = vmatmul.bf16.gmra.mxu0 %v3323
        %v3607 = vpop.f32.mrf.mxu0
        %v3608 = vadd.f32 %v3205, %v3607
        %v3609 = vpop.f32.mrf.mxu0
        %v3610 = vadd.f32 %v3205, %v3609
        %3611 = vmatmul.bf16.gmra.mxu0 %v3325
        %v3612 = vpop.f32.mrf.mxu0
        %v3613 = vadd.f32 %v3205, %v3612
        %v3614 = vpop.f32.mrf.mxu0
        %v3615 = vadd.f32 %v3205, %v3614
        %3616 = vmatmul.bf16.gmra.mxu0 %v3327
        %v3617 = vpop.f32.mrf.mxu0
        %v3618 = vadd.f32 %v3205, %v3617
        %v3619 = vpop.f32.mrf.mxu0
        %v3620 = vadd.f32 %v3205, %v3619
        %3621 = vmatmul.bf16.gmra.mxu0 %v3329
        %v3622 = vpop.f32.mrf.mxu0
        %v3623 = vadd.f32 %v3205, %v3622
        %v3624 = vpop.f32.mrf.mxu0
        %v3625 = vadd.f32 %v3205, %v3624
        %3626 = vdwg.mxu0
        %v3627 = vmax.f32 %v3348, 0.0
        %v3628 = vmax.f32 %v3350, 0.0
        %v3629 = vmax.f32 %v3353, 0.0
        %v3630 = vmax.f32 %v3355, 0.0
        %v3631 = vmax.f32 %v3358, 0.0
        %v3632 = vmax.f32 %v3360, 0.0
        %v3633 = vmax.f32 %v3363, 0.0
        %v3634 = vmax.f32 %v3365, 0.0
        %v3635 = vmax.f32 %v3368, 0.0
        %v3636 = vmax.f32 %v3370, 0.0
        %v3637 = vmax.f32 %v3373, 0.0
        %v3638 = vmax.f32 %v3375, 0.0
        %v3639 = vmax.f32 %v3378, 0.0
        %v3640 = vmax.f32 %v3380, 0.0
        %v3641 = vmax.f32 %v3383, 0.0
        %v3642 = vmax.f32 %v3385, 0.0
        %v3643 = vmax.f32 %v3388, 0.0
        %v3644 = vmax.f32 %v3390, 0.0
        %v3645 = vmax.f32 %v3393, 0.0
        %v3646 = vmax.f32 %v3395, 0.0
        %v3647 = vmax.f32 %v3398, 0.0
        %v3648 = vmax.f32 %v3400, 0.0
        %v3649 = vmax.f32 %v3403, 0.0
        %v3650 = vmax.f32 %v3405, 0.0
        %v3651 = vmax.f32 %v3408, 0.0
        %v3652 = vmax.f32 %v3410, 0.0
        %v3653 = vmax.f32 %v3413, 0.0
        %v3654 = vmax.f32 %v3415, 0.0
        %v3655 = vmax.f32 %v3418, 0.0
        %v3656 = vmax.f32 %v3420, 0.0
        %v3657 = vmax.f32 %v3423, 0.0
        %v3658 = vmax.f32 %v3425, 0.0
        %v3659 = vmax.f32 %v3428, 0.0
        %v3660 = vmax.f32 %v3430, 0.0
        %v3661 = vmax.f32 %v3433, 0.0
        %v3662 = vmax.f32 %v3435, 0.0
        %v3663 = vmax.f32 %v3438, 0.0
        %v3664 = vmax.f32 %v3440, 0.0
        %v3665 = vmax.f32 %v3443, 0.0
        %v3666 = vmax.f32 %v3445, 0.0
        %v3667 = vmax.f32 %v3448, 0.0
        %v3668 = vmax.f32 %v3450, 0.0
        %v3669 = vmax.f32 %v3453, 0.0
        %v3670 = vmax.f32 %v3455, 0.0
        %v3671 = vmax.f32 %v3458, 0.0
        %v3672 = vmax.f32 %v3460, 0.0
        %v3673 = vmax.f32 %v3463, 0.0
        %v3674 = vmax.f32 %v3465, 0.0
        %v3675 = vmax.f32 %v3468, 0.0
        %v3676 = vmax.f32 %v3470, 0.0
        %v3677 = vmax.f32 %v3473, 0.0
        %v3678 = vmax.f32 %v3475, 0.0
        %v3679 = vmax.f32 %v3478, 0.0
        %v3680 = vmax.f32 %v3480, 0.0
        %v3681 = vmax.f32 %v3483, 0.0
        %v3682 = vmax.f32 %v3485, 0.0
        %v3683 = vmax.f32 %v3488, 0.0
        %v3684 = vmax.f32 %v3490, 0.0
        %v3685 = vmax.f32 %v3493, 0.0
        %v3686 = vmax.f32 %v3495, 0.0
        %v3687 = vmax.f32 %v3498, 0.0
        %v3688 = vmax.f32 %v3500, 0.0
        %v3689 = vmax.f32 %v3503, 0.0
        %v3690 = vmax.f32 %v3505, 0.0
        %v3691 = vmax.f32 %v3508, 0.0
        %v3692 = vmax.f32 %v3510, 0.0
        %v3693 = vmax.f32 %v3513, 0.0
        %v3694 = vmax.f32 %v3515, 0.0
        %v3695 = vmax.f32 %v3518, 0.0
        %v3696 = vmax.f32 %v3520, 0.0
        %v3697 = vmax.f32 %v3523, 0.0
        %v3698 = vmax.f32 %v3525, 0.0
        %v3699 = vmax.f32 %v3528, 0.0
        %v3700 = vmax.f32 %v3530, 0.0
        %v3701 = vmax.f32 %v3533, 0.0
        %v3702 = vmax.f32 %v3535, 0.0
        %v3703 = vmax.f32 %v3538, 0.0
        %v3704 = vmax.f32 %v3540, 0.0
        %v3705 = vmax.f32 %v3543, 0.0
        %v3706 = vmax.f32 %v3545, 0.0
        %v3707 = vmax.f32 %v3548, 0.0
        %v3708 = vmax.f32 %v3550, 0.0
        %v3709 = vmax.f32 %v3553, 0.0
        %v3710 = vmax.f32 %v3555, 0.0
        %v3711 = vmax.f32 %v3558, 0.0
        %v3712 = vmax.f32 %v3560, 0.0
        %v3713 = vmax.f32 %v3563, 0.0
        %v3714 = vmax.f32 %v3565, 0.0
        %v3715 = vmax.f32 %v3568, 0.0
        %v3716 = vmax.f32 %v3570, 0.0
        %v3717 = vmax.f32 %v3573, 0.0
        %v3718 = vmax.f32 %v3575, 0.0
        %v3719 = vmax.f32 %v3578, 0.0
        %v3720 = vmax.f32 %v3580, 0.0
        %v3721 = vmax.f32 %v3583, 0.0
        %v3722 = vmax.f32 %v3585, 0.0
        %v3723 = vmax.f32 %v3588, 0.0
        %v3724 = vmax.f32 %v3590, 0.0
        %v3725 = vmax.f32 %v3593, 0.0
        %v3726 = vmax.f32 %v3595, 0.0
        %v3727 = vmax.f32 %v3598, 0.0
        %v3728 = vmax.f32 %v3600, 0.0
        %v3729 = vmax.f32 %v3603, 0.0
        %v3730 = vmax.f32 %v3605, 0.0
        %v3731 = vmax.f32 %v3608, 0.0
        %v3732 = vmax.f32 %v3610, 0.0
        %v3733 = vmax.f32 %v3613, 0.0
        %v3734 = vmax.f32 %v3615, 0.0
        %v3735 = vmax.f32 %v3618, 0.0
        %v3736 = vmax.f32 %v3620, 0.0
        %v3737 = vmax.f32 %v3623, 0.0
        %v3738 = vmax.f32 %v3625, 0.0
        %v3739 = vpack.c.bf16 %v3627, %v3627
        %v3740 = vpack.c.bf16 %v3628, %v3628
        %v3741 = vpack.c.bf16 %v3629, %v3629
        %v3742 = vpack.c.bf16 %v3630, %v3630
        %v3743 = vpack.c.bf16 %v3631, %v3631
        %v3744 = vpack.c.bf16 %v3632, %v3632
        %v3745 = vpack.c.bf16 %v3633, %v3633
        %v3746 = vpack.c.bf16 %v3634, %v3634
        %v3747 = vpack.c.bf16 %v3635, %v3635
        %v3748 = vpack.c.bf16 %v3636, %v3636
        %v3749 = vpack.c.bf16 %v3637, %v3637
        %v3750 = vpack.c.bf16 %v3638, %v3638
        %v3751 = vpack.c.bf16 %v3639, %v3639
        %v3752 = vpack.c.bf16 %v3640, %v3640
        %v3753 = vpack.c.bf16 %v3641, %v3641
        %v3754 = vpack.c.bf16 %v3642, %v3642
        %v3755 = vpack.c.bf16 %v3643, %v3643
        %v3756 = vpack.c.bf16 %v3644, %v3644
        %v3757 = vpack.c.bf16 %v3645, %v3645
        %v3758 = vpack.c.bf16 %v3646, %v3646
        %v3759 = vpack.c.bf16 %v3647, %v3647
        %v3760 = vpack.c.bf16 %v3648, %v3648
        %v3761 = vpack.c.bf16 %v3649, %v3649
        %v3762 = vpack.c.bf16 %v3650, %v3650
        %v3763 = vpack.c.bf16 %v3651, %v3651
        %v3764 = vpack.c.bf16 %v3652, %v3652
        %v3765 = vpack.c.bf16 %v3653, %v3653
        %v3766 = vpack.c.bf16 %v3654, %v3654
        %v3767 = vpack.c.bf16 %v3655, %v3655
        %v3768 = vpack.c.bf16 %v3656, %v3656
        %v3769 = vpack.c.bf16 %v3657, %v3657
        %v3770 = vpack.c.bf16 %v3658, %v3658
        %v3771 = vpack.c.bf16 %v3659, %v3659
        %v3772 = vpack.c.bf16 %v3660, %v3660
        %v3773 = vpack.c.bf16 %v3661, %v3661
        %v3774 = vpack.c.bf16 %v3662, %v3662
        %v3775 = vpack.c.bf16 %v3663, %v3663
        %v3776 = vpack.c.bf16 %v3664, %v3664
        %v3777 = vpack.c.bf16 %v3665, %v3665
        %v3778 = vpack.c.bf16 %v3666, %v3666
        %v3779 = vpack.c.bf16 %v3667, %v3667
        %v3780 = vpack.c.bf16 %v3668, %v3668
        %v3781 = vpack.c.bf16 %v3669, %v3669
        %v3782 = vpack.c.bf16 %v3670, %v3670
        %v3783 = vpack.c.bf16 %v3671, %v3671
        %v3784 = vpack.c.bf16 %v3672, %v3672
        %v3785 = vpack.c.bf16 %v3673, %v3673
        %v3786 = vpack.c.bf16 %v3674, %v3674
        %v3787 = vpack.c.bf16 %v3675, %v3675
        %v3788 = vpack.c.bf16 %v3676, %v3676
        %v3789 = vpack.c.bf16 %v3677, %v3677
        %v3790 = vpack.c.bf16 %v3678, %v3678
        %v3791 = vpack.c.bf16 %v3679, %v3679
        %v3792 = vpack.c.bf16 %v3680, %v3680
        %v3793 = vpack.c.bf16 %v3681, %v3681
        %v3794 = vpack.c.bf16 %v3682, %v3682
        %v3795 = vpack.c.bf16 %v3683, %v3683
        %v3796 = vpack.c.bf16 %v3684, %v3684
        %v3797 = vpack.c.bf16 %v3685, %v3685
        %v3798 = vpack.c.bf16 %v3686, %v3686
        %v3799 = vpack.c.bf16 %v3687, %v3687
        %v3800 = vpack.c.bf16 %v3688, %v3688
        %v3801 = vpack.c.bf16 %v3689, %v3689
        %v3802 = vpack.c.bf16 %v3690, %v3690
        %v3803 = vpack.c.bf16 %v3691, %v3691
        %v3804 = vpack.c.bf16 %v3692, %v3692
        %v3805 = vpack.c.bf16 %v3693, %v3693
        %v3806 = vpack.c.bf16 %v3694, %v3694
        %v3807 = vpack.c.bf16 %v3695, %v3695
        %v3808 = vpack.c.bf16 %v3696, %v3696
        %v3809 = vpack.c.bf16 %v3697, %v3697
        %v3810 = vpack.c.bf16 %v3698, %v3698
        %v3811 = vpack.c.bf16 %v3699, %v3699
        %v3812 = vpack.c.bf16 %v3700, %v3700
        %v3813 = vpack.c.bf16 %v3701, %v3701
        %v3814 = vpack.c.bf16 %v3702, %v3702
        %v3815 = vpack.c.bf16 %v3703, %v3703
        %v3816 = vpack.c.bf16 %v3704, %v3704
        %v3817 = vpack.c.bf16 %v3705, %v3705
        %v3818 = vpack.c.bf16 %v3706, %v3706
        %v3819 = vpack.c.bf16 %v3707, %v3707
        %v3820 = vpack.c.bf16 %v3708, %v3708
        %v3821 = vpack.c.bf16 %v3709, %v3709
        %v3822 = vpack.c.bf16 %v3710, %v3710
        %v3823 = vpack.c.bf16 %v3711, %v3711
        %v3824 = vpack.c.bf16 %v3712, %v3712
        %v3825 = vpack.c.bf16 %v3713, %v3713
        %v3826 = vpack.c.bf16 %v3714, %v3714
        %v3827 = vpack.c.bf16 %v3715, %v3715
        %v3828 = vpack.c.bf16 %v3716, %v3716
        %v3829 = vpack.c.bf16 %v3717, %v3717
        %v3830 = vpack.c.bf16 %v3718, %v3718
        %v3831 = vpack.c.bf16 %v3719, %v3719
        %v3832 = vpack.c.bf16 %v3720, %v3720
        %v3833 = vpack.c.bf16 %v3721, %v3721
        %v3834 = vpack.c.bf16 %v3722, %v3722
        %v3835 = vpack.c.bf16 %v3723, %v3723
        %v3836 = vpack.c.bf16 %v3724, %v3724
        %v3837 = vpack.c.bf16 %v3725, %v3725
        %v3838 = vpack.c.bf16 %v3726, %v3726
        %v3839 = vpack.c.bf16 %v3727, %v3727
        %v3840 = vpack.c.bf16 %v3728, %v3728
        %v3841 = vpack.c.bf16 %v3729, %v3729
        %v3842 = vpack.c.bf16 %v3730, %v3730
        %v3843 = vpack.c.bf16 %v3731, %v3731
        %v3844 = vpack.c.bf16 %v3732, %v3732
        %v3845 = vpack.c.bf16 %v3733, %v3733
        %v3846 = vpack.c.bf16 %v3734, %v3734
        %v3847 = vpack.c.bf16 %v3735, %v3735
        %v3848 = vpack.c.bf16 %v3736, %v3736
        %v3849 = vpack.c.bf16 %v3737, %v3737
        %v3850 = vpack.c.bf16 %v3738, %v3738
        %v3852 = vshrl.u32 %v3742, 16
        %v3853 = vpack.i.b16 %v3852, %v3852
        %v3855 = vperm.slane %v3853, 1
        %v3857 = vshrl.u32 %v3746, 16
        %v3858 = vpack.i.b16 %v3857, %v3857
        %v3860 = vperm.slane %v3858, 1
        %v3862 = vshrl.u32 %v3750, 16
        %v3863 = vpack.i.b16 %v3862, %v3862
        %v3865 = vperm.slane %v3863, 1
        %v3867 = vshrl.u32 %v3754, 16
        %v3868 = vpack.i.b16 %v3867, %v3867
        %v3870 = vperm.slane %v3868, 1
        %v3872 = vshrl.u32 %v3758, 16
        %v3873 = vpack.i.b16 %v3872, %v3872
        %v3875 = vperm.slane %v3873, 1
        %v3877 = vshrl.u32 %v3762, 16
        %v3878 = vpack.i.b16 %v3877, %v3877
        %v3880 = vperm.slane %v3878, 1
        %v3882 = vshrl.u32 %v3766, 16
        %v3883 = vpack.i.b16 %v3882, %v3882
        %v3885 = vperm.slane %v3883, 1
        %v3887 = vshrl.u32 %v3770, 16
        %v3888 = vpack.i.b16 %v3887, %v3887
        %v3890 = vperm.slane %v3888, 1
        %v3892 = vshrl.u32 %v3774, 16
        %v3893 = vpack.i.b16 %v3892, %v3892
        %v3895 = vperm.slane %v3893, 1
        %v3897 = vshrl.u32 %v3778, 16
        %v3898 = vpack.i.b16 %v3897, %v3897
        %v3900 = vperm.slane %v3898, 1
        %v3902 = vshrl.u32 %v3782, 16
        %v3903 = vpack.i.b16 %v3902, %v3902
        %v3905 = vperm.slane %v3903, 1
        %v3907 = vshrl.u32 %v3786, 16
        %v3908 = vpack.i.b16 %v3907, %v3907
        %v3910 = vperm.slane %v3908, 1
        %v3912 = vshrl.u32 %v3790, 16
        %v3913 = vpack.i.b16 %v3912, %v3912
        %v3915 = vperm.slane %v3913, 1
        %v3917 = vshrl.u32 %v3794, 16
        %v3918 = vpack.i.b16 %v3917, %v3917
        %v3920 = vperm.slane %v3918, 1
        %v3922 = vshrl.u32 %v3798, 16
        %v3923 = vpack.i.b16 %v3922, %v3922
        %v3925 = vperm.slane %v3923, 1
        %v3927 = vshrl.u32 %v3802, 16
        %v3928 = vpack.i.b16 %v3927, %v3927
        %v3930 = vperm.slane %v3928, 1
        %v3932 = vshrl.u32 %v3806, 16
        %v3933 = vpack.i.b16 %v3932, %v3932
        %v3935 = vperm.slane %v3933, 1
        %v3937 = vshrl.u32 %v3810, 16
        %v3938 = vpack.i.b16 %v3937, %v3937
        %v3940 = vperm.slane %v3938, 1
        %v3942 = vshrl.u32 %v3814, 16
        %v3943 = vpack.i.b16 %v3942, %v3942
        %v3945 = vperm.slane %v3943, 1
        %v3947 = vshrl.u32 %v3818, 16
        %v3948 = vpack.i.b16 %v3947, %v3947
        %v3950 = vperm.slane %v3948, 1
        %v3952 = vshrl.u32 %v3822, 16
        %v3953 = vpack.i.b16 %v3952, %v3952
        %v3955 = vperm.slane %v3953, 1
        %v3957 = vshrl.u32 %v3826, 16
        %v3958 = vpack.i.b16 %v3957, %v3957
        %v3960 = vperm.slane %v3958, 1
        %v3962 = vshrl.u32 %v3830, 16
        %v3963 = vpack.i.b16 %v3962, %v3962
        %v3965 = vperm.slane %v3963, 1
        %v3967 = vshrl.u32 %v3834, 16
        %v3968 = vpack.i.b16 %v3967, %v3967
        %v3970 = vperm.slane %v3968, 1
        %v3972 = vshrl.u32 %v3838, 16
        %v3973 = vpack.i.b16 %v3972, %v3972
        %v3975 = vperm.slane %v3973, 1
        %v3977 = vshrl.u32 %v3842, 16
        %v3978 = vpack.i.b16 %v3977, %v3977
        %v3980 = vperm.slane %v3978, 1
        %v3982 = vshrl.u32 %v3846, 16
        %v3983 = vpack.i.b16 %v3982, %v3982
        %v3985 = vperm.slane %v3983, 1
        %v3987 = vshrl.u32 %v3850, 16
        %v3988 = vpack.i.b16 %v3987, %v3987
        %v3990 = vperm.slane %v3988, 1
        %v4103 = vunpack.c.l.b16 %v3739
        %v4104 = vunpack.c.l.b16 %v3740
        %v4105 = vunpack.c.l.b16 %v3741
        %v4106 = vunpack.c.l.b16 %v3742
        %v4107 = vunpack.c.l.b16 %v3743
        %v4108 = vunpack.c.l.b16 %v3744
        %v4109 = vunpack.c.l.b16 %v3745
        %v4110 = vunpack.c.l.b16 %v3746
        %v4111 = vunpack.c.l.b16 %v3747
        %v4112 = vunpack.c.l.b16 %v3748
        %v4113 = vunpack.c.l.b16 %v3749
        %v4114 = vunpack.c.l.b16 %v3750
        %v4115 = vunpack.c.l.b16 %v3751
        %v4116 = vunpack.c.l.b16 %v3752
        %v4117 = vunpack.c.l.b16 %v3753
        %v4118 = vunpack.c.l.b16 %v3754
        %v4119 = vunpack.c.l.b16 %v3755
        %v4120 = vunpack.c.l.b16 %v3756
        %v4121 = vunpack.c.l.b16 %v3757
        %v4122 = vunpack.c.l.b16 %v3758
        %v4123 = vunpack.c.l.b16 %v3759
        %v4124 = vunpack.c.l.b16 %v3760
        %v4125 = vunpack.c.l.b16 %v3761
        %v4126 = vunpack.c.l.b16 %v3762
        %v4127 = vunpack.c.l.b16 %v3763
        %v4128 = vunpack.c.l.b16 %v3764
        %v4129 = vunpack.c.l.b16 %v3765
        %v4130 = vunpack.c.l.b16 %v3766
        %v4131 = vunpack.c.l.b16 %v3767
        %v4132 = vunpack.c.l.b16 %v3768
        %v4133 = vunpack.c.l.b16 %v3769
        %v4134 = vunpack.c.l.b16 %v3770
        %v4135 = vunpack.c.l.b16 %v3771
        %v4136 = vunpack.c.l.b16 %v3772
        %v4137 = vunpack.c.l.b16 %v3773
        %v4138 = vunpack.c.l.b16 %v3774
        %v4139 = vunpack.c.l.b16 %v3775
        %v4140 = vunpack.c.l.b16 %v3776
        %v4141 = vunpack.c.l.b16 %v3777
        %v4142 = vunpack.c.l.b16 %v3778
        %v4143 = vunpack.c.l.b16 %v3779
        %v4144 = vunpack.c.l.b16 %v3780
        %v4145 = vunpack.c.l.b16 %v3781
        %v4146 = vunpack.c.l.b16 %v3782
        %v4147 = vunpack.c.l.b16 %v3783
        %v4148 = vunpack.c.l.b16 %v3784
        %v4149 = vunpack.c.l.b16 %v3785
        %v4150 = vunpack.c.l.b16 %v3786
        %v4151 = vunpack.c.l.b16 %v3787
        %v4152 = vunpack.c.l.b16 %v3788
        %v4153 = vunpack.c.l.b16 %v3789
        %v4154 = vunpack.c.l.b16 %v3790
        %v4155 = vunpack.c.l.b16 %v3791
        %v4156 = vunpack.c.l.b16 %v3792
        %v4157 = vunpack.c.l.b16 %v3793
        %v4158 = vunpack.c.l.b16 %v3794
        %v4159 = vunpack.c.l.b16 %v3795
        %v4160 = vunpack.c.l.b16 %v3796
        %v4161 = vunpack.c.l.b16 %v3797
        %v4162 = vunpack.c.l.b16 %v3798
        %v4163 = vunpack.c.l.b16 %v3799
        %v4164 = vunpack.c.l.b16 %v3800
        %v4165 = vunpack.c.l.b16 %v3801
        %v4166 = vunpack.c.l.b16 %v3802
        %v4167 = vunpack.c.l.b16 %v3803
        %v4168 = vunpack.c.l.b16 %v3804
        %v4169 = vunpack.c.l.b16 %v3805
        %v4170 = vunpack.c.l.b16 %v3806
        %v4171 = vunpack.c.l.b16 %v3807
        %v4172 = vunpack.c.l.b16 %v3808
        %v4173 = vunpack.c.l.b16 %v3809
        %v4174 = vunpack.c.l.b16 %v3810
        %v4175 = vunpack.c.l.b16 %v3811
        %v4176 = vunpack.c.l.b16 %v3812
        %v4177 = vunpack.c.l.b16 %v3813
        %v4178 = vunpack.c.l.b16 %v3814
        %v4179 = vunpack.c.l.b16 %v3815
        %v4180 = vunpack.c.l.b16 %v3816
        %v4181 = vunpack.c.l.b16 %v3817
        %v4182 = vunpack.c.l.b16 %v3818
        %v4183 = vunpack.c.l.b16 %v3819
        %v4184 = vunpack.c.l.b16 %v3820
        %v4185 = vunpack.c.l.b16 %v3821
        %v4186 = vunpack.c.l.b16 %v3822
        %v4187 = vunpack.c.l.b16 %v3823
        %v4188 = vunpack.c.l.b16 %v3824
        %v4189 = vunpack.c.l.b16 %v3825
        %v4190 = vunpack.c.l.b16 %v3826
        %v4191 = vunpack.c.l.b16 %v3827
        %v4192 = vunpack.c.l.b16 %v3828
        %v4193 = vunpack.c.l.b16 %v3829
        %v4194 = vunpack.c.l.b16 %v3830
        %v4195 = vunpack.c.l.b16 %v3831
        %v4196 = vunpack.c.l.b16 %v3832
        %v4197 = vunpack.c.l.b16 %v3833
        %v4198 = vunpack.c.l.b16 %v3834
        %v4199 = vunpack.c.l.b16 %v3835
        %v4200 = vunpack.c.l.b16 %v3836
        %v4201 = vunpack.c.l.b16 %v3837
        %v4202 = vunpack.c.l.b16 %v3838
        %v4203 = vunpack.c.l.b16 %v3839
        %v4204 = vunpack.c.l.b16 %v3840
        %v4205 = vunpack.c.l.b16 %v3841
        %v4206 = vunpack.c.l.b16 %v3842
        %v4207 = vunpack.c.l.b16 %v3843
        %v4208 = vunpack.c.l.b16 %v3844
        %v4209 = vunpack.c.l.b16 %v3845
        %v4210 = vunpack.c.l.b16 %v3846
        %v4211 = vunpack.c.l.b16 %v3847
        %v4212 = vunpack.c.l.b16 %v3848
        %v4213 = vunpack.c.l.b16 %v3849
        %v4214 = vunpack.c.l.b16 %v3850
        %v4215 = vpack.c.b16 %v4104, %v4103
        %v4216 = vpack.c.b16 %v4106, %v4105
        %v4217 = vpack.c.b16 %v4108, %v4107
        %v4218 = vpack.c.b16 %v4110, %v4109
        %v4219 = vpack.c.b16 %v4112, %v4111
        %v4220 = vpack.c.b16 %v4114, %v4113
        %v4221 = vpack.c.b16 %v4116, %v4115
        %v4222 = vpack.c.b16 %v4118, %v4117
        %v4223 = vpack.c.b16 %v4120, %v4119
        %v4224 = vpack.c.b16 %v4122, %v4121
        %v4225 = vpack.c.b16 %v4124, %v4123
        %v4226 = vpack.c.b16 %v4126, %v4125
        %v4227 = vpack.c.b16 %v4128, %v4127
        %v4228 = vpack.c.b16 %v4130, %v4129
        %v4229 = vpack.c.b16 %v4132, %v4131
        %v4230 = vpack.c.b16 %v4134, %v4133
        %v4231 = vpack.c.b16 %v4136, %v4135
        %v4232 = vpack.c.b16 %v4138, %v4137
        %v4233 = vpack.c.b16 %v4140, %v4139
        %v4234 = vpack.c.b16 %v4142, %v4141
        %v4235 = vpack.c.b16 %v4144, %v4143
        %v4236 = vpack.c.b16 %v4146, %v4145
        %v4237 = vpack.c.b16 %v4148, %v4147
        %v4238 = vpack.c.b16 %v4150, %v4149
        %v4239 = vpack.c.b16 %v4152, %v4151
        %v4240 = vpack.c.b16 %v4154, %v4153
        %v4241 = vpack.c.b16 %v4156, %v4155
        %v4242 = vpack.c.b16 %v4158, %v4157
        %v4243 = vpack.c.b16 %v4160, %v4159
        %v4244 = vpack.c.b16 %v4162, %v4161
        %v4245 = vpack.c.b16 %v4164, %v4163
        %v4246 = vpack.c.b16 %v4166, %v4165
        %v4247 = vpack.c.b16 %v4168, %v4167
        %v4248 = vpack.c.b16 %v4170, %v4169
        %v4249 = vpack.c.b16 %v4172, %v4171
        %v4250 = vpack.c.b16 %v4174, %v4173
        %v4251 = vpack.c.b16 %v4176, %v4175
        %v4252 = vpack.c.b16 %v4178, %v4177
        %v4253 = vpack.c.b16 %v4180, %v4179
        %v4254 = vpack.c.b16 %v4182, %v4181
        %v4255 = vpack.c.b16 %v4184, %v4183
        %v4256 = vpack.c.b16 %v4186, %v4185
        %v4257 = vpack.c.b16 %v4188, %v4187
        %v4258 = vpack.c.b16 %v4190, %v4189
        %v4259 = vpack.c.b16 %v4192, %v4191
        %v4260 = vpack.c.b16 %v4194, %v4193
        %v4261 = vpack.c.b16 %v4196, %v4195
        %v4262 = vpack.c.b16 %v4198, %v4197
        %v4263 = vpack.c.b16 %v4200, %v4199
        %v4264 = vpack.c.b16 %v4202, %v4201
        %v4265 = vpack.c.b16 %v4204, %v4203
        %v4266 = vpack.c.b16 %v4206, %v4205
        %v4267 = vpack.c.b16 %v4208, %v4207
        %v4268 = vpack.c.b16 %v4210, %v4209
        %v4269 = vpack.c.b16 %v4212, %v4211
        %v4270 = vpack.c.b16 %v4214, %v4213
        %v4272 = vshrl.u32 %v4215, 16
        %v4274 = vrot.slane %v4272, 7
        %v4275 = vshll.u32 %v4215, 16
        %v4277 = vor.u32 %v4274, %v4275
        %v4279 = vshrl.u32 %v4216, 16
        %v4281 = vrot.slane %v4279, 7
        %v4282 = vshll.u32 %v4216, 16
        %v4284 = vor.u32 %v4281, %v4282
        %v4285 = vsel %vm943, %v4274, %v4284
        %v4287 = vshrl.u32 %v4217, 16
        %v4289 = vrot.slane %v4287, 7
        %v4290 = vshll.u32 %v4217, 16
        %v4292 = vor.u32 %v4289, %v4290
        %v4294 = vshrl.u32 %v4218, 16
        %v4296 = vrot.slane %v4294, 7
        %v4297 = vshll.u32 %v4218, 16
        %v4299 = vor.u32 %v4296, %v4297
        %v4300 = vsel %vm943, %v4289, %v4299
        %v4302 = vshrl.u32 %v4219, 16
        %v4304 = vrot.slane %v4302, 7
        %v4305 = vshll.u32 %v4219, 16
        %v4307 = vor.u32 %v4304, %v4305
        %v4309 = vshrl.u32 %v4220, 16
        %v4311 = vrot.slane %v4309, 7
        %v4312 = vshll.u32 %v4220, 16
        %v4314 = vor.u32 %v4311, %v4312
        %v4315 = vsel %vm943, %v4304, %v4314
        %v4317 = vshrl.u32 %v4221, 16
        %v4319 = vrot.slane %v4317, 7
        %v4320 = vshll.u32 %v4221, 16
        %v4322 = vor.u32 %v4319, %v4320
        %v4324 = vshrl.u32 %v4222, 16
        %v4326 = vrot.slane %v4324, 7
        %v4327 = vshll.u32 %v4222, 16
        %v4329 = vor.u32 %v4326, %v4327
        %v4330 = vsel %vm943, %v4319, %v4329
        %v4332 = vshrl.u32 %v4223, 16
        %v4334 = vrot.slane %v4332, 7
        %v4335 = vshll.u32 %v4223, 16
        %v4337 = vor.u32 %v4334, %v4335
        %v4339 = vshrl.u32 %v4224, 16
        %v4341 = vrot.slane %v4339, 7
        %v4342 = vshll.u32 %v4224, 16
        %v4344 = vor.u32 %v4341, %v4342
        %v4345 = vsel %vm943, %v4334, %v4344
        %v4347 = vshrl.u32 %v4225, 16
        %v4349 = vrot.slane %v4347, 7
        %v4350 = vshll.u32 %v4225, 16
        %v4352 = vor.u32 %v4349, %v4350
        %v4354 = vshrl.u32 %v4226, 16
        %v4356 = vrot.slane %v4354, 7
        %v4357 = vshll.u32 %v4226, 16
        %v4359 = vor.u32 %v4356, %v4357
        %v4360 = vsel %vm943, %v4349, %v4359
        %v4362 = vshrl.u32 %v4227, 16
        %v4364 = vrot.slane %v4362, 7
        %v4365 = vshll.u32 %v4227, 16
        %v4367 = vor.u32 %v4364, %v4365
        %v4369 = vshrl.u32 %v4228, 16
        %v4371 = vrot.slane %v4369, 7
        %v4372 = vshll.u32 %v4228, 16
        %v4374 = vor.u32 %v4371, %v4372
        %v4375 = vsel %vm943, %v4364, %v4374
        %v4377 = vshrl.u32 %v4229, 16
        %v4379 = vrot.slane %v4377, 7
        %v4380 = vshll.u32 %v4229, 16
        %v4382 = vor.u32 %v4379, %v4380
        %v4384 = vshrl.u32 %v4230, 16
        %v4386 = vrot.slane %v4384, 7
        %v4387 = vshll.u32 %v4230, 16
        %v4389 = vor.u32 %v4386, %v4387
        %v4390 = vsel %vm943, %v4379, %v4389
        %v4392 = vshrl.u32 %v4231, 16
        %v4394 = vrot.slane %v4392, 7
        %v4395 = vshll.u32 %v4231, 16
        %v4397 = vor.u32 %v4394, %v4395
        %v4399 = vshrl.u32 %v4232, 16
        %v4401 = vrot.slane %v4399, 7
        %v4402 = vshll.u32 %v4232, 16
        %v4404 = vor.u32 %v4401, %v4402
        %v4405 = vsel %vm943, %v4394, %v4404
        %v4407 = vshrl.u32 %v4233, 16
        %v4409 = vrot.slane %v4407, 7
        %v4410 = vshll.u32 %v4233, 16
        %v4412 = vor.u32 %v4409, %v4410
        %v4414 = vshrl.u32 %v4234, 16
        %v4416 = vrot.slane %v4414, 7
        %v4417 = vshll.u32 %v4234, 16
        %v4419 = vor.u32 %v4416, %v4417
        %v4420 = vsel %vm943, %v4409, %v4419
        %v4422 = vshrl.u32 %v4235, 16
        %v4424 = vrot.slane %v4422, 7
        %v4425 = vshll.u32 %v4235, 16
        %v4427 = vor.u32 %v4424, %v4425
        %v4429 = vshrl.u32 %v4236, 16
        %v4431 = vrot.slane %v4429, 7
        %v4432 = vshll.u32 %v4236, 16
        %v4434 = vor.u32 %v4431, %v4432
        %v4435 = vsel %vm943, %v4424, %v4434
        %v4437 = vshrl.u32 %v4237, 16
        %v4439 = vrot.slane %v4437, 7
        %v4440 = vshll.u32 %v4237, 16
        %v4442 = vor.u32 %v4439, %v4440
        %v4444 = vshrl.u32 %v4238, 16
        %v4446 = vrot.slane %v4444, 7
        %v4447 = vshll.u32 %v4238, 16
        %v4449 = vor.u32 %v4446, %v4447
        %v4450 = vsel %vm943, %v4439, %v4449
        %v4452 = vshrl.u32 %v4239, 16
        %v4454 = vrot.slane %v4452, 7
        %v4455 = vshll.u32 %v4239, 16
        %v4457 = vor.u32 %v4454, %v4455
        %v4459 = vshrl.u32 %v4240, 16
        %v4461 = vrot.slane %v4459, 7
        %v4462 = vshll.u32 %v4240, 16
        %v4464 = vor.u32 %v4461, %v4462
        %v4465 = vsel %vm943, %v4454, %v4464
        %v4467 = vshrl.u32 %v4241, 16
        %v4469 = vrot.slane %v4467, 7
        %v4470 = vshll.u32 %v4241, 16
        %v4472 = vor.u32 %v4469, %v4470
        %v4474 = vshrl.u32 %v4242, 16
        %v4476 = vrot.slane %v4474, 7
        %v4477 = vshll.u32 %v4242, 16
        %v4479 = vor.u32 %v4476, %v4477
        %v4480 = vsel %vm943, %v4469, %v4479
        %v4482 = vshrl.u32 %v4243, 16
        %v4484 = vrot.slane %v4482, 7
        %v4485 = vshll.u32 %v4243, 16
        %v4487 = vor.u32 %v4484, %v4485
        %v4489 = vshrl.u32 %v4244, 16
        %v4491 = vrot.slane %v4489, 7
        %v4492 = vshll.u32 %v4244, 16
        %v4494 = vor.u32 %v4491, %v4492
        %v4495 = vsel %vm943, %v4484, %v4494
        %v4497 = vshrl.u32 %v4245, 16
        %v4499 = vrot.slane %v4497, 7
        %v4500 = vshll.u32 %v4245, 16
        %v4502 = vor.u32 %v4499, %v4500
        %v4504 = vshrl.u32 %v4246, 16
        %v4506 = vrot.slane %v4504, 7
        %v4507 = vshll.u32 %v4246, 16
        %v4509 = vor.u32 %v4506, %v4507
        %v4510 = vsel %vm943, %v4499, %v4509
        %v4512 = vshrl.u32 %v4247, 16
        %v4514 = vrot.slane %v4512, 7
        %v4515 = vshll.u32 %v4247, 16
        %v4517 = vor.u32 %v4514, %v4515
        %v4519 = vshrl.u32 %v4248, 16
        %v4521 = vrot.slane %v4519, 7
        %v4522 = vshll.u32 %v4248, 16
        %v4524 = vor.u32 %v4521, %v4522
        %v4525 = vsel %vm943, %v4514, %v4524
        %v4527 = vshrl.u32 %v4249, 16
        %v4529 = vrot.slane %v4527, 7
        %v4530 = vshll.u32 %v4249, 16
        %v4532 = vor.u32 %v4529, %v4530
        %v4534 = vshrl.u32 %v4250, 16
        %v4536 = vrot.slane %v4534, 7
        %v4537 = vshll.u32 %v4250, 16
        %v4539 = vor.u32 %v4536, %v4537
        %v4540 = vsel %vm943, %v4529, %v4539
        %v4542 = vshrl.u32 %v4251, 16
        %v4544 = vrot.slane %v4542, 7
        %v4545 = vshll.u32 %v4251, 16
        %v4547 = vor.u32 %v4544, %v4545
        %v4549 = vshrl.u32 %v4252, 16
        %v4551 = vrot.slane %v4549, 7
        %v4552 = vshll.u32 %v4252, 16
        %v4554 = vor.u32 %v4551, %v4552
        %v4555 = vsel %vm943, %v4544, %v4554
        %v4557 = vshrl.u32 %v4253, 16
        %v4559 = vrot.slane %v4557, 7
        %v4560 = vshll.u32 %v4253, 16
        %v4562 = vor.u32 %v4559, %v4560
        %v4564 = vshrl.u32 %v4254, 16
        %v4566 = vrot.slane %v4564, 7
        %v4567 = vshll.u32 %v4254, 16
        %v4569 = vor.u32 %v4566, %v4567
        %v4570 = vsel %vm943, %v4559, %v4569
        %v4572 = vshrl.u32 %v4255, 16
        %v4574 = vrot.slane %v4572, 7
        %v4575 = vshll.u32 %v4255, 16
        %v4577 = vor.u32 %v4574, %v4575
        %v4579 = vshrl.u32 %v4256, 16
        %v4581 = vrot.slane %v4579, 7
        %v4582 = vshll.u32 %v4256, 16
        %v4584 = vor.u32 %v4581, %v4582
        %v4585 = vsel %vm943, %v4574, %v4584
        %v4587 = vshrl.u32 %v4257, 16
        %v4589 = vrot.slane %v4587, 7
        %v4590 = vshll.u32 %v4257, 16
        %v4592 = vor.u32 %v4589, %v4590
        %v4594 = vshrl.u32 %v4258, 16
        %v4596 = vrot.slane %v4594, 7
        %v4597 = vshll.u32 %v4258, 16
        %v4599 = vor.u32 %v4596, %v4597
        %v4600 = vsel %vm943, %v4589, %v4599
        %v4602 = vshrl.u32 %v4259, 16
        %v4604 = vrot.slane %v4602, 7
        %v4605 = vshll.u32 %v4259, 16
        %v4607 = vor.u32 %v4604, %v4605
        %v4609 = vshrl.u32 %v4260, 16
        %v4611 = vrot.slane %v4609, 7
        %v4612 = vshll.u32 %v4260, 16
        %v4614 = vor.u32 %v4611, %v4612
        %v4615 = vsel %vm943, %v4604, %v4614
        %v4617 = vshrl.u32 %v4261, 16
        %v4619 = vrot.slane %v4617, 7
        %v4620 = vshll.u32 %v4261, 16
        %v4622 = vor.u32 %v4619, %v4620
        %v4624 = vshrl.u32 %v4262, 16
        %v4626 = vrot.slane %v4624, 7
        %v4627 = vshll.u32 %v4262, 16
        %v4629 = vor.u32 %v4626, %v4627
        %v4630 = vsel %vm943, %v4619, %v4629
        %v4632 = vshrl.u32 %v4263, 16
        %v4634 = vrot.slane %v4632, 7
        %v4635 = vshll.u32 %v4263, 16
        %v4637 = vor.u32 %v4634, %v4635
        %v4639 = vshrl.u32 %v4264, 16
        %v4641 = vrot.slane %v4639, 7
        %v4642 = vshll.u32 %v4264, 16
        %v4644 = vor.u32 %v4641, %v4642
        %v4645 = vsel %vm943, %v4634, %v4644
        %v4647 = vshrl.u32 %v4265, 16
        %v4649 = vrot.slane %v4647, 7
        %v4650 = vshll.u32 %v4265, 16
        %v4652 = vor.u32 %v4649, %v4650
        %v4654 = vshrl.u32 %v4266, 16
        %v4656 = vrot.slane %v4654, 7
        %v4657 = vshll.u32 %v4266, 16
        %v4659 = vor.u32 %v4656, %v4657
        %v4660 = vsel %vm943, %v4649, %v4659
        %v4662 = vshrl.u32 %v4267, 16
        %v4664 = vrot.slane %v4662, 7
        %v4665 = vshll.u32 %v4267, 16
        %v4667 = vor.u32 %v4664, %v4665
        %v4669 = vshrl.u32 %v4268, 16
        %v4671 = vrot.slane %v4669, 7
        %v4672 = vshll.u32 %v4268, 16
        %v4674 = vor.u32 %v4671, %v4672
        %v4675 = vsel %vm943, %v4664, %v4674
        %v4677 = vshrl.u32 %v4269, 16
        %v4679 = vrot.slane %v4677, 7
        %v4680 = vshll.u32 %v4269, 16
        %v4682 = vor.u32 %v4679, %v4680
        %v4684 = vshrl.u32 %v4270, 16
        %v4686 = vrot.slane %v4684, 7
        %v4687 = vshll.u32 %v4270, 16
        %v4689 = vor.u32 %v4686, %v4687
        %v4690 = vsel %vm943, %v4679, %v4689
        %v4747 = vpack.c.b16 %v4106, %v4106
        %v4748 = vpack.c.b16 %v4110, %v4110
        %v4749 = vpack.c.b16 %v4114, %v4114
        %v4750 = vpack.c.b16 %v4118, %v4118
        %v4751 = vpack.c.b16 %v4122, %v4122
        %v4752 = vpack.c.b16 %v4126, %v4126
        %v4753 = vpack.c.b16 %v4130, %v4130
        %v4754 = vpack.c.b16 %v4134, %v4134
        %v4755 = vpack.c.b16 %v4138, %v4138
        %v4756 = vpack.c.b16 %v4142, %v4142
        %v4757 = vpack.c.b16 %v4146, %v4146
        %v4758 = vpack.c.b16 %v4150, %v4150
        %v4759 = vpack.c.b16 %v4154, %v4154
        %v4760 = vpack.c.b16 %v4158, %v4158
        %v4761 = vpack.c.b16 %v4162, %v4162
        %v4762 = vpack.c.b16 %v4166, %v4166
        %v4763 = vpack.c.b16 %v4170, %v4170
        %v4764 = vpack.c.b16 %v4174, %v4174
        %v4765 = vpack.c.b16 %v4178, %v4178
        %v4766 = vpack.c.b16 %v4182, %v4182
        %v4767 = vpack.c.b16 %v4186, %v4186
        %v4768 = vpack.c.b16 %v4190, %v4190
        %v4769 = vpack.c.b16 %v4194, %v4194
        %v4770 = vpack.c.b16 %v4198, %v4198
        %v4771 = vpack.c.b16 %v4202, %v4202
        %v4772 = vpack.c.b16 %v4206, %v4206
        %v4773 = vpack.c.b16 %v4210, %v4210
        %v4774 = vpack.c.b16 %v4214, %v4214
        %v4775 = vrot.slane %v4747, 3
        %v4776 = vrot.slane %v4748, 3
        %v4777 = vrot.slane %v4749, 3
        %v4778 = vrot.slane %v4750, 3
        %v4779 = vrot.slane %v4751, 3
        %v4780 = vrot.slane %v4752, 3
        %v4781 = vrot.slane %v4753, 3
        %v4782 = vrot.slane %v4754, 3
        %v4783 = vrot.slane %v4755, 3
        %v4784 = vrot.slane %v4756, 3
        %v4785 = vrot.slane %v4757, 3
        %v4786 = vrot.slane %v4758, 3
        %v4787 = vrot.slane %v4759, 3
        %v4788 = vrot.slane %v4760, 3
        %v4789 = vrot.slane %v4761, 3
        %v4790 = vrot.slane %v4762, 3
        %v4791 = vrot.slane %v4763, 3
        %v4792 = vrot.slane %v4764, 3
        %v4793 = vrot.slane %v4765, 3
        %v4794 = vrot.slane %v4766, 3
        %v4795 = vrot.slane %v4767, 3
        %v4796 = vrot.slane %v4768, 3
        %v4797 = vrot.slane %v4769, 3
        %v4798 = vrot.slane %v4770, 3
        %v4799 = vrot.slane %v4771, 3
        %v4800 = vrot.slane %v4772, 3
        %v4801 = vrot.slane %v4773, 3
        %v4802 = vrot.slane %v4774, 3
        %v4831 = vsel %vm1505, %v3739, %v4277
        %v4832 = vsel %vm1505, %v3743, %v4292
        %v4833 = vsel %vm1505, %v3747, %v4307
        %v4834 = vsel %vm1505, %v3751, %v4322
        %v4835 = vsel %vm1505, %v3755, %v4337
        %v4836 = vsel %vm1505, %v3759, %v4352
        %v4837 = vsel %vm1505, %v3763, %v4367
        %v4838 = vsel %vm1505, %v3767, %v4382
        %v4839 = vsel %vm1505, %v3771, %v4397
        %v4840 = vsel %vm1505, %v3775, %v4412
        %v4841 = vsel %vm1505, %v3779, %v4427
        %v4842 = vsel %vm1505, %v3783, %v4442
        %v4843 = vsel %vm1505, %v3787, %v4457
        %v4844 = vsel %vm1505, %v3791, %v4472
        %v4845 = vsel %vm1505, %v3795, %v4487
        %v4846 = vsel %vm1505, %v3799, %v4502
        %v4847 = vsel %vm1505, %v3803, %v4517
        %v4848 = vsel %vm1505, %v3807, %v4532
        %v4849 = vsel %vm1505, %v3811, %v4547
        %v4850 = vsel %vm1505, %v3815, %v4562
        %v4851 = vsel %vm1505, %v3819, %v4577
        %v4852 = vsel %vm1505, %v3823, %v4592
        %v4853 = vsel %vm1505, %v3827, %v4607
        %v4854 = vsel %vm1505, %v3831, %v4622
        %v4855 = vsel %vm1505, %v3835, %v4637
        %v4856 = vsel %vm1505, %v3839, %v4652
        %v4857 = vsel %vm1505, %v3843, %v4667
        %v4858 = vsel %vm1505, %v3847, %v4682
        %v4859 = vsel %vm1536, %v4285, %v4775
        %v4860 = vsel %vm1536, %v4300, %v4776
        %v4861 = vsel %vm1536, %v4315, %v4777
        %v4862 = vsel %vm1536, %v4330, %v4778
        %v4863 = vsel %vm1536, %v4345, %v4779
        %v4864 = vsel %vm1536, %v4360, %v4780
        %v4865 = vsel %vm1536, %v4375, %v4781
        %v4866 = vsel %vm1536, %v4390, %v4782
        %v4867 = vsel %vm1536, %v4405, %v4783
        %v4868 = vsel %vm1536, %v4420, %v4784
        %v4869 = vsel %vm1536, %v4435, %v4785
        %v4870 = vsel %vm1536, %v4450, %v4786
        %v4871 = vsel %vm1536, %v4465, %v4787
        %v4872 = vsel %vm1536, %v4480, %v4788
        %v4873 = vsel %vm1536, %v4495, %v4789
        %v4874 = vsel %vm1536, %v4510, %v4790
        %v4875 = vsel %vm1536, %v4525, %v4791
        %v4876 = vsel %vm1536, %v4540, %v4792
        %v4877 = vsel %vm1536, %v4555, %v4793
        %v4878 = vsel %vm1536, %v4570, %v4794
        %v4879 = vsel %vm1536, %v4585, %v4795
        %v4880 = vsel %vm1536, %v4600, %v4796
        %v4881 = vsel %vm1536, %v4615, %v4797
        %v4882 = vsel %vm1536, %v4630, %v4798
        %v4883 = vsel %vm1536, %v4645, %v4799
        %v4884 = vsel %vm1536, %v4660, %v4800
        %v4885 = vsel %vm1536, %v4675, %v4801
        %v4886 = vsel %vm1536, %v4690, %v4802
        %v4889 = vsel %vm1565, %v4859, %v3855
        %v4892 = vsel %vm1565, %v4860, %v3860
        %v4895 = vsel %vm1565, %v4861, %v3865
        %v4898 = vsel %vm1565, %v4862, %v3870
        %v4901 = vsel %vm1565, %v4863, %v3875
        %v4904 = vsel %vm1565, %v4864, %v3880
        %v4907 = vsel %vm1565, %v4865, %v3885
        %v4910 = vsel %vm1565, %v4866, %v3890
        %v4913 = vsel %vm1565, %v4867, %v3895
        %v4916 = vsel %vm1565, %v4868, %v3900
        %v4919 = vsel %vm1565, %v4869, %v3905
        %v4922 = vsel %vm1565, %v4870, %v3910
        %v4925 = vsel %vm1565, %v4871, %v3915
        %v4928 = vsel %vm1565, %v4872, %v3920
        %v4931 = vsel %vm1565, %v4873, %v3925
        %v4934 = vsel %vm1565, %v4874, %v3930
        %v4937 = vsel %vm1565, %v4875, %v3935
        %v4940 = vsel %vm1565, %v4876, %v3940
        %v4943 = vsel %vm1565, %v4877, %v3945
        %v4946 = vsel %vm1565, %v4878, %v3950
        %v4949 = vsel %vm1565, %v4879, %v3955
        %v4952 = vsel %vm1565, %v4880, %v3960
        %v4955 = vsel %vm1565, %v4881, %v3965
        %v4958 = vsel %vm1565, %v4882, %v3970
        %v4961 = vsel %vm1565, %v4883, %v3975
        %v4964 = vsel %vm1565, %v4884, %v3980
        %v4967 = vsel %vm1565, %v4885, %v3985
        %v4970 = vsel %vm1565, %v4886, %v3990
        %v4972 = vshrl.u32 %v4831, 16
        %v4974 = vshll.u32 %v4831, 16
        %v4976 = vrot.slane %v4974, 1
        %v4977 = vor.u32 %v4972, %v4976
        %v4978 = vshll.u32 %v4889, 16
        %v4980 = vrot.slane %v4978, 1
        %v4981 = vsel %vm1650, %v4977, %v4980
        %v4982 = vshrl.u32 %v4889, 16
        %v4984 = vor.u32 %v4982, %v4980
        %v4985 = vsel %vm1650, %v4984, %v4976
        %v4987 = vshll.u32 %v4832, 16
        %v4989 = vrot.slane %v4987, 1
        %v4990 = vsel %vm1650, %v4984, %v4989
        %v4991 = vshrl.u32 %v4832, 16
        %v4993 = vor.u32 %v4991, %v4989
        %v4994 = vshll.u32 %v4892, 16
        %v4996 = vrot.slane %v4994, 1
        %v4997 = vsel %vm1650, %v4993, %v4996
        %v4998 = vshrl.u32 %v4892, 16
        %v5000 = vor.u32 %v4998, %v4996
        %v5002 = vshll.u32 %v4833, 16
        %v5004 = vrot.slane %v5002, 1
        %v5005 = vsel %vm1650, %v5000, %v5004
        %v5006 = vshrl.u32 %v4833, 16
        %v5008 = vor.u32 %v5006, %v5004
        %v5009 = vshll.u32 %v4895, 16
        %v5011 = vrot.slane %v5009, 1
        %v5012 = vsel %vm1650, %v5008, %v5011
        %v5013 = vshrl.u32 %v4895, 16
        %v5015 = vor.u32 %v5013, %v5011
        %v5017 = vshll.u32 %v4834, 16
        %v5019 = vrot.slane %v5017, 1
        %v5020 = vsel %vm1650, %v5015, %v5019
        %v5021 = vshrl.u32 %v4834, 16
        %v5023 = vor.u32 %v5021, %v5019
        %v5024 = vshll.u32 %v4898, 16
        %v5026 = vrot.slane %v5024, 1
        %v5027 = vsel %vm1650, %v5023, %v5026
        %v5028 = vshrl.u32 %v4898, 16
        %v5030 = vor.u32 %v5028, %v5026
        %v5032 = vshll.u32 %v4835, 16
        %v5034 = vrot.slane %v5032, 1
        %v5035 = vsel %vm1650, %v5030, %v5034
        %v5036 = vshrl.u32 %v4835, 16
        %v5038 = vor.u32 %v5036, %v5034
        %v5039 = vshll.u32 %v4901, 16
        %v5041 = vrot.slane %v5039, 1
        %v5042 = vsel %vm1650, %v5038, %v5041
        %v5043 = vshrl.u32 %v4901, 16
        %v5045 = vor.u32 %v5043, %v5041
        %v5047 = vshll.u32 %v4836, 16
        %v5049 = vrot.slane %v5047, 1
        %v5050 = vsel %vm1650, %v5045, %v5049
        %v5051 = vshrl.u32 %v4836, 16
        %v5053 = vor.u32 %v5051, %v5049
        %v5054 = vshll.u32 %v4904, 16
        %v5056 = vrot.slane %v5054, 1
        %v5057 = vsel %vm1650, %v5053, %v5056
        %v5058 = vshrl.u32 %v4904, 16
        %v5060 = vor.u32 %v5058, %v5056
        %v5062 = vshll.u32 %v4837, 16
        %v5064 = vrot.slane %v5062, 1
        %v5065 = vsel %vm1650, %v5060, %v5064
        %v5066 = vshrl.u32 %v4837, 16
        %v5068 = vor.u32 %v5066, %v5064
        %v5069 = vshll.u32 %v4907, 16
        %v5071 = vrot.slane %v5069, 1
        %v5072 = vsel %vm1650, %v5068, %v5071
        %v5073 = vshrl.u32 %v4907, 16
        %v5075 = vor.u32 %v5073, %v5071
        %v5077 = vshll.u32 %v4838, 16
        %v5079 = vrot.slane %v5077, 1
        %v5080 = vsel %vm1650, %v5075, %v5079
        %v5081 = vshrl.u32 %v4838, 16
        %v5083 = vor.u32 %v5081, %v5079
        %v5084 = vshll.u32 %v4910, 16
        %v5086 = vrot.slane %v5084, 1
        %v5087 = vsel %vm1650, %v5083, %v5086
        %v5088 = vshrl.u32 %v4910, 16
        %v5090 = vor.u32 %v5088, %v5086
        %v5092 = vshll.u32 %v4839, 16
        %v5094 = vrot.slane %v5092, 1
        %v5095 = vsel %vm1650, %v5090, %v5094
        %v5096 = vshrl.u32 %v4839, 16
        %v5098 = vor.u32 %v5096, %v5094
        %v5099 = vshll.u32 %v4913, 16
        %v5101 = vrot.slane %v5099, 1
        %v5102 = vsel %vm1650, %v5098, %v5101
        %v5103 = vshrl.u32 %v4913, 16
        %v5105 = vor.u32 %v5103, %v5101
        %v5107 = vshll.u32 %v4840, 16
        %v5109 = vrot.slane %v5107, 1
        %v5110 = vsel %vm1650, %v5105, %v5109
        %v5111 = vshrl.u32 %v4840, 16
        %v5113 = vor.u32 %v5111, %v5109
        %v5114 = vshll.u32 %v4916, 16
        %v5116 = vrot.slane %v5114, 1
        %v5117 = vsel %vm1650, %v5113, %v5116
        %v5118 = vshrl.u32 %v4916, 16
        %v5120 = vor.u32 %v5118, %v5116
        %v5122 = vshll.u32 %v4841, 16
        %v5124 = vrot.slane %v5122, 1
        %v5125 = vsel %vm1650, %v5120, %v5124
        %v5126 = vshrl.u32 %v4841, 16
        %v5128 = vor.u32 %v5126, %v5124
        %v5129 = vshll.u32 %v4919, 16
        %v5131 = vrot.slane %v5129, 1
        %v5132 = vsel %vm1650, %v5128, %v5131
        %v5133 = vshrl.u32 %v4919, 16
        %v5135 = vor.u32 %v5133, %v5131
        %v5137 = vshll.u32 %v4842, 16
        %v5139 = vrot.slane %v5137, 1
        %v5140 = vsel %vm1650, %v5135, %v5139
        %v5141 = vshrl.u32 %v4842, 16
        %v5143 = vor.u32 %v5141, %v5139
        %v5144 = vshll.u32 %v4922, 16
        %v5146 = vrot.slane %v5144, 1
        %v5147 = vsel %vm1650, %v5143, %v5146
        %v5148 = vshrl.u32 %v4922, 16
        %v5150 = vor.u32 %v5148, %v5146
        %v5152 = vshll.u32 %v4843, 16
        %v5154 = vrot.slane %v5152, 1
        %v5155 = vsel %vm1650, %v5150, %v5154
        %v5156 = vshrl.u32 %v4843, 16
        %v5158 = vor.u32 %v5156, %v5154
        %v5159 = vshll.u32 %v4925, 16
        %v5161 = vrot.slane %v5159, 1
        %v5162 = vsel %vm1650, %v5158, %v5161
        %v5163 = vshrl.u32 %v4925, 16
        %v5165 = vor.u32 %v5163, %v5161
        %v5167 = vshll.u32 %v4844, 16
        %v5169 = vrot.slane %v5167, 1
        %v5170 = vsel %vm1650, %v5165, %v5169
        %v5171 = vshrl.u32 %v4844, 16
        %v5173 = vor.u32 %v5171, %v5169
        %v5174 = vshll.u32 %v4928, 16
        %v5176 = vrot.slane %v5174, 1
        %v5177 = vsel %vm1650, %v5173, %v5176
        %v5178 = vshrl.u32 %v4928, 16
        %v5180 = vor.u32 %v5178, %v5176
        %v5182 = vshll.u32 %v4845, 16
        %v5184 = vrot.slane %v5182, 1
        %v5185 = vsel %vm1650, %v5180, %v5184
        %v5186 = vshrl.u32 %v4845, 16
        %v5188 = vor.u32 %v5186, %v5184
        %v5189 = vshll.u32 %v4931, 16
        %v5191 = vrot.slane %v5189, 1
        %v5192 = vsel %vm1650, %v5188, %v5191
        %v5193 = vshrl.u32 %v4931, 16
        %v5195 = vor.u32 %v5193, %v5191
        %v5197 = vshll.u32 %v4846, 16
        %v5199 = vrot.slane %v5197, 1
        %v5200 = vsel %vm1650, %v5195, %v5199
        %v5201 = vshrl.u32 %v4846, 16
        %v5203 = vor.u32 %v5201, %v5199
        %v5204 = vshll.u32 %v4934, 16
        %v5206 = vrot.slane %v5204, 1
        %v5207 = vsel %vm1650, %v5203, %v5206
        %v5208 = vshrl.u32 %v4934, 16
        %v5210 = vor.u32 %v5208, %v5206
        %v5212 = vshll.u32 %v4847, 16
        %v5214 = vrot.slane %v5212, 1
        %v5215 = vsel %vm1650, %v5210, %v5214
        %v5216 = vshrl.u32 %v4847, 16
        %v5218 = vor.u32 %v5216, %v5214
        %v5219 = vshll.u32 %v4937, 16
        %v5221 = vrot.slane %v5219, 1
        %v5222 = vsel %vm1650, %v5218, %v5221
        %v5223 = vshrl.u32 %v4937, 16
        %v5225 = vor.u32 %v5223, %v5221
        %v5227 = vshll.u32 %v4848, 16
        %v5229 = vrot.slane %v5227, 1
        %v5230 = vsel %vm1650, %v5225, %v5229
        %v5231 = vshrl.u32 %v4848, 16
        %v5233 = vor.u32 %v5231, %v5229
        %v5234 = vshll.u32 %v4940, 16
        %v5236 = vrot.slane %v5234, 1
        %v5237 = vsel %vm1650, %v5233, %v5236
        %v5238 = vshrl.u32 %v4940, 16
        %v5240 = vor.u32 %v5238, %v5236
        %v5242 = vshll.u32 %v4849, 16
        %v5244 = vrot.slane %v5242, 1
        %v5245 = vsel %vm1650, %v5240, %v5244
        %v5246 = vshrl.u32 %v4849, 16
        %v5248 = vor.u32 %v5246, %v5244
        %v5249 = vshll.u32 %v4943, 16
        %v5251 = vrot.slane %v5249, 1
        %v5252 = vsel %vm1650, %v5248, %v5251
        %v5253 = vshrl.u32 %v4943, 16
        %v5255 = vor.u32 %v5253, %v5251
        %v5257 = vshll.u32 %v4850, 16
        %v5259 = vrot.slane %v5257, 1
        %v5260 = vsel %vm1650, %v5255, %v5259
        %v5261 = vshrl.u32 %v4850, 16
        %v5263 = vor.u32 %v5261, %v5259
        %v5264 = vshll.u32 %v4946, 16
        %v5266 = vrot.slane %v5264, 1
        %v5267 = vsel %vm1650, %v5263, %v5266
        %v5268 = vshrl.u32 %v4946, 16
        %v5270 = vor.u32 %v5268, %v5266
        %v5272 = vshll.u32 %v4851, 16
        %v5274 = vrot.slane %v5272, 1
        %v5275 = vsel %vm1650, %v5270, %v5274
        %v5276 = vshrl.u32 %v4851, 16
        %v5278 = vor.u32 %v5276, %v5274
        %v5279 = vshll.u32 %v4949, 16
        %v5281 = vrot.slane %v5279, 1
        %v5282 = vsel %vm1650, %v5278, %v5281
        %v5283 = vshrl.u32 %v4949, 16
        %v5285 = vor.u32 %v5283, %v5281
        %v5287 = vshll.u32 %v4852, 16
        %v5289 = vrot.slane %v5287, 1
        %v5290 = vsel %vm1650, %v5285, %v5289
        %v5291 = vshrl.u32 %v4852, 16
        %v5293 = vor.u32 %v5291, %v5289
        %v5294 = vshll.u32 %v4952, 16
        %v5296 = vrot.slane %v5294, 1
        %v5297 = vsel %vm1650, %v5293, %v5296
        %v5298 = vshrl.u32 %v4952, 16
        %v5300 = vor.u32 %v5298, %v5296
        %v5302 = vshll.u32 %v4853, 16
        %v5304 = vrot.slane %v5302, 1
        %v5305 = vsel %vm1650, %v5300, %v5304
        %v5306 = vshrl.u32 %v4853, 16
        %v5308 = vor.u32 %v5306, %v5304
        %v5309 = vshll.u32 %v4955, 16
        %v5311 = vrot.slane %v5309, 1
        %v5312 = vsel %vm1650, %v5308, %v5311
        %v5313 = vshrl.u32 %v4955, 16
        %v5315 = vor.u32 %v5313, %v5311
        %v5317 = vshll.u32 %v4854, 16
        %v5319 = vrot.slane %v5317, 1
        %v5320 = vsel %vm1650, %v5315, %v5319
        %v5321 = vshrl.u32 %v4854, 16
        %v5323 = vor.u32 %v5321, %v5319
        %v5324 = vshll.u32 %v4958, 16
        %v5326 = vrot.slane %v5324, 1
        %v5327 = vsel %vm1650, %v5323, %v5326
        %v5328 = vshrl.u32 %v4958, 16
        %v5330 = vor.u32 %v5328, %v5326
        %v5332 = vshll.u32 %v4855, 16
        %v5334 = vrot.slane %v5332, 1
        %v5335 = vsel %vm1650, %v5330, %v5334
        %v5336 = vshrl.u32 %v4855, 16
        %v5338 = vor.u32 %v5336, %v5334
        %v5339 = vshll.u32 %v4961, 16
        %v5341 = vrot.slane %v5339, 1
        %v5342 = vsel %vm1650, %v5338, %v5341
        %v5343 = vshrl.u32 %v4961, 16
        %v5345 = vor.u32 %v5343, %v5341
        %v5347 = vshll.u32 %v4856, 16
        %v5349 = vrot.slane %v5347, 1
        %v5350 = vsel %vm1650, %v5345, %v5349
        %v5351 = vshrl.u32 %v4856, 16
        %v5353 = vor.u32 %v5351, %v5349
        %v5354 = vshll.u32 %v4964, 16
        %v5356 = vrot.slane %v5354, 1
        %v5357 = vsel %vm1650, %v5353, %v5356
        %v5358 = vshrl.u32 %v4964, 16
        %v5360 = vor.u32 %v5358, %v5356
        %v5362 = vshll.u32 %v4857, 16
        %v5364 = vrot.slane %v5362, 1
        %v5365 = vsel %vm1650, %v5360, %v5364
        %v5366 = vshrl.u32 %v4857, 16
        %v5368 = vor.u32 %v5366, %v5364
        %v5369 = vshll.u32 %v4967, 16
        %v5371 = vrot.slane %v5369, 1
        %v5372 = vsel %vm1650, %v5368, %v5371
        %v5373 = vshrl.u32 %v4967, 16
        %v5375 = vor.u32 %v5373, %v5371
        %v5377 = vshll.u32 %v4858, 16
        %v5379 = vrot.slane %v5377, 1
        %v5380 = vsel %vm1650, %v5375, %v5379
        %v5381 = vshrl.u32 %v4858, 16
        %v5383 = vor.u32 %v5381, %v5379
        %v5384 = vshll.u32 %v4970, 16
        %v5386 = vrot.slane %v5384, 1
        %v5387 = vsel %vm1650, %v5383, %v5386
        %v5388 = vshrl.u32 %v4970, 16
        %v5390 = vor.u32 %v5388, %v5386
        %v5391 = vsel %vm1650, %v5390, %v5379
        %5392 = vrot.lane.b32.xlu0 %v4981, 16
        %v5393 = vpop.permute.xlu0 %5392
        %5394 = vrot.lane.b32.xlu0 %v4985, 16
        %v5395 = vpop.permute.xlu0 %5394
        %5396 = vrot.lane.b32.xlu0 %v4990, 16
        %v5397 = vpop.permute.xlu0 %5396
        %5398 = vrot.lane.b32.xlu0 %v4997, 16
        %v5399 = vpop.permute.xlu0 %5398
        %5400 = vrot.lane.b32.xlu0 %v5005, 16
        %v5401 = vpop.permute.xlu0 %5400
        %5402 = vrot.lane.b32.xlu0 %v5012, 16
        %v5403 = vpop.permute.xlu0 %5402
        %5404 = vrot.lane.b32.xlu0 %v5020, 16
        %v5405 = vpop.permute.xlu0 %5404
        %5406 = vrot.lane.b32.xlu0 %v5027, 16
        %v5407 = vpop.permute.xlu0 %5406
        %5408 = vrot.lane.b32.xlu0 %v5035, 16
        %v5409 = vpop.permute.xlu0 %5408
        %5410 = vrot.lane.b32.xlu0 %v5042, 16
        %v5411 = vpop.permute.xlu0 %5410
        %5412 = vrot.lane.b32.xlu0 %v5050, 16
        %v5413 = vpop.permute.xlu0 %5412
        %5414 = vrot.lane.b32.xlu0 %v5057, 16
        %v5415 = vpop.permute.xlu0 %5414
        %5416 = vrot.lane.b32.xlu0 %v5065, 16
        %v5417 = vpop.permute.xlu0 %5416
        %5418 = vrot.lane.b32.xlu0 %v5072, 16
        %v5419 = vpop.permute.xlu0 %5418
        %5420 = vrot.lane.b32.xlu0 %v5080, 16
        %v5421 = vpop.permute.xlu0 %5420
        %5422 = vrot.lane.b32.xlu0 %v5087, 16
        %v5423 = vpop.permute.xlu0 %5422
        %5424 = vrot.lane.b32.xlu0 %v5095, 16
        %v5425 = vpop.permute.xlu0 %5424
        %5426 = vrot.lane.b32.xlu0 %v5102, 16
        %v5427 = vpop.permute.xlu0 %5426
        %5428 = vrot.lane.b32.xlu0 %v5110, 16
        %v5429 = vpop.permute.xlu0 %5428
        %5430 = vrot.lane.b32.xlu0 %v5117, 16
        %v5431 = vpop.permute.xlu0 %5430
        %5432 = vrot.lane.b32.xlu0 %v5125, 16
        %v5433 = vpop.permute.xlu0 %5432
        %5434 = vrot.lane.b32.xlu0 %v5132, 16
        %v5435 = vpop.permute.xlu0 %5434
        %5436 = vrot.lane.b32.xlu0 %v5140, 16
        %v5437 = vpop.permute.xlu0 %5436
        %5438 = vrot.lane.b32.xlu0 %v5147, 16
        %v5439 = vpop.permute.xlu0 %5438
        %5440 = vrot.lane.b32.xlu0 %v5155, 16
        %v5441 = vpop.permute.xlu0 %5440
        %5442 = vrot.lane.b32.xlu0 %v5162, 16
        %v5443 = vpop.permute.xlu0 %5442
        %5444 = vrot.lane.b32.xlu0 %v5170, 16
        %v5445 = vpop.permute.xlu0 %5444
        %5446 = vrot.lane.b32.xlu0 %v5177, 16
        %v5447 = vpop.permute.xlu0 %5446
        %5448 = vrot.lane.b32.xlu0 %v5185, 16
        %v5449 = vpop.permute.xlu0 %5448
        %5450 = vrot.lane.b32.xlu0 %v5192, 16
        %v5451 = vpop.permute.xlu0 %5450
        %5452 = vrot.lane.b32.xlu0 %v5200, 16
        %v5453 = vpop.permute.xlu0 %5452
        %5454 = vrot.lane.b32.xlu0 %v5207, 16
        %v5455 = vpop.permute.xlu0 %5454
        %5456 = vrot.lane.b32.xlu0 %v5215, 16
        %v5457 = vpop.permute.xlu0 %5456
        %5458 = vrot.lane.b32.xlu0 %v5222, 16
        %v5459 = vpop.permute.xlu0 %5458
        %5460 = vrot.lane.b32.xlu0 %v5230, 16
        %v5461 = vpop.permute.xlu0 %5460
        %5462 = vrot.lane.b32.xlu0 %v5237, 16
        %v5463 = vpop.permute.xlu0 %5462
        %5464 = vrot.lane.b32.xlu0 %v5245, 16
        %v5465 = vpop.permute.xlu0 %5464
        %5466 = vrot.lane.b32.xlu0 %v5252, 16
        %v5467 = vpop.permute.xlu0 %5466
        %5468 = vrot.lane.b32.xlu0 %v5260, 16
        %v5469 = vpop.permute.xlu0 %5468
        %5470 = vrot.lane.b32.xlu0 %v5267, 16
        %v5471 = vpop.permute.xlu0 %5470
        %5472 = vrot.lane.b32.xlu0 %v5275, 16
        %v5473 = vpop.permute.xlu0 %5472
        %5474 = vrot.lane.b32.xlu0 %v5282, 16
        %v5475 = vpop.permute.xlu0 %5474
        %5476 = vrot.lane.b32.xlu0 %v5290, 16
        %v5477 = vpop.permute.xlu0 %5476
        %5478 = vrot.lane.b32.xlu0 %v5297, 16
        %v5479 = vpop.permute.xlu0 %5478
        %5480 = vrot.lane.b32.xlu0 %v5305, 16
        %v5481 = vpop.permute.xlu0 %5480
        %5482 = vrot.lane.b32.xlu0 %v5312, 16
        %v5483 = vpop.permute.xlu0 %5482
        %5484 = vrot.lane.b32.xlu0 %v5320, 16
        %v5485 = vpop.permute.xlu0 %5484
        %5486 = vrot.lane.b32.xlu0 %v5327, 16
        %v5487 = vpop.permute.xlu0 %5486
        %5488 = vrot.lane.b32.xlu0 %v5335, 16
        %v5489 = vpop.permute.xlu0 %5488
        %5490 = vrot.lane.b32.xlu0 %v5342, 16
        %v5491 = vpop.permute.xlu0 %5490
        %5492 = vrot.lane.b32.xlu0 %v5350, 16
        %v5493 = vpop.permute.xlu0 %5492
        %5494 = vrot.lane.b32.xlu0 %v5357, 16
        %v5495 = vpop.permute.xlu0 %5494
        %5496 = vrot.lane.b32.xlu0 %v5365, 16
        %v5497 = vpop.permute.xlu0 %5496
        %5498 = vrot.lane.b32.xlu0 %v5372, 16
        %v5499 = vpop.permute.xlu0 %5498
        %5500 = vrot.lane.b32.xlu0 %v5380, 16
        %v5501 = vpop.permute.xlu0 %5500
        %5502 = vrot.lane.b32.xlu0 %v5387, 16
        %v5503 = vpop.permute.xlu0 %5502
        %5504 = vrot.lane.b32.xlu0 %v5391, 16
        %v5505 = vpop.permute.xlu0 %5504
        %v5562 = vrot.slane %v4831, 1
        %v5563 = vrot.slane %v4889, 1
        %v5564 = vsel %vm1534, %v5562, %v5563
        %v5565 = vsel %vm1534, %v5563, %v5562
        %v5566 = vrot.slane %v4832, 1
        %v5567 = vsel %vm1534, %v5563, %v5566
        %v5568 = vrot.slane %v4892, 1
        %v5569 = vsel %vm1534, %v5566, %v5568
        %v5570 = vrot.slane %v4833, 1
        %v5571 = vsel %vm1534, %v5568, %v5570
        %v5572 = vrot.slane %v4895, 1
        %v5573 = vsel %vm1534, %v5570, %v5572
        %v5574 = vrot.slane %v4834, 1
        %v5575 = vsel %vm1534, %v5572, %v5574
        %v5576 = vrot.slane %v4898, 1
        %v5577 = vsel %vm1534, %v5574, %v5576
        %v5578 = vrot.slane %v4835, 1
        %v5579 = vsel %vm1534, %v5576, %v5578
        %v5580 = vrot.slane %v4901, 1
        %v5581 = vsel %vm1534, %v5578, %v5580
        %v5582 = vrot.slane %v4836, 1
        %v5583 = vsel %vm1534, %v5580, %v5582
        %v5584 = vrot.slane %v4904, 1
        %v5585 = vsel %vm1534, %v5582, %v5584
        %v5586 = vrot.slane %v4837, 1
        %v5587 = vsel %vm1534, %v5584, %v5586
        %v5588 = vrot.slane %v4907, 1
        %v5589 = vsel %vm1534, %v5586, %v5588
        %v5590 = vrot.slane %v4838, 1
        %v5591 = vsel %vm1534, %v5588, %v5590
        %v5592 = vrot.slane %v4910, 1
        %v5593 = vsel %vm1534, %v5590, %v5592
        %v5594 = vrot.slane %v4839, 1
        %v5595 = vsel %vm1534, %v5592, %v5594
        %v5596 = vrot.slane %v4913, 1
        %v5597 = vsel %vm1534, %v5594, %v5596
        %v5598 = vrot.slane %v4840, 1
        %v5599 = vsel %vm1534, %v5596, %v5598
        %v5600 = vrot.slane %v4916, 1
        %v5601 = vsel %vm1534, %v5598, %v5600
        %v5602 = vrot.slane %v4841, 1
        %v5603 = vsel %vm1534, %v5600, %v5602
        %v5604 = vrot.slane %v4919, 1
        %v5605 = vsel %vm1534, %v5602, %v5604
        %v5606 = vrot.slane %v4842, 1
        %v5607 = vsel %vm1534, %v5604, %v5606
        %v5608 = vrot.slane %v4922, 1
        %v5609 = vsel %vm1534, %v5606, %v5608
        %v5610 = vrot.slane %v4843, 1
        %v5611 = vsel %vm1534, %v5608, %v5610
        %v5612 = vrot.slane %v4925, 1
        %v5613 = vsel %vm1534, %v5610, %v5612
        %v5614 = vrot.slane %v4844, 1
        %v5615 = vsel %vm1534, %v5612, %v5614
        %v5616 = vrot.slane %v4928, 1
        %v5617 = vsel %vm1534, %v5614, %v5616
        %v5618 = vrot.slane %v4845, 1
        %v5619 = vsel %vm1534, %v5616, %v5618
        %v5620 = vrot.slane %v4931, 1
        %v5621 = vsel %vm1534, %v5618, %v5620
        %v5622 = vrot.slane %v4846, 1
        %v5623 = vsel %vm1534, %v5620, %v5622
        %v5624 = vrot.slane %v4934, 1
        %v5625 = vsel %vm1534, %v5622, %v5624
        %v5626 = vrot.slane %v4847, 1
        %v5627 = vsel %vm1534, %v5624, %v5626
        %v5628 = vrot.slane %v4937, 1
        %v5629 = vsel %vm1534, %v5626, %v5628
        %v5630 = vrot.slane %v4848, 1
        %v5631 = vsel %vm1534, %v5628, %v5630
        %v5632 = vrot.slane %v4940, 1
        %v5633 = vsel %vm1534, %v5630, %v5632
        %v5634 = vrot.slane %v4849, 1
        %v5635 = vsel %vm1534, %v5632, %v5634
        %v5636 = vrot.slane %v4943, 1
        %v5637 = vsel %vm1534, %v5634, %v5636
        %v5638 = vrot.slane %v4850, 1
        %v5639 = vsel %vm1534, %v5636, %v5638
        %v5640 = vrot.slane %v4946, 1
        %v5641 = vsel %vm1534, %v5638, %v5640
        %v5642 = vrot.slane %v4851, 1
        %v5643 = vsel %vm1534, %v5640, %v5642
        %v5644 = vrot.slane %v4949, 1
        %v5645 = vsel %vm1534, %v5642, %v5644
        %v5646 = vrot.slane %v4852, 1
        %v5647 = vsel %vm1534, %v5644, %v5646
        %v5648 = vrot.slane %v4952, 1
        %v5649 = vsel %vm1534, %v5646, %v5648
        %v5650 = vrot.slane %v4853, 1
        %v5651 = vsel %vm1534, %v5648, %v5650
        %v5652 = vrot.slane %v4955, 1
        %v5653 = vsel %vm1534, %v5650, %v5652
        %v5654 = vrot.slane %v4854, 1
        %v5655 = vsel %vm1534, %v5652, %v5654
        %v5656 = vrot.slane %v4958, 1
        %v5657 = vsel %vm1534, %v5654, %v5656
        %v5658 = vrot.slane %v4855, 1
        %v5659 = vsel %vm1534, %v5656, %v5658
        %v5660 = vrot.slane %v4961, 1
        %v5661 = vsel %vm1534, %v5658, %v5660
        %v5662 = vrot.slane %v4856, 1
        %v5663 = vsel %vm1534, %v5660, %v5662
        %v5664 = vrot.slane %v4964, 1
        %v5665 = vsel %vm1534, %v5662, %v5664
        %v5666 = vrot.slane %v4857, 1
        %v5667 = vsel %vm1534, %v5664, %v5666
        %v5668 = vrot.slane %v4967, 1
        %v5669 = vsel %vm1534, %v5666, %v5668
        %v5670 = vrot.slane %v4858, 1
        %v5671 = vsel %vm1534, %v5668, %v5670
        %v5672 = vrot.slane %v4970, 1
        %v5673 = vsel %vm1534, %v5670, %v5672
        %v5674 = vsel %vm1534, %v5672, %v5670
        %5675 = vrot.lane.b32.xlu0 %v5564, 32
        %v5676 = vpop.permute.xlu0 %5675
        %5677 = vrot.lane.b32.xlu0 %v5565, 32
        %v5678 = vpop.permute.xlu0 %5677
        %5679 = vrot.lane.b32.xlu0 %v5567, 32
        %v5680 = vpop.permute.xlu0 %5679
        %5681 = vrot.lane.b32.xlu0 %v5569, 32
        %v5682 = vpop.permute.xlu0 %5681
        %5683 = vrot.lane.b32.xlu0 %v5571, 32
        %v5684 = vpop.permute.xlu0 %5683
        %5685 = vrot.lane.b32.xlu0 %v5573, 32
        %v5686 = vpop.permute.xlu0 %5685
        %5687 = vrot.lane.b32.xlu0 %v5575, 32
        %v5688 = vpop.permute.xlu0 %5687
        %5689 = vrot.lane.b32.xlu0 %v5577, 32
        %v5690 = vpop.permute.xlu0 %5689
        %5691 = vrot.lane.b32.xlu0 %v5579, 32
        %v5692 = vpop.permute.xlu0 %5691
        %5693 = vrot.lane.b32.xlu0 %v5581, 32
        %v5694 = vpop.permute.xlu0 %5693
        %5695 = vrot.lane.b32.xlu0 %v5583, 32
        %v5696 = vpop.permute.xlu0 %5695
        %5697 = vrot.lane.b32.xlu0 %v5585, 32
        %v5698 = vpop.permute.xlu0 %5697
        %5699 = vrot.lane.b32.xlu0 %v5587, 32
        %v5700 = vpop.permute.xlu0 %5699
        %5701 = vrot.lane.b32.xlu0 %v5589, 32
        %v5702 = vpop.permute.xlu0 %5701
        %5703 = vrot.lane.b32.xlu0 %v5591, 32
        %v5704 = vpop.permute.xlu0 %5703
        %5705 = vrot.lane.b32.xlu0 %v5593, 32
        %v5706 = vpop.permute.xlu0 %5705
        %5707 = vrot.lane.b32.xlu0 %v5595, 32
        %v5708 = vpop.permute.xlu0 %5707
        %5709 = vrot.lane.b32.xlu0 %v5597, 32
        %v5710 = vpop.permute.xlu0 %5709
        %5711 = vrot.lane.b32.xlu0 %v5599, 32
        %v5712 = vpop.permute.xlu0 %5711
        %5713 = vrot.lane.b32.xlu0 %v5601, 32
        %v5714 = vpop.permute.xlu0 %5713
        %5715 = vrot.lane.b32.xlu0 %v5603, 32
        %v5716 = vpop.permute.xlu0 %5715
        %5717 = vrot.lane.b32.xlu0 %v5605, 32
        %v5718 = vpop.permute.xlu0 %5717
        %5719 = vrot.lane.b32.xlu0 %v5607, 32
        %v5720 = vpop.permute.xlu0 %5719
        %5721 = vrot.lane.b32.xlu0 %v5609, 32
        %v5722 = vpop.permute.xlu0 %5721
        %5723 = vrot.lane.b32.xlu0 %v5611, 32
        %v5724 = vpop.permute.xlu0 %5723
        %5725 = vrot.lane.b32.xlu0 %v5613, 32
        %v5726 = vpop.permute.xlu0 %5725
        %5727 = vrot.lane.b32.xlu0 %v5615, 32
        %v5728 = vpop.permute.xlu0 %5727
        %5729 = vrot.lane.b32.xlu0 %v5617, 32
        %v5730 = vpop.permute.xlu0 %5729
        %5731 = vrot.lane.b32.xlu0 %v5619, 32
        %v5732 = vpop.permute.xlu0 %5731
        %5733 = vrot.lane.b32.xlu0 %v5621, 32
        %v5734 = vpop.permute.xlu0 %5733
        %5735 = vrot.lane.b32.xlu0 %v5623, 32
        %v5736 = vpop.permute.xlu0 %5735
        %5737 = vrot.lane.b32.xlu0 %v5625, 32
        %v5738 = vpop.permute.xlu0 %5737
        %5739 = vrot.lane.b32.xlu0 %v5627, 32
        %v5740 = vpop.permute.xlu0 %5739
        %5741 = vrot.lane.b32.xlu0 %v5629, 32
        %v5742 = vpop.permute.xlu0 %5741
        %5743 = vrot.lane.b32.xlu0 %v5631, 32
        %v5744 = vpop.permute.xlu0 %5743
        %5745 = vrot.lane.b32.xlu0 %v5633, 32
        %v5746 = vpop.permute.xlu0 %5745
        %5747 = vrot.lane.b32.xlu0 %v5635, 32
        %v5748 = vpop.permute.xlu0 %5747
        %5749 = vrot.lane.b32.xlu0 %v5637, 32
        %v5750 = vpop.permute.xlu0 %5749
        %5751 = vrot.lane.b32.xlu0 %v5639, 32
        %v5752 = vpop.permute.xlu0 %5751
        %5753 = vrot.lane.b32.xlu0 %v5641, 32
        %v5754 = vpop.permute.xlu0 %5753
        %5755 = vrot.lane.b32.xlu0 %v5643, 32
        %v5756 = vpop.permute.xlu0 %5755
        %5757 = vrot.lane.b32.xlu0 %v5645, 32
        %v5758 = vpop.permute.xlu0 %5757
        %5759 = vrot.lane.b32.xlu0 %v5647, 32
        %v5760 = vpop.permute.xlu0 %5759
        %5761 = vrot.lane.b32.xlu0 %v5649, 32
        %v5762 = vpop.permute.xlu0 %5761
        %5763 = vrot.lane.b32.xlu0 %v5651, 32
        %v5764 = vpop.permute.xlu0 %5763
        %5765 = vrot.lane.b32.xlu0 %v5653, 32
        %v5766 = vpop.permute.xlu0 %5765
        %5767 = vrot.lane.b32.xlu0 %v5655, 32
        %v5768 = vpop.permute.xlu0 %5767
        %5769 = vrot.lane.b32.xlu0 %v5657, 32
        %v5770 = vpop.permute.xlu0 %5769
        %5771 = vrot.lane.b32.xlu0 %v5659, 32
        %v5772 = vpop.permute.xlu0 %5771
        %5773 = vrot.lane.b32.xlu0 %v5661, 32
        %v5774 = vpop.permute.xlu0 %5773
        %5775 = vrot.lane.b32.xlu0 %v5663, 32
        %v5776 = vpop.permute.xlu0 %5775
        %5777 = vrot.lane.b32.xlu0 %v5665, 32
        %v5778 = vpop.permute.xlu0 %5777
        %5779 = vrot.lane.b32.xlu0 %v5667, 32
        %v5780 = vpop.permute.xlu0 %5779
        %5781 = vrot.lane.b32.xlu0 %v5669, 32
        %v5782 = vpop.permute.xlu0 %5781
        %5783 = vrot.lane.b32.xlu0 %v5671, 32
        %v5784 = vpop.permute.xlu0 %5783
        %5785 = vrot.lane.b32.xlu0 %v5673, 32
        %v5786 = vpop.permute.xlu0 %5785
        %5787 = vrot.lane.b32.xlu0 %v5674, 32
        %v5788 = vpop.permute.xlu0 %5787
        %vm5789 = vcmask 130048
        %v5791 = vsel %vm5789, %v4831, %v5393
        %v5793 = vsel %vm5789, %v4889, %v5395
        %v5795 = vsel %vm5789, %v4889, %v5397
        %v5797 = vsel %vm5789, %v4832, %v5399
        %v5799 = vsel %vm5789, %v4892, %v5401
        %v5801 = vsel %vm5789, %v4833, %v5403
        %v5803 = vsel %vm5789, %v4895, %v5405
        %v5805 = vsel %vm5789, %v4834, %v5407
        %v5807 = vsel %vm5789, %v4898, %v5409
        %v5809 = vsel %vm5789, %v4835, %v5411
        %v5811 = vsel %vm5789, %v4901, %v5413
        %v5813 = vsel %vm5789, %v4836, %v5415
        %v5815 = vsel %vm5789, %v4904, %v5417
        %v5817 = vsel %vm5789, %v4837, %v5419
        %v5819 = vsel %vm5789, %v4907, %v5421
        %v5821 = vsel %vm5789, %v4838, %v5423
        %v5823 = vsel %vm5789, %v4910, %v5425
        %v5825 = vsel %vm5789, %v4839, %v5427
        %v5827 = vsel %vm5789, %v4913, %v5429
        %v5829 = vsel %vm5789, %v4840, %v5431
        %v5831 = vsel %vm5789, %v4916, %v5433
        %v5833 = vsel %vm5789, %v4841, %v5435
        %v5835 = vsel %vm5789, %v4919, %v5437
        %v5837 = vsel %vm5789, %v4842, %v5439
        %v5839 = vsel %vm5789, %v4922, %v5441
        %v5841 = vsel %vm5789, %v4843, %v5443
        %v5843 = vsel %vm5789, %v4925, %v5445
        %v5845 = vsel %vm5789, %v4844, %v5447
        %v5847 = vsel %vm5789, %v4928, %v5449
        %v5849 = vsel %vm5789, %v4845, %v5451
        %v5851 = vsel %vm5789, %v4931, %v5453
        %v5853 = vsel %vm5789, %v4846, %v5455
        %v5855 = vsel %vm5789, %v4934, %v5457
        %v5857 = vsel %vm5789, %v4847, %v5459
        %v5859 = vsel %vm5789, %v4937, %v5461
        %v5861 = vsel %vm5789, %v4848, %v5463
        %v5863 = vsel %vm5789, %v4940, %v5465
        %v5865 = vsel %vm5789, %v4849, %v5467
        %v5867 = vsel %vm5789, %v4943, %v5469
        %v5869 = vsel %vm5789, %v4850, %v5471
        %v5871 = vsel %vm5789, %v4946, %v5473
        %v5873 = vsel %vm5789, %v4851, %v5475
        %v5875 = vsel %vm5789, %v4949, %v5477
        %v5877 = vsel %vm5789, %v4852, %v5479
        %v5879 = vsel %vm5789, %v4952, %v5481
        %v5881 = vsel %vm5789, %v4853, %v5483
        %v5883 = vsel %vm5789, %v4955, %v5485
        %v5885 = vsel %vm5789, %v4854, %v5487
        %v5887 = vsel %vm5789, %v4958, %v5489
        %v5889 = vsel %vm5789, %v4855, %v5491
        %v5891 = vsel %vm5789, %v4961, %v5493
        %v5893 = vsel %vm5789, %v4856, %v5495
        %v5895 = vsel %vm5789, %v4964, %v5497
        %v5897 = vsel %vm5789, %v4857, %v5499
        %v5899 = vsel %vm5789, %v4967, %v5501
        %v5901 = vsel %vm5789, %v4858, %v5503
        %v5903 = vsel %vm5789, %v4970, %v5505
        %vm5904 = vcmask 261120
        %v5906 = vsel %vm5904, %v5791, %v5676
        %v5908 = vsel %vm5904, %v5793, %v5678
        %v5910 = vsel %vm5904, %v5795, %v5680
        %v5912 = vsel %vm5904, %v5797, %v5682
        %v5914 = vsel %vm5904, %v5799, %v5684
        %v5916 = vsel %vm5904, %v5801, %v5686
        %v5918 = vsel %vm5904, %v5803, %v5688
        %v5920 = vsel %vm5904, %v5805, %v5690
        %v5922 = vsel %vm5904, %v5807, %v5692
        %v5924 = vsel %vm5904, %v5809, %v5694
        %v5926 = vsel %vm5904, %v5811, %v5696
        %v5928 = vsel %vm5904, %v5813, %v5698
        %v5930 = vsel %vm5904, %v5815, %v5700
        %v5932 = vsel %vm5904, %v5817, %v5702
        %v5934 = vsel %vm5904, %v5819, %v5704
        %v5936 = vsel %vm5904, %v5821, %v5706
        %v5938 = vsel %vm5904, %v5823, %v5708
        %v5940 = vsel %vm5904, %v5825, %v5710
        %v5942 = vsel %vm5904, %v5827, %v5712
        %v5944 = vsel %vm5904, %v5829, %v5714
        %v5946 = vsel %vm5904, %v5831, %v5716
        %v5948 = vsel %vm5904, %v5833, %v5718
        %v5950 = vsel %vm5904, %v5835, %v5720
        %v5952 = vsel %vm5904, %v5837, %v5722
        %v5954 = vsel %vm5904, %v5839, %v5724
        %v5956 = vsel %vm5904, %v5841, %v5726
        %v5958 = vsel %vm5904, %v5843, %v5728
        %v5960 = vsel %vm5904, %v5845, %v5730
        %v5962 = vsel %vm5904, %v5847, %v5732
        %v5964 = vsel %vm5904, %v5849, %v5734
        %v5966 = vsel %vm5904, %v5851, %v5736
        %v5968 = vsel %vm5904, %v5853, %v5738
        %v5970 = vsel %vm5904, %v5855, %v5740
        %v5972 = vsel %vm5904, %v5857, %v5742
        %v5974 = vsel %vm5904, %v5859, %v5744
        %v5976 = vsel %vm5904, %v5861, %v5746
        %v5978 = vsel %vm5904, %v5863, %v5748
        %v5980 = vsel %vm5904, %v5865, %v5750
        %v5982 = vsel %vm5904, %v5867, %v5752
        %v5984 = vsel %vm5904, %v5869, %v5754
        %v5986 = vsel %vm5904, %v5871, %v5756
        %v5988 = vsel %vm5904, %v5873, %v5758
        %v5990 = vsel %vm5904, %v5875, %v5760
        %v5992 = vsel %vm5904, %v5877, %v5762
        %v5994 = vsel %vm5904, %v5879, %v5764
        %v5996 = vsel %vm5904, %v5881, %v5766
        %v5998 = vsel %vm5904, %v5883, %v5768
        %v6000 = vsel %vm5904, %v5885, %v5770
        %v6002 = vsel %vm5904, %v5887, %v5772
        %v6004 = vsel %vm5904, %v5889, %v5774
        %v6006 = vsel %vm5904, %v5891, %v5776
        %v6008 = vsel %vm5904, %v5893, %v5778
        %v6010 = vsel %vm5904, %v5895, %v5780
        %v6012 = vsel %vm5904, %v5897, %v5782
        %v6014 = vsel %vm5904, %v5899, %v5784
        %v6016 = vsel %vm5904, %v5901, %v5786
        %v6018 = vsel %vm5904, %v5903, %v5788
        %6075 = vrot.lane.b32.xlu0 %v5906, 48
        %v6076 = vpop.permute.xlu0 %6075
        %6077 = vrot.lane.b32.xlu0 %v5910, 48
        %v6078 = vpop.permute.xlu0 %6077
        %6079 = vrot.lane.b32.xlu0 %v5912, 48
        %v6080 = vpop.permute.xlu0 %6079
        %6081 = vrot.lane.b32.xlu0 %v5914, 48
        %v6082 = vpop.permute.xlu0 %6081
        %6083 = vrot.lane.b32.xlu0 %v5916, 48
        %v6084 = vpop.permute.xlu0 %6083
        %6085 = vrot.lane.b32.xlu0 %v5918, 48
        %v6086 = vpop.permute.xlu0 %6085
        %6087 = vrot.lane.b32.xlu0 %v5920, 48
        %v6088 = vpop.permute.xlu0 %6087
        %6089 = vrot.lane.b32.xlu0 %v5922, 48
        %v6090 = vpop.permute.xlu0 %6089
        %6091 = vrot.lane.b32.xlu0 %v5924, 48
        %v6092 = vpop.permute.xlu0 %6091
        %6093 = vrot.lane.b32.xlu0 %v5926, 48
        %v6094 = vpop.permute.xlu0 %6093
        %6095 = vrot.lane.b32.xlu0 %v5928, 48
        %v6096 = vpop.permute.xlu0 %6095
        %6097 = vrot.lane.b32.xlu0 %v5930, 48
        %v6098 = vpop.permute.xlu0 %6097
        %6099 = vrot.lane.b32.xlu0 %v5932, 48
        %v6100 = vpop.permute.xlu0 %6099
        %6101 = vrot.lane.b32.xlu0 %v5934, 48
        %v6102 = vpop.permute.xlu0 %6101
        %6103 = vrot.lane.b32.xlu0 %v5936, 48
        %v6104 = vpop.permute.xlu0 %6103
        %6105 = vrot.lane.b32.xlu0 %v5938, 48
        %v6106 = vpop.permute.xlu0 %6105
        %6107 = vrot.lane.b32.xlu0 %v5940, 48
        %v6108 = vpop.permute.xlu0 %6107
        %6109 = vrot.lane.b32.xlu0 %v5942, 48
        %v6110 = vpop.permute.xlu0 %6109
        %6111 = vrot.lane.b32.xlu0 %v5944, 48
        %v6112 = vpop.permute.xlu0 %6111
        %6113 = vrot.lane.b32.xlu0 %v5946, 48
        %v6114 = vpop.permute.xlu0 %6113
        %6115 = vrot.lane.b32.xlu0 %v5948, 48
        %v6116 = vpop.permute.xlu0 %6115
        %6117 = vrot.lane.b32.xlu0 %v5950, 48
        %v6118 = vpop.permute.xlu0 %6117
        %6119 = vrot.lane.b32.xlu0 %v5952, 48
        %v6120 = vpop.permute.xlu0 %6119
        %6121 = vrot.lane.b32.xlu0 %v5954, 48
        %v6122 = vpop.permute.xlu0 %6121
        %6123 = vrot.lane.b32.xlu0 %v5956, 48
        %v6124 = vpop.permute.xlu0 %6123
        %6125 = vrot.lane.b32.xlu0 %v5958, 48
        %v6126 = vpop.permute.xlu0 %6125
        %6127 = vrot.lane.b32.xlu0 %v5960, 48
        %v6128 = vpop.permute.xlu0 %6127
        %6129 = vrot.lane.b32.xlu0 %v5962, 48
        %v6130 = vpop.permute.xlu0 %6129
        %6131 = vrot.lane.b32.xlu0 %v5964, 48
        %v6132 = vpop.permute.xlu0 %6131
        %6133 = vrot.lane.b32.xlu0 %v5966, 48
        %v6134 = vpop.permute.xlu0 %6133
        %6135 = vrot.lane.b32.xlu0 %v5968, 48
        %v6136 = vpop.permute.xlu0 %6135
        %6137 = vrot.lane.b32.xlu0 %v5970, 48
        %v6138 = vpop.permute.xlu0 %6137
        %6139 = vrot.lane.b32.xlu0 %v5972, 48
        %v6140 = vpop.permute.xlu0 %6139
        %6141 = vrot.lane.b32.xlu0 %v5974, 48
        %v6142 = vpop.permute.xlu0 %6141
        %6143 = vrot.lane.b32.xlu0 %v5976, 48
        %v6144 = vpop.permute.xlu0 %6143
        %6145 = vrot.lane.b32.xlu0 %v5978, 48
        %v6146 = vpop.permute.xlu0 %6145
        %6147 = vrot.lane.b32.xlu0 %v5980, 48
        %v6148 = vpop.permute.xlu0 %6147
        %6149 = vrot.lane.b32.xlu0 %v5982, 48
        %v6150 = vpop.permute.xlu0 %6149
        %6151 = vrot.lane.b32.xlu0 %v5984, 48
        %v6152 = vpop.permute.xlu0 %6151
        %6153 = vrot.lane.b32.xlu0 %v5986, 48
        %v6154 = vpop.permute.xlu0 %6153
        %6155 = vrot.lane.b32.xlu0 %v5988, 48
        %v6156 = vpop.permute.xlu0 %6155
        %6157 = vrot.lane.b32.xlu0 %v5990, 48
        %v6158 = vpop.permute.xlu0 %6157
        %6159 = vrot.lane.b32.xlu0 %v5992, 48
        %v6160 = vpop.permute.xlu0 %6159
        %6161 = vrot.lane.b32.xlu0 %v5994, 48
        %v6162 = vpop.permute.xlu0 %6161
        %6163 = vrot.lane.b32.xlu0 %v5996, 48
        %v6164 = vpop.permute.xlu0 %6163
        %6165 = vrot.lane.b32.xlu0 %v5998, 48
        %v6166 = vpop.permute.xlu0 %6165
        %6167 = vrot.lane.b32.xlu0 %v6000, 48
        %v6168 = vpop.permute.xlu0 %6167
        %6169 = vrot.lane.b32.xlu0 %v6002, 48
        %v6170 = vpop.permute.xlu0 %6169
        %6171 = vrot.lane.b32.xlu0 %v6004, 48
        %v6172 = vpop.permute.xlu0 %6171
        %6173 = vrot.lane.b32.xlu0 %v6006, 48
        %v6174 = vpop.permute.xlu0 %6173
        %6175 = vrot.lane.b32.xlu0 %v6008, 48
        %v6176 = vpop.permute.xlu0 %6175
        %6177 = vrot.lane.b32.xlu0 %v6010, 48
        %v6178 = vpop.permute.xlu0 %6177
        %6179 = vrot.lane.b32.xlu0 %v6012, 48
        %v6180 = vpop.permute.xlu0 %6179
        %6181 = vrot.lane.b32.xlu0 %v6014, 48
        %v6182 = vpop.permute.xlu0 %6181
        %6183 = vrot.lane.b32.xlu0 %v6016, 48
        %v6184 = vpop.permute.xlu0 %6183
        %6185 = vrot.lane.b32.xlu0 %v6018, 48
        %v6186 = vpop.permute.xlu0 %6185
        %6187 = vrot.lane.b32.xlu0 %v5912, 96
        %v6188 = vpop.permute.xlu0 %6187
        %6189 = vrot.lane.b32.xlu0 %v5914, 96
        %v6190 = vpop.permute.xlu0 %6189
        %6191 = vrot.lane.b32.xlu0 %v5916, 96
        %v6192 = vpop.permute.xlu0 %6191
        %6193 = vrot.lane.b32.xlu0 %v5918, 96
        %v6194 = vpop.permute.xlu0 %6193
        %6195 = vrot.lane.b32.xlu0 %v5920, 96
        %v6196 = vpop.permute.xlu0 %6195
        %6197 = vrot.lane.b32.xlu0 %v5922, 96
        %v6198 = vpop.permute.xlu0 %6197
        %6199 = vrot.lane.b32.xlu0 %v5924, 96
        %v6200 = vpop.permute.xlu0 %6199
        %6201 = vrot.lane.b32.xlu0 %v5926, 96
        %v6202 = vpop.permute.xlu0 %6201
        %6203 = vrot.lane.b32.xlu0 %v5928, 96
        %v6204 = vpop.permute.xlu0 %6203
        %6205 = vrot.lane.b32.xlu0 %v5930, 96
        %v6206 = vpop.permute.xlu0 %6205
        %6207 = vrot.lane.b32.xlu0 %v5932, 96
        %v6208 = vpop.permute.xlu0 %6207
        %6209 = vrot.lane.b32.xlu0 %v5934, 96
        %v6210 = vpop.permute.xlu0 %6209
        %6211 = vrot.lane.b32.xlu0 %v5936, 96
        %v6212 = vpop.permute.xlu0 %6211
        %6213 = vrot.lane.b32.xlu0 %v5938, 96
        %v6214 = vpop.permute.xlu0 %6213
        %6215 = vrot.lane.b32.xlu0 %v5940, 96
        %v6216 = vpop.permute.xlu0 %6215
        %6217 = vrot.lane.b32.xlu0 %v5942, 96
        %v6218 = vpop.permute.xlu0 %6217
        %6219 = vrot.lane.b32.xlu0 %v5944, 96
        %v6220 = vpop.permute.xlu0 %6219
        %6221 = vrot.lane.b32.xlu0 %v5946, 96
        %v6222 = vpop.permute.xlu0 %6221
        %6223 = vrot.lane.b32.xlu0 %v5948, 96
        %v6224 = vpop.permute.xlu0 %6223
        %6225 = vrot.lane.b32.xlu0 %v5950, 96
        %v6226 = vpop.permute.xlu0 %6225
        %6227 = vrot.lane.b32.xlu0 %v5952, 96
        %v6228 = vpop.permute.xlu0 %6227
        %6229 = vrot.lane.b32.xlu0 %v5954, 96
        %v6230 = vpop.permute.xlu0 %6229
        %6231 = vrot.lane.b32.xlu0 %v5956, 96
        %v6232 = vpop.permute.xlu0 %6231
        %6233 = vrot.lane.b32.xlu0 %v5958, 96
        %v6234 = vpop.permute.xlu0 %6233
        %6235 = vrot.lane.b32.xlu0 %v5960, 96
        %v6236 = vpop.permute.xlu0 %6235
        %6237 = vrot.lane.b32.xlu0 %v5962, 96
        %v6238 = vpop.permute.xlu0 %6237
        %6239 = vrot.lane.b32.xlu0 %v5964, 96
        %v6240 = vpop.permute.xlu0 %6239
        %6241 = vrot.lane.b32.xlu0 %v5966, 96
        %v6242 = vpop.permute.xlu0 %6241
        %6243 = vrot.lane.b32.xlu0 %v5968, 96
        %v6244 = vpop.permute.xlu0 %6243
        %6245 = vrot.lane.b32.xlu0 %v5970, 96
        %v6246 = vpop.permute.xlu0 %6245
        %6247 = vrot.lane.b32.xlu0 %v5972, 96
        %v6248 = vpop.permute.xlu0 %6247
        %6249 = vrot.lane.b32.xlu0 %v5974, 96
        %v6250 = vpop.permute.xlu0 %6249
        %6251 = vrot.lane.b32.xlu0 %v5976, 96
        %v6252 = vpop.permute.xlu0 %6251
        %6253 = vrot.lane.b32.xlu0 %v5978, 96
        %v6254 = vpop.permute.xlu0 %6253
        %6255 = vrot.lane.b32.xlu0 %v5980, 96
        %v6256 = vpop.permute.xlu0 %6255
        %6257 = vrot.lane.b32.xlu0 %v5982, 96
        %v6258 = vpop.permute.xlu0 %6257
        %6259 = vrot.lane.b32.xlu0 %v5984, 96
        %v6260 = vpop.permute.xlu0 %6259
        %6261 = vrot.lane.b32.xlu0 %v5986, 96
        %v6262 = vpop.permute.xlu0 %6261
        %6263 = vrot.lane.b32.xlu0 %v5988, 96
        %v6264 = vpop.permute.xlu0 %6263
        %6265 = vrot.lane.b32.xlu0 %v5990, 96
        %v6266 = vpop.permute.xlu0 %6265
        %6267 = vrot.lane.b32.xlu0 %v5992, 96
        %v6268 = vpop.permute.xlu0 %6267
        %6269 = vrot.lane.b32.xlu0 %v5994, 96
        %v6270 = vpop.permute.xlu0 %6269
        %6271 = vrot.lane.b32.xlu0 %v5996, 96
        %v6272 = vpop.permute.xlu0 %6271
        %6273 = vrot.lane.b32.xlu0 %v5998, 96
        %v6274 = vpop.permute.xlu0 %6273
        %6275 = vrot.lane.b32.xlu0 %v6000, 96
        %v6276 = vpop.permute.xlu0 %6275
        %6277 = vrot.lane.b32.xlu0 %v6002, 96
        %v6278 = vpop.permute.xlu0 %6277
        %6279 = vrot.lane.b32.xlu0 %v6004, 96
        %v6280 = vpop.permute.xlu0 %6279
        %6281 = vrot.lane.b32.xlu0 %v6006, 96
        %v6282 = vpop.permute.xlu0 %6281
        %6283 = vrot.lane.b32.xlu0 %v6008, 96
        %v6284 = vpop.permute.xlu0 %6283
        %6285 = vrot.lane.b32.xlu0 %v6010, 96
        %v6286 = vpop.permute.xlu0 %6285
        %6287 = vrot.lane.b32.xlu0 %v6012, 96
        %v6288 = vpop.permute.xlu0 %6287
        %6289 = vrot.lane.b32.xlu0 %v6014, 96
        %v6290 = vpop.permute.xlu0 %6289
        %6291 = vrot.lane.b32.xlu0 %v6016, 96
        %v6292 = vpop.permute.xlu0 %6291
        %6293 = vrot.lane.b32.xlu0 %v6018, 96
        %v6294 = vpop.permute.xlu0 %6293
        %vm6295 = vcmask 392192
        %v6297 = vsel %vm6295, %v5906, %v6076
        %v6299 = vsel %vm6295, %v5908, %v6078
        %v6301 = vsel %vm6295, %v5906, %v6080
        %v6303 = vsel %vm6295, %v5910, %v6082
        %v6305 = vsel %vm6295, %v5912, %v6084
        %v6307 = vsel %vm6295, %v5914, %v6086
        %v6309 = vsel %vm6295, %v5916, %v6088
        %v6311 = vsel %vm6295, %v5918, %v6090
        %v6313 = vsel %vm6295, %v5920, %v6092
        %v6315 = vsel %vm6295, %v5922, %v6094
        %v6317 = vsel %vm6295, %v5924, %v6096
        %v6319 = vsel %vm6295, %v5926, %v6098
        %v6321 = vsel %vm6295, %v5928, %v6100
        %v6323 = vsel %vm6295, %v5930, %v6102
        %v6325 = vsel %vm6295, %v5932, %v6104
        %v6327 = vsel %vm6295, %v5934, %v6106
        %v6329 = vsel %vm6295, %v5936, %v6108
        %v6331 = vsel %vm6295, %v5938, %v6110
        %v6333 = vsel %vm6295, %v5940, %v6112
        %v6335 = vsel %vm6295, %v5942, %v6114
        %v6337 = vsel %vm6295, %v5944, %v6116
        %v6339 = vsel %vm6295, %v5946, %v6118
        %v6341 = vsel %vm6295, %v5948, %v6120
        %v6343 = vsel %vm6295, %v5950, %v6122
        %v6345 = vsel %vm6295, %v5952, %v6124
        %v6347 = vsel %vm6295, %v5954, %v6126
        %v6349 = vsel %vm6295, %v5956, %v6128
        %v6351 = vsel %vm6295, %v5958, %v6130
        %v6353 = vsel %vm6295, %v5960, %v6132
        %v6355 = vsel %vm6295, %v5962, %v6134
        %v6357 = vsel %vm6295, %v5964, %v6136
        %v6359 = vsel %vm6295, %v5966, %v6138
        %v6361 = vsel %vm6295, %v5968, %v6140
        %v6363 = vsel %vm6295, %v5970, %v6142
        %v6365 = vsel %vm6295, %v5972, %v6144
        %v6367 = vsel %vm6295, %v5974, %v6146
        %v6369 = vsel %vm6295, %v5976, %v6148
        %v6371 = vsel %vm6295, %v5978, %v6150
        %v6373 = vsel %vm6295, %v5980, %v6152
        %v6375 = vsel %vm6295, %v5982, %v6154
        %v6377 = vsel %vm6295, %v5984, %v6156
        %v6379 = vsel %vm6295, %v5986, %v6158
        %v6381 = vsel %vm6295, %v5988, %v6160
        %v6383 = vsel %vm6295, %v5990, %v6162
        %v6385 = vsel %vm6295, %v5992, %v6164
        %v6387 = vsel %vm6295, %v5994, %v6166
        %v6389 = vsel %vm6295, %v5996, %v6168
        %v6391 = vsel %vm6295, %v5998, %v6170
        %v6393 = vsel %vm6295, %v6000, %v6172
        %v6395 = vsel %vm6295, %v6002, %v6174
        %v6397 = vsel %vm6295, %v6004, %v6176
        %v6399 = vsel %vm6295, %v6006, %v6178
        %v6401 = vsel %vm6295, %v6008, %v6180
        %v6403 = vsel %vm6295, %v6010, %v6182
        %v6405 = vsel %vm6295, %v6012, %v6184
        %v6407 = vsel %vm6295, %v6014, %v6186
        %vm6408 = vcmask 785408
        %v6410 = vsel %vm6408, %v6297, %v6188
        %v6413 = vsel %vm6408, %v6299, %v6190
        %v6416 = vsel %vm6408, %v6301, %v6192
        %v6419 = vsel %vm6408, %v6303, %v6194
        %v6422 = vsel %vm6408, %v6305, %v6196
        %v6425 = vsel %vm6408, %v6307, %v6198
        %v6428 = vsel %vm6408, %v6309, %v6200
        %v6431 = vsel %vm6408, %v6311, %v6202
        %v6434 = vsel %vm6408, %v6313, %v6204
        %v6437 = vsel %vm6408, %v6315, %v6206
        %v6440 = vsel %vm6408, %v6317, %v6208
        %v6443 = vsel %vm6408, %v6319, %v6210
        %v6446 = vsel %vm6408, %v6321, %v6212
        %v6449 = vsel %vm6408, %v6323, %v6214
        %v6452 = vsel %vm6408, %v6325, %v6216
        %v6455 = vsel %vm6408, %v6327, %v6218
        %v6458 = vsel %vm6408, %v6329, %v6220
        %v6461 = vsel %vm6408, %v6331, %v6222
        %v6464 = vsel %vm6408, %v6333, %v6224
        %v6467 = vsel %vm6408, %v6335, %v6226
        %v6470 = vsel %vm6408, %v6337, %v6228
        %v6473 = vsel %vm6408, %v6339, %v6230
        %v6476 = vsel %vm6408, %v6341, %v6232
        %v6479 = vsel %vm6408, %v6343, %v6234
        %v6482 = vsel %vm6408, %v6345, %v6236
        %v6485 = vsel %vm6408, %v6347, %v6238
        %v6488 = vsel %vm6408, %v6349, %v6240
        %v6491 = vsel %vm6408, %v6351, %v6242
        %v6494 = vsel %vm6408, %v6353, %v6244
        %v6497 = vsel %vm6408, %v6355, %v6246
        %v6500 = vsel %vm6408, %v6357, %v6248
        %v6503 = vsel %vm6408, %v6359, %v6250
        %v6506 = vsel %vm6408, %v6361, %v6252
        %v6509 = vsel %vm6408, %v6363, %v6254
        %v6512 = vsel %vm6408, %v6365, %v6256
        %v6515 = vsel %vm6408, %v6367, %v6258
        %v6518 = vsel %vm6408, %v6369, %v6260
        %v6521 = vsel %vm6408, %v6371, %v6262
        %v6524 = vsel %vm6408, %v6373, %v6264
        %v6527 = vsel %vm6408, %v6375, %v6266
        %v6530 = vsel %vm6408, %v6377, %v6268
        %v6533 = vsel %vm6408, %v6379, %v6270
        %v6536 = vsel %vm6408, %v6381, %v6272
        %v6539 = vsel %vm6408, %v6383, %v6274
        %v6542 = vsel %vm6408, %v6385, %v6276
        %v6545 = vsel %vm6408, %v6387, %v6278
        %v6548 = vsel %vm6408, %v6389, %v6280
        %v6551 = vsel %vm6408, %v6391, %v6282
        %v6554 = vsel %vm6408, %v6393, %v6284
        %v6557 = vsel %vm6408, %v6395, %v6286
        %v6560 = vsel %vm6408, %v6397, %v6288
        %v6563 = vsel %vm6408, %v6399, %v6290
        %v6566 = vsel %vm6408, %v6401, %v6292
        %v6569 = vsel %vm6408, %v6403, %v6294
        %v6571 = vsel %vm6408, %v6405, %v6292
        %v6573 = vsel %vm6408, %v6407, %v6294
        %v6575 = vld [vmem:[%s3] sm:$0xf]
        %v6576 = vld [vmem:[%s3 + $0x4] sm:$0xf]
        %v6577 = vld [vmem:[%s3 + $0x8] sm:$0xf]
        %v6578 = vld [vmem:[%s3 + $0xc] sm:$0xf]
        %v6579 = vld [vmem:[%s3 + $0x10] sm:$0xf]
        %v6580 = vld [vmem:[%s3 + $0x14] sm:$0xf]
        %v6581 = vld [vmem:[%s3 + $0x18] sm:$0xf]
        %v6582 = vld [vmem:[%s3 + $0x1c] sm:$0xf]
        %v6583 = vld [vmem:[%s3 + $0x20] sm:$0xf]
        %v6584 = vld [vmem:[%s3 + $0x24] sm:$0xf]
        %v6585 = vld [vmem:[%s3 + $0x28] sm:$0xf]
        %v6586 = vld [vmem:[%s3 + $0x2c] sm:$0xf]
        %v6587 = vld [vmem:[%s3 + $0x30] sm:$0xf]
        %v6588 = vld [vmem:[%s3 + $0x34] sm:$0xf]
        %v6589 = vld [vmem:[%s3 + $0x38] sm:$0xf]
        %v6590 = vld [vmem:[%s3 + $0x3c] sm:$0xf]
        %v6591 = vld [vmem:[%s3 + $0x40] sm:$0xf]
        %v6592 = vld [vmem:[%s3 + $0x44] sm:$0xf]
        %v6593 = vld [vmem:[%s4] sm:$0x1]
        %v6595 = vperm.slane %v6593, 0
        %v6615 = vunpack.c.l.b16 %v6575
        %v6616 = vunpack.c.l.b16 %v6576
        %v6617 = vunpack.c.l.b16 %v6577
        %v6618 = vunpack.c.l.b16 %v6578
        %v6619 = vunpack.c.l.b16 %v6579
        %v6620 = vunpack.c.l.b16 %v6580
        %v6621 = vunpack.c.l.b16 %v6581
        %v6622 = vunpack.c.l.b16 %v6582
        %v6623 = vunpack.c.l.b16 %v6583
        %v6624 = vunpack.c.l.b16 %v6584
        %v6625 = vunpack.c.l.b16 %v6585
        %v6626 = vunpack.c.l.b16 %v6586
        %v6627 = vunpack.c.l.b16 %v6587
        %v6628 = vunpack.c.l.b16 %v6588
        %v6629 = vunpack.c.l.b16 %v6589
        %v6630 = vunpack.c.l.b16 %v6590
        %v6631 = vunpack.c.l.b16 %v6591
        %v6632 = vunpack.c.l.b16 %v6592
        %v6633 = vpack.c.b16 %v6616, %v6615
        %v6634 = vpack.c.b16 %v6618, %v6617
        %v6635 = vpack.c.b16 %v6620, %v6619
        %v6636 = vpack.c.b16 %v6622, %v6621
        %v6637 = vpack.c.b16 %v6624, %v6623
        %v6638 = vpack.c.b16 %v6626, %v6625
        %v6639 = vpack.c.b16 %v6628, %v6627
        %v6640 = vpack.c.b16 %v6630, %v6629
        %v6641 = vpack.c.b16 %v6632, %v6631
        %v6651 = vsel %vm5789, %v6188, 0
        %v6653 = vsel %vm5789, %v6190, 0
        %v6655 = vsel %vm5789, %v6192, 0
        %v6657 = vsel %vm5789, %v6194, 0
        %v6659 = vsel %vm5789, %v6196, 0
        %v6661 = vsel %vm5789, %v6198, 0
        %v6663 = vsel %vm5789, %v6200, 0
        %v6665 = vsel %vm5789, %v6202, 0
        %v6667 = vsel %vm5789, %v6204, 0
        %v6669 = vsel %vm5789, %v6206, 0
        %v6671 = vsel %vm5789, %v6208, 0
        %v6673 = vsel %vm5789, %v6210, 0
        %v6675 = vsel %vm5789, %v6212, 0
        %v6677 = vsel %vm5789, %v6214, 0
        %v6679 = vsel %vm5789, %v6216, 0
        %v6681 = vsel %vm5789, %v6218, 0
        %v6683 = vsel %vm5789, %v6220, 0
        %v6685 = vsel %vm5789, %v6222, 0
        %v6687 = vsel %vm5789, %v6224, 0
        %v6689 = vsel %vm5789, %v6226, 0
        %v6691 = vsel %vm5789, %v6228, 0
        %v6693 = vsel %vm5789, %v6230, 0
        %v6695 = vsel %vm5789, %v6232, 0
        %v6697 = vsel %vm5789, %v6234, 0
        %v6699 = vsel %vm5789, %v6236, 0
        %v6701 = vsel %vm5789, %v6238, 0
        %v6703 = vsel %vm5789, %v6240, 0
        %v6705 = vsel %vm5789, %v6242, 0
        %v6707 = vsel %vm5789, %v6244, 0
        %v6709 = vsel %vm5789, %v6246, 0
        %v6711 = vsel %vm5789, %v6248, 0
        %v6713 = vsel %vm5789, %v6250, 0
        %v6715 = vsel %vm5789, %v6252, 0
        %v6717 = vsel %vm5789, %v6254, 0
        %v6719 = vsel %vm5789, %v6256, 0
        %v6721 = vsel %vm5789, %v6258, 0
        %v6723 = vsel %vm5789, %v6260, 0
        %v6725 = vsel %vm5789, %v6262, 0
        %v6727 = vsel %vm5789, %v6264, 0
        %v6729 = vsel %vm5789, %v6266, 0
        %v6731 = vsel %vm5789, %v6268, 0
        %v6733 = vsel %vm5789, %v6270, 0
        %v6735 = vsel %vm5789, %v6272, 0
        %v6737 = vsel %vm5789, %v6274, 0
        %v6739 = vsel %vm5789, %v6276, 0
        %v6741 = vsel %vm5789, %v6278, 0
        %v6743 = vsel %vm5789, %v6280, 0
        %v6745 = vsel %vm5789, %v6282, 0
        %v6747 = vsel %vm5789, %v6284, 0
        %v6749 = vsel %vm5789, %v6286, 0
        %v6751 = vsel %vm5789, %v6288, 0
        %v6753 = vsel %vm5789, %v6290, 0
        %v6755 = vsel %vm5789, %v6292, 0
        %v6757 = vsel %vm5789, %v6294, 0
        %6759 = vmatpush.bf16.msra.mxu0 %v6640
        %6760 = vmatpush.bf16.msra.mxu0 %v6639
        %6761 = vmatpush.bf16.msra.mxu0 %v6638
        %6762 = vmatpush.bf16.msra.mxu0 %v6637
        %6763 = vmatpush.bf16.msra.mxu0 %v6636
        %6764 = vmatpush.bf16.msra.mxu0 %v6635
        %6765 = vmatpush.bf16.msra.mxu0 %v6634
        %6766 = vmatpush.bf16.msra.mxu0 %v6633
        %6767 = vmatmul.bf16.gmra.mxu0 %v6410
        %v6768 = vpop.f32.mrf.mxu0
        %v6769 = vadd.f32 %v6595, %v6768
        %v6770 = vpop.f32.mrf.mxu0
        %v6771 = vadd.f32 %v6595, %v6770
        %6772 = vmatmul.bf16.gmra.mxu0 %v6413
        %v6773 = vpop.f32.mrf.mxu0
        %v6774 = vadd.f32 %v6595, %v6773
        %v6775 = vpop.f32.mrf.mxu0
        %v6776 = vadd.f32 %v6595, %v6775
        %6777 = vmatmul.bf16.gmra.mxu0 %v6416
        %v6778 = vpop.f32.mrf.mxu0
        %v6779 = vadd.f32 %v6595, %v6778
        %v6780 = vpop.f32.mrf.mxu0
        %v6781 = vadd.f32 %v6595, %v6780
        %6782 = vmatmul.bf16.gmra.mxu0 %v6419
        %v6783 = vpop.f32.mrf.mxu0
        %v6784 = vadd.f32 %v6595, %v6783
        %v6785 = vpop.f32.mrf.mxu0
        %v6786 = vadd.f32 %v6595, %v6785
        %6787 = vmatmul.bf16.gmra.mxu0 %v6422
        %v6788 = vpop.f32.mrf.mxu0
        %v6789 = vadd.f32 %v6595, %v6788
        %v6790 = vpop.f32.mrf.mxu0
        %v6791 = vadd.f32 %v6595, %v6790
        %6792 = vmatmul.bf16.gmra.mxu0 %v6425
        %v6793 = vpop.f32.mrf.mxu0
        %v6794 = vadd.f32 %v6595, %v6793
        %v6795 = vpop.f32.mrf.mxu0
        %v6796 = vadd.f32 %v6595, %v6795
        %6797 = vmatmul.bf16.gmra.mxu0 %v6428
        %v6798 = vpop.f32.mrf.mxu0
        %v6799 = vadd.f32 %v6595, %v6798
        %v6800 = vpop.f32.mrf.mxu0
        %v6801 = vadd.f32 %v6595, %v6800
        %6802 = vmatmul.bf16.gmra.mxu0 %v6431
        %v6803 = vpop.f32.mrf.mxu0
        %v6804 = vadd.f32 %v6595, %v6803
        %v6805 = vpop.f32.mrf.mxu0
        %v6806 = vadd.f32 %v6595, %v6805
        %6807 = vmatmul.bf16.gmra.mxu0 %v6434
        %v6808 = vpop.f32.mrf.mxu0
        %v6809 = vadd.f32 %v6595, %v6808
        %v6810 = vpop.f32.mrf.mxu0
        %v6811 = vadd.f32 %v6595, %v6810
        %6812 = vmatmul.bf16.gmra.mxu0 %v6437
        %v6813 = vpop.f32.mrf.mxu0
        %v6814 = vadd.f32 %v6595, %v6813
        %v6815 = vpop.f32.mrf.mxu0
        %v6816 = vadd.f32 %v6595, %v6815
        %6817 = vmatmul.bf16.gmra.mxu0 %v6440
        %v6818 = vpop.f32.mrf.mxu0
        %v6819 = vadd.f32 %v6595, %v6818
        %v6820 = vpop.f32.mrf.mxu0
        %v6821 = vadd.f32 %v6595, %v6820
        %6822 = vmatmul.bf16.gmra.mxu0 %v6443
        %v6823 = vpop.f32.mrf.mxu0
        %v6824 = vadd.f32 %v6595, %v6823
        %v6825 = vpop.f32.mrf.mxu0
        %v6826 = vadd.f32 %v6595, %v6825
        %6827 = vmatmul.bf16.gmra.mxu0 %v6446
        %v6828 = vpop.f32.mrf.mxu0
        %v6829 = vadd.f32 %v6595, %v6828
        %v6830 = vpop.f32.mrf.mxu0
        %v6831 = vadd.f32 %v6595, %v6830
        %6832 = vmatmul.bf16.gmra.mxu0 %v6449
        %v6833 = vpop.f32.mrf.mxu0
        %v6834 = vadd.f32 %v6595, %v6833
        %v6835 = vpop.f32.mrf.mxu0
        %v6836 = vadd.f32 %v6595, %v6835
        %6837 = vmatmul.bf16.gmra.mxu0 %v6452
        %v6838 = vpop.f32.mrf.mxu0
        %v6839 = vadd.f32 %v6595, %v6838
        %v6840 = vpop.f32.mrf.mxu0
        %v6841 = vadd.f32 %v6595, %v6840
        %6842 = vmatmul.bf16.gmra.mxu0 %v6455
        %v6843 = vpop.f32.mrf.mxu0
        %v6844 = vadd.f32 %v6595, %v6843
        %v6845 = vpop.f32.mrf.mxu0
        %v6846 = vadd.f32 %v6595, %v6845
        %6847 = vmatmul.bf16.gmra.mxu0 %v6458
        %v6848 = vpop.f32.mrf.mxu0
        %v6849 = vadd.f32 %v6595, %v6848
        %v6850 = vpop.f32.mrf.mxu0
        %v6851 = vadd.f32 %v6595, %v6850
        %6852 = vmatmul.bf16.gmra.mxu0 %v6461
        %v6853 = vpop.f32.mrf.mxu0
        %v6854 = vadd.f32 %v6595, %v6853
        %v6855 = vpop.f32.mrf.mxu0
        %v6856 = vadd.f32 %v6595, %v6855
        %6857 = vmatmul.bf16.gmra.mxu0 %v6464
        %v6858 = vpop.f32.mrf.mxu0
        %v6859 = vadd.f32 %v6595, %v6858
        %v6860 = vpop.f32.mrf.mxu0
        %v6861 = vadd.f32 %v6595, %v6860
        %6862 = vmatmul.bf16.gmra.mxu0 %v6467
        %v6863 = vpop.f32.mrf.mxu0
        %v6864 = vadd.f32 %v6595, %v6863
        %v6865 = vpop.f32.mrf.mxu0
        %v6866 = vadd.f32 %v6595, %v6865
        %6867 = vmatmul.bf16.gmra.mxu0 %v6470
        %v6868 = vpop.f32.mrf.mxu0
        %v6869 = vadd.f32 %v6595, %v6868
        %v6870 = vpop.f32.mrf.mxu0
        %v6871 = vadd.f32 %v6595, %v6870
        %6872 = vmatmul.bf16.gmra.mxu0 %v6473
        %v6873 = vpop.f32.mrf.mxu0
        %v6874 = vadd.f32 %v6595, %v6873
        %v6875 = vpop.f32.mrf.mxu0
        %v6876 = vadd.f32 %v6595, %v6875
        %6877 = vmatmul.bf16.gmra.mxu0 %v6476
        %v6878 = vpop.f32.mrf.mxu0
        %v6879 = vadd.f32 %v6595, %v6878
        %v6880 = vpop.f32.mrf.mxu0
        %v6881 = vadd.f32 %v6595, %v6880
        %6882 = vmatmul.bf16.gmra.mxu0 %v6479
        %v6883 = vpop.f32.mrf.mxu0
        %v6884 = vadd.f32 %v6595, %v6883
        %v6885 = vpop.f32.mrf.mxu0
        %v6886 = vadd.f32 %v6595, %v6885
        %6887 = vmatmul.bf16.gmra.mxu0 %v6482
        %v6888 = vpop.f32.mrf.mxu0
        %v6889 = vadd.f32 %v6595, %v6888
        %v6890 = vpop.f32.mrf.mxu0
        %v6891 = vadd.f32 %v6595, %v6890
        %6892 = vmatmul.bf16.gmra.mxu0 %v6485
        %v6893 = vpop.f32.mrf.mxu0
        %v6894 = vadd.f32 %v6595, %v6893
        %v6895 = vpop.f32.mrf.mxu0
        %v6896 = vadd.f32 %v6595, %v6895
        %6897 = vmatmul.bf16.gmra.mxu0 %v6488
        %v6898 = vpop.f32.mrf.mxu0
        %v6899 = vadd.f32 %v6595, %v6898
        %v6900 = vpop.f32.mrf.mxu0
        %v6901 = vadd.f32 %v6595, %v6900
        %6902 = vmatmul.bf16.gmra.mxu0 %v6491
        %v6903 = vpop.f32.mrf.mxu0
        %v6904 = vadd.f32 %v6595, %v6903
        %v6905 = vpop.f32.mrf.mxu0
        %v6906 = vadd.f32 %v6595, %v6905
        %6907 = vmatmul.bf16.gmra.mxu0 %v6494
        %v6908 = vpop.f32.mrf.mxu0
        %v6909 = vadd.f32 %v6595, %v6908
        %v6910 = vpop.f32.mrf.mxu0
        %v6911 = vadd.f32 %v6595, %v6910
        %6912 = vmatmul.bf16.gmra.mxu0 %v6497
        %v6913 = vpop.f32.mrf.mxu0
        %v6914 = vadd.f32 %v6595, %v6913
        %v6915 = vpop.f32.mrf.mxu0
        %v6916 = vadd.f32 %v6595, %v6915
        %6917 = vmatmul.bf16.gmra.mxu0 %v6500
        %v6918 = vpop.f32.mrf.mxu0
        %v6919 = vadd.f32 %v6595, %v6918
        %v6920 = vpop.f32.mrf.mxu0
        %v6921 = vadd.f32 %v6595, %v6920
        %6922 = vmatmul.bf16.gmra.mxu0 %v6503
        %v6923 = vpop.f32.mrf.mxu0
        %v6924 = vadd.f32 %v6595, %v6923
        %v6925 = vpop.f32.mrf.mxu0
        %v6926 = vadd.f32 %v6595, %v6925
        %6927 = vmatmul.bf16.gmra.mxu0 %v6506
        %v6928 = vpop.f32.mrf.mxu0
        %v6929 = vadd.f32 %v6595, %v6928
        %v6930 = vpop.f32.mrf.mxu0
        %v6931 = vadd.f32 %v6595, %v6930
        %6932 = vmatmul.bf16.gmra.mxu0 %v6509
        %v6933 = vpop.f32.mrf.mxu0
        %v6934 = vadd.f32 %v6595, %v6933
        %v6935 = vpop.f32.mrf.mxu0
        %v6936 = vadd.f32 %v6595, %v6935
        %6937 = vmatmul.bf16.gmra.mxu0 %v6512
        %v6938 = vpop.f32.mrf.mxu0
        %v6939 = vadd.f32 %v6595, %v6938
        %v6940 = vpop.f32.mrf.mxu0
        %v6941 = vadd.f32 %v6595, %v6940
        %6942 = vmatmul.bf16.gmra.mxu0 %v6515
        %v6943 = vpop.f32.mrf.mxu0
        %v6944 = vadd.f32 %v6595, %v6943
        %v6945 = vpop.f32.mrf.mxu0
        %v6946 = vadd.f32 %v6595, %v6945
        %6947 = vmatmul.bf16.gmra.mxu0 %v6518
        %v6948 = vpop.f32.mrf.mxu0
        %v6949 = vadd.f32 %v6595, %v6948
        %v6950 = vpop.f32.mrf.mxu0
        %v6951 = vadd.f32 %v6595, %v6950
        %6952 = vmatmul.bf16.gmra.mxu0 %v6521
        %v6953 = vpop.f32.mrf.mxu0
        %v6954 = vadd.f32 %v6595, %v6953
        %v6955 = vpop.f32.mrf.mxu0
        %v6956 = vadd.f32 %v6595, %v6955
        %6957 = vmatmul.bf16.gmra.mxu0 %v6524
        %v6958 = vpop.f32.mrf.mxu0
        %v6959 = vadd.f32 %v6595, %v6958
        %v6960 = vpop.f32.mrf.mxu0
        %v6961 = vadd.f32 %v6595, %v6960
        %6962 = vmatmul.bf16.gmra.mxu0 %v6527
        %v6963 = vpop.f32.mrf.mxu0
        %v6964 = vadd.f32 %v6595, %v6963
        %v6965 = vpop.f32.mrf.mxu0
        %v6966 = vadd.f32 %v6595, %v6965
        %6967 = vmatmul.bf16.gmra.mxu0 %v6530
        %v6968 = vpop.f32.mrf.mxu0
        %v6969 = vadd.f32 %v6595, %v6968
        %v6970 = vpop.f32.mrf.mxu0
        %v6971 = vadd.f32 %v6595, %v6970
        %6972 = vmatmul.bf16.gmra.mxu0 %v6533
        %v6973 = vpop.f32.mrf.mxu0
        %v6974 = vadd.f32 %v6595, %v6973
        %v6975 = vpop.f32.mrf.mxu0
        %v6976 = vadd.f32 %v6595, %v6975
        %6977 = vmatmul.bf16.gmra.mxu0 %v6536
        %v6978 = vpop.f32.mrf.mxu0
        %v6979 = vadd.f32 %v6595, %v6978
        %v6980 = vpop.f32.mrf.mxu0
        %v6981 = vadd.f32 %v6595, %v6980
        %6982 = vmatmul.bf16.gmra.mxu0 %v6539
        %v6983 = vpop.f32.mrf.mxu0
        %v6984 = vadd.f32 %v6595, %v6983
        %v6985 = vpop.f32.mrf.mxu0
        %v6986 = vadd.f32 %v6595, %v6985
        %6987 = vmatmul.bf16.gmra.mxu0 %v6542
        %v6988 = vpop.f32.mrf.mxu0
        %v6989 = vadd.f32 %v6595, %v6988
        %v6990 = vpop.f32.mrf.mxu0
        %v6991 = vadd.f32 %v6595, %v6990
        %6992 = vmatmul.bf16.gmra.mxu0 %v6545
        %v6993 = vpop.f32.mrf.mxu0
        %v6994 = vadd.f32 %v6595, %v6993
        %v6995 = vpop.f32.mrf.mxu0
        %v6996 = vadd.f32 %v6595, %v6995
        %6997 = vmatmul.bf16.gmra.mxu0 %v6548
        %v6998 = vpop.f32.mrf.mxu0
        %v6999 = vadd.f32 %v6595, %v6998
        %v7000 = vpop.f32.mrf.mxu0
        %v7001 = vadd.f32 %v6595, %v7000
        %7002 = vmatmul.bf16.gmra.mxu0 %v6551
        %v7003 = vpop.f32.mrf.mxu0
        %v7004 = vadd.f32 %v6595, %v7003
        %v7005 = vpop.f32.mrf.mxu0
        %v7006 = vadd.f32 %v6595, %v7005
        %7007 = vmatmul.bf16.gmra.mxu0 %v6554
        %v7008 = vpop.f32.mrf.mxu0
        %v7009 = vadd.f32 %v6595, %v7008
        %v7010 = vpop.f32.mrf.mxu0
        %v7011 = vadd.f32 %v6595, %v7010
        %7012 = vmatmul.bf16.gmra.mxu0 %v6557
        %v7013 = vpop.f32.mrf.mxu0
        %v7014 = vadd.f32 %v6595, %v7013
        %v7015 = vpop.f32.mrf.mxu0
        %v7016 = vadd.f32 %v6595, %v7015
        %7017 = vmatmul.bf16.gmra.mxu0 %v6560
        %v7018 = vpop.f32.mrf.mxu0
        %v7019 = vadd.f32 %v6595, %v7018
        %v7020 = vpop.f32.mrf.mxu0
        %v7021 = vadd.f32 %v6595, %v7020
        %7022 = vmatmul.bf16.gmra.mxu0 %v6563
        %v7023 = vpop.f32.mrf.mxu0
        %v7024 = vadd.f32 %v6595, %v7023
        %v7025 = vpop.f32.mrf.mxu0
        %v7026 = vadd.f32 %v6595, %v7025
        %7027 = vmatmul.bf16.gmra.mxu0 %v6566
        %v7028 = vpop.f32.mrf.mxu0
        %v7029 = vadd.f32 %v6595, %v7028
        %v7030 = vpop.f32.mrf.mxu0
        %v7031 = vadd.f32 %v6595, %v7030
        %7032 = vmatmul.bf16.gmra.mxu0 %v6569
        %v7033 = vpop.f32.mrf.mxu0
        %v7034 = vadd.f32 %v6595, %v7033
        %v7035 = vpop.f32.mrf.mxu0
        %v7036 = vadd.f32 %v6595, %v7035
        %7037 = vmatmul.bf16.gmra.mxu0 %v6571
        %v7038 = vpop.f32.mrf.mxu0
        %v7039 = vadd.f32 %v6595, %v7038
        %v7040 = vpop.f32.mrf.mxu0
        %v7041 = vadd.f32 %v6595, %v7040
        %7042 = vmatmul.bf16.gmra.mxu0 %v6573
        %v7043 = vpop.f32.mrf.mxu0
        %v7044 = vadd.f32 %v6595, %v7043
        %v7045 = vpop.f32.mrf.mxu0
        %v7046 = vadd.f32 %v6595, %v7045
        %7047 = vdwg.mxu0
        %7048 = vmatpush.bf16.msra.mxu0 0
        %7049 = vmatpush.bf16.msra.mxu0 0
        %7050 = vmatpush.bf16.msra.mxu0 0
        %7051 = vmatpush.bf16.msra.mxu0 0
        %7052 = vmatpush.bf16.msra.mxu0 0
        %7053 = vmatpush.bf16.msra.mxu0 0
        %7054 = vmatpush.bf16.msra.mxu0 0
        %7055 = vmatpush.bf16.msra.mxu0 %v6641
        %7056 = vmatmul.bf16.gmra.mxu0 %v6651
        %v7057 = vpop.f32.mrf.mxu0
        %v7058 = vadd.f32 %v6769, %v7057
        %v7059 = vpop.f32.mrf.mxu0
        %v7060 = vadd.f32 %v6771, %v7059
        %7061 = vmatmul.bf16.gmra.mxu0 %v6653
        %v7062 = vpop.f32.mrf.mxu0
        %v7063 = vadd.f32 %v6774, %v7062
        %v7064 = vpop.f32.mrf.mxu0
        %v7065 = vadd.f32 %v6776, %v7064
        %7066 = vmatmul.bf16.gmra.mxu0 %v6655
        %v7067 = vpop.f32.mrf.mxu0
        %v7068 = vadd.f32 %v6779, %v7067
        %v7069 = vpop.f32.mrf.mxu0
        %v7070 = vadd.f32 %v6781, %v7069
        %7071 = vmatmul.bf16.gmra.mxu0 %v6657
        %v7072 = vpop.f32.mrf.mxu0
        %v7073 = vadd.f32 %v6784, %v7072
        %v7074 = vpop.f32.mrf.mxu0
        %v7075 = vadd.f32 %v6786, %v7074
        %7076 = vmatmul.bf16.gmra.mxu0 %v6659
        %v7077 = vpop.f32.mrf.mxu0
        %v7078 = vadd.f32 %v6789, %v7077
        %v7079 = vpop.f32.mrf.mxu0
        %v7080 = vadd.f32 %v6791, %v7079
        %7081 = vmatmul.bf16.gmra.mxu0 %v6661
        %v7082 = vpop.f32.mrf.mxu0
        %v7083 = vadd.f32 %v6794, %v7082
        %v7084 = vpop.f32.mrf.mxu0
        %v7085 = vadd.f32 %v6796, %v7084
        %7086 = vmatmul.bf16.gmra.mxu0 %v6663
        %v7087 = vpop.f32.mrf.mxu0
        %v7088 = vadd.f32 %v6799, %v7087
        %v7089 = vpop.f32.mrf.mxu0
        %v7090 = vadd.f32 %v6801, %v7089
        %7091 = vmatmul.bf16.gmra.mxu0 %v6665
        %v7092 = vpop.f32.mrf.mxu0
        %v7093 = vadd.f32 %v6804, %v7092
        %v7094 = vpop.f32.mrf.mxu0
        %v7095 = vadd.f32 %v6806, %v7094
        %7096 = vmatmul.bf16.gmra.mxu0 %v6667
        %v7097 = vpop.f32.mrf.mxu0
        %v7098 = vadd.f32 %v6809, %v7097
        %v7099 = vpop.f32.mrf.mxu0
        %v7100 = vadd.f32 %v6811, %v7099
        %7101 = vmatmul.bf16.gmra.mxu0 %v6669
        %v7102 = vpop.f32.mrf.mxu0
        %v7103 = vadd.f32 %v6814, %v7102
        %v7104 = vpop.f32.mrf.mxu0
        %v7105 = vadd.f32 %v6816, %v7104
        %7106 = vmatmul.bf16.gmra.mxu0 %v6671
        %v7107 = vpop.f32.mrf.mxu0
        %v7108 = vadd.f32 %v6819, %v7107
        %v7109 = vpop.f32.mrf.mxu0
        %v7110 = vadd.f32 %v6821, %v7109
        %7111 = vmatmul.bf16.gmra.mxu0 %v6673
        %v7112 = vpop.f32.mrf.mxu0
        %v7113 = vadd.f32 %v6824, %v7112
        %v7114 = vpop.f32.mrf.mxu0
        %v7115 = vadd.f32 %v6826, %v7114
        %7116 = vmatmul.bf16.gmra.mxu0 %v6675
        %v7117 = vpop.f32.mrf.mxu0
        %v7118 = vadd.f32 %v6829, %v7117
        %v7119 = vpop.f32.mrf.mxu0
        %v7120 = vadd.f32 %v6831, %v7119
        %7121 = vmatmul.bf16.gmra.mxu0 %v6677
        %v7122 = vpop.f32.mrf.mxu0
        %v7123 = vadd.f32 %v6834, %v7122
        %v7124 = vpop.f32.mrf.mxu0
        %v7125 = vadd.f32 %v6836, %v7124
        %7126 = vmatmul.bf16.gmra.mxu0 %v6679
        %v7127 = vpop.f32.mrf.mxu0
        %v7128 = vadd.f32 %v6839, %v7127
        %v7129 = vpop.f32.mrf.mxu0
        %v7130 = vadd.f32 %v6841, %v7129
        %7131 = vmatmul.bf16.gmra.mxu0 %v6681
        %v7132 = vpop.f32.mrf.mxu0
        %v7133 = vadd.f32 %v6844, %v7132
        %v7134 = vpop.f32.mrf.mxu0
        %v7135 = vadd.f32 %v6846, %v7134
        %7136 = vmatmul.bf16.gmra.mxu0 %v6683
        %v7137 = vpop.f32.mrf.mxu0
        %v7138 = vadd.f32 %v6849, %v7137
        %v7139 = vpop.f32.mrf.mxu0
        %v7140 = vadd.f32 %v6851, %v7139
        %7141 = vmatmul.bf16.gmra.mxu0 %v6685
        %v7142 = vpop.f32.mrf.mxu0
        %v7143 = vadd.f32 %v6854, %v7142
        %v7144 = vpop.f32.mrf.mxu0
        %v7145 = vadd.f32 %v6856, %v7144
        %7146 = vmatmul.bf16.gmra.mxu0 %v6687
        %v7147 = vpop.f32.mrf.mxu0
        %v7148 = vadd.f32 %v6859, %v7147
        %v7149 = vpop.f32.mrf.mxu0
        %v7150 = vadd.f32 %v6861, %v7149
        %7151 = vmatmul.bf16.gmra.mxu0 %v6689
        %v7152 = vpop.f32.mrf.mxu0
        %v7153 = vadd.f32 %v6864, %v7152
        %v7154 = vpop.f32.mrf.mxu0
        %v7155 = vadd.f32 %v6866, %v7154
        %7156 = vmatmul.bf16.gmra.mxu0 %v6691
        %v7157 = vpop.f32.mrf.mxu0
        %v7158 = vadd.f32 %v6869, %v7157
        %v7159 = vpop.f32.mrf.mxu0
        %v7160 = vadd.f32 %v6871, %v7159
        %7161 = vmatmul.bf16.gmra.mxu0 %v6693
        %v7162 = vpop.f32.mrf.mxu0
        %v7163 = vadd.f32 %v6874, %v7162
        %v7164 = vpop.f32.mrf.mxu0
        %v7165 = vadd.f32 %v6876, %v7164
        %7166 = vmatmul.bf16.gmra.mxu0 %v6695
        %v7167 = vpop.f32.mrf.mxu0
        %v7168 = vadd.f32 %v6879, %v7167
        %v7169 = vpop.f32.mrf.mxu0
        %v7170 = vadd.f32 %v6881, %v7169
        %7171 = vmatmul.bf16.gmra.mxu0 %v6697
        %v7172 = vpop.f32.mrf.mxu0
        %v7173 = vadd.f32 %v6884, %v7172
        %v7174 = vpop.f32.mrf.mxu0
        %v7175 = vadd.f32 %v6886, %v7174
        %7176 = vmatmul.bf16.gmra.mxu0 %v6699
        %v7177 = vpop.f32.mrf.mxu0
        %v7178 = vadd.f32 %v6889, %v7177
        %v7179 = vpop.f32.mrf.mxu0
        %v7180 = vadd.f32 %v6891, %v7179
        %7181 = vmatmul.bf16.gmra.mxu0 %v6701
        %v7182 = vpop.f32.mrf.mxu0
        %v7183 = vadd.f32 %v6894, %v7182
        %v7184 = vpop.f32.mrf.mxu0
        %v7185 = vadd.f32 %v6896, %v7184
        %7186 = vmatmul.bf16.gmra.mxu0 %v6703
        %v7187 = vpop.f32.mrf.mxu0
        %v7188 = vadd.f32 %v6899, %v7187
        %v7189 = vpop.f32.mrf.mxu0
        %v7190 = vadd.f32 %v6901, %v7189
        %7191 = vmatmul.bf16.gmra.mxu0 %v6705
        %v7192 = vpop.f32.mrf.mxu0
        %v7193 = vadd.f32 %v6904, %v7192
        %v7194 = vpop.f32.mrf.mxu0
        %v7195 = vadd.f32 %v6906, %v7194
        %7196 = vmatmul.bf16.gmra.mxu0 %v6707
        %v7197 = vpop.f32.mrf.mxu0
        %v7198 = vadd.f32 %v6909, %v7197
        %v7199 = vpop.f32.mrf.mxu0
        %v7200 = vadd.f32 %v6911, %v7199
        %7201 = vmatmul.bf16.gmra.mxu0 %v6709
        %v7202 = vpop.f32.mrf.mxu0
        %v7203 = vadd.f32 %v6914, %v7202
        %v7204 = vpop.f32.mrf.mxu0
        %v7205 = vadd.f32 %v6916, %v7204
        %7206 = vmatmul.bf16.gmra.mxu0 %v6711
        %v7207 = vpop.f32.mrf.mxu0
        %v7208 = vadd.f32 %v6919, %v7207
        %v7209 = vpop.f32.mrf.mxu0
        %v7210 = vadd.f32 %v6921, %v7209
        %7211 = vmatmul.bf16.gmra.mxu0 %v6713
        %v7212 = vpop.f32.mrf.mxu0
        %v7213 = vadd.f32 %v6924, %v7212
        %v7214 = vpop.f32.mrf.mxu0
        %v7215 = vadd.f32 %v6926, %v7214
        %7216 = vmatmul.bf16.gmra.mxu0 %v6715
        %v7217 = vpop.f32.mrf.mxu0
        %v7218 = vadd.f32 %v6929, %v7217
        %v7219 = vpop.f32.mrf.mxu0
        %v7220 = vadd.f32 %v6931, %v7219
        %7221 = vmatmul.bf16.gmra.mxu0 %v6717
        %v7222 = vpop.f32.mrf.mxu0
        %v7223 = vadd.f32 %v6934, %v7222
        %v7224 = vpop.f32.mrf.mxu0
        %v7225 = vadd.f32 %v6936, %v7224
        %7226 = vmatmul.bf16.gmra.mxu0 %v6719
        %v7227 = vpop.f32.mrf.mxu0
        %v7228 = vadd.f32 %v6939, %v7227
        %v7229 = vpop.f32.mrf.mxu0
        %v7230 = vadd.f32 %v6941, %v7229
        %7231 = vmatmul.bf16.gmra.mxu0 %v6721
        %v7232 = vpop.f32.mrf.mxu0
        %v7233 = vadd.f32 %v6944, %v7232
        %v7234 = vpop.f32.mrf.mxu0
        %v7235 = vadd.f32 %v6946, %v7234
        %7236 = vmatmul.bf16.gmra.mxu0 %v6723
        %v7237 = vpop.f32.mrf.mxu0
        %v7238 = vadd.f32 %v6949, %v7237
        %v7239 = vpop.f32.mrf.mxu0
        %v7240 = vadd.f32 %v6951, %v7239
        %7241 = vmatmul.bf16.gmra.mxu0 %v6725
        %v7242 = vpop.f32.mrf.mxu0
        %v7243 = vadd.f32 %v6954, %v7242
        %v7244 = vpop.f32.mrf.mxu0
        %v7245 = vadd.f32 %v6956, %v7244
        %7246 = vmatmul.bf16.gmra.mxu0 %v6727
        %v7247 = vpop.f32.mrf.mxu0
        %v7248 = vadd.f32 %v6959, %v7247
        %v7249 = vpop.f32.mrf.mxu0
        %v7250 = vadd.f32 %v6961, %v7249
        %7251 = vmatmul.bf16.gmra.mxu0 %v6729
        %v7252 = vpop.f32.mrf.mxu0
        %v7253 = vadd.f32 %v6964, %v7252
        %v7254 = vpop.f32.mrf.mxu0
        %v7255 = vadd.f32 %v6966, %v7254
        %7256 = vmatmul.bf16.gmra.mxu0 %v6731
        %v7257 = vpop.f32.mrf.mxu0
        %v7258 = vadd.f32 %v6969, %v7257
        %v7259 = vpop.f32.mrf.mxu0
        %v7260 = vadd.f32 %v6971, %v7259
        %7261 = vmatmul.bf16.gmra.mxu0 %v6733
        %v7262 = vpop.f32.mrf.mxu0
        %v7263 = vadd.f32 %v6974, %v7262
        %v7264 = vpop.f32.mrf.mxu0
        %v7265 = vadd.f32 %v6976, %v7264
        %7266 = vmatmul.bf16.gmra.mxu0 %v6735
        %v7267 = vpop.f32.mrf.mxu0
        %v7268 = vadd.f32 %v6979, %v7267
        %v7269 = vpop.f32.mrf.mxu0
        %v7270 = vadd.f32 %v6981, %v7269
        %7271 = vmatmul.bf16.gmra.mxu0 %v6737
        %v7272 = vpop.f32.mrf.mxu0
        %v7273 = vadd.f32 %v6984, %v7272
        %v7274 = vpop.f32.mrf.mxu0
        %v7275 = vadd.f32 %v6986, %v7274
        %7276 = vmatmul.bf16.gmra.mxu0 %v6739
        %v7277 = vpop.f32.mrf.mxu0
        %v7278 = vadd.f32 %v6989, %v7277
        %v7279 = vpop.f32.mrf.mxu0
        %v7280 = vadd.f32 %v6991, %v7279
        %7281 = vmatmul.bf16.gmra.mxu0 %v6741
        %v7282 = vpop.f32.mrf.mxu0
        %v7283 = vadd.f32 %v6994, %v7282
        %v7284 = vpop.f32.mrf.mxu0
        %v7285 = vadd.f32 %v6996, %v7284
        %7286 = vmatmul.bf16.gmra.mxu0 %v6743
        %v7287 = vpop.f32.mrf.mxu0
        %v7288 = vadd.f32 %v6999, %v7287
        %v7289 = vpop.f32.mrf.mxu0
        %v7290 = vadd.f32 %v7001, %v7289
        %7291 = vmatmul.bf16.gmra.mxu0 %v6745
        %v7292 = vpop.f32.mrf.mxu0
        %v7293 = vadd.f32 %v7004, %v7292
        %v7294 = vpop.f32.mrf.mxu0
        %v7295 = vadd.f32 %v7006, %v7294
        %7296 = vmatmul.bf16.gmra.mxu0 %v6747
        %v7297 = vpop.f32.mrf.mxu0
        %v7298 = vadd.f32 %v7009, %v7297
        %v7299 = vpop.f32.mrf.mxu0
        %v7300 = vadd.f32 %v7011, %v7299
        %7301 = vmatmul.bf16.gmra.mxu0 %v6749
        %v7302 = vpop.f32.mrf.mxu0
        %v7303 = vadd.f32 %v7014, %v7302
        %v7304 = vpop.f32.mrf.mxu0
        %v7305 = vadd.f32 %v7016, %v7304
        %7306 = vmatmul.bf16.gmra.mxu0 %v6751
        %v7307 = vpop.f32.mrf.mxu0
        %v7308 = vadd.f32 %v7019, %v7307
        %v7309 = vpop.f32.mrf.mxu0
        %v7310 = vadd.f32 %v7021, %v7309
        %7311 = vmatmul.bf16.gmra.mxu0 %v6753
        %v7312 = vpop.f32.mrf.mxu0
        %v7313 = vadd.f32 %v7024, %v7312
        %v7314 = vpop.f32.mrf.mxu0
        %v7315 = vadd.f32 %v7026, %v7314
        %7316 = vmatmul.bf16.gmra.mxu0 %v6755
        %v7317 = vpop.f32.mrf.mxu0
        %v7318 = vadd.f32 %v7029, %v7317
        %v7319 = vpop.f32.mrf.mxu0
        %v7320 = vadd.f32 %v7031, %v7319
        %7321 = vmatmul.bf16.gmra.mxu0 %v6757
        %v7322 = vpop.f32.mrf.mxu0
        %v7323 = vadd.f32 %v7034, %v7322
        %v7324 = vpop.f32.mrf.mxu0
        %v7325 = vadd.f32 %v7036, %v7324
        %7326 = vmatmul.bf16.gmra.mxu0 %v6755
        %v7327 = vpop.f32.mrf.mxu0
        %v7328 = vadd.f32 %v7039, %v7327
        %v7329 = vpop.f32.mrf.mxu0
        %v7330 = vadd.f32 %v7041, %v7329
        %7331 = vmatmul.bf16.gmra.mxu0 %v6757
        %v7332 = vpop.f32.mrf.mxu0
        %v7333 = vadd.f32 %v7044, %v7332
        %v7334 = vpop.f32.mrf.mxu0
        %v7335 = vadd.f32 %v7046, %v7334
        %7336 = vdwg.mxu0
        %v7337 = vmax.f32 %v7058, 0.0
        %v7338 = vmax.f32 %v7060, 0.0
        %v7339 = vmax.f32 %v7063, 0.0
        %v7340 = vmax.f32 %v7065, 0.0
        %v7341 = vmax.f32 %v7068, 0.0
        %v7342 = vmax.f32 %v7070, 0.0
        %v7343 = vmax.f32 %v7073, 0.0
        %v7344 = vmax.f32 %v7075, 0.0
        %v7345 = vmax.f32 %v7078, 0.0
        %v7346 = vmax.f32 %v7080, 0.0
        %v7347 = vmax.f32 %v7083, 0.0
        %v7348 = vmax.f32 %v7085, 0.0
        %v7349 = vmax.f32 %v7088, 0.0
        %v7350 = vmax.f32 %v7090, 0.0
        %v7351 = vmax.f32 %v7093, 0.0
        %v7352 = vmax.f32 %v7095, 0.0
        %v7353 = vmax.f32 %v7098, 0.0
        %v7354 = vmax.f32 %v7100, 0.0
        %v7355 = vmax.f32 %v7103, 0.0
        %v7356 = vmax.f32 %v7105, 0.0
        %v7357 = vmax.f32 %v7108, 0.0
        %v7358 = vmax.f32 %v7110, 0.0
        %v7359 = vmax.f32 %v7113, 0.0
        %v7360 = vmax.f32 %v7115, 0.0
        %v7361 = vmax.f32 %v7118, 0.0
        %v7362 = vmax.f32 %v7120, 0.0
        %v7363 = vmax.f32 %v7123, 0.0
        %v7364 = vmax.f32 %v7125, 0.0
        %v7365 = vmax.f32 %v7128, 0.0
        %v7366 = vmax.f32 %v7130, 0.0
        %v7367 = vmax.f32 %v7133, 0.0
        %v7368 = vmax.f32 %v7135, 0.0
        %v7369 = vmax.f32 %v7138, 0.0
        %v7370 = vmax.f32 %v7140, 0.0
        %v7371 = vmax.f32 %v7143, 0.0
        %v7372 = vmax.f32 %v7145, 0.0
        %v7373 = vmax.f32 %v7148, 0.0
        %v7374 = vmax.f32 %v7150, 0.0
        %v7375 = vmax.f32 %v7153, 0.0
        %v7376 = vmax.f32 %v7155, 0.0
        %v7377 = vmax.f32 %v7158, 0.0
        %v7378 = vmax.f32 %v7160, 0.0
        %v7379 = vmax.f32 %v7163, 0.0
        %v7380 = vmax.f32 %v7165, 0.0
        %v7381 = vmax.f32 %v7168, 0.0
        %v7382 = vmax.f32 %v7170, 0.0
        %v7383 = vmax.f32 %v7173, 0.0
        %v7384 = vmax.f32 %v7175, 0.0
        %v7385 = vmax.f32 %v7178, 0.0
        %v7386 = vmax.f32 %v7180, 0.0
        %v7387 = vmax.f32 %v7183, 0.0
        %v7388 = vmax.f32 %v7185, 0.0
        %v7389 = vmax.f32 %v7188, 0.0
        %v7390 = vmax.f32 %v7190, 0.0
        %v7391 = vmax.f32 %v7193, 0.0
        %v7392 = vmax.f32 %v7195, 0.0
        %v7393 = vmax.f32 %v7198, 0.0
        %v7394 = vmax.f32 %v7200, 0.0
        %v7395 = vmax.f32 %v7203, 0.0
        %v7396 = vmax.f32 %v7205, 0.0
        %v7397 = vmax.f32 %v7208, 0.0
        %v7398 = vmax.f32 %v7210, 0.0
        %v7399 = vmax.f32 %v7213, 0.0
        %v7400 = vmax.f32 %v7215, 0.0
        %v7401 = vmax.f32 %v7218, 0.0
        %v7402 = vmax.f32 %v7220, 0.0
        %v7403 = vmax.f32 %v7223, 0.0
        %v7404 = vmax.f32 %v7225, 0.0
        %v7405 = vmax.f32 %v7228, 0.0
        %v7406 = vmax.f32 %v7230, 0.0
        %v7407 = vmax.f32 %v7233, 0.0
        %v7408 = vmax.f32 %v7235, 0.0
        %v7409 = vmax.f32 %v7238, 0.0
        %v7410 = vmax.f32 %v7240, 0.0
        %v7411 = vmax.f32 %v7243, 0.0
        %v7412 = vmax.f32 %v7245, 0.0
        %v7413 = vmax.f32 %v7248, 0.0
        %v7414 = vmax.f32 %v7250, 0.0
        %v7415 = vmax.f32 %v7253, 0.0
        %v7416 = vmax.f32 %v7255, 0.0
        %v7417 = vmax.f32 %v7258, 0.0
        %v7418 = vmax.f32 %v7260, 0.0
        %v7419 = vmax.f32 %v7263, 0.0
        %v7420 = vmax.f32 %v7265, 0.0
        %v7421 = vmax.f32 %v7268, 0.0
        %v7422 = vmax.f32 %v7270, 0.0
        %v7423 = vmax.f32 %v7273, 0.0
        %v7424 = vmax.f32 %v7275, 0.0
        %v7425 = vmax.f32 %v7278, 0.0
        %v7426 = vmax.f32 %v7280, 0.0
        %v7427 = vmax.f32 %v7283, 0.0
        %v7428 = vmax.f32 %v7285, 0.0
        %v7429 = vmax.f32 %v7288, 0.0
        %v7430 = vmax.f32 %v7290, 0.0
        %v7431 = vmax.f32 %v7293, 0.0
        %v7432 = vmax.f32 %v7295, 0.0
        %v7433 = vmax.f32 %v7298, 0.0
        %v7434 = vmax.f32 %v7300, 0.0
        %v7435 = vmax.f32 %v7303, 0.0
        %v7436 = vmax.f32 %v7305, 0.0
        %v7437 = vmax.f32 %v7308, 0.0
        %v7438 = vmax.f32 %v7310, 0.0
        %v7439 = vmax.f32 %v7313, 0.0
        %v7440 = vmax.f32 %v7315, 0.0
        %v7441 = vmax.f32 %v7318, 0.0
        %v7442 = vmax.f32 %v7320, 0.0
        %v7443 = vmax.f32 %v7323, 0.0
        %v7444 = vmax.f32 %v7325, 0.0
        %v7445 = vmax.f32 %v7328, 0.0
        %v7446 = vmax.f32 %v7330, 0.0
        %v7447 = vmax.f32 %v7333, 0.0
        %v7448 = vmax.f32 %v7335, 0.0
        %v7449 = vsel %vm5789, %v7337, -inf
        %v7450 = vsel %vm5789, %v7341, -inf
        %v7451 = vmax.f32 %v7449, %v7450
        %v7452 = vsel %vm5789, %v7338, -inf
        %v7453 = vsel %vm5789, %v7342, -inf
        %v7454 = vmax.f32 %v7452, %v7453
        %v7455 = vsel %vm5789, %v7339, -inf
        %v7456 = vsel %vm5789, %v7343, -inf
        %v7457 = vmax.f32 %v7455, %v7456
        %v7458 = vsel %vm5789, %v7340, -inf
        %v7459 = vsel %vm5789, %v7344, -inf
        %v7460 = vmax.f32 %v7458, %v7459
        %v7461 = vsel %vm5789, %v7345, -inf
        %v7462 = vsel %vm5789, %v7349, -inf
        %v7463 = vmax.f32 %v7461, %v7462
        %v7464 = vsel %vm5789, %v7346, -inf
        %v7465 = vsel %vm5789, %v7350, -inf
        %v7466 = vmax.f32 %v7464, %v7465
        %v7467 = vsel %vm5789, %v7347, -inf
        %v7468 = vsel %vm5789, %v7351, -inf
        %v7469 = vmax.f32 %v7467, %v7468
        %v7470 = vsel %vm5789, %v7348, -inf
        %v7471 = vsel %vm5789, %v7352, -inf
        %v7472 = vmax.f32 %v7470, %v7471
        %v7473 = vsel %vm5789, %v7353, -inf
        %v7474 = vsel %vm5789, %v7357, -inf
        %v7475 = vmax.f32 %v7473, %v7474
        %v7476 = vsel %vm5789, %v7354, -inf
        %v7477 = vsel %vm5789, %v7358, -inf
        %v7478 = vmax.f32 %v7476, %v7477
        %v7479 = vsel %vm5789, %v7355, -inf
        %v7480 = vsel %vm5789, %v7359, -inf
        %v7481 = vmax.f32 %v7479, %v7480
        %v7482 = vsel %vm5789, %v7356, -inf
        %v7483 = vsel %vm5789, %v7360, -inf
        %v7484 = vmax.f32 %v7482, %v7483
        %v7485 = vsel %vm5789, %v7361, -inf
        %v7486 = vsel %vm5789, %v7365, -inf
        %v7487 = vmax.f32 %v7485, %v7486
        %v7488 = vsel %vm5789, %v7362, -inf
        %v7489 = vsel %vm5789, %v7366, -inf
        %v7490 = vmax.f32 %v7488, %v7489
        %v7491 = vsel %vm5789, %v7363, -inf
        %v7492 = vsel %vm5789, %v7367, -inf
        %v7493 = vmax.f32 %v7491, %v7492
        %v7494 = vsel %vm5789, %v7364, -inf
        %v7495 = vsel %vm5789, %v7368, -inf
        %v7496 = vmax.f32 %v7494, %v7495
        %v7497 = vsel %vm5789, %v7369, -inf
        %v7498 = vsel %vm5789, %v7373, -inf
        %v7499 = vmax.f32 %v7497, %v7498
        %v7500 = vsel %vm5789, %v7370, -inf
        %v7501 = vsel %vm5789, %v7374, -inf
        %v7502 = vmax.f32 %v7500, %v7501
        %v7503 = vsel %vm5789, %v7371, -inf
        %v7504 = vsel %vm5789, %v7375, -inf
        %v7505 = vmax.f32 %v7503, %v7504
        %v7506 = vsel %vm5789, %v7372, -inf
        %v7507 = vsel %vm5789, %v7376, -inf
        %v7508 = vmax.f32 %v7506, %v7507
        %v7509 = vsel %vm5789, %v7377, -inf
        %v7510 = vsel %vm5789, %v7381, -inf
        %v7511 = vmax.f32 %v7509, %v7510
        %v7512 = vsel %vm5789, %v7378, -inf
        %v7513 = vsel %vm5789, %v7382, -inf
        %v7514 = vmax.f32 %v7512, %v7513
        %v7515 = vsel %vm5789, %v7379, -inf
        %v7516 = vsel %vm5789, %v7383, -inf
        %v7517 = vmax.f32 %v7515, %v7516
        %v7518 = vsel %vm5789, %v7380, -inf
        %v7519 = vsel %vm5789, %v7384, -inf
        %v7520 = vmax.f32 %v7518, %v7519
        %v7521 = vsel %vm5789, %v7385, -inf
        %v7522 = vsel %vm5789, %v7389, -inf
        %v7523 = vmax.f32 %v7521, %v7522
        %v7524 = vsel %vm5789, %v7386, -inf
        %v7525 = vsel %vm5789, %v7390, -inf
        %v7526 = vmax.f32 %v7524, %v7525
        %v7527 = vsel %vm5789, %v7387, -inf
        %v7528 = vsel %vm5789, %v7391, -inf
        %v7529 = vmax.f32 %v7527, %v7528
        %v7530 = vsel %vm5789, %v7388, -inf
        %v7531 = vsel %vm5789, %v7392, -inf
        %v7532 = vmax.f32 %v7530, %v7531
        %v7533 = vsel %vm5789, %v7393, -inf
        %v7534 = vsel %vm5789, %v7397, -inf
        %v7535 = vmax.f32 %v7533, %v7534
        %v7536 = vsel %vm5789, %v7394, -inf
        %v7537 = vsel %vm5789, %v7398, -inf
        %v7538 = vmax.f32 %v7536, %v7537
        %v7539 = vsel %vm5789, %v7395, -inf
        %v7540 = vsel %vm5789, %v7399, -inf
        %v7541 = vmax.f32 %v7539, %v7540
        %v7542 = vsel %vm5789, %v7396, -inf
        %v7543 = vsel %vm5789, %v7400, -inf
        %v7544 = vmax.f32 %v7542, %v7543
        %v7545 = vsel %vm5789, %v7401, -inf
        %v7546 = vsel %vm5789, %v7405, -inf
        %v7547 = vmax.f32 %v7545, %v7546
        %v7548 = vsel %vm5789, %v7402, -inf
        %v7549 = vsel %vm5789, %v7406, -inf
        %v7550 = vmax.f32 %v7548, %v7549
        %v7551 = vsel %vm5789, %v7403, -inf
        %v7552 = vsel %vm5789, %v7407, -inf
        %v7553 = vmax.f32 %v7551, %v7552
        %v7554 = vsel %vm5789, %v7404, -inf
        %v7555 = vsel %vm5789, %v7408, -inf
        %v7556 = vmax.f32 %v7554, %v7555
        %v7557 = vsel %vm5789, %v7409, -inf
        %v7558 = vsel %vm5789, %v7413, -inf
        %v7559 = vmax.f32 %v7557, %v7558
        %v7560 = vsel %vm5789, %v7410, -inf
        %v7561 = vsel %vm5789, %v7414, -inf
        %v7562 = vmax.f32 %v7560, %v7561
        %v7563 = vsel %vm5789, %v7411, -inf
        %v7564 = vsel %vm5789, %v7415, -inf
        %v7565 = vmax.f32 %v7563, %v7564
        %v7566 = vsel %vm5789, %v7412, -inf
        %v7567 = vsel %vm5789, %v7416, -inf
        %v7568 = vmax.f32 %v7566, %v7567
        %v7569 = vsel %vm5789, %v7417, -inf
        %v7570 = vsel %vm5789, %v7421, -inf
        %v7571 = vmax.f32 %v7569, %v7570
        %v7572 = vsel %vm5789, %v7418, -inf
        %v7573 = vsel %vm5789, %v7422, -inf
        %v7574 = vmax.f32 %v7572, %v7573
        %v7575 = vsel %vm5789, %v7419, -inf
        %v7576 = vsel %vm5789, %v7423, -inf
        %v7577 = vmax.f32 %v7575, %v7576
        %v7578 = vsel %vm5789, %v7420, -inf
        %v7579 = vsel %vm5789, %v7424, -inf
        %v7580 = vmax.f32 %v7578, %v7579
        %v7581 = vsel %vm5789, %v7425, -inf
        %v7582 = vsel %vm5789, %v7429, -inf
        %v7583 = vmax.f32 %v7581, %v7582
        %v7584 = vsel %vm5789, %v7426, -inf
        %v7585 = vsel %vm5789, %v7430, -inf
        %v7586 = vmax.f32 %v7584, %v7585
        %v7587 = vsel %vm5789, %v7427, -inf
        %v7588 = vsel %vm5789, %v7431, -inf
        %v7589 = vmax.f32 %v7587, %v7588
        %v7590 = vsel %vm5789, %v7428, -inf
        %v7591 = vsel %vm5789, %v7432, -inf
        %v7592 = vmax.f32 %v7590, %v7591
        %v7593 = vsel %vm5789, %v7433, -inf
        %v7594 = vsel %vm5789, %v7437, -inf
        %v7595 = vmax.f32 %v7593, %v7594
        %v7596 = vsel %vm5789, %v7434, -inf
        %v7597 = vsel %vm5789, %v7438, -inf
        %v7598 = vmax.f32 %v7596, %v7597
        %v7599 = vsel %vm5789, %v7435, -inf
        %v7600 = vsel %vm5789, %v7439, -inf
        %v7601 = vmax.f32 %v7599, %v7600
        %v7602 = vsel %vm5789, %v7436, -inf
        %v7603 = vsel %vm5789, %v7440, -inf
        %v7604 = vmax.f32 %v7602, %v7603
        %v7605 = vsel %vm5789, %v7441, -inf
        %v7606 = vsel %vm5789, %v7445, -inf
        %v7607 = vmax.f32 %v7605, %v7606
        %v7608 = vsel %vm5789, %v7442, -inf
        %v7609 = vsel %vm5789, %v7446, -inf
        %v7610 = vmax.f32 %v7608, %v7609
        %v7611 = vsel %vm5789, %v7443, -inf
        %v7612 = vsel %vm5789, %v7447, -inf
        %v7613 = vmax.f32 %v7611, %v7612
        %v7614 = vsel %vm5789, %v7444, -inf
        %v7615 = vsel %vm5789, %v7448, -inf
        %v7616 = vmax.f32 %v7614, %v7615
        %7617 = vst.msk [vmem:[#allocation2] sm:$0xff] %vm5789, %v7451
        %7618 = vst.msk [vmem:[#allocation2 + $0x8] sm:$0xff] %vm5789, %v7454
        %7619 = vst.msk [vmem:[#allocation2 + $0x10] sm:$0xff] %vm5789, %v7457
        %7620 = vst.msk [vmem:[#allocation2 + $0x18] sm:$0xff] %vm5789, %v7460
        %7621 = vst.msk [vmem:[#allocation2 + $0x20] sm:$0xff] %vm5789, %v7463
        %7622 = vst.msk [vmem:[#allocation2 + $0x28] sm:$0xff] %vm5789, %v7466
        %7623 = vst.msk [vmem:[#allocation2 + $0x30] sm:$0xff] %vm5789, %v7469
        %7624 = vst.msk [vmem:[#allocation2 + $0x38] sm:$0xff] %vm5789, %v7472
        %7625 = vst.msk [vmem:[#allocation2 + $0x40] sm:$0xff] %vm5789, %v7475
        %7626 = vst.msk [vmem:[#allocation2 + $0x48] sm:$0xff] %vm5789, %v7478
        %7627 = vst.msk [vmem:[#allocation2 + $0x50] sm:$0xff] %vm5789, %v7481
        %7628 = vst.msk [vmem:[#allocation2 + $0x58] sm:$0xff] %vm5789, %v7484
        %7629 = vst.msk [vmem:[#allocation2 + $0x60] sm:$0xff] %vm5789, %v7487
        %7630 = vst.msk [vmem:[#allocation2 + $0x68] sm:$0xff] %vm5789, %v7490
        %7631 = vst.msk [vmem:[#allocation2 + $0x70] sm:$0xff] %vm5789, %v7493
        %7632 = vst.msk [vmem:[#allocation2 + $0x78] sm:$0xff] %vm5789, %v7496
        %7633 = vst.msk [vmem:[#allocation2 + $0x80] sm:$0xff] %vm5789, %v7499
        %7634 = vst.msk [vmem:[#allocation2 + $0x88] sm:$0xff] %vm5789, %v7502
        %7635 = vst.msk [vmem:[#allocation2 + $0x90] sm:$0xff] %vm5789, %v7505
        %7636 = vst.msk [vmem:[#allocation2 + $0x98] sm:$0xff] %vm5789, %v7508
        %7637 = vst.msk [vmem:[#allocation2 + $0xa0] sm:$0xff] %vm5789, %v7511
        %7638 = vst.msk [vmem:[#allocation2 + $0xa8] sm:$0xff] %vm5789, %v7514
        %7639 = vst.msk [vmem:[#allocation2 + $0xb0] sm:$0xff] %vm5789, %v7517
        %7640 = vst.msk [vmem:[#allocation2 + $0xb8] sm:$0xff] %vm5789, %v7520
        %7641 = vst.msk [vmem:[#allocation2 + $0xc0] sm:$0xff] %vm5789, %v7523
        %7642 = vst.msk [vmem:[#allocation2 + $0xc8] sm:$0xff] %vm5789, %v7526
        %7643 = vst.msk [vmem:[#allocation2 + $0xd0] sm:$0xff] %vm5789, %v7529
        %7644 = vst.msk [vmem:[#allocation2 + $0xd8] sm:$0xff] %vm5789, %v7532
        %7645 = vst.msk [vmem:[#allocation2 + $0xe0] sm:$0xff] %vm5789, %v7535
        %7646 = vst.msk [vmem:[#allocation2 + $0xe8] sm:$0xff] %vm5789, %v7538
        %7647 = vst.msk [vmem:[#allocation2 + $0xf0] sm:$0xff] %vm5789, %v7541
        %7648 = vst.msk [vmem:[#allocation2 + $0xf8] sm:$0xff] %vm5789, %v7544
        %7649 = vst.msk [vmem:[#allocation2 + $0x100] sm:$0xff] %vm5789, %v7547
        %7650 = vst.msk [vmem:[#allocation2 + $0x108] sm:$0xff] %vm5789, %v7550
        %7651 = vst.msk [vmem:[#allocation2 + $0x110] sm:$0xff] %vm5789, %v7553
        %7652 = vst.msk [vmem:[#allocation2 + $0x118] sm:$0xff] %vm5789, %v7556
        %7653 = vst.msk [vmem:[#allocation2 + $0x120] sm:$0xff] %vm5789, %v7559
        %7654 = vst.msk [vmem:[#allocation2 + $0x128] sm:$0xff] %vm5789, %v7562
        %7655 = vst.msk [vmem:[#allocation2 + $0x130] sm:$0xff] %vm5789, %v7565
        %7656 = vst.msk [vmem:[#allocation2 + $0x138] sm:$0xff] %vm5789, %v7568
        %7657 = vst.msk [vmem:[#allocation2 + $0x140] sm:$0xff] %vm5789, %v7571
        %7658 = vst.msk [vmem:[#allocation2 + $0x148] sm:$0xff] %vm5789, %v7574
        %7659 = vst.msk [vmem:[#allocation2 + $0x150] sm:$0xff] %vm5789, %v7577
        %7660 = vst.msk [vmem:[#allocation2 + $0x158] sm:$0xff] %vm5789, %v7580
        %7661 = vst.msk [vmem:[#allocation2 + $0x160] sm:$0xff] %vm5789, %v7583
        %7662 = vst.msk [vmem:[#allocation2 + $0x168] sm:$0xff] %vm5789, %v7586
        %7663 = vst.msk [vmem:[#allocation2 + $0x170] sm:$0xff] %vm5789, %v7589
        %7664 = vst.msk [vmem:[#allocation2 + $0x178] sm:$0xff] %vm5789, %v7592
        %7665 = vst.msk [vmem:[#allocation2 + $0x180] sm:$0xff] %vm5789, %v7595
        %7666 = vst.msk [vmem:[#allocation2 + $0x188] sm:$0xff] %vm5789, %v7598
        %7667 = vst.msk [vmem:[#allocation2 + $0x190] sm:$0xff] %vm5789, %v7601
        %7668 = vst.msk [vmem:[#allocation2 + $0x198] sm:$0xff] %vm5789, %v7604
        %7669 = vst.msk [vmem:[#allocation2 + $0x1a0] sm:$0xff] %vm5789, %v7607
        %7670 = vst.msk [vmem:[#allocation2 + $0x1a8] sm:$0xff] %vm5789, %v7610
        %7671 = vst.msk [vmem:[#allocation2 + $0x1b0] sm:$0xff] %vm5789, %v7613
        %7672 = vst.msk [vmem:[#allocation2 + $0x1b8] sm:$0xff] %vm5789, %v7616
        %v7673 = vld [vmem:[#allocation2] ss:$2 sm:$0xff]
        %s7674 = scalar_lea.vmem [#allocation2], 16
        %v7675 = vld [vmem:[%s7674] ss:$2 sm:$0xff]
        %s7676 = scalar_lea.vmem [#allocation2], 32
        %v7677 = vld [vmem:[%s7676] ss:$2 sm:$0xff]
        %s7678 = scalar_lea.vmem [#allocation2], 48
        %v7679 = vld [vmem:[%s7678] ss:$2 sm:$0xff]
        %s7680 = scalar_lea.vmem [#allocation2], 64
        %v7681 = vld [vmem:[%s7680] ss:$2 sm:$0xff]
        %s7682 = scalar_lea.vmem [#allocation2], 80
        %v7683 = vld [vmem:[%s7682] ss:$2 sm:$0xff]
        %s7684 = scalar_lea.vmem [#allocation2], 96
        %v7685 = vld [vmem:[%s7684] ss:$2 sm:$0xff]
        %s7686 = scalar_lea.vmem [#allocation2], 112
        %v7687 = vld [vmem:[%s7686] ss:$2 sm:$0xff]
        %s7688 = scalar_lea.vmem [#allocation2], 128
        %v7689 = vld [vmem:[%s7688] ss:$2 sm:$0xff]
        %s7690 = scalar_lea.vmem [#allocation2], 144
        %v7691 = vld [vmem:[%s7690] ss:$2 sm:$0xff]
        %s7692 = scalar_lea.vmem [#allocation2], 160
        %v7693 = vld [vmem:[%s7692] ss:$2 sm:$0xff]
        %s7694 = scalar_lea.vmem [#allocation2], 176
        %v7695 = vld [vmem:[%s7694] ss:$2 sm:$0xff]
        %s7696 = scalar_lea.vmem [#allocation2], 192
        %v7697 = vld [vmem:[%s7696] ss:$2 sm:$0xff]
        %s7698 = scalar_lea.vmem [#allocation2], 208
        %v7699 = vld [vmem:[%s7698] ss:$2 sm:$0xff]
        %s7700 = scalar_lea.vmem [#allocation2], 224
        %v7701 = vld [vmem:[%s7700] ss:$2 sm:$0xff]
        %s7702 = scalar_lea.vmem [#allocation2], 240
        %v7703 = vld [vmem:[%s7702] ss:$2 sm:$0xff]
        %s7704 = scalar_lea.vmem [#allocation2], 256
        %v7705 = vld [vmem:[%s7704] ss:$2 sm:$0xff]
        %s7706 = scalar_lea.vmem [#allocation2], 272
        %v7707 = vld [vmem:[%s7706] ss:$2 sm:$0xff]
        %s7708 = scalar_lea.vmem [#allocation2], 288
        %v7709 = vld [vmem:[%s7708] ss:$2 sm:$0xff]
        %s7710 = scalar_lea.vmem [#allocation2], 304
        %v7711 = vld [vmem:[%s7710] ss:$2 sm:$0xff]
        %s7712 = scalar_lea.vmem [#allocation2], 320
        %v7713 = vld [vmem:[%s7712] ss:$2 sm:$0xff]
        %s7714 = scalar_lea.vmem [#allocation2], 336
        %v7715 = vld [vmem:[%s7714] ss:$2 sm:$0xff]
        %s7716 = scalar_lea.vmem [#allocation2], 352
        %v7717 = vld [vmem:[%s7716] ss:$2 sm:$0xff]
        %s7718 = scalar_lea.vmem [#allocation2], 368
        %v7719 = vld [vmem:[%s7718] ss:$2 sm:$0xff]
        %s7720 = scalar_lea.vmem [#allocation2], 384
        %v7721 = vld [vmem:[%s7720] ss:$2 sm:$0xff]
        %s7722 = scalar_lea.vmem [#allocation2], 400
        %v7723 = vld [vmem:[%s7722] ss:$2 sm:$0xff]
        %s7724 = scalar_lea.vmem [#allocation2], 416
        %v7725 = vld [vmem:[%s7724] ss:$2 sm:$0xff]
        %s7726 = scalar_lea.vmem [#allocation2], 432
        %v7727 = vld [vmem:[%s7726] ss:$2 sm:$0xff]
        %s7728 = scalar_lea.vmem [#allocation2], 1
        %v7729 = vld [vmem:[%s7728] ss:$2 sm:$0xff]
        %s7730 = scalar_lea.vmem [#allocation2], 17
        %v7731 = vld [vmem:[%s7730] ss:$2 sm:$0xff]
        %s7732 = scalar_lea.vmem [#allocation2], 33
        %v7733 = vld [vmem:[%s7732] ss:$2 sm:$0xff]
        %s7734 = scalar_lea.vmem [#allocation2], 49
        %v7735 = vld [vmem:[%s7734] ss:$2 sm:$0xff]
        %s7736 = scalar_lea.vmem [#allocation2], 65
        %v7737 = vld [vmem:[%s7736] ss:$2 sm:$0xff]
        %s7738 = scalar_lea.vmem [#allocation2], 81
        %v7739 = vld [vmem:[%s7738] ss:$2 sm:$0xff]
        %s7740 = scalar_lea.vmem [#allocation2], 97
        %v7741 = vld [vmem:[%s7740] ss:$2 sm:$0xff]
        %s7742 = scalar_lea.vmem [#allocation2], 113
        %v7743 = vld [vmem:[%s7742] ss:$2 sm:$0xff]
        %s7744 = scalar_lea.vmem [#allocation2], 129
        %v7745 = vld [vmem:[%s7744] ss:$2 sm:$0xff]
        %s7746 = scalar_lea.vmem [#allocation2], 145
        %v7747 = vld [vmem:[%s7746] ss:$2 sm:$0xff]
        %s7748 = scalar_lea.vmem [#allocation2], 161
        %v7749 = vld [vmem:[%s7748] ss:$2 sm:$0xff]
        %s7750 = scalar_lea.vmem [#allocation2], 177
        %v7751 = vld [vmem:[%s7750] ss:$2 sm:$0xff]
        %s7752 = scalar_lea.vmem [#allocation2], 193
        %v7753 = vld [vmem:[%s7752] ss:$2 sm:$0xff]
        %s7754 = scalar_lea.vmem [#allocation2], 209
        %v7755 = vld [vmem:[%s7754] ss:$2 sm:$0xff]
        %s7756 = scalar_lea.vmem [#allocation2], 225
        %v7757 = vld [vmem:[%s7756] ss:$2 sm:$0xff]
        %s7758 = scalar_lea.vmem [#allocation2], 241
        %v7759 = vld [vmem:[%s7758] ss:$2 sm:$0xff]
        %s7760 = scalar_lea.vmem [#allocation2], 257
        %v7761 = vld [vmem:[%s7760] ss:$2 sm:$0xff]
        %s7762 = scalar_lea.vmem [#allocation2], 273
        %v7763 = vld [vmem:[%s7762] ss:$2 sm:$0xff]
        %s7764 = scalar_lea.vmem [#allocation2], 289
        %v7765 = vld [vmem:[%s7764] ss:$2 sm:$0xff]
        %s7766 = scalar_lea.vmem [#allocation2], 305
        %v7767 = vld [vmem:[%s7766] ss:$2 sm:$0xff]
        %s7768 = scalar_lea.vmem [#allocation2], 321
        %v7769 = vld [vmem:[%s7768] ss:$2 sm:$0xff]
        %s7770 = scalar_lea.vmem [#allocation2], 337
        %v7771 = vld [vmem:[%s7770] ss:$2 sm:$0xff]
        %s7772 = scalar_lea.vmem [#allocation2], 353
        %v7773 = vld [vmem:[%s7772] ss:$2 sm:$0xff]
        %s7774 = scalar_lea.vmem [#allocation2], 369
        %v7775 = vld [vmem:[%s7774] ss:$2 sm:$0xff]
        %s7776 = scalar_lea.vmem [#allocation2], 385
        %v7777 = vld [vmem:[%s7776] ss:$2 sm:$0xff]
        %s7778 = scalar_lea.vmem [#allocation2], 401
        %v7779 = vld [vmem:[%s7778] ss:$2 sm:$0xff]
        %s7780 = scalar_lea.vmem [#allocation2], 417
        %v7781 = vld [vmem:[%s7780] ss:$2 sm:$0xff]
        %s7782 = scalar_lea.vmem [#allocation2], 433
        %v7783 = vld [vmem:[%s7782] ss:$2 sm:$0xff]
        %v7784 = vmax.f32 %v7673, %v7729
        %v7785 = vmax.f32 %v7675, %v7731
        %v7786 = vmax.f32 %v7677, %v7733
        %v7787 = vmax.f32 %v7679, %v7735
        %v7788 = vmax.f32 %v7681, %v7737
        %v7789 = vmax.f32 %v7683, %v7739
        %v7790 = vmax.f32 %v7685, %v7741
        %v7791 = vmax.f32 %v7687, %v7743
        %v7792 = vmax.f32 %v7689, %v7745
        %v7793 = vmax.f32 %v7691, %v7747
        %v7794 = vmax.f32 %v7693, %v7749
        %v7795 = vmax.f32 %v7695, %v7751
        %v7796 = vmax.f32 %v7697, %v7753
        %v7797 = vmax.f32 %v7699, %v7755
        %v7798 = vmax.f32 %v7701, %v7757
        %v7799 = vmax.f32 %v7703, %v7759
        %v7800 = vmax.f32 %v7705, %v7761
        %v7801 = vmax.f32 %v7707, %v7763
        %v7802 = vmax.f32 %v7709, %v7765
        %v7803 = vmax.f32 %v7711, %v7767
        %v7804 = vmax.f32 %v7713, %v7769
        %v7805 = vmax.f32 %v7715, %v7771
        %v7806 = vmax.f32 %v7717, %v7773
        %v7807 = vmax.f32 %v7719, %v7775
        %v7808 = vmax.f32 %v7721, %v7777
        %v7809 = vmax.f32 %v7723, %v7779
        %v7810 = vmax.f32 %v7725, %v7781
        %v7811 = vmax.f32 %v7727, %v7783
        %v7812 = vpack.c.bf16 %v7784, %v7784
        %v7813 = vpack.c.bf16 %v7785, %v7785
        %v7814 = vpack.c.bf16 %v7786, %v7786
        %v7815 = vpack.c.bf16 %v7787, %v7787
        %v7816 = vpack.c.bf16 %v7788, %v7788
        %v7817 = vpack.c.bf16 %v7789, %v7789
        %v7818 = vpack.c.bf16 %v7790, %v7790
        %v7819 = vpack.c.bf16 %v7791, %v7791
        %v7820 = vpack.c.bf16 %v7792, %v7792
        %v7821 = vpack.c.bf16 %v7793, %v7793
        %v7822 = vpack.c.bf16 %v7794, %v7794
        %v7823 = vpack.c.bf16 %v7795, %v7795
        %v7824 = vpack.c.bf16 %v7796, %v7796
        %v7825 = vpack.c.bf16 %v7797, %v7797
        %v7826 = vpack.c.bf16 %v7798, %v7798
        %v7827 = vpack.c.bf16 %v7799, %v7799
        %v7828 = vpack.c.bf16 %v7800, %v7800
        %v7829 = vpack.c.bf16 %v7801, %v7801
        %v7830 = vpack.c.bf16 %v7802, %v7802
        %v7831 = vpack.c.bf16 %v7803, %v7803
        %v7832 = vpack.c.bf16 %v7804, %v7804
        %v7833 = vpack.c.bf16 %v7805, %v7805
        %v7834 = vpack.c.bf16 %v7806, %v7806
        %v7835 = vpack.c.bf16 %v7807, %v7807
        %v7836 = vpack.c.bf16 %v7808, %v7808
        %v7837 = vpack.c.bf16 %v7809, %v7809
        %v7838 = vpack.c.bf16 %v7810, %v7810
        %v7839 = vpack.c.bf16 %v7811, %v7811
        %v7868 = vunpack.c.l.b16 %v7812
        %v7869 = vunpack.c.l.b16 %v7813
        %v7870 = vunpack.c.l.b16 %v7814
        %v7871 = vunpack.c.l.b16 %v7815
        %v7872 = vunpack.c.l.b16 %v7816
        %v7873 = vunpack.c.l.b16 %v7817
        %v7874 = vunpack.c.l.b16 %v7818
        %v7875 = vunpack.c.l.b16 %v7819
        %v7876 = vunpack.c.l.b16 %v7820
        %v7877 = vunpack.c.l.b16 %v7821
        %v7878 = vunpack.c.l.b16 %v7822
        %v7879 = vunpack.c.l.b16 %v7823
        %v7880 = vunpack.c.l.b16 %v7824
        %v7881 = vunpack.c.l.b16 %v7825
        %v7882 = vunpack.c.l.b16 %v7826
        %v7883 = vunpack.c.l.b16 %v7827
        %v7884 = vunpack.c.l.b16 %v7828
        %v7885 = vunpack.c.l.b16 %v7829
        %v7886 = vunpack.c.l.b16 %v7830
        %v7887 = vunpack.c.l.b16 %v7831
        %v7888 = vunpack.c.l.b16 %v7832
        %v7889 = vunpack.c.l.b16 %v7833
        %v7890 = vunpack.c.l.b16 %v7834
        %v7891 = vunpack.c.l.b16 %v7835
        %v7892 = vunpack.c.l.b16 %v7836
        %v7893 = vunpack.c.l.b16 %v7837
        %v7894 = vunpack.c.l.b16 %v7838
        %v7895 = vunpack.c.l.b16 %v7839
        %v7896 = vpack.c.b16 %v7869, %v7868
        %v7897 = vpack.c.b16 %v7871, %v7870
        %v7898 = vpack.c.b16 %v7873, %v7872
        %v7899 = vpack.c.b16 %v7875, %v7874
        %v7900 = vpack.c.b16 %v7877, %v7876
        %v7901 = vpack.c.b16 %v7879, %v7878
        %v7902 = vpack.c.b16 %v7881, %v7880
        %v7903 = vpack.c.b16 %v7883, %v7882
        %v7904 = vpack.c.b16 %v7885, %v7884
        %v7905 = vpack.c.b16 %v7887, %v7886
        %v7906 = vpack.c.b16 %v7889, %v7888
        %v7907 = vpack.c.b16 %v7891, %v7890
        %v7908 = vpack.c.b16 %v7893, %v7892
        %v7909 = vpack.c.b16 %v7895, %v7894
        %v7911 = vshrl.u32 %v7896, 16
        %v7913 = vrot.slane %v7911, 7
        %v7914 = vshll.u32 %v7896, 16
        %v7916 = vor.u32 %v7913, %v7914
        %v7918 = vshrl.u32 %v7897, 16
        %v7920 = vrot.slane %v7918, 7
        %v7921 = vshll.u32 %v7897, 16
        %v7923 = vor.u32 %v7920, %v7921
        %v7925 = vshrl.u32 %v7898, 16
        %v7927 = vrot.slane %v7925, 7
        %v7928 = vshll.u32 %v7898, 16
        %v7930 = vor.u32 %v7927, %v7928
        %v7932 = vshrl.u32 %v7899, 16
        %v7934 = vrot.slane %v7932, 7
        %v7935 = vshll.u32 %v7899, 16
        %v7937 = vor.u32 %v7934, %v7935
        %v7939 = vshrl.u32 %v7900, 16
        %v7941 = vrot.slane %v7939, 7
        %v7942 = vshll.u32 %v7900, 16
        %v7944 = vor.u32 %v7941, %v7942
        %v7946 = vshrl.u32 %v7901, 16
        %v7948 = vrot.slane %v7946, 7
        %v7949 = vshll.u32 %v7901, 16
        %v7951 = vor.u32 %v7948, %v7949
        %v7953 = vshrl.u32 %v7902, 16
        %v7955 = vrot.slane %v7953, 7
        %v7956 = vshll.u32 %v7902, 16
        %v7958 = vor.u32 %v7955, %v7956
        %v7960 = vshrl.u32 %v7903, 16
        %v7962 = vrot.slane %v7960, 7
        %v7963 = vshll.u32 %v7903, 16
        %v7965 = vor.u32 %v7962, %v7963
        %v7967 = vshrl.u32 %v7904, 16
        %v7969 = vrot.slane %v7967, 7
        %v7970 = vshll.u32 %v7904, 16
        %v7972 = vor.u32 %v7969, %v7970
        %v7974 = vshrl.u32 %v7905, 16
        %v7976 = vrot.slane %v7974, 7
        %v7977 = vshll.u32 %v7905, 16
        %v7979 = vor.u32 %v7976, %v7977
        %v7981 = vshrl.u32 %v7906, 16
        %v7983 = vrot.slane %v7981, 7
        %v7984 = vshll.u32 %v7906, 16
        %v7986 = vor.u32 %v7983, %v7984
        %v7988 = vshrl.u32 %v7907, 16
        %v7990 = vrot.slane %v7988, 7
        %v7991 = vshll.u32 %v7907, 16
        %v7993 = vor.u32 %v7990, %v7991
        %v7995 = vshrl.u32 %v7908, 16
        %v7997 = vrot.slane %v7995, 7
        %v7998 = vshll.u32 %v7908, 16
        %v8000 = vor.u32 %v7997, %v7998
        %v8002 = vshrl.u32 %v7909, 16
        %v8004 = vrot.slane %v8002, 7
        %v8005 = vshll.u32 %v7909, 16
        %v8007 = vor.u32 %v8004, %v8005
        %v8022 = vpack.c.b16 %v7869, %v7869
        %v8023 = vpack.c.b16 %v7871, %v7871
        %v8024 = vpack.c.b16 %v7873, %v7873
        %v8025 = vpack.c.b16 %v7875, %v7875
        %v8026 = vpack.c.b16 %v7877, %v7877
        %v8027 = vpack.c.b16 %v7879, %v7879
        %v8028 = vpack.c.b16 %v7881, %v7881
        %v8029 = vpack.c.b16 %v7883, %v7883
        %v8030 = vpack.c.b16 %v7885, %v7885
        %v8031 = vpack.c.b16 %v7887, %v7887
        %v8032 = vpack.c.b16 %v7889, %v7889
        %v8033 = vpack.c.b16 %v7891, %v7891
        %v8034 = vpack.c.b16 %v7893, %v7893
        %v8035 = vpack.c.b16 %v7895, %v7895
        %v8036 = vrot.slane %v8022, 3
        %v8037 = vrot.slane %v8023, 3
        %v8038 = vrot.slane %v8024, 3
        %v8039 = vrot.slane %v8025, 3
        %v8040 = vrot.slane %v8026, 3
        %v8041 = vrot.slane %v8027, 3
        %v8042 = vrot.slane %v8028, 3
        %v8043 = vrot.slane %v8029, 3
        %v8044 = vrot.slane %v8030, 3
        %v8045 = vrot.slane %v8031, 3
        %v8046 = vrot.slane %v8032, 3
        %v8047 = vrot.slane %v8033, 3
        %v8048 = vrot.slane %v8034, 3
        %v8049 = vrot.slane %v8035, 3
        %v8064 = vsel %vm1505, %v7812, %v7916
        %v8065 = vsel %vm1505, %v7814, %v7923
        %v8066 = vsel %vm1505, %v7816, %v7930
        %v8067 = vsel %vm1505, %v7818, %v7937
        %v8068 = vsel %vm1505, %v7820, %v7944
        %v8069 = vsel %vm1505, %v7822, %v7951
        %v8070 = vsel %vm1505, %v7824, %v7958
        %v8071 = vsel %vm1505, %v7826, %v7965
        %v8072 = vsel %vm1505, %v7828, %v7972
        %v8073 = vsel %vm1505, %v7830, %v7979
        %v8074 = vsel %vm1505, %v7832, %v7986
        %v8075 = vsel %vm1505, %v7834, %v7993
        %v8076 = vsel %vm1505, %v7836, %v8000
        %v8077 = vsel %vm1505, %v7838, %v8007
        %vm8078 = vcmask 1047552
        %vm8079 = vmand %vm8078, %vm1650
        %v8080 = vsel %vm8079, %v8064, %v8036
        %v8081 = vsel %vm8079, %v8065, %v8037
        %v8082 = vsel %vm8079, %v8066, %v8038
        %v8083 = vsel %vm8079, %v8067, %v8039
        %v8084 = vsel %vm8079, %v8068, %v8040
        %v8085 = vsel %vm8079, %v8069, %v8041
        %v8086 = vsel %vm8079, %v8070, %v8042
        %v8087 = vsel %vm8079, %v8071, %v8043
        %v8088 = vsel %vm8079, %v8072, %v8044
        %v8089 = vsel %vm8079, %v8073, %v8045
        %v8090 = vsel %vm8079, %v8074, %v8046
        %v8091 = vsel %vm8079, %v8075, %v8047
        %v8092 = vsel %vm8079, %v8076, %v8048
        %v8093 = vsel %vm8079, %v8077, %v8049
        %v8095 = vshrl.u32 %v8080, 16
        %v8097 = vshll.u32 %v8080, 16
        %v8099 = vrot.slane %v8097, 1
        %v8100 = vor.u32 %v8095, %v8099
        %v8101 = vsel %vm1650, %v8100, %v8099
        %v8103 = vshll.u32 %v8081, 16
        %v8105 = vrot.slane %v8103, 1
        %v8106 = vsel %vm1650, %v8100, %v8105
        %v8107 = vshrl.u32 %v8081, 16
        %v8109 = vor.u32 %v8107, %v8105
        %v8111 = vshll.u32 %v8082, 16
        %v8113 = vrot.slane %v8111, 1
        %v8114 = vsel %vm1650, %v8109, %v8113
        %v8115 = vshrl.u32 %v8082, 16
        %v8117 = vor.u32 %v8115, %v8113
        %v8119 = vshll.u32 %v8083, 16
        %v8121 = vrot.slane %v8119, 1
        %v8122 = vsel %vm1650, %v8117, %v8121
        %v8123 = vshrl.u32 %v8083, 16
        %v8125 = vor.u32 %v8123, %v8121
        %v8127 = vshll.u32 %v8084, 16
        %v8129 = vrot.slane %v8127, 1
        %v8130 = vsel %vm1650, %v8125, %v8129
        %v8131 = vshrl.u32 %v8084, 16
        %v8133 = vor.u32 %v8131, %v8129
        %v8135 = vshll.u32 %v8085, 16
        %v8137 = vrot.slane %v8135, 1
        %v8138 = vsel %vm1650, %v8133, %v8137
        %v8139 = vshrl.u32 %v8085, 16
        %v8141 = vor.u32 %v8139, %v8137
        %v8143 = vshll.u32 %v8086, 16
        %v8145 = vrot.slane %v8143, 1
        %v8146 = vsel %vm1650, %v8141, %v8145
        %v8147 = vshrl.u32 %v8086, 16
        %v8149 = vor.u32 %v8147, %v8145
        %v8151 = vshll.u32 %v8087, 16
        %v8153 = vrot.slane %v8151, 1
        %v8154 = vsel %vm1650, %v8149, %v8153
        %v8155 = vshrl.u32 %v8087, 16
        %v8157 = vor.u32 %v8155, %v8153
        %v8159 = vshll.u32 %v8088, 16
        %v8161 = vrot.slane %v8159, 1
        %v8162 = vsel %vm1650, %v8157, %v8161
        %v8163 = vshrl.u32 %v8088, 16
        %v8165 = vor.u32 %v8163, %v8161
        %v8167 = vshll.u32 %v8089, 16
        %v8169 = vrot.slane %v8167, 1
        %v8170 = vsel %vm1650, %v8165, %v8169
        %v8171 = vshrl.u32 %v8089, 16
        %v8173 = vor.u32 %v8171, %v8169
        %v8175 = vshll.u32 %v8090, 16
        %v8177 = vrot.slane %v8175, 1
        %v8178 = vsel %vm1650, %v8173, %v8177
        %v8179 = vshrl.u32 %v8090, 16
        %v8181 = vor.u32 %v8179, %v8177
        %v8183 = vshll.u32 %v8091, 16
        %v8185 = vrot.slane %v8183, 1
        %v8186 = vsel %vm1650, %v8181, %v8185
        %v8187 = vshrl.u32 %v8091, 16
        %v8189 = vor.u32 %v8187, %v8185
        %v8191 = vshll.u32 %v8092, 16
        %v8193 = vrot.slane %v8191, 1
        %v8194 = vsel %vm1650, %v8189, %v8193
        %v8195 = vshrl.u32 %v8092, 16
        %v8197 = vor.u32 %v8195, %v8193
        %v8199 = vshll.u32 %v8093, 16
        %v8201 = vrot.slane %v8199, 1
        %v8202 = vsel %vm1650, %v8197, %v8201
        %v8203 = vshrl.u32 %v8093, 16
        %v8205 = vor.u32 %v8203, %v8201
        %v8206 = vsel %vm1650, %v8205, %v8201
        %8207 = vrot.lane.b32.xlu0 %v8101, 16
        %v8208 = vpop.permute.xlu0 %8207
        %8209 = vrot.lane.b32.xlu0 %v8106, 16
        %v8210 = vpop.permute.xlu0 %8209
        %8211 = vrot.lane.b32.xlu0 %v8114, 16
        %v8212 = vpop.permute.xlu0 %8211
        %8213 = vrot.lane.b32.xlu0 %v8122, 16
        %v8214 = vpop.permute.xlu0 %8213
        %8215 = vrot.lane.b32.xlu0 %v8130, 16
        %v8216 = vpop.permute.xlu0 %8215
        %8217 = vrot.lane.b32.xlu0 %v8138, 16
        %v8218 = vpop.permute.xlu0 %8217
        %8219 = vrot.lane.b32.xlu0 %v8146, 16
        %v8220 = vpop.permute.xlu0 %8219
        %8221 = vrot.lane.b32.xlu0 %v8154, 16
        %v8222 = vpop.permute.xlu0 %8221
        %8223 = vrot.lane.b32.xlu0 %v8162, 16
        %v8224 = vpop.permute.xlu0 %8223
        %8225 = vrot.lane.b32.xlu0 %v8170, 16
        %v8226 = vpop.permute.xlu0 %8225
        %8227 = vrot.lane.b32.xlu0 %v8178, 16
        %v8228 = vpop.permute.xlu0 %8227
        %8229 = vrot.lane.b32.xlu0 %v8186, 16
        %v8230 = vpop.permute.xlu0 %8229
        %8231 = vrot.lane.b32.xlu0 %v8194, 16
        %v8232 = vpop.permute.xlu0 %8231
        %8233 = vrot.lane.b32.xlu0 %v8202, 16
        %v8234 = vpop.permute.xlu0 %8233
        %8235 = vrot.lane.b32.xlu0 %v8206, 16
        %v8236 = vpop.permute.xlu0 %8235
        %v8251 = vrot.slane %v8080, 1
        %v8252 = vsel %vm1534, %v8251, %v8251
        %v8253 = vrot.slane %v8081, 1
        %v8254 = vsel %vm1534, %v8251, %v8253
        %v8255 = vrot.slane %v8082, 1
        %v8256 = vsel %vm1534, %v8253, %v8255
        %v8257 = vrot.slane %v8083, 1
        %v8258 = vsel %vm1534, %v8255, %v8257
        %v8259 = vrot.slane %v8084, 1
        %v8260 = vsel %vm1534, %v8257, %v8259
        %v8261 = vrot.slane %v8085, 1
        %v8262 = vsel %vm1534, %v8259, %v8261
        %v8263 = vrot.slane %v8086, 1
        %v8264 = vsel %vm1534, %v8261, %v8263
        %v8265 = vrot.slane %v8087, 1
        %v8266 = vsel %vm1534, %v8263, %v8265
        %v8267 = vrot.slane %v8088, 1
        %v8268 = vsel %vm1534, %v8265, %v8267
        %v8269 = vrot.slane %v8089, 1
        %v8270 = vsel %vm1534, %v8267, %v8269
        %v8271 = vrot.slane %v8090, 1
        %v8272 = vsel %vm1534, %v8269, %v8271
        %v8273 = vrot.slane %v8091, 1
        %v8274 = vsel %vm1534, %v8271, %v8273
        %v8275 = vrot.slane %v8092, 1
        %v8276 = vsel %vm1534, %v8273, %v8275
        %v8277 = vrot.slane %v8093, 1
        %v8278 = vsel %vm1534, %v8275, %v8277
        %v8279 = vsel %vm1534, %v8277, %v8277
        %8280 = vrot.lane.b32.xlu0 %v8252, 32
        %v8281 = vpop.permute.xlu0 %8280
        %8282 = vrot.lane.b32.xlu0 %v8254, 32
        %v8283 = vpop.permute.xlu0 %8282
        %8284 = vrot.lane.b32.xlu0 %v8256, 32
        %v8285 = vpop.permute.xlu0 %8284
        %8286 = vrot.lane.b32.xlu0 %v8258, 32
        %v8287 = vpop.permute.xlu0 %8286
        %8288 = vrot.lane.b32.xlu0 %v8260, 32
        %v8289 = vpop.permute.xlu0 %8288
        %8290 = vrot.lane.b32.xlu0 %v8262, 32
        %v8291 = vpop.permute.xlu0 %8290
        %8292 = vrot.lane.b32.xlu0 %v8264, 32
        %v8293 = vpop.permute.xlu0 %8292
        %8294 = vrot.lane.b32.xlu0 %v8266, 32
        %v8295 = vpop.permute.xlu0 %8294
        %8296 = vrot.lane.b32.xlu0 %v8268, 32
        %v8297 = vpop.permute.xlu0 %8296
        %8298 = vrot.lane.b32.xlu0 %v8270, 32
        %v8299 = vpop.permute.xlu0 %8298
        %8300 = vrot.lane.b32.xlu0 %v8272, 32
        %v8301 = vpop.permute.xlu0 %8300
        %8302 = vrot.lane.b32.xlu0 %v8274, 32
        %v8303 = vpop.permute.xlu0 %8302
        %8304 = vrot.lane.b32.xlu0 %v8276, 32
        %v8305 = vpop.permute.xlu0 %8304
        %8306 = vrot.lane.b32.xlu0 %v8278, 32
        %v8307 = vpop.permute.xlu0 %8306
        %8308 = vrot.lane.b32.xlu0 %v8279, 32
        %v8309 = vpop.permute.xlu0 %8308
        %v8311 = vsel %vm5789, %v8080, %v8208
        %v8313 = vsel %vm5789, %v8080, %v8210
        %v8315 = vsel %vm5789, %v8081, %v8212
        %v8317 = vsel %vm5789, %v8082, %v8214
        %v8319 = vsel %vm5789, %v8083, %v8216
        %v8321 = vsel %vm5789, %v8084, %v8218
        %v8323 = vsel %vm5789, %v8085, %v8220
        %v8325 = vsel %vm5789, %v8086, %v8222
        %v8327 = vsel %vm5789, %v8087, %v8224
        %v8329 = vsel %vm5789, %v8088, %v8226
        %v8331 = vsel %vm5789, %v8089, %v8228
        %v8333 = vsel %vm5789, %v8090, %v8230
        %v8335 = vsel %vm5789, %v8091, %v8232
        %v8337 = vsel %vm5789, %v8092, %v8234
        %v8339 = vsel %vm5789, %v8093, %v8236
        %v8341 = vsel %vm5904, %v8311, %v8281
        %v8343 = vsel %vm5904, %v8313, %v8283
        %v8345 = vsel %vm5904, %v8315, %v8285
        %v8347 = vsel %vm5904, %v8317, %v8287
        %v8349 = vsel %vm5904, %v8319, %v8289
        %v8351 = vsel %vm5904, %v8321, %v8291
        %v8353 = vsel %vm5904, %v8323, %v8293
        %v8355 = vsel %vm5904, %v8325, %v8295
        %v8357 = vsel %vm5904, %v8327, %v8297
        %v8359 = vsel %vm5904, %v8329, %v8299
        %v8361 = vsel %vm5904, %v8331, %v8301
        %v8363 = vsel %vm5904, %v8333, %v8303
        %v8365 = vsel %vm5904, %v8335, %v8305
        %v8367 = vsel %vm5904, %v8337, %v8307
        %v8369 = vsel %vm5904, %v8339, %v8309
        %8384 = vrot.lane.b32.xlu0 %v8343, 48
        %v8385 = vpop.permute.xlu0 %8384
        %8386 = vrot.lane.b32.xlu0 %v8345, 48
        %v8387 = vpop.permute.xlu0 %8386
        %8388 = vrot.lane.b32.xlu0 %v8347, 48
        %v8389 = vpop.permute.xlu0 %8388
        %8390 = vrot.lane.b32.xlu0 %v8349, 48
        %v8391 = vpop.permute.xlu0 %8390
        %8392 = vrot.lane.b32.xlu0 %v8351, 48
        %v8393 = vpop.permute.xlu0 %8392
        %8394 = vrot.lane.b32.xlu0 %v8353, 48
        %v8395 = vpop.permute.xlu0 %8394
        %8396 = vrot.lane.b32.xlu0 %v8355, 48
        %v8397 = vpop.permute.xlu0 %8396
        %8398 = vrot.lane.b32.xlu0 %v8357, 48
        %v8399 = vpop.permute.xlu0 %8398
        %8400 = vrot.lane.b32.xlu0 %v8359, 48
        %v8401 = vpop.permute.xlu0 %8400
        %8402 = vrot.lane.b32.xlu0 %v8361, 48
        %v8403 = vpop.permute.xlu0 %8402
        %8404 = vrot.lane.b32.xlu0 %v8363, 48
        %v8405 = vpop.permute.xlu0 %8404
        %8406 = vrot.lane.b32.xlu0 %v8365, 48
        %v8407 = vpop.permute.xlu0 %8406
        %8408 = vrot.lane.b32.xlu0 %v8367, 48
        %v8409 = vpop.permute.xlu0 %8408
        %8410 = vrot.lane.b32.xlu0 %v8369, 48
        %v8411 = vpop.permute.xlu0 %8410
        %8412 = vrot.lane.b32.xlu0 %v8345, 96
        %v8413 = vpop.permute.xlu0 %8412
        %8414 = vrot.lane.b32.xlu0 %v8347, 96
        %v8415 = vpop.permute.xlu0 %8414
        %8416 = vrot.lane.b32.xlu0 %v8349, 96
        %v8417 = vpop.permute.xlu0 %8416
        %8418 = vrot.lane.b32.xlu0 %v8351, 96
        %v8419 = vpop.permute.xlu0 %8418
        %8420 = vrot.lane.b32.xlu0 %v8353, 96
        %v8421 = vpop.permute.xlu0 %8420
        %8422 = vrot.lane.b32.xlu0 %v8355, 96
        %v8423 = vpop.permute.xlu0 %8422
        %8424 = vrot.lane.b32.xlu0 %v8357, 96
        %v8425 = vpop.permute.xlu0 %8424
        %8426 = vrot.lane.b32.xlu0 %v8359, 96
        %v8427 = vpop.permute.xlu0 %8426
        %8428 = vrot.lane.b32.xlu0 %v8361, 96
        %v8429 = vpop.permute.xlu0 %8428
        %8430 = vrot.lane.b32.xlu0 %v8363, 96
        %v8431 = vpop.permute.xlu0 %8430
        %8432 = vrot.lane.b32.xlu0 %v8365, 96
        %v8433 = vpop.permute.xlu0 %8432
        %8434 = vrot.lane.b32.xlu0 %v8367, 96
        %v8435 = vpop.permute.xlu0 %8434
        %8436 = vrot.lane.b32.xlu0 %v8369, 96
        %v8437 = vpop.permute.xlu0 %8436
        %v8439 = vsel %vm6295, %v8341, %v8385
        %v8441 = vsel %vm6295, %v8343, %v8387
        %v8443 = vsel %vm6295, %v8345, %v8389
        %v8445 = vsel %vm6295, %v8347, %v8391
        %v8447 = vsel %vm6295, %v8349, %v8393
        %v8449 = vsel %vm6295, %v8351, %v8395
        %v8451 = vsel %vm6295, %v8353, %v8397
        %v8453 = vsel %vm6295, %v8355, %v8399
        %v8455 = vsel %vm6295, %v8357, %v8401
        %v8457 = vsel %vm6295, %v8359, %v8403
        %v8459 = vsel %vm6295, %v8361, %v8405
        %v8461 = vsel %vm6295, %v8363, %v8407
        %v8463 = vsel %vm6295, %v8365, %v8409
        %v8465 = vsel %vm6295, %v8367, %v8411
        %v8467 = vsel %vm6408, %v8439, %v8413
        %v8470 = vsel %vm6408, %v8441, %v8415
        %v8473 = vsel %vm6408, %v8443, %v8417
        %v8476 = vsel %vm6408, %v8445, %v8419
        %v8479 = vsel %vm6408, %v8447, %v8421
        %v8482 = vsel %vm6408, %v8449, %v8423
        %v8485 = vsel %vm6408, %v8451, %v8425
        %v8488 = vsel %vm6408, %v8453, %v8427
        %v8491 = vsel %vm6408, %v8455, %v8429
        %v8494 = vsel %vm6408, %v8457, %v8431
        %v8497 = vsel %vm6408, %v8459, %v8433
        %v8500 = vsel %vm6408, %v8461, %v8435
        %v8503 = vsel %vm6408, %v8463, %v8437
        %v8505 = vsel %vm6408, %v8465, %v8437
        %v8507 = vld [vmem:[%s5] sm:$0xf]
        %v8508 = vld [vmem:[%s5 + $0x4] sm:$0xf]
        %v8509 = vld [vmem:[%s5 + $0x8] sm:$0xf]
        %v8510 = vld [vmem:[%s5 + $0xc] sm:$0xf]
        %v8511 = vld [vmem:[%s5 + $0x10] sm:$0xf]
        %v8512 = vld [vmem:[%s5 + $0x14] sm:$0xf]
        %v8513 = vld [vmem:[%s5 + $0x18] sm:$0xf]
        %v8514 = vld [vmem:[%s5 + $0x1c] sm:$0xf]
        %v8515 = vld [vmem:[%s5 + $0x20] sm:$0xf]
        %v8516 = vld [vmem:[%s5 + $0x24] sm:$0xf]
        %v8517 = vld [vmem:[%s5 + $0x28] sm:$0xf]
        %v8518 = vld [vmem:[%s5 + $0x2c] sm:$0xf]
        %v8519 = vld [vmem:[%s5 + $0x30] sm:$0xf]
        %v8520 = vld [vmem:[%s5 + $0x34] sm:$0xf]
        %v8521 = vld [vmem:[%s5 + $0x38] sm:$0xf]
        %v8522 = vld [vmem:[%s5 + $0x3c] sm:$0xf]
        %v8523 = vld [vmem:[%s5 + $0x40] sm:$0xf]
        %v8524 = vld [vmem:[%s5 + $0x44] sm:$0xf]
        %v8525 = vld [vmem:[%s6] sm:$0x1]
        %v8527 = vperm.slane %v8525, 0
        %v8547 = vunpack.c.l.b16 %v8507
        %v8548 = vunpack.c.l.b16 %v8508
        %v8549 = vunpack.c.l.b16 %v8509
        %v8550 = vunpack.c.l.b16 %v8510
        %v8551 = vunpack.c.l.b16 %v8511
        %v8552 = vunpack.c.l.b16 %v8512
        %v8553 = vunpack.c.l.b16 %v8513
        %v8554 = vunpack.c.l.b16 %v8514
        %v8555 = vunpack.c.l.b16 %v8515
        %v8556 = vunpack.c.l.b16 %v8516
        %v8557 = vunpack.c.l.b16 %v8517
        %v8558 = vunpack.c.l.b16 %v8518
        %v8559 = vunpack.c.l.b16 %v8519
        %v8560 = vunpack.c.l.b16 %v8520
        %v8561 = vunpack.c.l.b16 %v8521
        %v8562 = vunpack.c.l.b16 %v8522
        %v8563 = vunpack.c.l.b16 %v8523
        %v8564 = vunpack.c.l.b16 %v8524
        %v8565 = vpack.c.b16 %v8548, %v8547
        %v8566 = vpack.c.b16 %v8550, %v8549
        %v8567 = vpack.c.b16 %v8552, %v8551
        %v8568 = vpack.c.b16 %v8554, %v8553
        %v8569 = vpack.c.b16 %v8556, %v8555
        %v8570 = vpack.c.b16 %v8558, %v8557
        %v8571 = vpack.c.b16 %v8560, %v8559
        %v8572 = vpack.c.b16 %v8562, %v8561
        %v8573 = vpack.c.b16 %v8564, %v8563
        %v8583 = vsel %vm5789, %v8413, 0
        %v8585 = vsel %vm5789, %v8415, 0
        %v8587 = vsel %vm5789, %v8417, 0
        %v8589 = vsel %vm5789, %v8419, 0
        %v8591 = vsel %vm5789, %v8421, 0
        %v8593 = vsel %vm5789, %v8423, 0
        %v8595 = vsel %vm5789, %v8425, 0
        %v8597 = vsel %vm5789, %v8427, 0
        %v8599 = vsel %vm5789, %v8429, 0
        %v8601 = vsel %vm5789, %v8431, 0
        %v8603 = vsel %vm5789, %v8433, 0
        %v8605 = vsel %vm5789, %v8435, 0
        %v8607 = vsel %vm5789, %v8437, 0
        %8609 = vmatpush.bf16.msra.mxu0 %v8572
        %8610 = vmatpush.bf16.msra.mxu0 %v8571
        %8611 = vmatpush.bf16.msra.mxu0 %v8570
        %8612 = vmatpush.bf16.msra.mxu0 %v8569
        %8613 = vmatpush.bf16.msra.mxu0 %v8568
        %8614 = vmatpush.bf16.msra.mxu0 %v8567
        %8615 = vmatpush.bf16.msra.mxu0 %v8566
        %8616 = vmatpush.bf16.msra.mxu0 %v8565
        %8617 = vmatmul.bf16.gmra.mxu0 %v8467
        %v8618 = vpop.f32.mrf.mxu0
        %v8619 = vadd.f32 %v8527, %v8618
        %v8620 = vpop.f32.mrf.mxu0
        %v8621 = vadd.f32 %v8527, %v8620
        %8622 = vmatmul.bf16.gmra.mxu0 %v8470
        %v8623 = vpop.f32.mrf.mxu0
        %v8624 = vadd.f32 %v8527, %v8623
        %v8625 = vpop.f32.mrf.mxu0
        %v8626 = vadd.f32 %v8527, %v8625
        %8627 = vmatmul.bf16.gmra.mxu0 %v8473
        %v8628 = vpop.f32.mrf.mxu0
        %v8629 = vadd.f32 %v8527, %v8628
        %v8630 = vpop.f32.mrf.mxu0
        %v8631 = vadd.f32 %v8527, %v8630
        %8632 = vmatmul.bf16.gmra.mxu0 %v8476
        %v8633 = vpop.f32.mrf.mxu0
        %v8634 = vadd.f32 %v8527, %v8633
        %v8635 = vpop.f32.mrf.mxu0
        %v8636 = vadd.f32 %v8527, %v8635
        %8637 = vmatmul.bf16.gmra.mxu0 %v8479
        %v8638 = vpop.f32.mrf.mxu0
        %v8639 = vadd.f32 %v8527, %v8638
        %v8640 = vpop.f32.mrf.mxu0
        %v8641 = vadd.f32 %v8527, %v8640
        %8642 = vmatmul.bf16.gmra.mxu0 %v8482
        %v8643 = vpop.f32.mrf.mxu0
        %v8644 = vadd.f32 %v8527, %v8643
        %v8645 = vpop.f32.mrf.mxu0
        %v8646 = vadd.f32 %v8527, %v8645
        %8647 = vmatmul.bf16.gmra.mxu0 %v8485
        %v8648 = vpop.f32.mrf.mxu0
        %v8649 = vadd.f32 %v8527, %v8648
        %v8650 = vpop.f32.mrf.mxu0
        %v8651 = vadd.f32 %v8527, %v8650
        %8652 = vmatmul.bf16.gmra.mxu0 %v8488
        %v8653 = vpop.f32.mrf.mxu0
        %v8654 = vadd.f32 %v8527, %v8653
        %v8655 = vpop.f32.mrf.mxu0
        %v8656 = vadd.f32 %v8527, %v8655
        %8657 = vmatmul.bf16.gmra.mxu0 %v8491
        %v8658 = vpop.f32.mrf.mxu0
        %v8659 = vadd.f32 %v8527, %v8658
        %v8660 = vpop.f32.mrf.mxu0
        %v8661 = vadd.f32 %v8527, %v8660
        %8662 = vmatmul.bf16.gmra.mxu0 %v8494
        %v8663 = vpop.f32.mrf.mxu0
        %v8664 = vadd.f32 %v8527, %v8663
        %v8665 = vpop.f32.mrf.mxu0
        %v8666 = vadd.f32 %v8527, %v8665
        %8667 = vmatmul.bf16.gmra.mxu0 %v8497
        %v8668 = vpop.f32.mrf.mxu0
        %v8669 = vadd.f32 %v8527, %v8668
        %v8670 = vpop.f32.mrf.mxu0
        %v8671 = vadd.f32 %v8527, %v8670
        %8672 = vmatmul.bf16.gmra.mxu0 %v8500
        %v8673 = vpop.f32.mrf.mxu0
        %v8674 = vadd.f32 %v8527, %v8673
        %v8675 = vpop.f32.mrf.mxu0
        %v8676 = vadd.f32 %v8527, %v8675
        %8677 = vmatmul.bf16.gmra.mxu0 %v8503
        %v8678 = vpop.f32.mrf.mxu0
        %v8679 = vadd.f32 %v8527, %v8678
        %v8680 = vpop.f32.mrf.mxu0
        %v8681 = vadd.f32 %v8527, %v8680
        %8682 = vmatmul.bf16.gmra.mxu0 %v8505
        %v8683 = vpop.f32.mrf.mxu0
        %v8684 = vadd.f32 %v8527, %v8683
        %v8685 = vpop.f32.mrf.mxu0
        %v8686 = vadd.f32 %v8527, %v8685
        %8687 = vdwg.mxu0
        %8688 = vmatpush.bf16.msra.mxu0 0
        %8689 = vmatpush.bf16.msra.mxu0 0
        %8690 = vmatpush.bf16.msra.mxu0 0
        %8691 = vmatpush.bf16.msra.mxu0 0
        %8692 = vmatpush.bf16.msra.mxu0 0
        %8693 = vmatpush.bf16.msra.mxu0 0
        %8694 = vmatpush.bf16.msra.mxu0 0
        %8695 = vmatpush.bf16.msra.mxu0 %v8573
        %8696 = vmatmul.bf16.gmra.mxu0 %v8583
        %v8697 = vpop.f32.mrf.mxu0
        %v8698 = vadd.f32 %v8619, %v8697
        %v8699 = vpop.f32.mrf.mxu0
        %v8700 = vadd.f32 %v8621, %v8699
        %8701 = vmatmul.bf16.gmra.mxu0 %v8585
        %v8702 = vpop.f32.mrf.mxu0
        %v8703 = vadd.f32 %v8624, %v8702
        %v8704 = vpop.f32.mrf.mxu0
        %v8705 = vadd.f32 %v8626, %v8704
        %8706 = vmatmul.bf16.gmra.mxu0 %v8587
        %v8707 = vpop.f32.mrf.mxu0
        %v8708 = vadd.f32 %v8629, %v8707
        %v8709 = vpop.f32.mrf.mxu0
        %v8710 = vadd.f32 %v8631, %v8709
        %8711 = vmatmul.bf16.gmra.mxu0 %v8589
        %v8712 = vpop.f32.mrf.mxu0
        %v8713 = vadd.f32 %v8634, %v8712
        %v8714 = vpop.f32.mrf.mxu0
        %v8715 = vadd.f32 %v8636, %v8714
        %8716 = vmatmul.bf16.gmra.mxu0 %v8591
        %v8717 = vpop.f32.mrf.mxu0
        %v8718 = vadd.f32 %v8639, %v8717
        %v8719 = vpop.f32.mrf.mxu0
        %v8720 = vadd.f32 %v8641, %v8719
        %8721 = vmatmul.bf16.gmra.mxu0 %v8593
        %v8722 = vpop.f32.mrf.mxu0
        %v8723 = vadd.f32 %v8644, %v8722
        %v8724 = vpop.f32.mrf.mxu0
        %v8725 = vadd.f32 %v8646, %v8724
        %8726 = vmatmul.bf16.gmra.mxu0 %v8595
        %v8727 = vpop.f32.mrf.mxu0
        %v8728 = vadd.f32 %v8649, %v8727
        %v8729 = vpop.f32.mrf.mxu0
        %v8730 = vadd.f32 %v8651, %v8729
        %8731 = vmatmul.bf16.gmra.mxu0 %v8597
        %v8732 = vpop.f32.mrf.mxu0
        %v8733 = vadd.f32 %v8654, %v8732
        %v8734 = vpop.f32.mrf.mxu0
        %v8735 = vadd.f32 %v8656, %v8734
        %8736 = vmatmul.bf16.gmra.mxu0 %v8599
        %v8737 = vpop.f32.mrf.mxu0
        %v8738 = vadd.f32 %v8659, %v8737
        %v8739 = vpop.f32.mrf.mxu0
        %v8740 = vadd.f32 %v8661, %v8739
        %8741 = vmatmul.bf16.gmra.mxu0 %v8601
        %v8742 = vpop.f32.mrf.mxu0
        %v8743 = vadd.f32 %v8664, %v8742
        %v8744 = vpop.f32.mrf.mxu0
        %v8745 = vadd.f32 %v8666, %v8744
        %8746 = vmatmul.bf16.gmra.mxu0 %v8603
        %v8747 = vpop.f32.mrf.mxu0
        %v8748 = vadd.f32 %v8669, %v8747
        %v8749 = vpop.f32.mrf.mxu0
        %v8750 = vadd.f32 %v8671, %v8749
        %8751 = vmatmul.bf16.gmra.mxu0 %v8605
        %v8752 = vpop.f32.mrf.mxu0
        %v8753 = vadd.f32 %v8674, %v8752
        %v8754 = vpop.f32.mrf.mxu0
        %v8755 = vadd.f32 %v8676, %v8754
        %8756 = vmatmul.bf16.gmra.mxu0 %v8607
        %v8757 = vpop.f32.mrf.mxu0
        %v8758 = vadd.f32 %v8679, %v8757
        %v8759 = vpop.f32.mrf.mxu0
        %v8760 = vadd.f32 %v8681, %v8759
        %8761 = vmatmul.bf16.gmra.mxu0 %v8607
        %v8762 = vpop.f32.mrf.mxu0
        %v8763 = vadd.f32 %v8684, %v8762
        %v8764 = vpop.f32.mrf.mxu0
        %v8765 = vadd.f32 %v8686, %v8764
        %8766 = vdwg.mxu0
        %v8767 = vmax.f32 %v8698, 0.0
        %v8768 = vmax.f32 %v8700, 0.0
        %v8769 = vmax.f32 %v8703, 0.0
        %v8770 = vmax.f32 %v8705, 0.0
        %v8771 = vmax.f32 %v8708, 0.0
        %v8772 = vmax.f32 %v8710, 0.0
        %v8773 = vmax.f32 %v8713, 0.0
        %v8774 = vmax.f32 %v8715, 0.0
        %v8775 = vmax.f32 %v8718, 0.0
        %v8776 = vmax.f32 %v8720, 0.0
        %v8777 = vmax.f32 %v8723, 0.0
        %v8778 = vmax.f32 %v8725, 0.0
        %v8779 = vmax.f32 %v8728, 0.0
        %v8780 = vmax.f32 %v8730, 0.0
        %v8781 = vmax.f32 %v8733, 0.0
        %v8782 = vmax.f32 %v8735, 0.0
        %v8783 = vmax.f32 %v8738, 0.0
        %v8784 = vmax.f32 %v8740, 0.0
        %v8785 = vmax.f32 %v8743, 0.0
        %v8786 = vmax.f32 %v8745, 0.0
        %v8787 = vmax.f32 %v8748, 0.0
        %v8788 = vmax.f32 %v8750, 0.0
        %v8789 = vmax.f32 %v8753, 0.0
        %v8790 = vmax.f32 %v8755, 0.0
        %v8791 = vmax.f32 %v8758, 0.0
        %v8792 = vmax.f32 %v8760, 0.0
        %v8793 = vmax.f32 %v8763, 0.0
        %v8794 = vmax.f32 %v8765, 0.0
        %v8795 = vpack.c.bf16 %v8767, %v8767
        %v8796 = vpack.c.bf16 %v8768, %v8768
        %v8797 = vpack.c.bf16 %v8769, %v8769
        %v8798 = vpack.c.bf16 %v8770, %v8770
        %v8799 = vpack.c.bf16 %v8771, %v8771
        %v8800 = vpack.c.bf16 %v8772, %v8772
        %v8801 = vpack.c.bf16 %v8773, %v8773
        %v8802 = vpack.c.bf16 %v8774, %v8774
        %v8803 = vpack.c.bf16 %v8775, %v8775
        %v8804 = vpack.c.bf16 %v8776, %v8776
        %v8805 = vpack.c.bf16 %v8777, %v8777
        %v8806 = vpack.c.bf16 %v8778, %v8778
        %v8807 = vpack.c.bf16 %v8779, %v8779
        %v8808 = vpack.c.bf16 %v8780, %v8780
        %v8809 = vpack.c.bf16 %v8781, %v8781
        %v8810 = vpack.c.bf16 %v8782, %v8782
        %v8811 = vpack.c.bf16 %v8783, %v8783
        %v8812 = vpack.c.bf16 %v8784, %v8784
        %v8813 = vpack.c.bf16 %v8785, %v8785
        %v8814 = vpack.c.bf16 %v8786, %v8786
        %v8815 = vpack.c.bf16 %v8787, %v8787
        %v8816 = vpack.c.bf16 %v8788, %v8788
        %v8817 = vpack.c.bf16 %v8789, %v8789
        %v8818 = vpack.c.bf16 %v8790, %v8790
        %v8819 = vpack.c.bf16 %v8791, %v8791
        %v8820 = vpack.c.bf16 %v8792, %v8792
        %v8821 = vpack.c.bf16 %v8793, %v8793
        %v8822 = vpack.c.bf16 %v8794, %v8794
        %v8851 = vunpack.c.l.b16 %v8795
        %v8852 = vunpack.c.l.b16 %v8796
        %v8853 = vunpack.c.l.b16 %v8797
        %v8854 = vunpack.c.l.b16 %v8798
        %v8855 = vunpack.c.l.b16 %v8799
        %v8856 = vunpack.c.l.b16 %v8800
        %v8857 = vunpack.c.l.b16 %v8801
        %v8858 = vunpack.c.l.b16 %v8802
        %v8859 = vunpack.c.l.b16 %v8803
        %v8860 = vunpack.c.l.b16 %v8804
        %v8861 = vunpack.c.l.b16 %v8805
        %v8862 = vunpack.c.l.b16 %v8806
        %v8863 = vunpack.c.l.b16 %v8807
        %v8864 = vunpack.c.l.b16 %v8808
        %v8865 = vunpack.c.l.b16 %v8809
        %v8866 = vunpack.c.l.b16 %v8810
        %v8867 = vunpack.c.l.b16 %v8811
        %v8868 = vunpack.c.l.b16 %v8812
        %v8869 = vunpack.c.l.b16 %v8813
        %v8870 = vunpack.c.l.b16 %v8814
        %v8871 = vunpack.c.l.b16 %v8815
        %v8872 = vunpack.c.l.b16 %v8816
        %v8873 = vunpack.c.l.b16 %v8817
        %v8874 = vunpack.c.l.b16 %v8818
        %v8875 = vunpack.c.l.b16 %v8819
        %v8876 = vunpack.c.l.b16 %v8820
        %v8877 = vunpack.c.l.b16 %v8821
        %v8878 = vunpack.c.l.b16 %v8822
        %v8879 = vpack.c.b16 %v8852, %v8851
        %v8880 = vpack.c.b16 %v8854, %v8853
        %v8881 = vpack.c.b16 %v8856, %v8855
        %v8882 = vpack.c.b16 %v8858, %v8857
        %v8883 = vpack.c.b16 %v8860, %v8859
        %v8884 = vpack.c.b16 %v8862, %v8861
        %v8885 = vpack.c.b16 %v8864, %v8863
        %v8886 = vpack.c.b16 %v8866, %v8865
        %v8887 = vpack.c.b16 %v8868, %v8867
        %v8888 = vpack.c.b16 %v8870, %v8869
        %v8889 = vpack.c.b16 %v8872, %v8871
        %v8890 = vpack.c.b16 %v8874, %v8873
        %v8891 = vpack.c.b16 %v8876, %v8875
        %v8892 = vpack.c.b16 %v8878, %v8877
        %v8894 = vshrl.u32 %v8879, 16
        %v8896 = vrot.slane %v8894, 7
        %v8897 = vshll.u32 %v8879, 16
        %v8899 = vor.u32 %v8896, %v8897
        %v8901 = vshrl.u32 %v8880, 16
        %v8903 = vrot.slane %v8901, 7
        %v8904 = vshll.u32 %v8880, 16
        %v8906 = vor.u32 %v8903, %v8904
        %v8908 = vshrl.u32 %v8881, 16
        %v8910 = vrot.slane %v8908, 7
        %v8911 = vshll.u32 %v8881, 16
        %v8913 = vor.u32 %v8910, %v8911
        %v8915 = vshrl.u32 %v8882, 16
        %v8917 = vrot.slane %v8915, 7
        %v8918 = vshll.u32 %v8882, 16
        %v8920 = vor.u32 %v8917, %v8918
        %v8922 = vshrl.u32 %v8883, 16
        %v8924 = vrot.slane %v8922, 7
        %v8925 = vshll.u32 %v8883, 16
        %v8927 = vor.u32 %v8924, %v8925
        %v8929 = vshrl.u32 %v8884, 16
        %v8931 = vrot.slane %v8929, 7
        %v8932 = vshll.u32 %v8884, 16
        %v8934 = vor.u32 %v8931, %v8932
        %v8936 = vshrl.u32 %v8885, 16
        %v8938 = vrot.slane %v8936, 7
        %v8939 = vshll.u32 %v8885, 16
        %v8941 = vor.u32 %v8938, %v8939
        %v8943 = vshrl.u32 %v8886, 16
        %v8945 = vrot.slane %v8943, 7
        %v8946 = vshll.u32 %v8886, 16
        %v8948 = vor.u32 %v8945, %v8946
        %v8950 = vshrl.u32 %v8887, 16
        %v8952 = vrot.slane %v8950, 7
        %v8953 = vshll.u32 %v8887, 16
        %v8955 = vor.u32 %v8952, %v8953
        %v8957 = vshrl.u32 %v8888, 16
        %v8959 = vrot.slane %v8957, 7
        %v8960 = vshll.u32 %v8888, 16
        %v8962 = vor.u32 %v8959, %v8960
        %v8964 = vshrl.u32 %v8889, 16
        %v8966 = vrot.slane %v8964, 7
        %v8967 = vshll.u32 %v8889, 16
        %v8969 = vor.u32 %v8966, %v8967
        %v8971 = vshrl.u32 %v8890, 16
        %v8973 = vrot.slane %v8971, 7
        %v8974 = vshll.u32 %v8890, 16
        %v8976 = vor.u32 %v8973, %v8974
        %v8978 = vshrl.u32 %v8891, 16
        %v8980 = vrot.slane %v8978, 7
        %v8981 = vshll.u32 %v8891, 16
        %v8983 = vor.u32 %v8980, %v8981
        %v8985 = vshrl.u32 %v8892, 16
        %v8987 = vrot.slane %v8985, 7
        %v8988 = vshll.u32 %v8892, 16
        %v8990 = vor.u32 %v8987, %v8988
        %v9005 = vpack.c.b16 %v8852, %v8852
        %v9006 = vpack.c.b16 %v8854, %v8854
        %v9007 = vpack.c.b16 %v8856, %v8856
        %v9008 = vpack.c.b16 %v8858, %v8858
        %v9009 = vpack.c.b16 %v8860, %v8860
        %v9010 = vpack.c.b16 %v8862, %v8862
        %v9011 = vpack.c.b16 %v8864, %v8864
        %v9012 = vpack.c.b16 %v8866, %v8866
        %v9013 = vpack.c.b16 %v8868, %v8868
        %v9014 = vpack.c.b16 %v8870, %v8870
        %v9015 = vpack.c.b16 %v8872, %v8872
        %v9016 = vpack.c.b16 %v8874, %v8874
        %v9017 = vpack.c.b16 %v8876, %v8876
        %v9018 = vpack.c.b16 %v8878, %v8878
        %v9019 = vrot.slane %v9005, 3
        %v9020 = vrot.slane %v9006, 3
        %v9021 = vrot.slane %v9007, 3
        %v9022 = vrot.slane %v9008, 3
        %v9023 = vrot.slane %v9009, 3
        %v9024 = vrot.slane %v9010, 3
        %v9025 = vrot.slane %v9011, 3
        %v9026 = vrot.slane %v9012, 3
        %v9027 = vrot.slane %v9013, 3
        %v9028 = vrot.slane %v9014, 3
        %v9029 = vrot.slane %v9015, 3
        %v9030 = vrot.slane %v9016, 3
        %v9031 = vrot.slane %v9017, 3
        %v9032 = vrot.slane %v9018, 3
        %v9047 = vsel %vm1505, %v8795, %v8899
        %v9048 = vsel %vm1505, %v8797, %v8906
        %v9049 = vsel %vm1505, %v8799, %v8913
        %v9050 = vsel %vm1505, %v8801, %v8920
        %v9051 = vsel %vm1505, %v8803, %v8927
        %v9052 = vsel %vm1505, %v8805, %v8934
        %v9053 = vsel %vm1505, %v8807, %v8941
        %v9054 = vsel %vm1505, %v8809, %v8948
        %v9055 = vsel %vm1505, %v8811, %v8955
        %v9056 = vsel %vm1505, %v8813, %v8962
        %v9057 = vsel %vm1505, %v8815, %v8969
        %v9058 = vsel %vm1505, %v8817, %v8976
        %v9059 = vsel %vm1505, %v8819, %v8983
        %v9060 = vsel %vm1505, %v8821, %v8990
        %v9061 = vsel %vm8079, %v9047, %v9019
        %v9062 = vsel %vm8079, %v9048, %v9020
        %v9063 = vsel %vm8079, %v9049, %v9021
        %v9064 = vsel %vm8079, %v9050, %v9022
        %v9065 = vsel %vm8079, %v9051, %v9023
        %v9066 = vsel %vm8079, %v9052, %v9024
        %v9067 = vsel %vm8079, %v9053, %v9025
        %v9068 = vsel %vm8079, %v9054, %v9026
        %v9069 = vsel %vm8079, %v9055, %v9027
        %v9070 = vsel %vm8079, %v9056, %v9028
        %v9071 = vsel %vm8079, %v9057, %v9029
        %v9072 = vsel %vm8079, %v9058, %v9030
        %v9073 = vsel %vm8079, %v9059, %v9031
        %v9074 = vsel %vm8079, %v9060, %v9032
        %v9076 = vshrl.u32 %v9061, 16
        %v9078 = vshll.u32 %v9061, 16
        %v9080 = vrot.slane %v9078, 1
        %v9081 = vor.u32 %v9076, %v9080
        %v9082 = vsel %vm1650, %v9081, %v9080
        %v9084 = vshll.u32 %v9062, 16
        %v9086 = vrot.slane %v9084, 1
        %v9087 = vsel %vm1650, %v9081, %v9086
        %v9088 = vshrl.u32 %v9062, 16
        %v9090 = vor.u32 %v9088, %v9086
        %v9092 = vshll.u32 %v9063, 16
        %v9094 = vrot.slane %v9092, 1
        %v9095 = vsel %vm1650, %v9090, %v9094
        %v9096 = vshrl.u32 %v9063, 16
        %v9098 = vor.u32 %v9096, %v9094
        %v9100 = vshll.u32 %v9064, 16
        %v9102 = vrot.slane %v9100, 1
        %v9103 = vsel %vm1650, %v9098, %v9102
        %v9104 = vshrl.u32 %v9064, 16
        %v9106 = vor.u32 %v9104, %v9102
        %v9108 = vshll.u32 %v9065, 16
        %v9110 = vrot.slane %v9108, 1
        %v9111 = vsel %vm1650, %v9106, %v9110
        %v9112 = vshrl.u32 %v9065, 16
        %v9114 = vor.u32 %v9112, %v9110
        %v9116 = vshll.u32 %v9066, 16
        %v9118 = vrot.slane %v9116, 1
        %v9119 = vsel %vm1650, %v9114, %v9118
        %v9120 = vshrl.u32 %v9066, 16
        %v9122 = vor.u32 %v9120, %v9118
        %v9124 = vshll.u32 %v9067, 16
        %v9126 = vrot.slane %v9124, 1
        %v9127 = vsel %vm1650, %v9122, %v9126
        %v9128 = vshrl.u32 %v9067, 16
        %v9130 = vor.u32 %v9128, %v9126
        %v9132 = vshll.u32 %v9068, 16
        %v9134 = vrot.slane %v9132, 1
        %v9135 = vsel %vm1650, %v9130, %v9134
        %v9136 = vshrl.u32 %v9068, 16
        %v9138 = vor.u32 %v9136, %v9134
        %v9140 = vshll.u32 %v9069, 16
        %v9142 = vrot.slane %v9140, 1
        %v9143 = vsel %vm1650, %v9138, %v9142
        %v9144 = vshrl.u32 %v9069, 16
        %v9146 = vor.u32 %v9144, %v9142
        %v9148 = vshll.u32 %v9070, 16
        %v9150 = vrot.slane %v9148, 1
        %v9151 = vsel %vm1650, %v9146, %v9150
        %v9152 = vshrl.u32 %v9070, 16
        %v9154 = vor.u32 %v9152, %v9150
        %v9156 = vshll.u32 %v9071, 16
        %v9158 = vrot.slane %v9156, 1
        %v9159 = vsel %vm1650, %v9154, %v9158
        %v9160 = vshrl.u32 %v9071, 16
        %v9162 = vor.u32 %v9160, %v9158
        %v9164 = vshll.u32 %v9072, 16
        %v9166 = vrot.slane %v9164, 1
        %v9167 = vsel %vm1650, %v9162, %v9166
        %v9168 = vshrl.u32 %v9072, 16
        %v9170 = vor.u32 %v9168, %v9166
        %v9172 = vshll.u32 %v9073, 16
        %v9174 = vrot.slane %v9172, 1
        %v9175 = vsel %vm1650, %v9170, %v9174
        %v9176 = vshrl.u32 %v9073, 16
        %v9178 = vor.u32 %v9176, %v9174
        %v9180 = vshll.u32 %v9074, 16
        %v9182 = vrot.slane %v9180, 1
        %v9183 = vsel %vm1650, %v9178, %v9182
        %v9184 = vshrl.u32 %v9074, 16
        %v9186 = vor.u32 %v9184, %v9182
        %v9187 = vsel %vm1650, %v9186, %v9182
        %9188 = vrot.lane.b32.xlu0 %v9082, 32
        %v9189 = vpop.permute.xlu0 %9188
        %9190 = vrot.lane.b32.xlu0 %v9087, 32
        %v9191 = vpop.permute.xlu0 %9190
        %9192 = vrot.lane.b32.xlu0 %v9095, 32
        %v9193 = vpop.permute.xlu0 %9192
        %9194 = vrot.lane.b32.xlu0 %v9103, 32
        %v9195 = vpop.permute.xlu0 %9194
        %9196 = vrot.lane.b32.xlu0 %v9111, 32
        %v9197 = vpop.permute.xlu0 %9196
        %9198 = vrot.lane.b32.xlu0 %v9119, 32
        %v9199 = vpop.permute.xlu0 %9198
        %9200 = vrot.lane.b32.xlu0 %v9127, 32
        %v9201 = vpop.permute.xlu0 %9200
        %9202 = vrot.lane.b32.xlu0 %v9135, 32
        %v9203 = vpop.permute.xlu0 %9202
        %9204 = vrot.lane.b32.xlu0 %v9143, 32
        %v9205 = vpop.permute.xlu0 %9204
        %9206 = vrot.lane.b32.xlu0 %v9151, 32
        %v9207 = vpop.permute.xlu0 %9206
        %9208 = vrot.lane.b32.xlu0 %v9159, 32
        %v9209 = vpop.permute.xlu0 %9208
        %9210 = vrot.lane.b32.xlu0 %v9167, 32
        %v9211 = vpop.permute.xlu0 %9210
        %9212 = vrot.lane.b32.xlu0 %v9175, 32
        %v9213 = vpop.permute.xlu0 %9212
        %9214 = vrot.lane.b32.xlu0 %v9183, 32
        %v9215 = vpop.permute.xlu0 %9214
        %9216 = vrot.lane.b32.xlu0 %v9187, 32
        %v9217 = vpop.permute.xlu0 %9216
        %v9232 = vrot.slane %v9061, 1
        %v9233 = vsel %vm1534, %v9232, %v9232
        %v9234 = vrot.slane %v9062, 1
        %v9235 = vsel %vm1534, %v9232, %v9234
        %v9236 = vrot.slane %v9063, 1
        %v9237 = vsel %vm1534, %v9234, %v9236
        %v9238 = vrot.slane %v9064, 1
        %v9239 = vsel %vm1534, %v9236, %v9238
        %v9240 = vrot.slane %v9065, 1
        %v9241 = vsel %vm1534, %v9238, %v9240
        %v9242 = vrot.slane %v9066, 1
        %v9243 = vsel %vm1534, %v9240, %v9242
        %v9244 = vrot.slane %v9067, 1
        %v9245 = vsel %vm1534, %v9242, %v9244
        %v9246 = vrot.slane %v9068, 1
        %v9247 = vsel %vm1534, %v9244, %v9246
        %v9248 = vrot.slane %v9069, 1
        %v9249 = vsel %vm1534, %v9246, %v9248
        %v9250 = vrot.slane %v9070, 1
        %v9251 = vsel %vm1534, %v9248, %v9250
        %v9252 = vrot.slane %v9071, 1
        %v9253 = vsel %vm1534, %v9250, %v9252
        %v9254 = vrot.slane %v9072, 1
        %v9255 = vsel %vm1534, %v9252, %v9254
        %v9256 = vrot.slane %v9073, 1
        %v9257 = vsel %vm1534, %v9254, %v9256
        %v9258 = vrot.slane %v9074, 1
        %v9259 = vsel %vm1534, %v9256, %v9258
        %v9260 = vsel %vm1534, %v9258, %v9258
        %9261 = vrot.lane.b32.xlu0 %v9233, 64
        %v9262 = vpop.permute.xlu0 %9261
        %9263 = vrot.lane.b32.xlu0 %v9235, 64
        %v9264 = vpop.permute.xlu0 %9263
        %9265 = vrot.lane.b32.xlu0 %v9237, 64
        %v9266 = vpop.permute.xlu0 %9265
        %9267 = vrot.lane.b32.xlu0 %v9239, 64
        %v9268 = vpop.permute.xlu0 %9267
        %9269 = vrot.lane.b32.xlu0 %v9241, 64
        %v9270 = vpop.permute.xlu0 %9269
        %9271 = vrot.lane.b32.xlu0 %v9243, 64
        %v9272 = vpop.permute.xlu0 %9271
        %9273 = vrot.lane.b32.xlu0 %v9245, 64
        %v9274 = vpop.permute.xlu0 %9273
        %9275 = vrot.lane.b32.xlu0 %v9247, 64
        %v9276 = vpop.permute.xlu0 %9275
        %9277 = vrot.lane.b32.xlu0 %v9249, 64
        %v9278 = vpop.permute.xlu0 %9277
        %9279 = vrot.lane.b32.xlu0 %v9251, 64
        %v9280 = vpop.permute.xlu0 %9279
        %9281 = vrot.lane.b32.xlu0 %v9253, 64
        %v9282 = vpop.permute.xlu0 %9281
        %9283 = vrot.lane.b32.xlu0 %v9255, 64
        %v9284 = vpop.permute.xlu0 %9283
        %9285 = vrot.lane.b32.xlu0 %v9257, 64
        %v9286 = vpop.permute.xlu0 %9285
        %9287 = vrot.lane.b32.xlu0 %v9259, 64
        %v9288 = vpop.permute.xlu0 %9287
        %9289 = vrot.lane.b32.xlu0 %v9260, 64
        %v9290 = vpop.permute.xlu0 %9289
        %v9292 = vsel %vm5904, %v9061, %v9189
        %v9294 = vsel %vm5904, %v9061, %v9191
        %v9296 = vsel %vm5904, %v9062, %v9193
        %v9298 = vsel %vm5904, %v9063, %v9195
        %v9300 = vsel %vm5904, %v9064, %v9197
        %v9302 = vsel %vm5904, %v9065, %v9199
        %v9304 = vsel %vm5904, %v9066, %v9201
        %v9306 = vsel %vm5904, %v9067, %v9203
        %v9308 = vsel %vm5904, %v9068, %v9205
        %v9310 = vsel %vm5904, %v9069, %v9207
        %v9312 = vsel %vm5904, %v9070, %v9209
        %v9314 = vsel %vm5904, %v9071, %v9211
        %v9316 = vsel %vm5904, %v9072, %v9213
        %v9318 = vsel %vm5904, %v9073, %v9215
        %v9320 = vsel %vm5904, %v9074, %v9217
        %vm9321 = vcmask 523264
        %v9323 = vsel %vm9321, %v9292, %v9262
        %v9325 = vsel %vm9321, %v9294, %v9264
        %v9327 = vsel %vm9321, %v9296, %v9266
        %v9329 = vsel %vm9321, %v9298, %v9268
        %v9331 = vsel %vm9321, %v9300, %v9270
        %v9333 = vsel %vm9321, %v9302, %v9272
        %v9335 = vsel %vm9321, %v9304, %v9274
        %v9337 = vsel %vm9321, %v9306, %v9276
        %v9339 = vsel %vm9321, %v9308, %v9278
        %v9341 = vsel %vm9321, %v9310, %v9280
        %v9343 = vsel %vm9321, %v9312, %v9282
        %v9345 = vsel %vm9321, %v9314, %v9284
        %v9347 = vsel %vm9321, %v9316, %v9286
        %v9349 = vsel %vm9321, %v9318, %v9288
        %v9351 = vsel %vm9321, %v9320, %v9290
        %9366 = vrot.lane.b32.xlu0 %v9325, 96
        %v9367 = vpop.permute.xlu0 %9366
        %9368 = vrot.lane.b32.xlu0 %v9327, 96
        %v9369 = vpop.permute.xlu0 %9368
        %9370 = vrot.lane.b32.xlu0 %v9329, 96
        %v9371 = vpop.permute.xlu0 %9370
        %9372 = vrot.lane.b32.xlu0 %v9331, 96
        %v9373 = vpop.permute.xlu0 %9372
        %9374 = vrot.lane.b32.xlu0 %v9333, 96
        %v9375 = vpop.permute.xlu0 %9374
        %9376 = vrot.lane.b32.xlu0 %v9335, 96
        %v9377 = vpop.permute.xlu0 %9376
        %9378 = vrot.lane.b32.xlu0 %v9337, 96
        %v9379 = vpop.permute.xlu0 %9378
        %9380 = vrot.lane.b32.xlu0 %v9339, 96
        %v9381 = vpop.permute.xlu0 %9380
        %9382 = vrot.lane.b32.xlu0 %v9341, 96
        %v9383 = vpop.permute.xlu0 %9382
        %9384 = vrot.lane.b32.xlu0 %v9343, 96
        %v9385 = vpop.permute.xlu0 %9384
        %9386 = vrot.lane.b32.xlu0 %v9345, 96
        %v9387 = vpop.permute.xlu0 %9386
        %9388 = vrot.lane.b32.xlu0 %v9347, 96
        %v9389 = vpop.permute.xlu0 %9388
        %9390 = vrot.lane.b32.xlu0 %v9349, 96
        %v9391 = vpop.permute.xlu0 %9390
        %9392 = vrot.lane.b32.xlu0 %v9351, 96
        %v9393 = vpop.permute.xlu0 %9392
        %9394 = vrot.lane.b32.xlu0 %v9327, 64
        %v9395 = vpop.permute.xlu0 %9394
        %9396 = vrot.lane.b32.xlu0 %v9329, 64
        %v9397 = vpop.permute.xlu0 %9396
        %9398 = vrot.lane.b32.xlu0 %v9331, 64
        %v9399 = vpop.permute.xlu0 %9398
        %9400 = vrot.lane.b32.xlu0 %v9333, 64
        %v9401 = vpop.permute.xlu0 %9400
        %9402 = vrot.lane.b32.xlu0 %v9335, 64
        %v9403 = vpop.permute.xlu0 %9402
        %9404 = vrot.lane.b32.xlu0 %v9337, 64
        %v9405 = vpop.permute.xlu0 %9404
        %9406 = vrot.lane.b32.xlu0 %v9339, 64
        %v9407 = vpop.permute.xlu0 %9406
        %9408 = vrot.lane.b32.xlu0 %v9341, 64
        %v9409 = vpop.permute.xlu0 %9408
        %9410 = vrot.lane.b32.xlu0 %v9343, 64
        %v9411 = vpop.permute.xlu0 %9410
        %9412 = vrot.lane.b32.xlu0 %v9345, 64
        %v9413 = vpop.permute.xlu0 %9412
        %9414 = vrot.lane.b32.xlu0 %v9347, 64
        %v9415 = vpop.permute.xlu0 %9414
        %9416 = vrot.lane.b32.xlu0 %v9349, 64
        %v9417 = vpop.permute.xlu0 %9416
        %9418 = vrot.lane.b32.xlu0 %v9351, 64
        %v9419 = vpop.permute.xlu0 %9418
        %v9421 = vsel %vm6408, %v9323, %v9367
        %v9424 = vsel %vm6408, %v9325, %v9369
        %v9427 = vsel %vm6408, %v9327, %v9371
        %v9430 = vsel %vm6408, %v9329, %v9373
        %v9433 = vsel %vm6408, %v9331, %v9375
        %v9436 = vsel %vm6408, %v9333, %v9377
        %v9439 = vsel %vm6408, %v9335, %v9379
        %v9442 = vsel %vm6408, %v9337, %v9381
        %v9445 = vsel %vm6408, %v9339, %v9383
        %v9448 = vsel %vm6408, %v9341, %v9385
        %v9451 = vsel %vm6408, %v9343, %v9387
        %v9454 = vsel %vm6408, %v9345, %v9389
        %v9457 = vsel %vm6408, %v9347, %v9391
        %v9460 = vsel %vm6408, %v9349, %v9393
        %v9463 = vsel %vm9321, %v9367, %v9395
        %v9466 = vsel %vm9321, %v9369, %v9397
        %v9469 = vsel %vm9321, %v9371, %v9399
        %v9472 = vsel %vm9321, %v9373, %v9401
        %v9475 = vsel %vm9321, %v9375, %v9403
        %v9478 = vsel %vm9321, %v9377, %v9405
        %v9481 = vsel %vm9321, %v9379, %v9407
        %v9484 = vsel %vm9321, %v9381, %v9409
        %v9487 = vsel %vm9321, %v9383, %v9411
        %v9490 = vsel %vm9321, %v9385, %v9413
        %v9493 = vsel %vm9321, %v9387, %v9415
        %v9496 = vsel %vm9321, %v9389, %v9417
        %v9499 = vsel %vm9321, %v9391, %v9419
        %v9501 = vsel %vm9321, %v9393, %v9419
        %v9503 = vld [vmem:[%s7] sm:$0xf]
        %v9504 = vld [vmem:[%s7 + $0x4] sm:$0xf]
        %v9505 = vld [vmem:[%s7 + $0x8] sm:$0xf]
        %v9506 = vld [vmem:[%s7 + $0xc] sm:$0xf]
        %v9507 = vld [vmem:[%s7 + $0x10] sm:$0xf]
        %v9508 = vld [vmem:[%s7 + $0x14] sm:$0xf]
        %v9509 = vld [vmem:[%s7 + $0x18] sm:$0xf]
        %v9510 = vld [vmem:[%s7 + $0x1c] sm:$0xf]
        %v9511 = vld [vmem:[%s7 + $0x20] sm:$0xf]
        %v9512 = vld [vmem:[%s7 + $0x24] sm:$0xf]
        %v9513 = vld [vmem:[%s7 + $0x28] sm:$0xf]
        %v9514 = vld [vmem:[%s7 + $0x2c] sm:$0xf]
        %v9515 = vld [vmem:[%s7 + $0x30] sm:$0xf]
        %v9516 = vld [vmem:[%s7 + $0x34] sm:$0xf]
        %v9517 = vld [vmem:[%s7 + $0x38] sm:$0xf]
        %v9518 = vld [vmem:[%s7 + $0x3c] sm:$0xf]
        %v9519 = vld [vmem:[%s7 + $0x40] sm:$0xf]
        %v9520 = vld [vmem:[%s7 + $0x44] sm:$0xf]
        %v9521 = vld [vmem:[%s7 + $0x48] sm:$0xf]
        %v9522 = vld [vmem:[%s7 + $0x4c] sm:$0xf]
        %v9523 = vld [vmem:[%s7 + $0x50] sm:$0xf]
        %v9524 = vld [vmem:[%s7 + $0x54] sm:$0xf]
        %v9525 = vld [vmem:[%s7 + $0x58] sm:$0xf]
        %v9526 = vld [vmem:[%s7 + $0x5c] sm:$0xf]
        %v9527 = vld [vmem:[%s7 + $0x60] sm:$0xf]
        %v9528 = vld [vmem:[%s7 + $0x64] sm:$0xf]
        %v9529 = vld [vmem:[%s7 + $0x68] sm:$0xf]
        %v9530 = vld [vmem:[%s7 + $0x6c] sm:$0xf]
        %v9531 = vld [vmem:[%s7 + $0x70] sm:$0xf]
        %v9532 = vld [vmem:[%s7 + $0x74] sm:$0xf]
        %v9533 = vld [vmem:[%s7 + $0x78] sm:$0xf]
        %v9534 = vld [vmem:[%s7 + $0x7c] sm:$0xf]
        %v9535 = vld [vmem:[%s7 + $0x80] sm:$0xf]
        %v9536 = vld [vmem:[%s7 + $0x84] sm:$0xf]
        %v9537 = vld [vmem:[%s7 + $0x88] sm:$0xf]
        %v9538 = vld [vmem:[%s7 + $0x8c] sm:$0xf]
        %v9539 = vld [vmem:[%s8] sm:$0x1]
        %v9541 = vperm.slane %v9539, 0
        %v9579 = vunpack.c.l.b16 %v9503
        %v9580 = vunpack.c.l.b16 %v9504
        %v9581 = vunpack.c.l.b16 %v9505
        %v9582 = vunpack.c.l.b16 %v9506
        %v9583 = vunpack.c.l.b16 %v9507
        %v9584 = vunpack.c.l.b16 %v9508
        %v9585 = vunpack.c.l.b16 %v9509
        %v9586 = vunpack.c.l.b16 %v9510
        %v9587 = vunpack.c.l.b16 %v9511
        %v9588 = vunpack.c.l.b16 %v9512
        %v9589 = vunpack.c.l.b16 %v9513
        %v9590 = vunpack.c.l.b16 %v9514
        %v9591 = vunpack.c.l.b16 %v9515
        %v9592 = vunpack.c.l.b16 %v9516
        %v9593 = vunpack.c.l.b16 %v9517
        %v9594 = vunpack.c.l.b16 %v9518
        %v9595 = vunpack.c.l.b16 %v9519
        %v9596 = vunpack.c.l.b16 %v9520
        %v9597 = vunpack.c.l.b16 %v9521
        %v9598 = vunpack.c.l.b16 %v9522
        %v9599 = vunpack.c.l.b16 %v9523
        %v9600 = vunpack.c.l.b16 %v9524
        %v9601 = vunpack.c.l.b16 %v9525
        %v9602 = vunpack.c.l.b16 %v9526
        %v9603 = vunpack.c.l.b16 %v9527
        %v9604 = vunpack.c.l.b16 %v9528
        %v9605 = vunpack.c.l.b16 %v9529
        %v9606 = vunpack.c.l.b16 %v9530
        %v9607 = vunpack.c.l.b16 %v9531
        %v9608 = vunpack.c.l.b16 %v9532
        %v9609 = vunpack.c.l.b16 %v9533
        %v9610 = vunpack.c.l.b16 %v9534
        %v9611 = vunpack.c.l.b16 %v9535
        %v9612 = vunpack.c.l.b16 %v9536
        %v9613 = vunpack.c.l.b16 %v9537
        %v9614 = vunpack.c.l.b16 %v9538
        %v9615 = vpack.c.b16 %v9580, %v9579
        %v9616 = vpack.c.b16 %v9582, %v9581
        %v9617 = vpack.c.b16 %v9584, %v9583
        %v9618 = vpack.c.b16 %v9586, %v9585
        %v9619 = vpack.c.b16 %v9588, %v9587
        %v9620 = vpack.c.b16 %v9590, %v9589
        %v9621 = vpack.c.b16 %v9592, %v9591
        %v9622 = vpack.c.b16 %v9594, %v9593
        %v9623 = vpack.c.b16 %v9596, %v9595
        %v9624 = vpack.c.b16 %v9598, %v9597
        %v9625 = vpack.c.b16 %v9600, %v9599
        %v9626 = vpack.c.b16 %v9602, %v9601
        %v9627 = vpack.c.b16 %v9604, %v9603
        %v9628 = vpack.c.b16 %v9606, %v9605
        %v9629 = vpack.c.b16 %v9608, %v9607
        %v9630 = vpack.c.b16 %v9610, %v9609
        %v9631 = vpack.c.b16 %v9612, %v9611
        %v9632 = vpack.c.b16 %v9614, %v9613
        %v9651 = vsel %vm5904, %v9395, 0
        %v9653 = vsel %vm5904, %v9397, 0
        %v9655 = vsel %vm5904, %v9399, 0
        %v9657 = vsel %vm5904, %v9401, 0
        %v9659 = vsel %vm5904, %v9403, 0
        %v9661 = vsel %vm5904, %v9405, 0
        %v9663 = vsel %vm5904, %v9407, 0
        %v9665 = vsel %vm5904, %v9409, 0
        %v9667 = vsel %vm5904, %v9411, 0
        %v9669 = vsel %vm5904, %v9413, 0
        %v9671 = vsel %vm5904, %v9415, 0
        %v9673 = vsel %vm5904, %v9417, 0
        %v9675 = vsel %vm5904, %v9419, 0
        %9677 = vmatpush.bf16.msra.mxu0 %v9622
        %9678 = vmatpush.bf16.msra.mxu0 %v9621
        %9679 = vmatpush.bf16.msra.mxu0 %v9620
        %9680 = vmatpush.bf16.msra.mxu0 %v9619
        %9681 = vmatpush.bf16.msra.mxu0 %v9618
        %9682 = vmatpush.bf16.msra.mxu0 %v9617
        %9683 = vmatpush.bf16.msra.mxu0 %v9616
        %9684 = vmatpush.bf16.msra.mxu0 %v9615
        %9685 = vmatmul.bf16.gmra.mxu0 %v9421
        %v9686 = vpop.f32.mrf.mxu0
        %v9687 = vadd.f32 %v9541, %v9686
        %v9688 = vpop.f32.mrf.mxu0
        %v9689 = vadd.f32 %v9541, %v9688
        %9690 = vmatmul.bf16.gmra.mxu0 %v9424
        %v9691 = vpop.f32.mrf.mxu0
        %v9692 = vadd.f32 %v9541, %v9691
        %v9693 = vpop.f32.mrf.mxu0
        %v9694 = vadd.f32 %v9541, %v9693
        %9695 = vmatmul.bf16.gmra.mxu0 %v9427
        %v9696 = vpop.f32.mrf.mxu0
        %v9697 = vadd.f32 %v9541, %v9696
        %v9698 = vpop.f32.mrf.mxu0
        %v9699 = vadd.f32 %v9541, %v9698
        %9700 = vmatmul.bf16.gmra.mxu0 %v9430
        %v9701 = vpop.f32.mrf.mxu0
        %v9702 = vadd.f32 %v9541, %v9701
        %v9703 = vpop.f32.mrf.mxu0
        %v9704 = vadd.f32 %v9541, %v9703
        %9705 = vmatmul.bf16.gmra.mxu0 %v9433
        %v9706 = vpop.f32.mrf.mxu0
        %v9707 = vadd.f32 %v9541, %v9706
        %v9708 = vpop.f32.mrf.mxu0
        %v9709 = vadd.f32 %v9541, %v9708
        %9710 = vmatmul.bf16.gmra.mxu0 %v9436
        %v9711 = vpop.f32.mrf.mxu0
        %v9712 = vadd.f32 %v9541, %v9711
        %v9713 = vpop.f32.mrf.mxu0
        %v9714 = vadd.f32 %v9541, %v9713
        %9715 = vmatmul.bf16.gmra.mxu0 %v9439
        %v9716 = vpop.f32.mrf.mxu0
        %v9717 = vadd.f32 %v9541, %v9716
        %v9718 = vpop.f32.mrf.mxu0
        %v9719 = vadd.f32 %v9541, %v9718
        %9720 = vmatmul.bf16.gmra.mxu0 %v9442
        %v9721 = vpop.f32.mrf.mxu0
        %v9722 = vadd.f32 %v9541, %v9721
        %v9723 = vpop.f32.mrf.mxu0
        %v9724 = vadd.f32 %v9541, %v9723
        %9725 = vmatmul.bf16.gmra.mxu0 %v9445
        %v9726 = vpop.f32.mrf.mxu0
        %v9727 = vadd.f32 %v9541, %v9726
        %v9728 = vpop.f32.mrf.mxu0
        %v9729 = vadd.f32 %v9541, %v9728
        %9730 = vmatmul.bf16.gmra.mxu0 %v9448
        %v9731 = vpop.f32.mrf.mxu0
        %v9732 = vadd.f32 %v9541, %v9731
        %v9733 = vpop.f32.mrf.mxu0
        %v9734 = vadd.f32 %v9541, %v9733
        %9735 = vmatmul.bf16.gmra.mxu0 %v9451
        %v9736 = vpop.f32.mrf.mxu0
        %v9737 = vadd.f32 %v9541, %v9736
        %v9738 = vpop.f32.mrf.mxu0
        %v9739 = vadd.f32 %v9541, %v9738
        %9740 = vmatmul.bf16.gmra.mxu0 %v9454
        %v9741 = vpop.f32.mrf.mxu0
        %v9742 = vadd.f32 %v9541, %v9741
        %v9743 = vpop.f32.mrf.mxu0
        %v9744 = vadd.f32 %v9541, %v9743
        %9745 = vmatmul.bf16.gmra.mxu0 %v9457
        %v9746 = vpop.f32.mrf.mxu0
        %v9747 = vadd.f32 %v9541, %v9746
        %v9748 = vpop.f32.mrf.mxu0
        %v9749 = vadd.f32 %v9541, %v9748
        %9750 = vmatmul.bf16.gmra.mxu0 %v9460
        %v9751 = vpop.f32.mrf.mxu0
        %v9752 = vadd.f32 %v9541, %v9751
        %v9753 = vpop.f32.mrf.mxu0
        %v9754 = vadd.f32 %v9541, %v9753
        %9755 = vdwg.mxu0
        %9756 = vmatpush.bf16.msra.mxu0 %v9630
        %9757 = vmatpush.bf16.msra.mxu0 %v9629
        %9758 = vmatpush.bf16.msra.mxu0 %v9628
        %9759 = vmatpush.bf16.msra.mxu0 %v9627
        %9760 = vmatpush.bf16.msra.mxu0 %v9626
        %9761 = vmatpush.bf16.msra.mxu0 %v9625
        %9762 = vmatpush.bf16.msra.mxu0 %v9624
        %9763 = vmatpush.bf16.msra.mxu0 %v9623
        %9764 = vmatmul.bf16.gmra.mxu0 %v9463
        %v9765 = vpop.f32.mrf.mxu0
        %v9766 = vadd.f32 %v9687, %v9765
        %v9767 = vpop.f32.mrf.mxu0
        %v9768 = vadd.f32 %v9689, %v9767
        %9769 = vmatmul.bf16.gmra.mxu0 %v9466
        %v9770 = vpop.f32.mrf.mxu0
        %v9771 = vadd.f32 %v9692, %v9770
        %v9772 = vpop.f32.mrf.mxu0
        %v9773 = vadd.f32 %v9694, %v9772
        %9774 = vmatmul.bf16.gmra.mxu0 %v9469
        %v9775 = vpop.f32.mrf.mxu0
        %v9776 = vadd.f32 %v9697, %v9775
        %v9777 = vpop.f32.mrf.mxu0
        %v9778 = vadd.f32 %v9699, %v9777
        %9779 = vmatmul.bf16.gmra.mxu0 %v9472
        %v9780 = vpop.f32.mrf.mxu0
        %v9781 = vadd.f32 %v9702, %v9780
        %v9782 = vpop.f32.mrf.mxu0
        %v9783 = vadd.f32 %v9704, %v9782
        %9784 = vmatmul.bf16.gmra.mxu0 %v9475
        %v9785 = vpop.f32.mrf.mxu0
        %v9786 = vadd.f32 %v9707, %v9785
        %v9787 = vpop.f32.mrf.mxu0
        %v9788 = vadd.f32 %v9709, %v9787
        %9789 = vmatmul.bf16.gmra.mxu0 %v9478
        %v9790 = vpop.f32.mrf.mxu0
        %v9791 = vadd.f32 %v9712, %v9790
        %v9792 = vpop.f32.mrf.mxu0
        %v9793 = vadd.f32 %v9714, %v9792
        %9794 = vmatmul.bf16.gmra.mxu0 %v9481
        %v9795 = vpop.f32.mrf.mxu0
        %v9796 = vadd.f32 %v9717, %v9795
        %v9797 = vpop.f32.mrf.mxu0
        %v9798 = vadd.f32 %v9719, %v9797
        %9799 = vmatmul.bf16.gmra.mxu0 %v9484
        %v9800 = vpop.f32.mrf.mxu0
        %v9801 = vadd.f32 %v9722, %v9800
        %v9802 = vpop.f32.mrf.mxu0
        %v9803 = vadd.f32 %v9724, %v9802
        %9804 = vmatmul.bf16.gmra.mxu0 %v9487
        %v9805 = vpop.f32.mrf.mxu0
        %v9806 = vadd.f32 %v9727, %v9805
        %v9807 = vpop.f32.mrf.mxu0
        %v9808 = vadd.f32 %v9729, %v9807
        %9809 = vmatmul.bf16.gmra.mxu0 %v9490
        %v9810 = vpop.f32.mrf.mxu0
        %v9811 = vadd.f32 %v9732, %v9810
        %v9812 = vpop.f32.mrf.mxu0
        %v9813 = vadd.f32 %v9734, %v9812
        %9814 = vmatmul.bf16.gmra.mxu0 %v9493
        %v9815 = vpop.f32.mrf.mxu0
        %v9816 = vadd.f32 %v9737, %v9815
        %v9817 = vpop.f32.mrf.mxu0
        %v9818 = vadd.f32 %v9739, %v9817
        %9819 = vmatmul.bf16.gmra.mxu0 %v9496
        %v9820 = vpop.f32.mrf.mxu0
        %v9821 = vadd.f32 %v9742, %v9820
        %v9822 = vpop.f32.mrf.mxu0
        %v9823 = vadd.f32 %v9744, %v9822
        %9824 = vmatmul.bf16.gmra.mxu0 %v9499
        %v9825 = vpop.f32.mrf.mxu0
        %v9826 = vadd.f32 %v9747, %v9825
        %v9827 = vpop.f32.mrf.mxu0
        %v9828 = vadd.f32 %v9749, %v9827
        %9829 = vmatmul.bf16.gmra.mxu0 %v9501
        %v9830 = vpop.f32.mrf.mxu0
        %v9831 = vadd.f32 %v9752, %v9830
        %v9832 = vpop.f32.mrf.mxu0
        %v9833 = vadd.f32 %v9754, %v9832
        %9834 = vdwg.mxu0
        %9835 = vmatpush.bf16.msra.mxu0 0
        %9836 = vmatpush.bf16.msra.mxu0 0
        %9837 = vmatpush.bf16.msra.mxu0 0
        %9838 = vmatpush.bf16.msra.mxu0 0
        %9839 = vmatpush.bf16.msra.mxu0 0
        %9840 = vmatpush.bf16.msra.mxu0 0
        %9841 = vmatpush.bf16.msra.mxu0 %v9632
        %9842 = vmatpush.bf16.msra.mxu0 %v9631
        %9843 = vmatmul.bf16.gmra.mxu0 %v9651
        %v9844 = vpop.f32.mrf.mxu0
        %v9845 = vadd.f32 %v9766, %v9844
        %v9846 = vpop.f32.mrf.mxu0
        %v9847 = vadd.f32 %v9768, %v9846
        %9848 = vmatmul.bf16.gmra.mxu0 %v9653
        %v9849 = vpop.f32.mrf.mxu0
        %v9850 = vadd.f32 %v9771, %v9849
        %v9851 = vpop.f32.mrf.mxu0
        %v9852 = vadd.f32 %v9773, %v9851
        %9853 = vmatmul.bf16.gmra.mxu0 %v9655
        %v9854 = vpop.f32.mrf.mxu0
        %v9855 = vadd.f32 %v9776, %v9854
        %v9856 = vpop.f32.mrf.mxu0
        %v9857 = vadd.f32 %v9778, %v9856
        %9858 = vmatmul.bf16.gmra.mxu0 %v9657
        %v9859 = vpop.f32.mrf.mxu0
        %v9860 = vadd.f32 %v9781, %v9859
        %v9861 = vpop.f32.mrf.mxu0
        %v9862 = vadd.f32 %v9783, %v9861
        %9863 = vmatmul.bf16.gmra.mxu0 %v9659
        %v9864 = vpop.f32.mrf.mxu0
        %v9865 = vadd.f32 %v9786, %v9864
        %v9866 = vpop.f32.mrf.mxu0
        %v9867 = vadd.f32 %v9788, %v9866
        %9868 = vmatmul.bf16.gmra.mxu0 %v9661
        %v9869 = vpop.f32.mrf.mxu0
        %v9870 = vadd.f32 %v9791, %v9869
        %v9871 = vpop.f32.mrf.mxu0
        %v9872 = vadd.f32 %v9793, %v9871
        %9873 = vmatmul.bf16.gmra.mxu0 %v9663
        %v9874 = vpop.f32.mrf.mxu0
        %v9875 = vadd.f32 %v9796, %v9874
        %v9876 = vpop.f32.mrf.mxu0
        %v9877 = vadd.f32 %v9798, %v9876
        %9878 = vmatmul.bf16.gmra.mxu0 %v9665
        %v9879 = vpop.f32.mrf.mxu0
        %v9880 = vadd.f32 %v9801, %v9879
        %v9881 = vpop.f32.mrf.mxu0
        %v9882 = vadd.f32 %v9803, %v9881
        %9883 = vmatmul.bf16.gmra.mxu0 %v9667
        %v9884 = vpop.f32.mrf.mxu0
        %v9885 = vadd.f32 %v9806, %v9884
        %v9886 = vpop.f32.mrf.mxu0
        %v9887 = vadd.f32 %v9808, %v9886
        %9888 = vmatmul.bf16.gmra.mxu0 %v9669
        %v9889 = vpop.f32.mrf.mxu0
        %v9890 = vadd.f32 %v9811, %v9889
        %v9891 = vpop.f32.mrf.mxu0
        %v9892 = vadd.f32 %v9813, %v9891
        %9893 = vmatmul.bf16.gmra.mxu0 %v9671
        %v9894 = vpop.f32.mrf.mxu0
        %v9895 = vadd.f32 %v9816, %v9894
        %v9896 = vpop.f32.mrf.mxu0
        %v9897 = vadd.f32 %v9818, %v9896
        %9898 = vmatmul.bf16.gmra.mxu0 %v9673
        %v9899 = vpop.f32.mrf.mxu0
        %v9900 = vadd.f32 %v9821, %v9899
        %v9901 = vpop.f32.mrf.mxu0
        %v9902 = vadd.f32 %v9823, %v9901
        %9903 = vmatmul.bf16.gmra.mxu0 %v9675
        %v9904 = vpop.f32.mrf.mxu0
        %v9905 = vadd.f32 %v9826, %v9904
        %v9906 = vpop.f32.mrf.mxu0
        %v9907 = vadd.f32 %v9828, %v9906
        %9908 = vmatmul.bf16.gmra.mxu0 %v9675
        %v9909 = vpop.f32.mrf.mxu0
        %v9910 = vadd.f32 %v9831, %v9909
        %v9911 = vpop.f32.mrf.mxu0
        %v9912 = vadd.f32 %v9833, %v9911
        %9913 = vdwg.mxu0
        %v9914 = vmax.f32 %v9845, 0.0
        %v9915 = vmax.f32 %v9847, 0.0
        %v9916 = vmax.f32 %v9850, 0.0
        %v9917 = vmax.f32 %v9852, 0.0
        %v9918 = vmax.f32 %v9855, 0.0
        %v9919 = vmax.f32 %v9857, 0.0
        %v9920 = vmax.f32 %v9860, 0.0
        %v9921 = vmax.f32 %v9862, 0.0
        %v9922 = vmax.f32 %v9865, 0.0
        %v9923 = vmax.f32 %v9867, 0.0
        %v9924 = vmax.f32 %v9870, 0.0
        %v9925 = vmax.f32 %v9872, 0.0
        %v9926 = vmax.f32 %v9875, 0.0
        %v9927 = vmax.f32 %v9877, 0.0
        %v9928 = vmax.f32 %v9880, 0.0
        %v9929 = vmax.f32 %v9882, 0.0
        %v9930 = vmax.f32 %v9885, 0.0
        %v9931 = vmax.f32 %v9887, 0.0
        %v9932 = vmax.f32 %v9890, 0.0
        %v9933 = vmax.f32 %v9892, 0.0
        %v9934 = vmax.f32 %v9895, 0.0
        %v9935 = vmax.f32 %v9897, 0.0
        %v9936 = vmax.f32 %v9900, 0.0
        %v9937 = vmax.f32 %v9902, 0.0
        %v9938 = vmax.f32 %v9905, 0.0
        %v9939 = vmax.f32 %v9907, 0.0
        %v9940 = vmax.f32 %v9910, 0.0
        %v9941 = vmax.f32 %v9912, 0.0
        %9942 = vst.msk [vmem:[%s404] sm:$0xff] %vm5904, %v9914
        %vm9943 = vcmask 259072
        %9944 = vst.msk [vmem:[%s404 + $0x8] sm:$0x3f] %vm9943, %v9915
        %9945 = vst.msk [vmem:[%s404 + $0x10] sm:$0xff] %vm5904, %v9916
        %9946 = vst.msk [vmem:[%s404 + $0x18] sm:$0x3f] %vm9943, %v9917
        %9947 = vst.msk [vmem:[%s404 + $0x20] sm:$0xff] %vm5904, %v9918
        %9948 = vst.msk [vmem:[%s404 + $0x28] sm:$0x3f] %vm9943, %v9919
        %9949 = vst.msk [vmem:[%s404 + $0x30] sm:$0xff] %vm5904, %v9920
        %9950 = vst.msk [vmem:[%s404 + $0x38] sm:$0x3f] %vm9943, %v9921
        %9951 = vst.msk [vmem:[%s404 + $0x40] sm:$0xff] %vm5904, %v9922
        %9952 = vst.msk [vmem:[%s404 + $0x48] sm:$0x3f] %vm9943, %v9923
        %9953 = vst.msk [vmem:[%s404 + $0x50] sm:$0xff] %vm5904, %v9924
        %9954 = vst.msk [vmem:[%s404 + $0x58] sm:$0x3f] %vm9943, %v9925
        %9955 = vst.msk [vmem:[%s404 + $0x60] sm:$0xff] %vm5904, %v9926
        %9956 = vst.msk [vmem:[%s404 + $0x68] sm:$0x3f] %vm9943, %v9927
        %9957 = vst.msk [vmem:[%s404 + $0x70] sm:$0xff] %vm5904, %v9928
        %9958 = vst.msk [vmem:[%s404 + $0x78] sm:$0x3f] %vm9943, %v9929
        %9959 = vst.msk [vmem:[%s404 + $0x80] sm:$0xff] %vm5904, %v9930
        %9960 = vst.msk [vmem:[%s404 + $0x88] sm:$0x3f] %vm9943, %v9931
        %9961 = vst.msk [vmem:[%s404 + $0x90] sm:$0xff] %vm5904, %v9932
        %9962 = vst.msk [vmem:[%s404 + $0x98] sm:$0x3f] %vm9943, %v9933
        %9963 = vst.msk [vmem:[%s404 + $0xa0] sm:$0xff] %vm5904, %v9934
        %9964 = vst.msk [vmem:[%s404 + $0xa8] sm:$0x3f] %vm9943, %v9935
        %9965 = vst.msk [vmem:[%s404 + $0xb0] sm:$0xff] %vm5904, %v9936
        %9966 = vst.msk [vmem:[%s404 + $0xb8] sm:$0x3f] %vm9943, %v9937
        %9967 = vst.msk [vmem:[%s404 + $0xc0] sm:$0xff] %vm5904, %v9938
        %9968 = vst.msk [vmem:[%s404 + $0xc8] sm:$0x3f] %vm9943, %v9939
        %9969 = vst.msk [vmem:[%s404 + $0xd0] sm:$0xff] %vm5904, %v9940
        %9970 = vst.msk [vmem:[%s404 + $0xd8] sm:$0x3f] %vm9943, %v9941
        %v9971 = vlaneseq
        %v9972 = vshrl.u32 %v9971, 7
        %v9973 = vadd.s32 %v9972, 8
        %v9974 = vadd.s32 %v9972, 16
        %v9975 = vadd.s32 %v9972, 24
        %v9976 = vadd.s32 %v9972, 32
        %v9977 = vadd.s32 %v9972, 40
        %v9978 = vadd.s32 %v9972, 48
        %v9979 = vadd.s32 %v9972, 56
        %v9980 = vadd.s32 %v9972, 64
        %v9981 = vadd.s32 %v9972, 72
        %v9982 = vadd.s32 %v9972, 80
        %v9983 = vadd.s32 %v9972, 88
        %v9984 = vadd.s32 %v9972, 96
        %v9985 = vadd.s32 %v9972, 104
        %v9986 = vadd.s32 %v9972, 112
        %v9987 = vadd.s32 %v9972, 120
        %v9988 = vadd.s32 %v9972, 128
        %v9989 = vadd.s32 %v9972, 136
        %v9990 = vadd.s32 %v9972, 144
        %v9991 = vadd.s32 %v9972, 152
        %v9992 = vadd.s32 %v9972, 160
        %v9993 = vadd.s32 %v9972, 168
        %v9994 = vadd.s32 %v9972, 176
        %v9995 = vadd.s32 %v9972, 184
        %v9996 = vadd.s32 %v9972, 192
        %v9997 = vadd.s32 %v9972, 200
        %v9998 = vadd.s32 %v9972, 208
        %v9999 = vadd.s32 %v9972, 216
        %vm10000 = vcmp.lt.s32.totalorder %v9972, 0
        %v10001 = vsub.s32 0, %v9972
        %v10002 = vsel %vm10000, %v10001, %v9972
        %v10003 = vshrl.u32 %v10002, 4
        %v10004 = vand.u32 %v10002, 15
        %v10005 = vsub.s32 0, %v10004
        %v10006 = vsel %vm10000, %v10005, %v10004
        %vm10007 = vcmp.lt.s32.totalorder %v9973, 0
        %v10008 = vsub.s32 0, %v9973
        %v10009 = vsel %vm10007, %v10008, %v9973
        %v10010 = vshrl.u32 %v10009, 4
        %v10011 = vand.u32 %v10009, 15
        %v10012 = vsub.s32 0, %v10011
        %v10013 = vsel %vm10007, %v10012, %v10011
        %vm10014 = vcmp.lt.s32.totalorder %v9974, 0
        %v10015 = vsub.s32 0, %v9974
        %v10016 = vsel %vm10014, %v10015, %v9974
        %v10017 = vshrl.u32 %v10016, 4
        %v10018 = vand.u32 %v10016, 15
        %v10019 = vsub.s32 0, %v10018
        %v10020 = vsel %vm10014, %v10019, %v10018
        %vm10021 = vcmp.lt.s32.totalorder %v9975, 0
        %v10022 = vsub.s32 0, %v9975
        %v10023 = vsel %vm10021, %v10022, %v9975
        %v10024 = vshrl.u32 %v10023, 4
        %v10025 = vand.u32 %v10023, 15
        %v10026 = vsub.s32 0, %v10025
        %v10027 = vsel %vm10021, %v10026, %v10025
        %vm10028 = vcmp.lt.s32.totalorder %v9976, 0
        %v10029 = vsub.s32 0, %v9976
        %v10030 = vsel %vm10028, %v10029, %v9976
        %v10031 = vshrl.u32 %v10030, 4
        %v10032 = vand.u32 %v10030, 15
        %v10033 = vsub.s32 0, %v10032
        %v10034 = vsel %vm10028, %v10033, %v10032
        %vm10035 = vcmp.lt.s32.totalorder %v9977, 0
        %v10036 = vsub.s32 0, %v9977
        %v10037 = vsel %vm10035, %v10036, %v9977
        %v10038 = vshrl.u32 %v10037, 4
        %v10039 = vand.u32 %v10037, 15
        %v10040 = vsub.s32 0, %v10039
        %v10041 = vsel %vm10035, %v10040, %v10039
        %vm10042 = vcmp.lt.s32.totalorder %v9978, 0
        %v10043 = vsub.s32 0, %v9978
        %v10044 = vsel %vm10042, %v10043, %v9978
        %v10045 = vshrl.u32 %v10044, 4
        %v10046 = vand.u32 %v10044, 15
        %v10047 = vsub.s32 0, %v10046
        %v10048 = vsel %vm10042, %v10047, %v10046
        %vm10049 = vcmp.lt.s32.totalorder %v9979, 0
        %v10050 = vsub.s32 0, %v9979
        %v10051 = vsel %vm10049, %v10050, %v9979
        %v10052 = vshrl.u32 %v10051, 4
        %v10053 = vand.u32 %v10051, 15
        %v10054 = vsub.s32 0, %v10053
        %v10055 = vsel %vm10049, %v10054, %v10053
        %vm10056 = vcmp.lt.s32.totalorder %v9980, 0
        %v10057 = vsub.s32 0, %v9980
        %v10058 = vsel %vm10056, %v10057, %v9980
        %v10059 = vshrl.u32 %v10058, 4
        %v10060 = vand.u32 %v10058, 15
        %v10061 = vsub.s32 0, %v10060
        %v10062 = vsel %vm10056, %v10061, %v10060
        %vm10063 = vcmp.lt.s32.totalorder %v9981, 0
        %v10064 = vsub.s32 0, %v9981
        %v10065 = vsel %vm10063, %v10064, %v9981
        %v10066 = vshrl.u32 %v10065, 4
        %v10067 = vand.u32 %v10065, 15
        %v10068 = vsub.s32 0, %v10067
        %v10069 = vsel %vm10063, %v10068, %v10067
        %vm10070 = vcmp.lt.s32.totalorder %v9982, 0
        %v10071 = vsub.s32 0, %v9982
        %v10072 = vsel %vm10070, %v10071, %v9982
        %v10073 = vshrl.u32 %v10072, 4
        %v10074 = vand.u32 %v10072, 15
        %v10075 = vsub.s32 0, %v10074
        %v10076 = vsel %vm10070, %v10075, %v10074
        %vm10077 = vcmp.lt.s32.totalorder %v9983, 0
        %v10078 = vsub.s32 0, %v9983
        %v10079 = vsel %vm10077, %v10078, %v9983
        %v10080 = vshrl.u32 %v10079, 4
        %v10081 = vand.u32 %v10079, 15
        %v10082 = vsub.s32 0, %v10081
        %v10083 = vsel %vm10077, %v10082, %v10081
        %vm10084 = vcmp.lt.s32.totalorder %v9984, 0
        %v10085 = vsub.s32 0, %v9984
        %v10086 = vsel %vm10084, %v10085, %v9984
        %v10087 = vshrl.u32 %v10086, 4
        %v10088 = vand.u32 %v10086, 15
        %v10089 = vsub.s32 0, %v10088
        %v10090 = vsel %vm10084, %v10089, %v10088
        %vm10091 = vcmp.lt.s32.totalorder %v9985, 0
        %v10092 = vsub.s32 0, %v9985
        %v10093 = vsel %vm10091, %v10092, %v9985
        %v10094 = vshrl.u32 %v10093, 4
        %v10095 = vand.u32 %v10093, 15
        %v10096 = vsub.s32 0, %v10095
        %v10097 = vsel %vm10091, %v10096, %v10095
        %vm10098 = vcmp.lt.s32.totalorder %v9986, 0
        %v10099 = vsub.s32 0, %v9986
        %v10100 = vsel %vm10098, %v10099, %v9986
        %v10101 = vshrl.u32 %v10100, 4
        %v10102 = vand.u32 %v10100, 15
        %v10103 = vsub.s32 0, %v10102
        %v10104 = vsel %vm10098, %v10103, %v10102
        %vm10105 = vcmp.lt.s32.totalorder %v9987, 0
        %v10106 = vsub.s32 0, %v9987
        %v10107 = vsel %vm10105, %v10106, %v9987
        %v10108 = vshrl.u32 %v10107, 4
        %v10109 = vand.u32 %v10107, 15
        %v10110 = vsub.s32 0, %v10109
        %v10111 = vsel %vm10105, %v10110, %v10109
        %vm10112 = vcmp.lt.s32.totalorder %v9988, 0
        %v10113 = vsub.s32 0, %v9988
        %v10114 = vsel %vm10112, %v10113, %v9988
        %v10115 = vshrl.u32 %v10114, 4
        %v10116 = vand.u32 %v10114, 15
        %v10117 = vsub.s32 0, %v10116
        %v10118 = vsel %vm10112, %v10117, %v10116
        %vm10119 = vcmp.lt.s32.totalorder %v9989, 0
        %v10120 = vsub.s32 0, %v9989
        %v10121 = vsel %vm10119, %v10120, %v9989
        %v10122 = vshrl.u32 %v10121, 4
        %v10123 = vand.u32 %v10121, 15
        %v10124 = vsub.s32 0, %v10123
        %v10125 = vsel %vm10119, %v10124, %v10123
        %vm10126 = vcmp.lt.s32.totalorder %v9990, 0
        %v10127 = vsub.s32 0, %v9990
        %v10128 = vsel %vm10126, %v10127, %v9990
        %v10129 = vshrl.u32 %v10128, 4
        %v10130 = vand.u32 %v10128, 15
        %v10131 = vsub.s32 0, %v10130
        %v10132 = vsel %vm10126, %v10131, %v10130
        %vm10133 = vcmp.lt.s32.totalorder %v9991, 0
        %v10134 = vsub.s32 0, %v9991
        %v10135 = vsel %vm10133, %v10134, %v9991
        %v10136 = vshrl.u32 %v10135, 4
        %v10137 = vand.u32 %v10135, 15
        %v10138 = vsub.s32 0, %v10137
        %v10139 = vsel %vm10133, %v10138, %v10137
        %vm10140 = vcmp.lt.s32.totalorder %v9992, 0
        %v10141 = vsub.s32 0, %v9992
        %v10142 = vsel %vm10140, %v10141, %v9992
        %v10143 = vshrl.u32 %v10142, 4
        %v10144 = vand.u32 %v10142, 15
        %v10145 = vsub.s32 0, %v10144
        %v10146 = vsel %vm10140, %v10145, %v10144
        %vm10147 = vcmp.lt.s32.totalorder %v9993, 0
        %v10148 = vsub.s32 0, %v9993
        %v10149 = vsel %vm10147, %v10148, %v9993
        %v10150 = vshrl.u32 %v10149, 4
        %v10151 = vand.u32 %v10149, 15
        %v10152 = vsub.s32 0, %v10151
        %v10153 = vsel %vm10147, %v10152, %v10151
        %vm10154 = vcmp.lt.s32.totalorder %v9994, 0
        %v10155 = vsub.s32 0, %v9994
        %v10156 = vsel %vm10154, %v10155, %v9994
        %v10157 = vshrl.u32 %v10156, 4
        %v10158 = vand.u32 %v10156, 15
        %v10159 = vsub.s32 0, %v10158
        %v10160 = vsel %vm10154, %v10159, %v10158
        %vm10161 = vcmp.lt.s32.totalorder %v9995, 0
        %v10162 = vsub.s32 0, %v9995
        %v10163 = vsel %vm10161, %v10162, %v9995
        %v10164 = vshrl.u32 %v10163, 4
        %v10165 = vand.u32 %v10163, 15
        %v10166 = vsub.s32 0, %v10165
        %v10167 = vsel %vm10161, %v10166, %v10165
        %vm10168 = vcmp.lt.s32.totalorder %v9996, 0
        %v10169 = vsub.s32 0, %v9996
        %v10170 = vsel %vm10168, %v10169, %v9996
        %v10171 = vshrl.u32 %v10170, 4
        %v10172 = vand.u32 %v10170, 15
        %v10173 = vsub.s32 0, %v10172
        %v10174 = vsel %vm10168, %v10173, %v10172
        %vm10175 = vcmp.lt.s32.totalorder %v9997, 0
        %v10176 = vsub.s32 0, %v9997
        %v10177 = vsel %vm10175, %v10176, %v9997
        %v10178 = vshrl.u32 %v10177, 4
        %v10179 = vand.u32 %v10177, 15
        %v10180 = vsub.s32 0, %v10179
        %v10181 = vsel %vm10175, %v10180, %v10179
        %vm10182 = vcmp.lt.s32.totalorder %v9998, 0
        %v10183 = vsub.s32 0, %v9998
        %v10184 = vsel %vm10182, %v10183, %v9998
        %v10185 = vshrl.u32 %v10184, 4
        %v10186 = vand.u32 %v10184, 15
        %v10187 = vsub.s32 0, %v10186
        %v10188 = vsel %vm10182, %v10187, %v10186
        %vm10189 = vcmp.lt.s32.totalorder %v9999, 0
        %v10190 = vsub.s32 0, %v9999
        %v10191 = vsel %vm10189, %v10190, %v9999
        %v10192 = vshrl.u32 %v10191, 4
        %v10193 = vand.u32 %v10191, 15
        %v10194 = vsub.s32 0, %v10193
        %v10195 = vsel %vm10189, %v10194, %v10193
        %vm10196 = vcmp.ne.s32.totalorder %v10006, 0
        %vm10197 = vcmp.ne.s32.totalorder %v10013, 0
        %vm10198 = vcmp.ne.s32.totalorder %v10020, 0
        %vm10199 = vcmp.ne.s32.totalorder %v10027, 0
        %vm10200 = vcmp.ne.s32.totalorder %v10034, 0
        %vm10201 = vcmp.ne.s32.totalorder %v10041, 0
        %vm10202 = vcmp.ne.s32.totalorder %v10048, 0
        %vm10203 = vcmp.ne.s32.totalorder %v10055, 0
        %vm10204 = vcmp.ne.s32.totalorder %v10062, 0
        %vm10205 = vcmp.ne.s32.totalorder %v10069, 0
        %vm10206 = vcmp.ne.s32.totalorder %v10076, 0
        %vm10207 = vcmp.ne.s32.totalorder %v10083, 0
        %vm10208 = vcmp.ne.s32.totalorder %v10090, 0
        %vm10209 = vcmp.ne.s32.totalorder %v10097, 0
        %vm10210 = vcmp.ne.s32.totalorder %v10104, 0
        %vm10211 = vcmp.ne.s32.totalorder %v10111, 0
        %vm10212 = vcmp.ne.s32.totalorder %v10118, 0
        %vm10213 = vcmp.ne.s32.totalorder %v10125, 0
        %vm10214 = vcmp.ne.s32.totalorder %v10132, 0
        %vm10215 = vcmp.ne.s32.totalorder %v10139, 0
        %vm10216 = vcmp.ne.s32.totalorder %v10146, 0
        %vm10217 = vcmp.ne.s32.totalorder %v10153, 0
        %vm10218 = vcmp.ne.s32.totalorder %v10160, 0
        %vm10219 = vcmp.ne.s32.totalorder %v10167, 0
        %vm10220 = vcmp.ne.s32.totalorder %v10174, 0
        %vm10221 = vcmp.ne.s32.totalorder %v10181, 0
        %vm10222 = vcmp.ne.s32.totalorder %v10188, 0
        %vm10223 = vcmp.ne.s32.totalorder %v10195, 0
        %vm10224 = vcmp.lt.s32.totalorder %v10006, 0
        %vm10225 = vcmp.lt.s32.totalorder %v10013, 0
        %vm10226 = vcmp.lt.s32.totalorder %v10020, 0
        %vm10227 = vcmp.lt.s32.totalorder %v10027, 0
        %vm10228 = vcmp.lt.s32.totalorder %v10034, 0
        %vm10229 = vcmp.lt.s32.totalorder %v10041, 0
        %vm10230 = vcmp.lt.s32.totalorder %v10048, 0
        %vm10231 = vcmp.lt.s32.totalorder %v10055, 0
        %vm10232 = vcmp.lt.s32.totalorder %v10062, 0
        %vm10233 = vcmp.lt.s32.totalorder %v10069, 0
        %vm10234 = vcmp.lt.s32.totalorder %v10076, 0
        %vm10235 = vcmp.lt.s32.totalorder %v10083, 0
        %vm10236 = vcmp.lt.s32.totalorder %v10090, 0
        %vm10237 = vcmp.lt.s32.totalorder %v10097, 0
        %vm10238 = vcmp.lt.s32.totalorder %v10104, 0
        %vm10239 = vcmp.lt.s32.totalorder %v10111, 0
        %vm10240 = vcmp.lt.s32.totalorder %v10118, 0
        %vm10241 = vcmp.lt.s32.totalorder %v10125, 0
        %vm10242 = vcmp.lt.s32.totalorder %v10132, 0
        %vm10243 = vcmp.lt.s32.totalorder %v10139, 0
        %vm10244 = vcmp.lt.s32.totalorder %v10146, 0
        %vm10245 = vcmp.lt.s32.totalorder %v10153, 0
        %vm10246 = vcmp.lt.s32.totalorder %v10160, 0
        %vm10247 = vcmp.lt.s32.totalorder %v10167, 0
        %vm10248 = vcmp.lt.s32.totalorder %v10174, 0
        %vm10249 = vcmp.lt.s32.totalorder %v10181, 0
        %vm10250 = vcmp.lt.s32.totalorder %v10188, 0
        %vm10251 = vcmp.lt.s32.totalorder %v10195, 0
        %vm10252 = vmand %vm10224, %vm10196
        %vm10253 = vmand %vm10225, %vm10197
        %vm10254 = vmand %vm10226, %vm10198
        %vm10255 = vmand %vm10227, %vm10199
        %vm10256 = vmand %vm10228, %vm10200
        %vm10257 = vmand %vm10229, %vm10201
        %vm10258 = vmand %vm10230, %vm10202
        %vm10259 = vmand %vm10231, %vm10203
        %vm10260 = vmand %vm10232, %vm10204
        %vm10261 = vmand %vm10233, %vm10205
        %vm10262 = vmand %vm10234, %vm10206
        %vm10263 = vmand %vm10235, %vm10207
        %vm10264 = vmand %vm10236, %vm10208
        %vm10265 = vmand %vm10237, %vm10209
        %vm10266 = vmand %vm10238, %vm10210
        %vm10267 = vmand %vm10239, %vm10211
        %vm10268 = vmand %vm10240, %vm10212
        %vm10269 = vmand %vm10241, %vm10213
        %vm10270 = vmand %vm10242, %vm10214
        %vm10271 = vmand %vm10243, %vm10215
        %vm10272 = vmand %vm10244, %vm10216
        %vm10273 = vmand %vm10245, %vm10217
        %vm10274 = vmand %vm10246, %vm10218
        %vm10275 = vmand %vm10247, %vm10219
        %vm10276 = vmand %vm10248, %vm10220
        %vm10277 = vmand %vm10249, %vm10221
        %vm10278 = vmand %vm10250, %vm10222
        %vm10279 = vmand %vm10251, %vm10223
        %v10280 = vadd.s32 %v10006, 16
        %v10281 = vadd.s32 %v10013, 16
        %v10282 = vadd.s32 %v10020, 16
        %v10283 = vadd.s32 %v10027, 16
        %v10284 = vadd.s32 %v10034, 16
        %v10285 = vadd.s32 %v10041, 16
        %v10286 = vadd.s32 %v10048, 16
        %v10287 = vadd.s32 %v10055, 16
        %v10288 = vadd.s32 %v10062, 16
        %v10289 = vadd.s32 %v10069, 16
        %v10290 = vadd.s32 %v10076, 16
        %v10291 = vadd.s32 %v10083, 16
        %v10292 = vadd.s32 %v10090, 16
        %v10293 = vadd.s32 %v10097, 16
        %v10294 = vadd.s32 %v10104, 16
        %v10295 = vadd.s32 %v10111, 16
        %v10296 = vadd.s32 %v10118, 16
        %v10297 = vadd.s32 %v10125, 16
        %v10298 = vadd.s32 %v10132, 16
        %v10299 = vadd.s32 %v10139, 16
        %v10300 = vadd.s32 %v10146, 16
        %v10301 = vadd.s32 %v10153, 16
        %v10302 = vadd.s32 %v10160, 16
        %v10303 = vadd.s32 %v10167, 16
        %v10304 = vadd.s32 %v10174, 16
        %v10305 = vadd.s32 %v10181, 16
        %v10306 = vadd.s32 %v10188, 16
        %v10307 = vadd.s32 %v10195, 16
        %v10308 = vsel %vm10252, %v10280, %v10006
        %v10309 = vsel %vm10253, %v10281, %v10013
        %v10310 = vsel %vm10254, %v10282, %v10020
        %v10311 = vsel %vm10255, %v10283, %v10027
        %v10312 = vsel %vm10256, %v10284, %v10034
        %v10313 = vsel %vm10257, %v10285, %v10041
        %v10314 = vsel %vm10258, %v10286, %v10048
        %v10315 = vsel %vm10259, %v10287, %v10055
        %v10316 = vsel %vm10260, %v10288, %v10062
        %v10317 = vsel %vm10261, %v10289, %v10069
        %v10318 = vsel %vm10262, %v10290, %v10076
        %v10319 = vsel %vm10263, %v10291, %v10083
        %v10320 = vsel %vm10264, %v10292, %v10090
        %v10321 = vsel %vm10265, %v10293, %v10097
        %v10322 = vsel %vm10266, %v10294, %v10104
        %v10323 = vsel %vm10267, %v10295, %v10111
        %v10324 = vsel %vm10268, %v10296, %v10118
        %v10325 = vsel %vm10269, %v10297, %v10125
        %v10326 = vsel %vm10270, %v10298, %v10132
        %v10327 = vsel %vm10271, %v10299, %v10139
        %v10328 = vsel %vm10272, %v10300, %v10146
        %v10329 = vsel %vm10273, %v10301, %v10153
        %v10330 = vsel %vm10274, %v10302, %v10160
        %v10331 = vsel %vm10275, %v10303, %v10167
        %v10332 = vsel %vm10276, %v10304, %v10174
        %v10333 = vsel %vm10277, %v10305, %v10181
        %v10334 = vsel %vm10278, %v10306, %v10188
        %v10335 = vsel %vm10279, %v10307, %v10195
        %vm10336 = vcmp.lt.s32.totalorder %v10308, 14
        %vm10337 = vcmp.lt.s32.totalorder %v10309, 14
        %vm10338 = vcmp.lt.s32.totalorder %v10310, 14
        %vm10339 = vcmp.lt.s32.totalorder %v10311, 14
        %vm10340 = vcmp.lt.s32.totalorder %v10312, 14
        %vm10341 = vcmp.lt.s32.totalorder %v10313, 14
        %vm10342 = vcmp.lt.s32.totalorder %v10314, 14
        %vm10343 = vcmp.lt.s32.totalorder %v10315, 14
        %vm10344 = vcmp.lt.s32.totalorder %v10316, 14
        %vm10345 = vcmp.lt.s32.totalorder %v10317, 14
        %vm10346 = vcmp.lt.s32.totalorder %v10318, 14
        %vm10347 = vcmp.lt.s32.totalorder %v10319, 14
        %vm10348 = vcmp.lt.s32.totalorder %v10320, 14
        %vm10349 = vcmp.lt.s32.totalorder %v10321, 14
        %vm10350 = vcmp.lt.s32.totalorder %v10322, 14
        %vm10351 = vcmp.lt.s32.totalorder %v10323, 14
        %vm10352 = vcmp.lt.s32.totalorder %v10324, 14
        %vm10353 = vcmp.lt.s32.totalorder %v10325, 14
        %vm10354 = vcmp.lt.s32.totalorder %v10326, 14
        %vm10355 = vcmp.lt.s32.totalorder %v10327, 14
        %vm10356 = vcmp.lt.s32.totalorder %v10328, 14
        %vm10357 = vcmp.lt.s32.totalorder %v10329, 14
        %vm10358 = vcmp.lt.s32.totalorder %v10330, 14
        %vm10359 = vcmp.lt.s32.totalorder %v10331, 14
        %vm10360 = vcmp.lt.s32.totalorder %v10332, 14
        %vm10361 = vcmp.lt.s32.totalorder %v10333, 14
        %vm10362 = vcmp.lt.s32.totalorder %v10334, 14
        %vm10363 = vcmp.lt.s32.totalorder %v10335, 14
        %v10364 = vsel %vm10336, 1, 0
        %v10365 = vsel %vm10337, 1, 0
        %v10366 = vsel %vm10338, 1, 0
        %v10367 = vsel %vm10339, 1, 0
        %v10368 = vsel %vm10340, 1, 0
        %v10369 = vsel %vm10341, 1, 0
        %v10370 = vsel %vm10342, 1, 0
        %v10371 = vsel %vm10343, 1, 0
        %v10372 = vsel %vm10344, 1, 0
        %v10373 = vsel %vm10345, 1, 0
        %v10374 = vsel %vm10346, 1, 0
        %v10375 = vsel %vm10347, 1, 0
        %v10376 = vsel %vm10348, 1, 0
        %v10377 = vsel %vm10349, 1, 0
        %v10378 = vsel %vm10350, 1, 0
        %v10379 = vsel %vm10351, 1, 0
        %v10380 = vsel %vm10352, 1, 0
        %v10381 = vsel %vm10353, 1, 0
        %v10382 = vsel %vm10354, 1, 0
        %v10383 = vsel %vm10355, 1, 0
        %v10384 = vsel %vm10356, 1, 0
        %v10385 = vsel %vm10357, 1, 0
        %v10386 = vsel %vm10358, 1, 0
        %v10387 = vsel %vm10359, 1, 0
        %v10388 = vsel %vm10360, 1, 0
        %v10389 = vsel %vm10361, 1, 0
        %v10390 = vsel %vm10362, 1, 0
        %v10391 = vsel %vm10363, 1, 0
        %vm10392 = vcmp.eq.s32.totalorder %v10364, 1
        %vm10393 = vcmp.eq.s32.totalorder %v10365, 1
        %vm10394 = vcmp.eq.s32.totalorder %v10366, 1
        %vm10395 = vcmp.eq.s32.totalorder %v10367, 1
        %vm10396 = vcmp.eq.s32.totalorder %v10368, 1
        %vm10397 = vcmp.eq.s32.totalorder %v10369, 1
        %vm10398 = vcmp.eq.s32.totalorder %v10370, 1
        %vm10399 = vcmp.eq.s32.totalorder %v10371, 1
        %vm10400 = vcmp.eq.s32.totalorder %v10372, 1
        %vm10401 = vcmp.eq.s32.totalorder %v10373, 1
        %vm10402 = vcmp.eq.s32.totalorder %v10374, 1
        %vm10403 = vcmp.eq.s32.totalorder %v10375, 1
        %vm10404 = vcmp.eq.s32.totalorder %v10376, 1
        %vm10405 = vcmp.eq.s32.totalorder %v10377, 1
        %vm10406 = vcmp.eq.s32.totalorder %v10378, 1
        %vm10407 = vcmp.eq.s32.totalorder %v10379, 1
        %vm10408 = vcmp.eq.s32.totalorder %v10380, 1
        %vm10409 = vcmp.eq.s32.totalorder %v10381, 1
        %vm10410 = vcmp.eq.s32.totalorder %v10382, 1
        %vm10411 = vcmp.eq.s32.totalorder %v10383, 1
        %vm10412 = vcmp.eq.s32.totalorder %v10384, 1
        %vm10413 = vcmp.eq.s32.totalorder %v10385, 1
        %vm10414 = vcmp.eq.s32.totalorder %v10386, 1
        %vm10415 = vcmp.eq.s32.totalorder %v10387, 1
        %vm10416 = vcmp.eq.s32.totalorder %v10388, 1
        %vm10417 = vcmp.eq.s32.totalorder %v10389, 1
        %vm10418 = vcmp.eq.s32.totalorder %v10390, 1
        %vm10419 = vcmp.eq.s32.totalorder %v10391, 1
        %v10420 = vsel %vm10392, %v9914, 0.0
        %v10421 = vsel %vm10393, %v9915, 0.0
        %v10422 = vsel %vm10394, %v9916, 0.0
        %v10423 = vsel %vm10395, %v9917, 0.0
        %v10424 = vsel %vm10396, %v9918, 0.0
        %v10425 = vsel %vm10397, %v9919, 0.0
        %v10426 = vsel %vm10398, %v9920, 0.0
        %v10427 = vsel %vm10399, %v9921, 0.0
        %v10428 = vsel %vm10400, %v9922, 0.0
        %v10429 = vsel %vm10401, %v9923, 0.0
        %v10430 = vsel %vm10402, %v9924, 0.0
        %v10431 = vsel %vm10403, %v9925, 0.0
        %v10432 = vsel %vm10404, %v9926, 0.0
        %v10433 = vsel %vm10405, %v9927, 0.0
        %v10434 = vsel %vm10406, %v9928, 0.0
        %v10435 = vsel %vm10407, %v9929, 0.0
        %v10436 = vsel %vm10408, %v9930, 0.0
        %v10437 = vsel %vm10409, %v9931, 0.0
        %v10438 = vsel %vm10410, %v9932, 0.0
        %v10439 = vsel %vm10411, %v9933, 0.0
        %v10440 = vsel %vm10412, %v9934, 0.0
        %v10441 = vsel %vm10413, %v9935, 0.0
        %v10442 = vsel %vm10414, %v9936, 0.0
        %v10443 = vsel %vm10415, %v9937, 0.0
        %v10444 = vsel %vm10416, %v9938, 0.0
        %v10445 = vsel %vm10417, %v9939, 0.0
        %v10446 = vsel %vm10418, %v9940, 0.0
        %v10447 = vsel %vm10419, %v9941, 0.0
        %v10448 = vsel %vm5904, %v10420, 0.0
        %v10449 = vsel %vm5904, %v10421, 0.0
        %v10450 = vadd.f32 %v10448, %v10449
        %v10451 = vsel %vm5904, %v10422, 0.0
        %v10452 = vadd.f32 %v10450, %v10451
        %v10453 = vsel %vm5904, %v10423, 0.0
        %v10454 = vadd.f32 %v10452, %v10453
        %v10455 = vsel %vm5904, %v10424, 0.0
        %v10456 = vadd.f32 %v10454, %v10455
        %v10457 = vsel %vm5904, %v10425, 0.0
        %v10458 = vadd.f32 %v10456, %v10457
        %v10459 = vsel %vm5904, %v10426, 0.0
        %v10460 = vadd.f32 %v10458, %v10459
        %v10461 = vsel %vm5904, %v10427, 0.0
        %v10462 = vadd.f32 %v10460, %v10461
        %v10463 = vsel %vm5904, %v10428, 0.0
        %v10464 = vadd.f32 %v10462, %v10463
        %v10465 = vsel %vm5904, %v10429, 0.0
        %v10466 = vadd.f32 %v10464, %v10465
        %v10467 = vsel %vm5904, %v10430, 0.0
        %v10468 = vadd.f32 %v10466, %v10467
        %v10469 = vsel %vm5904, %v10431, 0.0
        %v10470 = vadd.f32 %v10468, %v10469
        %v10471 = vsel %vm5904, %v10432, 0.0
        %v10472 = vadd.f32 %v10470, %v10471
        %v10473 = vsel %vm5904, %v10433, 0.0
        %v10474 = vadd.f32 %v10472, %v10473
        %v10475 = vsel %vm5904, %v10434, 0.0
        %v10476 = vadd.f32 %v10474, %v10475
        %v10477 = vsel %vm5904, %v10435, 0.0
        %v10478 = vadd.f32 %v10476, %v10477
        %v10479 = vsel %vm5904, %v10436, 0.0
        %v10480 = vadd.f32 %v10478, %v10479
        %v10481 = vsel %vm5904, %v10437, 0.0
        %v10482 = vadd.f32 %v10480, %v10481
        %v10483 = vsel %vm5904, %v10438, 0.0
        %v10484 = vadd.f32 %v10482, %v10483
        %v10485 = vsel %vm5904, %v10439, 0.0
        %v10486 = vadd.f32 %v10484, %v10485
        %v10487 = vsel %vm5904, %v10440, 0.0
        %v10488 = vadd.f32 %v10486, %v10487
        %v10489 = vsel %vm5904, %v10441, 0.0
        %v10490 = vadd.f32 %v10488, %v10489
        %v10491 = vsel %vm5904, %v10442, 0.0
        %v10492 = vadd.f32 %v10490, %v10491
        %v10493 = vsel %vm5904, %v10443, 0.0
        %v10494 = vadd.f32 %v10492, %v10493
        %v10495 = vsel %vm5904, %v10444, 0.0
        %v10496 = vadd.f32 %v10494, %v10495
        %v10497 = vsel %vm5904, %v10445, 0.0
        %v10498 = vadd.f32 %v10496, %v10497
        %v10499 = vsel %vm5904, %v10446, 0.0
        %v10500 = vadd.f32 %v10498, %v10499
        %v10501 = vsel %vm5904, %v10447, 0.0
        %v10502 = vadd.f32 %v10500, %v10501
        %v10503 = vrot.slane %v10502, 4
        %v10504 = vadd.f32 %v10502, %v10503
        %v10505 = vrot.slane %v10504, 2
        %v10506 = vadd.f32 %v10504, %v10505
        %v10507 = vrot.slane %v10506, 1
        %v10508 = vadd.f32 %v10506, %v10507
        %v10509 = vmul.f32 %v10508, 0.0051020407
        %v10510 = vsub.f32 %v9914, %v10509
        %v10511 = vsub.f32 %v9915, %v10509
        %v10512 = vsub.f32 %v9916, %v10509
        %v10513 = vsub.f32 %v9917, %v10509
        %v10514 = vsub.f32 %v9918, %v10509
        %v10515 = vsub.f32 %v9919, %v10509
        %v10516 = vsub.f32 %v9920, %v10509
        %v10517 = vsub.f32 %v9921, %v10509
        %v10518 = vsub.f32 %v9922, %v10509
        %v10519 = vsub.f32 %v9923, %v10509
        %v10520 = vsub.f32 %v9924, %v10509
        %v10521 = vsub.f32 %v9925, %v10509
        %v10522 = vsub.f32 %v9926, %v10509
        %v10523 = vsub.f32 %v9927, %v10509
        %v10524 = vsub.f32 %v9928, %v10509
        %v10525 = vsub.f32 %v9929, %v10509
        %v10526 = vsub.f32 %v9930, %v10509
        %v10527 = vsub.f32 %v9931, %v10509
        %v10528 = vsub.f32 %v9932, %v10509
        %v10529 = vsub.f32 %v9933, %v10509
        %v10530 = vsub.f32 %v9934, %v10509
        %v10531 = vsub.f32 %v9935, %v10509
        %v10532 = vsub.f32 %v9936, %v10509
        %v10533 = vsub.f32 %v9937, %v10509
        %v10534 = vsub.f32 %v9938, %v10509
        %v10535 = vsub.f32 %v9939, %v10509
        %v10536 = vsub.f32 %v9940, %v10509
        %v10537 = vsub.f32 %v9941, %v10509
        %v10538 = vsel %vm10392, %v10510, 0.0
        %v10539 = vsel %vm10393, %v10511, 0.0
        %v10540 = vsel %vm10394, %v10512, 0.0
        %v10541 = vsel %vm10395, %v10513, 0.0
        %v10542 = vsel %vm10396, %v10514, 0.0
        %v10543 = vsel %vm10397, %v10515, 0.0
        %v10544 = vsel %vm10398, %v10516, 0.0
        %v10545 = vsel %vm10399, %v10517, 0.0
        %v10546 = vsel %vm10400, %v10518, 0.0
        %v10547 = vsel %vm10401, %v10519, 0.0
        %v10548 = vsel %vm10402, %v10520, 0.0
        %v10549 = vsel %vm10403, %v10521, 0.0
        %v10550 = vsel %vm10404, %v10522, 0.0
        %v10551 = vsel %vm10405, %v10523, 0.0
        %v10552 = vsel %vm10406, %v10524, 0.0
        %v10553 = vsel %vm10407, %v10525, 0.0
        %v10554 = vsel %vm10408, %v10526, 0.0
        %v10555 = vsel %vm10409, %v10527, 0.0
        %v10556 = vsel %vm10410, %v10528, 0.0
        %v10557 = vsel %vm10411, %v10529, 0.0
        %v10558 = vsel %vm10412, %v10530, 0.0
        %v10559 = vsel %vm10413, %v10531, 0.0
        %v10560 = vsel %vm10414, %v10532, 0.0
        %v10561 = vsel %vm10415, %v10533, 0.0
        %v10562 = vsel %vm10416, %v10534, 0.0
        %v10563 = vsel %vm10417, %v10535, 0.0
        %v10564 = vsel %vm10418, %v10536, 0.0
        %v10565 = vsel %vm10419, %v10537, 0.0
        %10566 = vxpose.xlu0.b32.start [1/16] %v10538, 128
        %10567 = vxpose.xlu0.b32.cont [2/16] %v10539, 128
        %10568 = vxpose.xlu0.b32.cont [3/16] %v10540, 128
        %10569 = vxpose.xlu0.b32.cont [4/16] %v10541, 128
        %10570 = vxpose.xlu0.b32.cont [5/16] %v10542, 128
        %10571 = vxpose.xlu0.b32.cont [6/16] %v10543, 128
        %10572 = vxpose.xlu0.b32.cont [7/16] %v10544, 128
        %10573 = vxpose.xlu0.b32.cont [8/16] %v10545, 128
        %10574 = vxpose.xlu0.b32.cont [9/16] %v10546, 128
        %10575 = vxpose.xlu0.b32.cont [10/16] %v10547, 128
        %10576 = vxpose.xlu0.b32.cont [11/16] %v10548, 128
        %10577 = vxpose.xlu0.b32.cont [12/16] %v10549, 128
        %10578 = vxpose.xlu0.b32.cont [13/16] %v10550, 128
        %10579 = vxpose.xlu0.b32.cont [14/16] %v10551, 128
        %10580 = vxpose.xlu0.b32.cont [15/16] %v10552, 128
        %10581 = vxpose.xlu0.b32.end [16/16] %v10553, 128
        %v10582 = vpop.trf.xlu0
        %v10583 = vpop.trf.xlu0
        %v10584 = vpop.trf.xlu0
        %v10585 = vpop.trf.xlu0
        %v10586 = vpop.trf.xlu0
        %v10587 = vpop.trf.xlu0
        %v10588 = vpop.trf.xlu0
        %v10589 = vpop.trf.xlu0
        %v10590 = vpop.trf.xlu0
        %v10591 = vpop.trf.xlu0
        %v10592 = vpop.trf.xlu0
        %v10593 = vpop.trf.xlu0
        %v10594 = vpop.trf.xlu0
        %v10595 = vpop.trf.xlu0
        %v10596 = vpop.trf.xlu0
        %v10597 = vpop.trf.xlu0
        %10598 = vxpose.xlu0.b32.start [1/16] %v10554, 128
        %10599 = vxpose.xlu0.b32.cont [2/16] %v10555, 128
        %10600 = vxpose.xlu0.b32.cont [3/16] %v10556, 128
        %10601 = vxpose.xlu0.b32.cont [4/16] %v10557, 128
        %10602 = vxpose.xlu0.b32.cont [5/16] %v10558, 128
        %10603 = vxpose.xlu0.b32.cont [6/16] %v10559, 128
        %10604 = vxpose.xlu0.b32.cont [7/16] %v10560, 128
        %10605 = vxpose.xlu0.b32.cont [8/16] %v10561, 128
        %10606 = vxpose.xlu0.b32.cont [9/16] %v10562, 128
        %10607 = vxpose.xlu0.b32.cont [10/16] %v10563, 128
        %10608 = vxpose.xlu0.b32.cont [11/16] %v10564, 128
        %10609 = vxpose.xlu0.b32.cont [12/16] %v10565, 128
        %10610 = vxpose.xlu0.b32.cont [13/16] 0.0, 128
        %10611 = vxpose.xlu0.b32.cont [14/16] 0.0, 128
        %10612 = vxpose.xlu0.b32.cont [15/16] 0.0, 128
        %10613 = vxpose.xlu0.b32.end [16/16] 0.0, 128
        %v10614 = vpop.trf.xlu0
        %v10615 = vpop.trf.xlu0
        %v10616 = vpop.trf.xlu0
        %v10617 = vpop.trf.xlu0
        %v10618 = vpop.trf.xlu0
        %v10619 = vpop.trf.xlu0
        %v10620 = vpop.trf.xlu0
        %v10621 = vpop.trf.xlu0
        %v10622 = vpop.trf.xlu0
        %v10623 = vpop.trf.xlu0
        %v10624 = vpop.trf.xlu0
        %v10625 = vpop.trf.xlu0
        %v10626 = vpop.trf.xlu0
        %v10627 = vpop.trf.xlu0
        %v10628 = vpop.trf.xlu0
        %v10629 = vpop.trf.xlu0
        %v10630 = vpack.c.bf16 %v10583, %v10582
        %v10631 = vpack.c.bf16 %v10615, %v10614
        %v10632 = vpack.c.bf16 %v10585, %v10584
        %v10633 = vpack.c.bf16 %v10617, %v10616
        %v10634 = vpack.c.bf16 %v10539, %v10538
        %v10635 = vpack.c.bf16 %v10541, %v10540
        %v10636 = vpack.c.bf16 %v10543, %v10542
        %v10637 = vpack.c.bf16 %v10545, %v10544
        %v10638 = vpack.c.bf16 %v10547, %v10546
        %v10639 = vpack.c.bf16 %v10549, %v10548
        %v10640 = vpack.c.bf16 %v10551, %v10550
        %v10641 = vpack.c.bf16 %v10553, %v10552
        %v10642 = vpack.c.bf16 %v10555, %v10554
        %v10643 = vpack.c.bf16 %v10557, %v10556
        %v10644 = vpack.c.bf16 %v10559, %v10558
        %v10645 = vpack.c.bf16 %v10561, %v10560
        %v10646 = vpack.c.bf16 %v10563, %v10562
        %v10647 = vpack.c.bf16 %v10565, %v10564
        %v10649 = vsel %vm6408, %v10631, 0
        %v10652 = vsel %vm6408, %v10633, 0
        %10654 = vmatpush.bf16.msra.mxu0 %v10641
        %10655 = vmatpush.bf16.msra.mxu0 %v10640
        %10656 = vmatpush.bf16.msra.mxu0 %v10639
        %10657 = vmatpush.bf16.msra.mxu0 %v10638
        %10658 = vmatpush.bf16.msra.mxu0 %v10637
        %10659 = vmatpush.bf16.msra.mxu0 %v10636
        %10660 = vmatpush.bf16.msra.mxu0 %v10635
        %10661 = vmatpush.bf16.msra.mxu0 %v10634
        %10662 = vmatmul.bf16.gmra.mxu0 %v10630
        %v10663 = vpop.f32.mrf.mxu0
        %v10664 = vadd.f32 0.0, %v10663
        %v10665 = vpop.f32.mrf.mxu0
        %v10666 = vadd.f32 0.0, %v10665
        %10667 = vmatmul.bf16.gmra.mxu0 %v10632
        %v10668 = vpop.f32.mrf.mxu0
        %v10669 = vadd.f32 0.0, %v10668
        %v10670 = vpop.f32.mrf.mxu0
        %v10671 = vadd.f32 0.0, %v10670
        %10672 = vdwg.mxu0
        %10673 = vmatpush.bf16.msra.mxu0 0
        %10674 = vmatpush.bf16.msra.mxu0 0
        %10675 = vmatpush.bf16.msra.mxu0 %v10647
        %10676 = vmatpush.bf16.msra.mxu0 %v10646
        %10677 = vmatpush.bf16.msra.mxu0 %v10645
        %10678 = vmatpush.bf16.msra.mxu0 %v10644
        %10679 = vmatpush.bf16.msra.mxu0 %v10643
        %10680 = vmatpush.bf16.msra.mxu0 %v10642
        %10681 = vmatmul.bf16.gmra.mxu0 %v10649
        %v10682 = vpop.f32.mrf.mxu0
        %v10683 = vadd.f32 %v10664, %v10682
        %v10684 = vpop.f32.mrf.mxu0
        %v10685 = vadd.f32 %v10666, %v10684
        %10686 = vmatmul.bf16.gmra.mxu0 %v10652
        %v10687 = vpop.f32.mrf.mxu0
        %v10688 = vadd.f32 %v10669, %v10687
        %v10689 = vpop.f32.mrf.mxu0
        %v10690 = vadd.f32 %v10671, %v10689
        %10691 = vdwg.mxu0
        %v10692 = vmul.f32 %v10538, %v10538
        %v10693 = vmul.f32 %v10539, %v10539
        %v10694 = vmul.f32 %v10540, %v10540
        %v10695 = vmul.f32 %v10541, %v10541
        %v10696 = vmul.f32 %v10542, %v10542
        %v10697 = vmul.f32 %v10543, %v10543
        %v10698 = vmul.f32 %v10544, %v10544
        %v10699 = vmul.f32 %v10545, %v10545
        %v10700 = vmul.f32 %v10546, %v10546
        %v10701 = vmul.f32 %v10547, %v10547
        %v10702 = vmul.f32 %v10548, %v10548
        %v10703 = vmul.f32 %v10549, %v10549
        %v10704 = vmul.f32 %v10550, %v10550
        %v10705 = vmul.f32 %v10551, %v10551
        %v10706 = vmul.f32 %v10552, %v10552
        %v10707 = vmul.f32 %v10553, %v10553
        %v10708 = vmul.f32 %v10554, %v10554
        %v10709 = vmul.f32 %v10555, %v10555
        %v10710 = vmul.f32 %v10556, %v10556
        %v10711 = vmul.f32 %v10557, %v10557
        %v10712 = vmul.f32 %v10558, %v10558
        %v10713 = vmul.f32 %v10559, %v10559
        %v10714 = vmul.f32 %v10560, %v10560
        %v10715 = vmul.f32 %v10561, %v10561
        %v10716 = vmul.f32 %v10562, %v10562
        %v10717 = vmul.f32 %v10563, %v10563
        %v10718 = vmul.f32 %v10564, %v10564
        %v10719 = vmul.f32 %v10565, %v10565
        %v10720 = vsel %vm5904, %v10692, 0.0
        %v10721 = vsel %vm5904, %v10693, 0.0
        %v10722 = vadd.f32 %v10720, %v10721
        %v10723 = vsel %vm5904, %v10694, 0.0
        %v10724 = vadd.f32 %v10722, %v10723
        %v10725 = vsel %vm5904, %v10695, 0.0
        %v10726 = vadd.f32 %v10724, %v10725
        %v10727 = vsel %vm5904, %v10696, 0.0
        %v10728 = vadd.f32 %v10726, %v10727
        %v10729 = vsel %vm5904, %v10697, 0.0
        %v10730 = vadd.f32 %v10728, %v10729
        %v10731 = vsel %vm5904, %v10698, 0.0
        %v10732 = vadd.f32 %v10730, %v10731
        %v10733 = vsel %vm5904, %v10699, 0.0
        %v10734 = vadd.f32 %v10732, %v10733
        %v10735 = vsel %vm5904, %v10700, 0.0
        %v10736 = vadd.f32 %v10734, %v10735
        %v10737 = vsel %vm5904, %v10701, 0.0
        %v10738 = vadd.f32 %v10736, %v10737
        %v10739 = vsel %vm5904, %v10702, 0.0
        %v10740 = vadd.f32 %v10738, %v10739
        %v10741 = vsel %vm5904, %v10703, 0.0
        %v10742 = vadd.f32 %v10740, %v10741
        %v10743 = vsel %vm5904, %v10704, 0.0
        %v10744 = vadd.f32 %v10742, %v10743
        %v10745 = vsel %vm5904, %v10705, 0.0
        %v10746 = vadd.f32 %v10744, %v10745
        %v10747 = vsel %vm5904, %v10706, 0.0
        %v10748 = vadd.f32 %v10746, %v10747
        %v10749 = vsel %vm5904, %v10707, 0.0
        %v10750 = vadd.f32 %v10748, %v10749
        %v10751 = vsel %vm5904, %v10708, 0.0
        %v10752 = vadd.f32 %v10750, %v10751
        %v10753 = vsel %vm5904, %v10709, 0.0
        %v10754 = vadd.f32 %v10752, %v10753
        %v10755 = vsel %vm5904, %v10710, 0.0
        %v10756 = vadd.f32 %v10754, %v10755
        %v10757 = vsel %vm5904, %v10711, 0.0
        %v10758 = vadd.f32 %v10756, %v10757
        %v10759 = vsel %vm5904, %v10712, 0.0
        %v10760 = vadd.f32 %v10758, %v10759
        %v10761 = vsel %vm5904, %v10713, 0.0
        %v10762 = vadd.f32 %v10760, %v10761
        %v10763 = vsel %vm5904, %v10714, 0.0
        %v10764 = vadd.f32 %v10762, %v10763
        %v10765 = vsel %vm5904, %v10715, 0.0
        %v10766 = vadd.f32 %v10764, %v10765
        %v10767 = vsel %vm5904, %v10716, 0.0
        %v10768 = vadd.f32 %v10766, %v10767
        %v10769 = vsel %vm5904, %v10717, 0.0
        %v10770 = vadd.f32 %v10768, %v10769
        %v10771 = vsel %vm5904, %v10718, 0.0
        %v10772 = vadd.f32 %v10770, %v10771
        %v10773 = vsel %vm5904, %v10719, 0.0
        %v10774 = vadd.f32 %v10772, %v10773
        %v10775 = vrot.slane %v10774, 4
        %v10776 = vadd.f32 %v10774, %v10775
        %v10777 = vrot.slane %v10776, 2
        %v10778 = vadd.f32 %v10776, %v10777
        %v10779 = vrot.slane %v10778, 1
        %v10780 = vadd.f32 %v10778, %v10779
        %v10781 = vadd.f32 %v10780, 1e-08
        %v10782 = vrsqrt.pop %v10781
        %v10783 = vmul.f32 %v10782, %v10781
        %v10784 = vmul.f32 %v10783, %v10782
        %v10785 = vmul.f32 0.5, %v10784
        %v10786 = vsub.f32 1.5, %v10785
        %v10787 = vmul.f32 %v10782, %v10786
        %vm10788 = vweird.f32 %v10781
        %vm10789 = vweird.f32 %v10782
        %vm10790 = vmor %vm10788, %vm10789
        %v10791 = vsel %vm10790, %v10782, %v10787
        %v10792 = vmul.f32 %v10683, %v10791
        %v10793 = vmul.f32 %v10685, %v10791
        %v10794 = vmul.f32 %v10688, %v10791
        %v10795 = vmul.f32 %v10690, %v10791
        %10796 = vxpose.xlu0.b32.start [1/16] %v10792, 128
        %10797 = vxpose.xlu0.b32.cont [2/16] %v10793, 128
        %10798 = vxpose.xlu0.b32.cont [3/16] %v10794, 128
        %10799 = vxpose.xlu0.b32.cont [4/16] %v10795, 128
        %10800 = vxpose.xlu0.b32.cont [5/16] 0.0, 128
        %10801 = vxpose.xlu0.b32.cont [6/16] 0.0, 128
        %10802 = vxpose.xlu0.b32.cont [7/16] 0.0, 128
        %10803 = vxpose.xlu0.b32.cont [8/16] 0.0, 128
        %10804 = vxpose.xlu0.b32.cont [9/16] 0.0, 128
        %10805 = vxpose.xlu0.b32.cont [10/16] 0.0, 128
        %10806 = vxpose.xlu0.b32.cont [11/16] 0.0, 128
        %10807 = vxpose.xlu0.b32.cont [12/16] 0.0, 128
        %10808 = vxpose.xlu0.b32.cont [13/16] 0.0, 128
        %10809 = vxpose.xlu0.b32.cont [14/16] 0.0, 128
        %10810 = vxpose.xlu0.b32.cont [15/16] 0.0, 128
        %10811 = vxpose.xlu0.b32.end [16/16] 0.0, 128
        %v10812 = vpop.trf.xlu0
        %v10813 = vpop.trf.xlu0
        %v10814 = vpop.trf.xlu0
        %v10815 = vpop.trf.xlu0
        %v10816 = vpop.trf.xlu0
        %v10817 = vpop.trf.xlu0
        %v10818 = vpop.trf.xlu0
        %v10819 = vpop.trf.xlu0
        %v10820 = vpop.trf.xlu0
        %v10821 = vpop.trf.xlu0
        %v10822 = vpop.trf.xlu0
        %v10823 = vpop.trf.xlu0
        %v10824 = vpop.trf.xlu0
        %v10825 = vpop.trf.xlu0
        %v10826 = vpop.trf.xlu0
        %v10827 = vpop.trf.xlu0
        %v10828 = vmul.f32 %v10812, %v10791
        %v10829 = vmul.f32 %v10813, %v10791
        %v10830 = vmul.f32 %v10814, %v10791
        %v10831 = vmul.f32 %v10815, %v10791
        %10832 = vst.msk [vmem:[%s387] sm:$0xff] %vm5904, %v10828
        %10833 = vst.msk [vmem:[%s387 + $0x8] sm:$0xff] %vm5904, %v10829
        %10834 = vst.msk [vmem:[%s387 + $0x10] sm:$0xff] %vm5904, %v10830
        %10835 = vst.msk [vmem:[%s387 + $0x18] sm:$0xff] %vm5904, %v10831
        %v10836 = vsel %vm5904, %v9914, -inf
        %v10837 = vsel %vm5904, %v9916, -inf
        %v10838 = vmax.f32 %v10836, %v10837
        %v10839 = vsel %vm5904, %v9915, -inf
        %v10840 = vsel %vm5904, %v9917, -inf
        %v10841 = vmax.f32 %v10839, %v10840
        %v10842 = vsel %vm5904, %v9918, -inf
        %v10843 = vsel %vm5904, %v9920, -inf
        %v10844 = vmax.f32 %v10842, %v10843
        %v10845 = vsel %vm5904, %v9919, -inf
        %v10846 = vsel %vm5904, %v9921, -inf
        %v10847 = vmax.f32 %v10845, %v10846
        %v10848 = vsel %vm5904, %v9922, -inf
        %v10849 = vsel %vm5904, %v9924, -inf
        %v10850 = vmax.f32 %v10848, %v10849
        %v10851 = vsel %vm5904, %v9923, -inf
        %v10852 = vsel %vm5904, %v9925, -inf
        %v10853 = vmax.f32 %v10851, %v10852
        %v10854 = vsel %vm5904, %v9926, -inf
        %v10855 = vsel %vm5904, %v9928, -inf
        %v10856 = vmax.f32 %v10854, %v10855
        %v10857 = vsel %vm5904, %v9927, -inf
        %v10858 = vsel %vm5904, %v9929, -inf
        %v10859 = vmax.f32 %v10857, %v10858
        %v10860 = vsel %vm5904, %v9930, -inf
        %v10861 = vsel %vm5904, %v9932, -inf
        %v10862 = vmax.f32 %v10860, %v10861
        %v10863 = vsel %vm5904, %v9931, -inf
        %v10864 = vsel %vm5904, %v9933, -inf
        %v10865 = vmax.f32 %v10863, %v10864
        %v10866 = vsel %vm5904, %v9934, -inf
        %v10867 = vsel %vm5904, %v9936, -inf
        %v10868 = vmax.f32 %v10866, %v10867
        %v10869 = vsel %vm5904, %v9935, -inf
        %v10870 = vsel %vm5904, %v9937, -inf
        %v10871 = vmax.f32 %v10869, %v10870
        %v10872 = vsel %vm5904, %v9938, -inf
        %v10873 = vsel %vm5904, %v9940, -inf
        %v10874 = vmax.f32 %v10872, %v10873
        %v10875 = vsel %vm5904, %v9939, -inf
        %v10876 = vsel %vm5904, %v9941, -inf
        %v10877 = vmax.f32 %v10875, %v10876
        %10878 = vst.msk [vmem:[#allocation3] sm:$0xff] %vm5904, %v10838
        %10879 = vst.msk [vmem:[#allocation3 + $0x8] sm:$0xff] %vm5904, %v10841
        %10880 = vst.msk [vmem:[#allocation3 + $0x10] sm:$0xff] %vm5904, %v10844
        %10881 = vst.msk [vmem:[#allocation3 + $0x18] sm:$0xff] %vm5904, %v10847
        %10882 = vst.msk [vmem:[#allocation3 + $0x20] sm:$0xff] %vm5904, %v10850
        %10883 = vst.msk [vmem:[#allocation3 + $0x28] sm:$0xff] %vm5904, %v10853
        %10884 = vst.msk [vmem:[#allocation3 + $0x30] sm:$0xff] %vm5904, %v10856
        %10885 = vst.msk [vmem:[#allocation3 + $0x38] sm:$0xff] %vm5904, %v10859
        %10886 = vst.msk [vmem:[#allocation3 + $0x40] sm:$0xff] %vm5904, %v10862
        %10887 = vst.msk [vmem:[#allocation3 + $0x48] sm:$0xff] %vm5904, %v10865
        %10888 = vst.msk [vmem:[#allocation3 + $0x50] sm:$0xff] %vm5904, %v10868
        %10889 = vst.msk [vmem:[#allocation3 + $0x58] sm:$0xff] %vm5904, %v10871
        %10890 = vst.msk [vmem:[#allocation3 + $0x60] sm:$0xff] %vm5904, %v10874
        %10891 = vst.msk [vmem:[#allocation3 + $0x68] sm:$0xff] %vm5904, %v10877
        %v10892 = vld [vmem:[#allocation3] ss:$2 sm:$0xff]
        %s10893 = scalar_lea.vmem [#allocation3], 16
        %v10894 = vld [vmem:[%s10893] ss:$2 sm:$0xff]
        %s10895 = scalar_lea.vmem [#allocation3], 32
        %v10896 = vld [vmem:[%s10895] ss:$2 sm:$0xff]
        %s10897 = scalar_lea.vmem [#allocation3], 48
        %v10898 = vld [vmem:[%s10897] ss:$2 sm:$0xff]
        %s10899 = scalar_lea.vmem [#allocation3], 64
        %v10900 = vld [vmem:[%s10899] ss:$2 sm:$0xff]
        %s10901 = scalar_lea.vmem [#allocation3], 80
        %v10902 = vld [vmem:[%s10901] ss:$2 sm:$0xff]
        %s10903 = scalar_lea.vmem [#allocation3], 96
        %v10904 = vld [vmem:[%s10903] ss:$2 sm:$0xff]
        %s10905 = scalar_lea.vmem [#allocation3], 1
        %v10906 = vld [vmem:[%s10905] ss:$2 sm:$0xff]
        %s10907 = scalar_lea.vmem [#allocation3], 17
        %v10908 = vld [vmem:[%s10907] ss:$2 sm:$0xff]
        %s10909 = scalar_lea.vmem [#allocation3], 33
        %v10910 = vld [vmem:[%s10909] ss:$2 sm:$0xff]
        %s10911 = scalar_lea.vmem [#allocation3], 49
        %v10912 = vld [vmem:[%s10911] ss:$2 sm:$0xff]
        %s10913 = scalar_lea.vmem [#allocation3], 65
        %v10914 = vld [vmem:[%s10913] ss:$2 sm:$0xff]
        %s10915 = scalar_lea.vmem [#allocation3], 81
        %v10916 = vld [vmem:[%s10915] ss:$2 sm:$0xff]
        %s10917 = scalar_lea.vmem [#allocation3], 97
        %v10918 = vld [vmem:[%s10917] ss:$2 sm:$0xff]
        %v10919 = vmax.f32 %v10892, %v10906
        %v10920 = vmax.f32 %v10894, %v10908
        %v10921 = vmax.f32 %v10896, %v10910
        %v10922 = vmax.f32 %v10898, %v10912
        %v10923 = vmax.f32 %v10900, %v10914
        %v10924 = vmax.f32 %v10902, %v10916
        %v10925 = vmax.f32 %v10904, %v10918
        %v10926 = vpack.c.bf16 %v10919, %v10919
        %v10927 = vpack.c.bf16 %v10920, %v10920
        %v10928 = vpack.c.bf16 %v10921, %v10921
        %v10929 = vpack.c.bf16 %v10922, %v10922
        %v10930 = vpack.c.bf16 %v10923, %v10923
        %v10931 = vpack.c.bf16 %v10924, %v10924
        %v10932 = vpack.c.bf16 %v10925, %v10925
        %vm10933 = vcmask 257024
        %vm10934 = vsmask.f32 3328
        %vm10935 = vmand %vm10933, %vm10934
        %v10936 = vld [vmem:[%s409] sm:$0xf]
        %v10937 = vsel %vm10935, %v10926, %v10936
        %10938 = vst [vmem:[%s409] sm:$0xf] %v10937
        %v10939 = vld [vmem:[%s409 + $0x4] sm:$0xf]
        %v10940 = vsel %vm10935, %v10927, %v10939
        %10941 = vst [vmem:[%s409 + $0x4] sm:$0xf] %v10940
        %v10942 = vld [vmem:[%s409 + $0x8] sm:$0xf]
        %v10943 = vsel %vm10935, %v10928, %v10942
        %10944 = vst [vmem:[%s409 + $0x8] sm:$0xf] %v10943
        %v10945 = vld [vmem:[%s409 + $0xc] sm:$0xf]
        %v10946 = vsel %vm10935, %v10929, %v10945
        %10947 = vst [vmem:[%s409 + $0xc] sm:$0xf] %v10946
        %v10948 = vld [vmem:[%s409 + $0x10] sm:$0xf]
        %v10949 = vsel %vm10935, %v10930, %v10948
        %10950 = vst [vmem:[%s409 + $0x10] sm:$0xf] %v10949
        %v10951 = vld [vmem:[%s409 + $0x14] sm:$0xf]
        %v10952 = vsel %vm10935, %v10931, %v10951
        %10953 = vst [vmem:[%s409 + $0x14] sm:$0xf] %v10952
        %v10954 = vld [vmem:[%s409 + $0x18] sm:$0xf]
        %v10955 = vsel %vm10935, %v10932, %v10954
        %10956 = vst [vmem:[%s409 + $0x18] sm:$0xf] %v10955
        %p10957 = scmp.lt.s32.totalorder %s26, 1
        %s10958 = scalar_select %p10957, %s26, 1
        %s10959 = smul.addr %s10958, 28
        %s10960 = smul.addr %s10959, 8
        %s10961 = scalar_lea.vmem %s9, %s10960
        %s10962 = sand.u32 %s254, 1
        %s10963 = scalar_lea.sflag [#allocation5], %s10962
        %s10964 = sand.u32 %s254, 1
        %s10965 = smul.addr %s10964, 32
        %s10966 = scalar_lea.vmem [#allocation4], %s10965
        %p10967 = scmp.lt.s32.totalorder %s26, 1
        %s10968 = scalar_select %p10967, %s26, 1
        %s10969 = smul.addr %s10968, 7
        %s10970 = smul.addr %s10969, 4
        %s10971 = scalar_lea.vmem %s11, %s10970
        // Predicated region
        $region57: #{vgg_forward.2} parent=55 // pred_check
          %p10972 = pneg %p238
        $region58: #{vgg_forward.2} parent=55 // pred_check_branch
          %10974 = sbr.rel (%p10972) target = $region60
        $region59: #{vgg_forward.2} parent=55 // pred_region
          _
        $region60: #{vgg_forward.2} parent=55 // pred_fallthru
          _
        // Predicated region
        $region61: #{vgg_forward.2} parent=55 // pred_check
          %p10975 = pneg %p264
        $region62: #{vgg_forward.2} parent=55 // pred_check_branch
          %10977 = sbr.rel (%p10975) target = $region64
        $region63: #{vgg_forward.2} parent=55 // pred_region
          %10979 = vsyncadd %s10963, 0
          %s10980 = smul.addr %s26, 4
          %s10981 = smul.addr %s10980, 8
          %s10982 = scalar_lea.hbm %s10, %s10981
          %s10983 = sshll.u32 %s10966, 4
          %s10984 = int_to_ptr.vmem [resolvable:$true] %s10983
          %s10985 = sshll.u32 %s10982, 4
          %s10986 = int_to_ptr.hbm [resolvable:$true] %s10985
          %10991 = dma.vmem_to_hbm [thread:$0]  %s10984, 512, %s10986, %s10963, 128, 128, 8
        $region64: #{vgg_forward.2} parent=55 // pred_fallthru
          _
        // Predicated region
        $region65: #{vgg_forward.2} parent=55 // pred_check
          %p10992 = pneg %p290
        $region66: #{vgg_forward.2} parent=55 // pred_check_branch
          %10994 = sbr.rel (%p10992) target = $region68
        $region67: #{vgg_forward.2} parent=55 // pred_region
          _
        $region68: #{vgg_forward.2} parent=55 // pred_fallthru
          _
      $region56: #{vgg_forward.2} parent=5 // pred_fallthru
        _
      %p10995 = scmp.le.s32.totalorder 2, %s21
      // Predicated region
      $region69: #{vgg_forward.2} parent=5 // pred_check
        %p10996 = pneg %p10995
      $region70: #{vgg_forward.2} parent=5 // pred_check_branch
        %10998 = sbr.rel (%p10996) target = $region72
      $region71: #{vgg_forward.2} parent=5 // pred_region
        %s10999 = ssub.s32 %s21, 2
        // Predicated region
        $region73: #{vgg_forward.2} parent=71 // pred_check
          %p11000 = pneg %p244
        $region74: #{vgg_forward.2} parent=71 // pred_check_branch
          %11002 = sbr.rel (%p11000) target = $region76
        $region75: #{vgg_forward.2} parent=71 // pred_region
          %p11003 = scmp.lt.s32.totalorder %s27, 1
          %s11004 = scalar_select %p11003, %s27, 1
          %s11005 = smul.addr %s11004, 28
          %s11006 = smul.addr %s11005, 8
          %s11007 = scalar_lea.vmem %s9, %s11006
        $region76: #{vgg_forward.2} parent=71 // pred_fallthru
          _
        // Predicated region
        $region77: #{vgg_forward.2} parent=71 // pred_check
          %p11008 = pneg %p270
        $region78: #{vgg_forward.2} parent=71 // pred_check_branch
          %11010 = sbr.rel (%p11008) target = $region80
        $region79: #{vgg_forward.2} parent=71 // pred_region
          %s11011 = sand.u32 %s255, 1
          %s11012 = scalar_lea.sflag [#allocation5], %s11011
          %s11013 = sand.u32 %s255, 1
          %s11014 = smul.addr %s11013, 32
          %s11015 = scalar_lea.vmem [#allocation4], %s11014
          %11017 = dma.done %s11012, 512
        $region80: #{vgg_forward.2} parent=71 // pred_fallthru
          _
        // Predicated region
        $region81: #{vgg_forward.2} parent=71 // pred_check
          %p11018 = pneg %p296
        $region82: #{vgg_forward.2} parent=71 // pred_check_branch
          %11020 = sbr.rel (%p11018) target = $region84
        $region83: #{vgg_forward.2} parent=71 // pred_region
          %p11021 = scmp.lt.s32.totalorder %s27, 1
          %s11022 = scalar_select %p11021, %s27, 1
          %s11023 = smul.addr %s11022, 7
          %s11024 = smul.addr %s11023, 4
          %s11025 = scalar_lea.vmem %s11, %s11024
        $region84: #{vgg_forward.2} parent=71 // pred_fallthru
          _
      $region72: #{vgg_forward.2} parent=5 // pred_fallthru
        _
    $region6: #{vgg_forward.2} parent=1 // loop_footer
      %s25 = sadd.s32 1, %s21
    $region7: #{vgg_forward.2} parent=1 // loop_footer_branch
      %20 = sbr.rel target = $region3
    $region8: #{vgg_forward.2} parent=1 // loop_exit
      _
    %11026 = vsyncpa [#allocation5], 1
    %s11027 = scalar_lea.sflag [#allocation5], 1
    %11028 = vsyncpa %s11027, 1

</llo_original>
